<compile_context>
chip_gen: v6e
topology: v6e:2x2x1
jax: 0.10.0
libtpu: 0.0.40
codegen_flags: <defaults>
</compile_context>

<pallas_src>
import functools

import numpy as np
import jax
import jax.numpy as jnp
from jax import lax
from jax.experimental import pallas as pl
from jax.experimental.pallas import tpu as pltpu

P = 3        # spatial halo = max dilation
PW = 8       # in-kernel column pad (>= P, multiple of 8 -> aligned interior copies)
EPS = 1e-5   # BatchNorm eps


# ----------------------------- sizing helpers ------------------------------ #

@functools.lru_cache(maxsize=None)
def _vmem_limit():
    """Generation-aware VMEM budget: ~0.8*capacity, capped at 100 MiB (v5e/v6e ~100, v7x ~51)."""
    try:
        cap = int(pltpu.get_tpu_info().vmem_capacity_bytes)
    except Exception:
        cap = 64 * 2 ** 20
    return int(min(100 * 2 ** 20, max(32 * 2 ** 20, int(0.8 * cap))))


def _pick_rows(total, bytes_per_row, budget, max_rows=4096):
    """Largest multiple-of-8 divisor of `total` whose per-step footprint fits `budget`."""
    cap = max(1, min(total, max_rows, budget // max(1, bytes_per_row)))
    for t in range(cap - cap % 8, 0, -8):
        if total % t == 0:
            return t
    # TODO(synk): if no multiple-of-8 divisor of `total` fits, fall back to one full block.
    return total


def _pick_th(H, W, Cp, budget):
    """Row-tile height for the inception kernel (divides H, VMEM-aware, >= halo)."""
    per_row = (2 * 2 * W * Cp            # double-buffered bf16 output rows
               + 2 * (W + 2 * PW) * Cp   # halo-padded bf16 scratch rows
               + 2 * 9 * W * Cp          # bf16 im2col slab rows
               + 2 * 4 * W * Cp)         # live f32 accumulator rows (with slack)
    cap = max(1, min(H, 64, budget // max(1, per_row)))
    th = 1
    for t in range(cap, 0, -1):
        if H % t == 0:
            th = t
            break
    if th < P:            # neighbour-row halo reads need TH >= P (else use whole image)
        th = H
    return th


# ----------------------------- Pallas kernels ------------------------------ #

def _stem_kernel(x_ref, w_ref, b_ref, o_ref):
    # relu(x @ w + b) ; bnInp and bn1 are pre-folded into w/b in glue.
    y = jnp.dot(x_ref[...], w_ref[...], preferred_element_type=jnp.float32) + b_ref[...]
    o_ref[...] = jnp.maximum(y, 0.0).astype(o_ref.dtype)


def _inception_kernel(x_ref, w_ref, bsum_ref, s_ref, b_ref, o_ref, xp, col,
                      *, W, TH, Cp):
    # (conv_d1 + conv_d2 + conv_d3 + x) -> folded BN -> relu, for one (image, row-tile).
    # x_ref : (H, W, Cp)  bf16 full image (leading batch dim squeezed)
    # w_ref : (27*Cp, Cp) bf16, row blocks ordered (dilation, ky, kx, cin)
    # xp    : (TH+2P, W+2*PW, Cp) bf16 halo-padded tile scratch
    # col   : (TH, W, 9*Cp)       bf16 per-dilation im2col slab (reused 3x)
    rt = pl.program_id(1)
    nrt = pl.num_programs(1)
    h0 = pl.multiple_of(rt * TH, TH)

    # ---- halo-padded input tile: zero ONLY the halo bands ----
    zcols = jnp.zeros((TH + 2 * P, PW, Cp), dtype=xp.dtype)
    xp[:, 0:PW, :] = zcols
    xp[:, PW + W:PW + W + PW, :] = zcols

    x_tile = x_ref[pl.ds(h0, TH), :, :]                       # (TH, W, Cp) bf16
    xp[P:P + TH, PW:PW + W, :] = x_tile                       # aligned interior copy

    zrows = jnp.zeros((P, W, Cp), dtype=xp.dtype)

    @pl.when(rt == 0)
    def _():
        xp[0:P, PW:PW + W, :] = zrows

    @pl.when(rt > 0)
    def _():
        xp[0:P, PW:PW + W, :] = x_ref[pl.ds(h0 - P, P), :, :]

    @pl.when(rt == nrt - 1)
    def _():
        xp[P + TH:P + TH + P, PW:PW + W, :] = zrows

    @pl.when(rt < nrt - 1)
    def _():
        xp[P + TH:P + TH + P, PW:PW + W, :] = x_ref[pl.ds(h0 + TH, P), :, :]

    # ---- accumulator seeded with the residual + summed conv biases (f32) ----
    acc = x_tile.astype(jnp.float32).reshape(TH * W, Cp) + bsum_ref[...]

    # ---- three dilated 3x3 convs: per-dilation im2col slab + one K=9*Cp matmul ----
    for di, d in enumerate((1, 2, 3)):
        for ky in range(3):
            for kx in range(3):
                t = ky * 3 + kx
                dy = d * (ky - 1)
                dx = d * (kx - 1)
                # pure 3-D slice copy (lane-aligned dest, no merge-reshape per tap)
                col[:, :, t * Cp:(t + 1) * Cp] = xp[P + dy:P + dy + TH,
                                                    PW + dx:PW + dx + W, :]
        acc = acc + jnp.dot(col[...].reshape(TH * W, 9 * Cp),
                            w_ref[di * 9 * Cp:(di + 1) * 9 * Cp, :],
                            preferred_element_type=jnp.float32)

    # ---- folded BatchNorm + relu; emit bf16 for the next layer ----
    y = jnp.maximum(acc * s_ref[...] + b_ref[...], 0.0)
    o_ref[...] = y.reshape(TH, W, Cp).astype(o_ref.dtype)


def _head_kernel(x_ref, wo_ref, bo_ref, o_ref):
    # final 1x1 conv as one matmul, then log_softmax over the batch axis (torch dim=0).
    N, TS, Cp = x_ref.shape
    OUTP = wo_ref.shape[-1]
    xb = x_ref[...].reshape(N * TS, Cp)
    logits = (jnp.dot(xb, wo_ref[...], preferred_element_type=jnp.float32)
              + bo_ref[...])
    logits = logits.reshape(N, TS, OUTP)
    m = jnp.max(logits, axis=0, keepdims=True)
    lse = m + jnp.log(jnp.sum(jnp.exp(logits - m), axis=0, keepdims=True))
    o_ref[...] = logits - lse


# ----------------------------- pallas_call wrappers ------------------------ #

def stem(x2, w_eff, b_eff, *, TM, vmem_limit):
    M, Cin = x2.shape
    Cp = w_eff.shape[1]
    return pl.pallas_call(
        _stem_kernel,
        out_shape=jax.ShapeDtypeStruct((M, Cp), jnp.bfloat16),
        grid=(M // TM,),
        in_specs=[
            pl.BlockSpec((TM, Cin), lambda m: (m, 0)),
            pl.BlockSpec((Cin, Cp), lambda m: (0, 0)),
            pl.BlockSpec((1, Cp), lambda m: (0, 0)),
        ],
        out_specs=pl.BlockSpec((TM, Cp), lambda m: (m, 0)),
        compiler_params=pltpu.CompilerParams(
            dimension_semantics=("parallel",), vmem_limit_bytes=vmem_limit),
    )(x2, w_eff, b_eff)


def inception_layer(x, w_cat, bsum, s, b, *, TH, vmem_limit):
    N, H, W, Cp = x.shape
    kern = functools.partial(_inception_kernel, W=W, TH=TH, Cp=Cp)
    return pl.pallas_call(
        kern,
        out_shape=jax.ShapeDtypeStruct((N, H, W, Cp), jnp.bfloat16),
        grid=(N, H // TH),
        in_specs=[
            pl.BlockSpec((None, H, W, Cp), lambda n, r: (n, 0, 0, 0)),
            pl.BlockSpec((27 * Cp, Cp), lambda n, r: (0, 0)),
            pl.BlockSpec((1, Cp), lambda n, r: (0, 0)),
            pl.BlockSpec((1, Cp), lambda n, r: (0, 0)),
            pl.BlockSpec((1, Cp), lambda n, r: (0, 0)),
        ],
        out_specs=pl.BlockSpec((None, TH, W, Cp), lambda n, r: (n, r, 0, 0)),
        scratch_shapes=[
            pltpu.VMEM((TH + 2 * P, W + 2 * PW, Cp), jnp.bfloat16),
            pltpu.VMEM((TH, W, 9 * Cp), jnp.bfloat16),
        ],
        compiler_params=pltpu.CompilerParams(
            dimension_semantics=("parallel", "parallel"),
            vmem_limit_bytes=vmem_limit),
    )(x, w_cat, bsum, s, b)


def head(x3, wo_pad, bo_pad, *, TS, vmem_limit):
    N, S, Cp = x3.shape
    OUTP = wo_pad.shape[1]
    return pl.pallas_call(
        _head_kernel,
        out_shape=jax.ShapeDtypeStruct((N, S, OUTP), jnp.float32),
        grid=(S // TS,),
        in_specs=[
            pl.BlockSpec((N, TS, Cp), lambda t: (0, t, 0)),
            pl.BlockSpec((Cp, OUTP), lambda t: (0, 0)),
            pl.BlockSpec((1, OUTP), lambda t: (0, 0)),
        ],
        out_specs=pl.BlockSpec((N, TS, OUTP), lambda t: (0, t, 0)),
        compiler_params=pltpu.CompilerParams(
            dimension_semantics=("parallel",), vmem_limit_bytes=vmem_limit),
    )(x3, wo_pad, bo_pad)


# ----------------------------- full forward (glue) ------------------------- #

@jax.jit
def inception_forward(x_nchw, params):
    N, Cin, H, W = x_nchw.shape
    C = params["w_inp"].shape[0]
    OUT = params["w_out"].shape[0]
    Cp = ((C + 127) // 128) * 128
    OUTP = ((OUT + 127) // 128) * 128
    limit = _vmem_limit()

    # NCHW -> NHWC bf16 (halves stem DMA); fuse batch+spatial into the matmul M dim.
    x = jnp.transpose(x_nchw, (0, 2, 3, 1)).astype(jnp.bfloat16)
    x2 = x.reshape(N * H * W, Cin)

    # --- stem: bnInp and bn1 folded into the 1x1 conv weights/bias ---
    w1t = jnp.transpose(params["w_inp"][:, :, 0, 0])            # (Cin, C)
    s_in, b_in = params["bn_inp_scale"], params["bn_inp_bias"]
    s1, b1 = params["bn1_scale"], params["bn1_bias"]
    w_eff = (s_in[:, None] * w1t) * s1[None, :]                 # (Cin, C)
    b_eff = (b_in @ w1t + params["b_inp"]) * s1 + b1            # (C,)
    w_eff = jnp.zeros((Cin, Cp), jnp.float32).at[:, :C].set(w_eff).astype(jnp.bfloat16)
    b_eff = jnp.zeros((1, Cp), jnp.float32).at[0, :C].set(b_eff)

    TM = _pick_rows(N * H * W, 2 * (2 * Cin + 2 * Cp), limit // 2 - Cin * Cp * 2)
    y2 = stem(x2, w_eff, b_eff, TM=TM, vmem_limit=limit)        # (M, Cp) bf16
    xb = y2.reshape(N, H, W, Cp)

    # --- inception blocks (bf16 activations between layers) ---
    TH = _pick_th(H, W, Cp,
                  limit // 2 - (2 * H * W * Cp * 2 + 27 * Cp * Cp * 2))
    for blk in params["blocks"]:
        w_taps = []
        for d in (1, 2, 3):
            w = jnp.transpose(blk["w%d" % d], (2, 3, 1, 0))     # (3, 3, Cin, Cout)
            w = jnp.zeros((3, 3, Cp, Cp), jnp.float32).at[:, :, :C, :C].set(w)
            w_taps.append(w.reshape(9 * Cp, Cp))
        w_cat = jnp.concatenate(w_taps, axis=0).astype(jnp.bfloat16)   # (27*Cp, Cp)
        bsum = jnp.zeros((1, Cp), jnp.float32).at[0, :C].set(
            blk["b1"] + blk["b2"] + blk["b3"])
        s = jnp.zeros((1, Cp), jnp.float32).at[0, :C].set(blk["bn_scale"])
        b = jnp.zeros((1, Cp), jnp.float32).at[0, :C].set(blk["bn_bias"])
        xb = inception_layer(xb, w_cat, bsum, s, b, TH=TH, vmem_limit=limit)

    # --- head: 1x1 conv + log_softmax over batch (torch dim=0); lane-padded out ---
    wo = jnp.transpose(params["w_out"][:, :, 0, 0])             # (C, OUT)
    wo_pad = jnp.zeros((Cp, OUTP), jnp.float32).at[:C, :OUT].set(wo).astype(jnp.bfloat16)
    bo_pad = jnp.zeros((1, OUTP), jnp.float32).at[0, :OUT].set(params["b_out"])
    S = H * W
    TS = _pick_rows(S, N * (2 * 2 * Cp + 2 * 4 * OUTP), limit // 2 - Cp * OUTP * 2)
    logp = head(xb.reshape(N, S, Cp), wo_pad, bo_pad, TS=TS, vmem_limit=limit)
    logp = logp[:, :, :OUT].reshape(N, H, W, OUT)
    return jnp.transpose(logp, (0, 3, 1, 2))                    # NHWC -> NCHW


# ----------------------------- pure-JAX reference -------------------------- #

def _conv_nchw(x, w_oihw, b, pad, dil):
    y = lax.conv_general_dilated(
        x, w_oihw, window_strides=(1, 1),
        padding=((pad, pad), (pad, pad)), rhs_dilation=(dil, dil),
        dimension_numbers=("NCHW", "OIHW", "NCHW"),
        precision=lax.Precision.HIGHEST)
    return y + b[None, :, None, None]


def ref_forward(x, p):
    def bn(z, s, b):
        return z * s[None, :, None, None] + b[None, :, None, None]

    x = bn(x, p["bn_inp_scale"], p["bn_inp_bias"])
    x = jax.nn.relu(bn(_conv_nchw(x, p["w_inp"], p["b_inp"], 0, 1),
                       p["bn1_scale"], p["bn1_bias"]))
    for blk in p["blocks"]:
        o = (_conv_nchw(x, blk["w1"], blk["b1"], 1, 1)
             + _conv_nchw(x, blk["w2"], blk["b2"], 2, 2)
             + _conv_nchw(x, blk["w3"], blk["b3"], 3, 3) + x)
        x = jax.nn.relu(bn(o, blk["bn_scale"], blk["bn_bias"]))
    logits = _conv_nchw(x, p["w_out"], p["b_out"], 0, 1)
    return jax.nn.log_softmax(logits, axis=0)


# ----------------------------- parameter setup ----------------------------- #

def make_bn(key, c):
    k1, k2, k3, k4 = jax.random.split(key, 4)
    gamma = 1.0 + 0.1 * jax.random.normal(k1, (c,))
    beta = 0.1 * jax.random.normal(k2, (c,))
    mean = 0.1 * jax.random.normal(k3, (c,))
    var = jax.random.uniform(k4, (c,), minval=0.5, maxval=1.5)
    scale = gamma / jnp.sqrt(var + EPS)
    return scale.astype(jnp.float32), (beta - mean * scale).astype(jnp.float32)


def make_conv(key, cout, cin, k):
    k1, k2 = jax.random.split(key)
    bound = 1.0 / np.sqrt(cin * k * k)
    w = jax.random.uniform(k1, (cout, cin, k, k), minval=-bound, maxval=bound)
    b = jax.random.uniform(k2, (cout,), minval=-bound, maxval=bound)
    return w.astype(jnp.float32), b.astype(jnp.float32)


def make_params(key, in_ch, ch, n_inc, out_bins):
    keys = jax.random.split(key, 4 + n_inc)
    bn_inp_s, bn_inp_b = make_bn(keys[0], in_ch)
    w_inp, b_inp = make_conv(keys[1], ch, in_ch, 1)
    bn1_s, bn1_b = make_bn(keys[2], ch)
    blocks = []
    for i in range(n_inc):
        kk = jax.random.split(keys[3 + i], 4)
        w1, b1 = make_conv(kk[0], ch, ch, 3)
        w2, b2 = make_conv(kk[1], ch, ch, 3)
        w3, b3 = make_conv(kk[2], ch, ch, 3)
        bs, bb = make_bn(kk[3], ch)
        blocks.append(dict(w1=w1, b1=b1, w2=w2, b2=b2, w3=w3, b3=b3,
                           bn_scale=bs, bn_bias=bb))
    w_out, b_out = make_conv(keys[3 + n_inc], out_bins, ch, 1)
    return dict(bn_inp_scale=bn_inp_s, bn_inp_bias=bn_inp_b,
                w_inp=w_inp, b_inp=b_inp,
                bn1_scale=bn1_s, bn1_bias=bn1_b,
                blocks=blocks, w_out=w_out, b_out=b_out)


# ----------------------------- main ----------------------------------------- #

if __name__ == "__main__":
    # small shapes consistent with the module (defaults would be 569/128/16/32)
    INPUT_CHANNELS, CHANNELS, INCEPTIONS, OUTPUT_BINS = 16, 32, 2, 8
    N, H, W = 2, 8, 8

    key = jax.random.PRNGKey(0)
    kx, kp = jax.random.split(key)
    x = jax.random.normal(kx, (N, INPUT_CHANNELS, H, W), dtype=jnp.float32)  # NCHW
    params = make_params(kp, INPUT_CHANNELS, CHANNELS, INCEPTIONS, OUTPUT_BINS)

    out = inception_forward(x, params)
    out = jax.block_until_ready(out)
    assert out.shape == (N, OUTPUT_BINS, H, W)

    ref = jax.block_until_ready(ref_forward(x, params))
    # bf16 MXU inputs, bf16 inter-layer activations and folded-BN bf16 weights vs an
    # f32 HIGHEST-precision reference: tolerance loosened accordingly (structural bugs
    # would show up as O(1) errors).
    np.testing.assert_allclose(np.asarray(out), np.asarray(ref), atol=2e-1, rtol=2e-1)

    print("KERNEL_OK")
</pallas_src>

<mosaic_0001>
module attributes {stable_mosaic.version = 11 : i64} {
  func.func @_stem_kernel(%arg0: i32, %arg1: memref<128x16xbf16, #tpu.memory_space<vmem>>, %arg2: memref<16x128xbf16, #tpu.memory_space<vmem>>, %arg3: memref<1x128xf32, #tpu.memory_space<vmem>>, %arg4: memref<128x128xbf16, #tpu.memory_space<vmem>>) attributes {dimension_semantics = [#tpu.dimension_semantics<parallel>], iteration_bounds = array<i64: 1>, scalar_prefetch = 0 : i64, scratch_operands = 0 : i64, tpu.core_type = #tpu.core_type<tc>, window_params = [{transform_indices = @transform_0, window_bounds = array<i64: 128, 16>}, {pipeline_mode = #tpu.pipeline_mode<synchronous>, transform_indices = @transform_1, window_bounds = array<i64: 16, 128>}, {pipeline_mode = #tpu.pipeline_mode<synchronous>, transform_indices = @transform_2, window_bounds = array<i64: 1, 128>}, {transform_indices = @transform_3, window_bounds = array<i64: 128, 128>}]} {
    %c0 = arith.constant 0 : index
    %c0_0 = arith.constant 0 : index
    %0 = vector.load %arg1[%c0, %c0_0] : memref<128x16xbf16, #tpu.memory_space<vmem>>, vector<128x16xbf16>
    %c0_1 = arith.constant 0 : index
    %c0_2 = arith.constant 0 : index
    %1 = vector.load %arg2[%c0_1, %c0_2] : memref<16x128xbf16, #tpu.memory_space<vmem>>, vector<16x128xbf16>
    %cst = arith.constant dense<0.000000e+00> : vector<128x128xf32>
    %2 = tpu.matmul %0, %1, %cst {dimension_numbers = #tpu.dot_dimension_numbers<[1], [0], [0], [1], [0, 0, 1, 1], [], []>} : vector<128x16xbf16>, vector<16x128xbf16>, vector<128x128xf32> -> vector<128x128xf32>
    %c0_3 = arith.constant 0 : index
    %c0_4 = arith.constant 0 : index
    %3 = vector.load %arg3[%c0_3, %c0_4] : memref<1x128xf32, #tpu.memory_space<vmem>>, vector<1x128xf32>
    %4 = vector.broadcast %3 : vector<1x128xf32> to vector<128x128xf32>
    %5 = arith.addf %2, %4 : vector<128x128xf32>
    %cst_5 = arith.constant 0.000000e+00 : f32
    %6 = vector.broadcast %cst_5 : f32 to vector<128x128xf32>
    %7 = arith.maximumf %5, %6 : vector<128x128xf32>
    %8 = arith.truncf %7 : vector<128x128xf32> to vector<128x128xbf16>
    %c0_6 = arith.constant 0 : index
    %c0_7 = arith.constant 0 : index
    %9 = vector.load %arg4[%c0_6, %c0_7] : memref<128x128xbf16, #tpu.memory_space<vmem>>, vector<128x128xbf16>
    tpu.vector_store %arg4[%c0_6, %c0_7], %8 {strides = array<i32>} : memref<128x128xbf16, #tpu.memory_space<vmem>>, vector<128x128xbf16>,
    return
  }
  func.func @transform_0(%arg0: i32) -> (i32, i32) {
    %c0_i32 = arith.constant 0 : i32
    %c0_i32_0 = arith.constant 0 : i32
    return %arg0, %c0_i32 : i32, i32
  }
  func.func @transform_1(%arg0: i32) -> (i32, i32) {
    %c0_i32 = arith.constant 0 : i32
    %c0_i32_0 = arith.constant 0 : i32
    %c0_i32_1 = arith.constant 0 : i32
    return %c0_i32, %c0_i32_0 : i32, i32
  }
  func.func @transform_2(%arg0: i32) -> (i32, i32) {
    %c0_i32 = arith.constant 0 : i32
    %c0_i32_0 = arith.constant 0 : i32
    %c0_i32_1 = arith.constant 0 : i32
    return %c0_i32, %c0_i32_0 : i32, i32
  }
  func.func @transform_3(%arg0: i32) -> (i32, i32) {
    %c0_i32 = arith.constant 0 : i32
    %c0_i32_0 = arith.constant 0 : i32
    return %arg0, %c0_i32 : i32, i32
  }
}

module attributes {stable_mosaic.version = 11 : i64} {
  func.func @_inception_kernel(%arg0: i32, %arg1: i32, %arg2: memref<1x8x8x128xbf16, #tpu.memory_space<vmem>>, %arg3: memref<3456x128xbf16, #tpu.memory_space<vmem>>, %arg4: memref<1x128xf32, #tpu.memory_space<vmem>>, %arg5: memref<1x128xf32, #tpu.memory_space<vmem>>, %arg6: memref<1x128xf32, #tpu.memory_space<vmem>>, %arg7: memref<1x8x8x128xbf16, #tpu.memory_space<vmem>>, %arg8: memref<14x24x128xbf16, #tpu.memory_space<vmem>>, %arg9: memref<8x8x1152xbf16, #tpu.memory_space<vmem>>) attributes {dimension_semantics = [#tpu.dimension_semantics<parallel>, #tpu.dimension_semantics<parallel>], iteration_bounds = array<i64: 2, 1>, scalar_prefetch = 0 : i64, scratch_operands = 2 : i64, tpu.core_type = #tpu.core_type<tc>, window_params = [{transform_indices = @transform_0, window_bounds = array<i64: 1, 8, 8, 128>}, {pipeline_mode = #tpu.pipeline_mode<synchronous>, transform_indices = @transform_1, window_bounds = array<i64: 3456, 128>}, {pipeline_mode = #tpu.pipeline_mode<synchronous>, transform_indices = @transform_2, window_bounds = array<i64: 1, 128>}, {pipeline_mode = #tpu.pipeline_mode<synchronous>, transform_indices = @transform_3, window_bounds = array<i64: 1, 128>}, {pipeline_mode = #tpu.pipeline_mode<synchronous>, transform_indices = @transform_4, window_bounds = array<i64: 1, 128>}, {transform_indices = @transform_5, window_bounds = array<i64: 1, 8, 8, 128>}]} {
    %c8_i32 = arith.constant 8 : i32
    %0 = arith.muli %arg1, %c8_i32 : i32
    %1 = tpu.assume_multiple %0, 8 : i32
    %cst = arith.constant 0.000000e+00 : bf16
    %2 = vector.broadcast %cst : bf16 to vector<14x8x128xbf16>
    %c0 = arith.constant 0 : index
    %c0_0 = arith.constant 0 : index
    %c0_1 = arith.constant 0 : index
    %3 = vector.load %arg8[%c0, %c0_0, %c0_1] : memref<14x24x128xbf16, #tpu.memory_space<vmem>>, vector<14x8x128xbf16>
    tpu.vector_store %arg8[%c0, %c0_0, %c0_1], %2 {strides = array<i32>} : memref<14x24x128xbf16, #tpu.memory_space<vmem>>, vector<14x8x128xbf16>,
    %c0_2 = arith.constant 0 : index
    %c16 = arith.constant 16 : index
    %c0_3 = arith.constant 0 : index
    %4 = vector.load %arg8[%c0_2, %c16, %c0_3] : memref<14x24x128xbf16, #tpu.memory_space<vmem>>, vector<14x8x128xbf16>
    tpu.vector_store %arg8[%c0_2, %c16, %c0_3], %2 {strides = array<i32>} : memref<14x24x128xbf16, #tpu.memory_space<vmem>>, vector<14x8x128xbf16>,
    %c0_4 = arith.constant 0 : index
    %5 = arith.index_cast %1 : i32 to index
    %c0_5 = arith.constant 0 : index
    %c0_6 = arith.constant 0 : index
    %6 = vector.load %arg2[%c0_4, %5, %c0_5, %c0_6] : memref<1x8x8x128xbf16, #tpu.memory_space<vmem>>, vector<1x8x8x128xbf16>
    %7 = vector.shape_cast %6 : vector<1x8x8x128xbf16> to vector<8x8x128xbf16>
    %c3 = arith.constant 3 : index
    %c8 = arith.constant 8 : index
    %c0_7 = arith.constant 0 : index
    %8 = vector.load %arg8[%c3, %c8, %c0_7] : memref<14x24x128xbf16, #tpu.memory_space<vmem>>, vector<8x8x128xbf16>
    tpu.vector_store %arg8[%c3, %c8, %c0_7], %7 {strides = array<i32>} : memref<14x24x128xbf16, #tpu.memory_space<vmem>>, vector<8x8x128xbf16>,
    %cst_8 = arith.constant 0.000000e+00 : bf16
    %9 = vector.broadcast %cst_8 : bf16 to vector<3x8x128xbf16>
    %c0_i32 = arith.constant 0 : i32
    %10 = arith.cmpi eq, %arg1, %c0_i32 : i32
    %11 = arith.extui %10 : i1 to i32
    %c0_i32_9 = arith.constant 0 : i32
    %12 = arith.cmpi ne, %11, %c0_i32_9 : i32
    scf.if %12 {
      %c0_188 = arith.constant 0 : index
      %c8_189 = arith.constant 8 : index
      %c0_190 = arith.constant 0 : index
      %109 = vector.load %arg8[%c0_188, %c8_189, %c0_190] : memref<14x24x128xbf16, #tpu.memory_space<vmem>>, vector<3x8x128xbf16>
      tpu.vector_store %arg8[%c0_188, %c8_189, %c0_190], %9 {strides = array<i32>} : memref<14x24x128xbf16, #tpu.memory_space<vmem>>, vector<3x8x128xbf16>,
    } else {
    }
    %c0_i32_10 = arith.constant 0 : i32
    %13 = arith.cmpi sgt, %arg1, %c0_i32_10 : i32
    %14 = arith.extui %13 : i1 to i32
    %c0_i32_11 = arith.constant 0 : i32
    %15 = arith.cmpi ne, %14, %c0_i32_11 : i32
    scf.if %15 {
      %c3_i32 = arith.constant 3 : i32
      %109 = arith.subi %1, %c3_i32 : i32
      %c0_188 = arith.constant 0 : index
      %110 = arith.index_cast %109 : i32 to index
      %c0_189 = arith.constant 0 : index
      %c0_190 = arith.constant 0 : index
      %111 = vector.load %arg2[%c0_188, %110, %c0_189, %c0_190] : memref<1x8x8x128xbf16, #tpu.memory_space<vmem>>, vector<1x3x8x128xbf16>
      %112 = vector.shape_cast %111 : vector<1x3x8x128xbf16> to vector<3x8x128xbf16>
      %c0_191 = arith.constant 0 : index
      %c8_192 = arith.constant 8 : index
      %c0_193 = arith.constant 0 : index
      %113 = vector.load %arg8[%c0_191, %c8_192, %c0_193] : memref<14x24x128xbf16, #tpu.memory_space<vmem>>, vector<3x8x128xbf16>
      tpu.vector_store %arg8[%c0_191, %c8_192, %c0_193], %112 {strides = array<i32>} : memref<14x24x128xbf16, #tpu.memory_space<vmem>>, vector<3x8x128xbf16>,
    } else {
    }
    %c0_i32_12 = arith.constant 0 : i32
    %16 = arith.cmpi eq, %arg1, %c0_i32_12 : i32
    %17 = arith.extui %16 : i1 to i32
    %c0_i32_13 = arith.constant 0 : i32
    %18 = arith.cmpi ne, %17, %c0_i32_13 : i32
    scf.if %18 {
      %c11_188 = arith.constant 11 : index
      %c8_189 = arith.constant 8 : index
      %c0_190 = arith.constant 0 : index
      %109 = vector.load %arg8[%c11_188, %c8_189, %c0_190] : memref<14x24x128xbf16, #tpu.memory_space<vmem>>, vector<3x8x128xbf16>
      tpu.vector_store %arg8[%c11_188, %c8_189, %c0_190], %9 {strides = array<i32>} : memref<14x24x128xbf16, #tpu.memory_space<vmem>>, vector<3x8x128xbf16>,
    } else {
    }
    %c0_i32_14 = arith.constant 0 : i32
    %19 = arith.cmpi slt, %arg1, %c0_i32_14 : i32
    %20 = arith.extui %19 : i1 to i32
    %c0_i32_15 = arith.constant 0 : i32
    %21 = arith.cmpi ne, %20, %c0_i32_15 : i32
    scf.if %21 {
      %c8_i32_188 = arith.constant 8 : i32
      %109 = arith.addi %1, %c8_i32_188 : i32
      %c0_189 = arith.constant 0 : index
      %110 = arith.index_cast %109 : i32 to index
      %c0_190 = arith.constant 0 : index
      %c0_191 = arith.constant 0 : index
      %111 = vector.load %arg2[%c0_189, %110, %c0_190, %c0_191] : memref<1x8x8x128xbf16, #tpu.memory_space<vmem>>, vector<1x3x8x128xbf16>
      %112 = vector.shape_cast %111 : vector<1x3x8x128xbf16> to vector<3x8x128xbf16>
      %c11_192 = arith.constant 11 : index
      %c8_193 = arith.constant 8 : index
      %c0_194 = arith.constant 0 : index
      %113 = vector.load %arg8[%c11_192, %c8_193, %c0_194] : memref<14x24x128xbf16, #tpu.memory_space<vmem>>, vector<3x8x128xbf16>
      tpu.vector_store %arg8[%c11_192, %c8_193, %c0_194], %112 {strides = array<i32>} : memref<14x24x128xbf16, #tpu.memory_space<vmem>>, vector<3x8x128xbf16>,
    } else {
    }
    %22 = arith.extf %7 : vector<8x8x128xbf16> to vector<8x8x128xf32>
    %23 = vector.shape_cast %22 : vector<8x8x128xf32> to vector<64x128xf32>
    %c0_16 = arith.constant 0 : index
    %c0_17 = arith.constant 0 : index
    %24 = vector.load %arg4[%c0_16, %c0_17] : memref<1x128xf32, #tpu.memory_space<vmem>>, vector<1x128xf32>
    %25 = vector.broadcast %24 : vector<1x128xf32> to vector<64x128xf32>
    %26 = arith.addf %23, %25 : vector<64x128xf32>
    %c2 = arith.constant 2 : index
    %c7 = arith.constant 7 : index
    %c0_18 = arith.constant 0 : index
    %27 = vector.load %arg8[%c2, %c7, %c0_18] : memref<14x24x128xbf16, #tpu.memory_space<vmem>>, vector<8x8x128xbf16>
    %c0_19 = arith.constant 0 : index
    %c0_20 = arith.constant 0 : index
    %c0_21 = arith.constant 0 : index
    %28 = vector.load %arg9[%c0_19, %c0_20, %c0_21] : memref<8x8x1152xbf16, #tpu.memory_space<vmem>>, vector<8x8x128xbf16>
    tpu.vector_store %arg9[%c0_19, %c0_20, %c0_21], %27 {strides = array<i32>} : memref<8x8x1152xbf16, #tpu.memory_space<vmem>>, vector<8x8x128xbf16>,
    %c2_22 = arith.constant 2 : index
    %c8_23 = arith.constant 8 : index
    %c0_24 = arith.constant 0 : index
    %29 = vector.load %arg8[%c2_22, %c8_23, %c0_24] : memref<14x24x128xbf16, #tpu.memory_space<vmem>>, vector<8x8x128xbf16>
    %c0_25 = arith.constant 0 : index
    %c0_26 = arith.constant 0 : index
    %c128 = arith.constant 128 : index
    %30 = vector.load %arg9[%c0_25, %c0_26, %c128] : memref<8x8x1152xbf16, #tpu.memory_space<vmem>>, vector<8x8x128xbf16>
    tpu.vector_store %arg9[%c0_25, %c0_26, %c128], %29 {strides = array<i32>} : memref<8x8x1152xbf16, #tpu.memory_space<vmem>>, vector<8x8x128xbf16>,
    %c2_27 = arith.constant 2 : index
    %c9 = arith.constant 9 : index
    %c0_28 = arith.constant 0 : index
    %31 = vector.load %arg8[%c2_27, %c9, %c0_28] : memref<14x24x128xbf16, #tpu.memory_space<vmem>>, vector<8x8x128xbf16>
    %c0_29 = arith.constant 0 : index
    %c0_30 = arith.constant 0 : index
    %c256 = arith.constant 256 : index
    %32 = vector.load %arg9[%c0_29, %c0_30, %c256] : memref<8x8x1152xbf16, #tpu.memory_space<vmem>>, vector<8x8x128xbf16>
    tpu.vector_store %arg9[%c0_29, %c0_30, %c256], %31 {strides = array<i32>} : memref<8x8x1152xbf16, #tpu.memory_space<vmem>>, vector<8x8x128xbf16>,
    %c3_31 = arith.constant 3 : index
    %c7_32 = arith.constant 7 : index
    %c0_33 = arith.constant 0 : index
    %33 = vector.load %arg8[%c3_31, %c7_32, %c0_33] : memref<14x24x128xbf16, #tpu.memory_space<vmem>>, vector<8x8x128xbf16>
    %c0_34 = arith.constant 0 : index
    %c0_35 = arith.constant 0 : index
    %c384 = arith.constant 384 : index
    %34 = vector.load %arg9[%c0_34, %c0_35, %c384] : memref<8x8x1152xbf16, #tpu.memory_space<vmem>>, vector<8x8x128xbf16>
    tpu.vector_store %arg9[%c0_34, %c0_35, %c384], %33 {strides = array<i32>} : memref<8x8x1152xbf16, #tpu.memory_space<vmem>>, vector<8x8x128xbf16>,
    %c3_36 = arith.constant 3 : index
    %c8_37 = arith.constant 8 : index
    %c0_38 = arith.constant 0 : index
    %35 = vector.load %arg8[%c3_36, %c8_37, %c0_38] : memref<14x24x128xbf16, #tpu.memory_space<vmem>>, vector<8x8x128xbf16>
    %c0_39 = arith.constant 0 : index
    %c0_40 = arith.constant 0 : index
    %c512 = arith.constant 512 : index
    %36 = vector.load %arg9[%c0_39, %c0_40, %c512] : memref<8x8x1152xbf16, #tpu.memory_space<vmem>>, vector<8x8x128xbf16>
    tpu.vector_store %arg9[%c0_39, %c0_40, %c512], %35 {strides = array<i32>} : memref<8x8x1152xbf16, #tpu.memory_space<vmem>>, vector<8x8x128xbf16>,
    %c3_41 = arith.constant 3 : index
    %c9_42 = arith.constant 9 : index
    %c0_43 = arith.constant 0 : index
    %37 = vector.load %arg8[%c3_41, %c9_42, %c0_43] : memref<14x24x128xbf16, #tpu.memory_space<vmem>>, vector<8x8x128xbf16>
    %c0_44 = arith.constant 0 : index
    %c0_45 = arith.constant 0 : index
    %c640 = arith.constant 640 : index
    %38 = vector.load %arg9[%c0_44, %c0_45, %c640] : memref<8x8x1152xbf16, #tpu.memory_space<vmem>>, vector<8x8x128xbf16>
    tpu.vector_store %arg9[%c0_44, %c0_45, %c640], %37 {strides = array<i32>} : memref<8x8x1152xbf16, #tpu.memory_space<vmem>>, vector<8x8x128xbf16>,
    %c4 = arith.constant 4 : index
    %c7_46 = arith.constant 7 : index
    %c0_47 = arith.constant 0 : index
    %39 = vector.load %arg8[%c4, %c7_46, %c0_47] : memref<14x24x128xbf16, #tpu.memory_space<vmem>>, vector<8x8x128xbf16>
    %c0_48 = arith.constant 0 : index
    %c0_49 = arith.constant 0 : index
    %c768 = arith.constant 768 : index
    %40 = vector.load %arg9[%c0_48, %c0_49, %c768] : memref<8x8x1152xbf16, #tpu.memory_space<vmem>>, vector<8x8x128xbf16>
    tpu.vector_store %arg9[%c0_48, %c0_49, %c768], %39 {strides = array<i32>} : memref<8x8x1152xbf16, #tpu.memory_space<vmem>>, vector<8x8x128xbf16>,
    %c4_50 = arith.constant 4 : index
    %c8_51 = arith.constant 8 : index
    %c0_52 = arith.constant 0 : index
    %41 = vector.load %arg8[%c4_50, %c8_51, %c0_52] : memref<14x24x128xbf16, #tpu.memory_space<vmem>>, vector<8x8x128xbf16>
    %c0_53 = arith.constant 0 : index
    %c0_54 = arith.constant 0 : index
    %c896 = arith.constant 896 : index
    %42 = vector.load %arg9[%c0_53, %c0_54, %c896] : memref<8x8x1152xbf16, #tpu.memory_space<vmem>>, vector<8x8x128xbf16>
    tpu.vector_store %arg9[%c0_53, %c0_54, %c896], %41 {strides = array<i32>} : memref<8x8x1152xbf16, #tpu.memory_space<vmem>>, vector<8x8x128xbf16>,
    %c4_55 = arith.constant 4 : index
    %c9_56 = arith.constant 9 : index
    %c0_57 = arith.constant 0 : index
    %43 = vector.load %arg8[%c4_55, %c9_56, %c0_57] : memref<14x24x128xbf16, #tpu.memory_space<vmem>>, vector<8x8x128xbf16>
    %c0_58 = arith.constant 0 : index
    %c0_59 = arith.constant 0 : index
    %c1024 = arith.constant 1024 : index
    %44 = vector.load %arg9[%c0_58, %c0_59, %c1024] : memref<8x8x1152xbf16, #tpu.memory_space<vmem>>, vector<8x8x128xbf16>
    tpu.vector_store %arg9[%c0_58, %c0_59, %c1024], %43 {strides = array<i32>} : memref<8x8x1152xbf16, #tpu.memory_space<vmem>>, vector<8x8x128xbf16>,
    %c0_60 = arith.constant 0 : index
    %c0_61 = arith.constant 0 : index
    %c0_62 = arith.constant 0 : index
    %45 = vector.load %arg9[%c0_60, %c0_61, %c0_62] : memref<8x8x1152xbf16, #tpu.memory_space<vmem>>, vector<8x8x1152xbf16>
    %46 = vector.shape_cast %45 : vector<8x8x1152xbf16> to vector<64x1152xbf16>
    %c0_63 = arith.constant 0 : index
    %c0_64 = arith.constant 0 : index
    %47 = vector.load %arg3[%c0_63, %c0_64] : memref<3456x128xbf16, #tpu.memory_space<vmem>>, vector<1152x128xbf16>
    %cst_65 = arith.constant dense<0.000000e+00> : vector<64x128xf32>
    %48 = tpu.matmul %46, %47, %cst_65 {dimension_numbers = #tpu.dot_dimension_numbers<[1], [0], [0], [1], [0, 0, 1, 1], [], []>} : vector<64x1152xbf16>, vector<1152x128xbf16>, vector<64x128xf32> -> vector<64x128xf32>
    %49 = arith.addf %26, %48 : vector<64x128xf32>
    %c1 = arith.constant 1 : index
    %c6 = arith.constant 6 : index
    %c0_66 = arith.constant 0 : index
    %50 = vector.load %arg8[%c1, %c6, %c0_66] : memref<14x24x128xbf16, #tpu.memory_space<vmem>>, vector<8x8x128xbf16>
    %c0_67 = arith.constant 0 : index
    %c0_68 = arith.constant 0 : index
    %c0_69 = arith.constant 0 : index
    %51 = vector.load %arg9[%c0_67, %c0_68, %c0_69] : memref<8x8x1152xbf16, #tpu.memory_space<vmem>>, vector<8x8x128xbf16>
    tpu.vector_store %arg9[%c0_67, %c0_68, %c0_69], %50 {strides = array<i32>} : memref<8x8x1152xbf16, #tpu.memory_space<vmem>>, vector<8x8x128xbf16>,
    %c1_70 = arith.constant 1 : index
    %c8_71 = arith.constant 8 : index
    %c0_72 = arith.constant 0 : index
    %52 = vector.load %arg8[%c1_70, %c8_71, %c0_72] : memref<14x24x128xbf16, #tpu.memory_space<vmem>>, vector<8x8x128xbf16>
    %c0_73 = arith.constant 0 : index
    %c0_74 = arith.constant 0 : index
    %c128_75 = arith.constant 128 : index
    %53 = vector.load %arg9[%c0_73, %c0_74, %c128_75] : memref<8x8x1152xbf16, #tpu.memory_space<vmem>>, vector<8x8x128xbf16>
    tpu.vector_store %arg9[%c0_73, %c0_74, %c128_75], %52 {strides = array<i32>} : memref<8x8x1152xbf16, #tpu.memory_space<vmem>>, vector<8x8x128xbf16>,
    %c1_76 = arith.constant 1 : index
    %c10 = arith.constant 10 : index
    %c0_77 = arith.constant 0 : index
    %54 = vector.load %arg8[%c1_76, %c10, %c0_77] : memref<14x24x128xbf16, #tpu.memory_space<vmem>>, vector<8x8x128xbf16>
    %c0_78 = arith.constant 0 : index
    %c0_79 = arith.constant 0 : index
    %c256_80 = arith.constant 256 : index
    %55 = vector.load %arg9[%c0_78, %c0_79, %c256_80] : memref<8x8x1152xbf16, #tpu.memory_space<vmem>>, vector<8x8x128xbf16>
    tpu.vector_store %arg9[%c0_78, %c0_79, %c256_80], %54 {strides = array<i32>} : memref<8x8x1152xbf16, #tpu.memory_space<vmem>>, vector<8x8x128xbf16>,
    %c3_81 = arith.constant 3 : index
    %c6_82 = arith.constant 6 : index
    %c0_83 = arith.constant 0 : index
    %56 = vector.load %arg8[%c3_81, %c6_82, %c0_83] : memref<14x24x128xbf16, #tpu.memory_space<vmem>>, vector<8x8x128xbf16>
    %c0_84 = arith.constant 0 : index
    %c0_85 = arith.constant 0 : index
    %c384_86 = arith.constant 384 : index
    %57 = vector.load %arg9[%c0_84, %c0_85, %c384_86] : memref<8x8x1152xbf16, #tpu.memory_space<vmem>>, vector<8x8x128xbf16>
    tpu.vector_store %arg9[%c0_84, %c0_85, %c384_86], %56 {strides = array<i32>} : memref<8x8x1152xbf16, #tpu.memory_space<vmem>>, vector<8x8x128xbf16>,
    %c3_87 = arith.constant 3 : index
    %c8_88 = arith.constant 8 : index
    %c0_89 = arith.constant 0 : index
    %58 = vector.load %arg8[%c3_87, %c8_88, %c0_89] : memref<14x24x128xbf16, #tpu.memory_space<vmem>>, vector<8x8x128xbf16>
    %c0_90 = arith.constant 0 : index
    %c0_91 = arith.constant 0 : index
    %c512_92 = arith.constant 512 : index
    %59 = vector.load %arg9[%c0_90, %c0_91, %c512_92] : memref<8x8x1152xbf16, #tpu.memory_space<vmem>>, vector<8x8x128xbf16>
    tpu.vector_store %arg9[%c0_90, %c0_91, %c512_92], %58 {strides = array<i32>} : memref<8x8x1152xbf16, #tpu.memory_space<vmem>>, vector<8x8x128xbf16>,
    %c3_93 = arith.constant 3 : index
    %c10_94 = arith.constant 10 : index
    %c0_95 = arith.constant 0 : index
    %60 = vector.load %arg8[%c3_93, %c10_94, %c0_95] : memref<14x24x128xbf16, #tpu.memory_space<vmem>>, vector<8x8x128xbf16>
    %c0_96 = arith.constant 0 : index
    %c0_97 = arith.constant 0 : index
    %c640_98 = arith.constant 640 : index
    %61 = vector.load %arg9[%c0_96, %c0_97, %c640_98] : memref<8x8x1152xbf16, #tpu.memory_space<vmem>>, vector<8x8x128xbf16>
    tpu.vector_store %arg9[%c0_96, %c0_97, %c640_98], %60 {strides = array<i32>} : memref<8x8x1152xbf16, #tpu.memory_space<vmem>>, vector<8x8x128xbf16>,
    %c5 = arith.constant 5 : index
    %c6_99 = arith.constant 6 : index
    %c0_100 = arith.constant 0 : index
    %62 = vector.load %arg8[%c5, %c6_99, %c0_100] : memref<14x24x128xbf16, #tpu.memory_space<vmem>>, vector<8x8x128xbf16>
    %c0_101 = arith.constant 0 : index
    %c0_102 = arith.constant 0 : index
    %c768_103 = arith.constant 768 : index
    %63 = vector.load %arg9[%c0_101, %c0_102, %c768_103] : memref<8x8x1152xbf16, #tpu.memory_space<vmem>>, vector<8x8x128xbf16>
    tpu.vector_store %arg9[%c0_101, %c0_102, %c768_103], %62 {strides = array<i32>} : memref<8x8x1152xbf16, #tpu.memory_space<vmem>>, vector<8x8x128xbf16>,
    %c5_104 = arith.constant 5 : index
    %c8_105 = arith.constant 8 : index
    %c0_106 = arith.constant 0 : index
    %64 = vector.load %arg8[%c5_104, %c8_105, %c0_106] : memref<14x24x128xbf16, #tpu.memory_space<vmem>>, vector<8x8x128xbf16>
    %c0_107 = arith.constant 0 : index
    %c0_108 = arith.constant 0 : index
    %c896_109 = arith.constant 896 : index
    %65 = vector.load %arg9[%c0_107, %c0_108, %c896_109] : memref<8x8x1152xbf16, #tpu.memory_space<vmem>>, vector<8x8x128xbf16>
    tpu.vector_store %arg9[%c0_107, %c0_108, %c896_109], %64 {strides = array<i32>} : memref<8x8x1152xbf16, #tpu.memory_space<vmem>>, vector<8x8x128xbf16>,
    %c5_110 = arith.constant 5 : index
    %c10_111 = arith.constant 10 : index
    %c0_112 = arith.constant 0 : index
    %66 = vector.load %arg8[%c5_110, %c10_111, %c0_112] : memref<14x24x128xbf16, #tpu.memory_space<vmem>>, vector<8x8x128xbf16>
    %c0_113 = arith.constant 0 : index
    %c0_114 = arith.constant 0 : index
    %c1024_115 = arith.constant 1024 : index
    %67 = vector.load %arg9[%c0_113, %c0_114, %c1024_115] : memref<8x8x1152xbf16, #tpu.memory_space<vmem>>, vector<8x8x128xbf16>
    tpu.vector_store %arg9[%c0_113, %c0_114, %c1024_115], %66 {strides = array<i32>} : memref<8x8x1152xbf16, #tpu.memory_space<vmem>>, vector<8x8x128xbf16>,
    %c0_116 = arith.constant 0 : index
    %c0_117 = arith.constant 0 : index
    %c0_118 = arith.constant 0 : index
    %68 = vector.load %arg9[%c0_116, %c0_117, %c0_118] : memref<8x8x1152xbf16, #tpu.memory_space<vmem>>, vector<8x8x1152xbf16>
    %69 = vector.shape_cast %68 : vector<8x8x1152xbf16> to vector<64x1152xbf16>
    %c1152 = arith.constant 1152 : index
    %c0_119 = arith.constant 0 : index
    %70 = vector.load %arg3[%c1152, %c0_119] : memref<3456x128xbf16, #tpu.memory_space<vmem>>, vector<1152x128xbf16>
    %cst_120 = arith.constant dense<0.000000e+00> : vector<64x128xf32>
    %71 = tpu.matmul %69, %70, %cst_120 {dimension_numbers = #tpu.dot_dimension_numbers<[1], [0], [0], [1], [0, 0, 1, 1], [], []>} : vector<64x1152xbf16>, vector<1152x128xbf16>, vector<64x128xf32> -> vector<64x128xf32>
    %72 = arith.addf %49, %71 : vector<64x128xf32>
    %c0_121 = arith.constant 0 : index
    %c5_122 = arith.constant 5 : index
    %c0_123 = arith.constant 0 : index
    %73 = vector.load %arg8[%c0_121, %c5_122, %c0_123] : memref<14x24x128xbf16, #tpu.memory_space<vmem>>, vector<8x8x128xbf16>
    %c0_124 = arith.constant 0 : index
    %c0_125 = arith.constant 0 : index
    %c0_126 = arith.constant 0 : index
    %74 = vector.load %arg9[%c0_124, %c0_125, %c0_126] : memref<8x8x1152xbf16, #tpu.memory_space<vmem>>, vector<8x8x128xbf16>
    tpu.vector_store %arg9[%c0_124, %c0_125, %c0_126], %73 {strides = array<i32>} : memref<8x8x1152xbf16, #tpu.memory_space<vmem>>, vector<8x8x128xbf16>,
    %c0_127 = arith.constant 0 : index
    %c8_128 = arith.constant 8 : index
    %c0_129 = arith.constant 0 : index
    %75 = vector.load %arg8[%c0_127, %c8_128, %c0_129] : memref<14x24x128xbf16, #tpu.memory_space<vmem>>, vector<8x8x128xbf16>
    %c0_130 = arith.constant 0 : index
    %c0_131 = arith.constant 0 : index
    %c128_132 = arith.constant 128 : index
    %76 = vector.load %arg9[%c0_130, %c0_131, %c128_132] : memref<8x8x1152xbf16, #tpu.memory_space<vmem>>, vector<8x8x128xbf16>
    tpu.vector_store %arg9[%c0_130, %c0_131, %c128_132], %75 {strides = array<i32>} : memref<8x8x1152xbf16, #tpu.memory_space<vmem>>, vector<8x8x128xbf16>,
    %c0_133 = arith.constant 0 : index
    %c11 = arith.constant 11 : index
    %c0_134 = arith.constant 0 : index
    %77 = vector.load %arg8[%c0_133, %c11, %c0_134] : memref<14x24x128xbf16, #tpu.memory_space<vmem>>, vector<8x8x128xbf16>
    %c0_135 = arith.constant 0 : index
    %c0_136 = arith.constant 0 : index
    %c256_137 = arith.constant 256 : index
    %78 = vector.load %arg9[%c0_135, %c0_136, %c256_137] : memref<8x8x1152xbf16, #tpu.memory_space<vmem>>, vector<8x8x128xbf16>
    tpu.vector_store %arg9[%c0_135, %c0_136, %c256_137], %77 {strides = array<i32>} : memref<8x8x1152xbf16, #tpu.memory_space<vmem>>, vector<8x8x128xbf16>,
    %c3_138 = arith.constant 3 : index
    %c5_139 = arith.constant 5 : index
    %c0_140 = arith.constant 0 : index
    %79 = vector.load %arg8[%c3_138, %c5_139, %c0_140] : memref<14x24x128xbf16, #tpu.memory_space<vmem>>, vector<8x8x128xbf16>
    %c0_141 = arith.constant 0 : index
    %c0_142 = arith.constant 0 : index
    %c384_143 = arith.constant 384 : index
    %80 = vector.load %arg9[%c0_141, %c0_142, %c384_143] : memref<8x8x1152xbf16, #tpu.memory_space<vmem>>, vector<8x8x128xbf16>
    tpu.vector_store %arg9[%c0_141, %c0_142, %c384_143], %79 {strides = array<i32>} : memref<8x8x1152xbf16, #tpu.memory_space<vmem>>, vector<8x8x128xbf16>,
    %c3_144 = arith.constant 3 : index
    %c8_145 = arith.constant 8 : index
    %c0_146 = arith.constant 0 : index
    %81 = vector.load %arg8[%c3_144, %c8_145, %c0_146] : memref<14x24x128xbf16, #tpu.memory_space<vmem>>, vector<8x8x128xbf16>
    %c0_147 = arith.constant 0 : index
    %c0_148 = arith.constant 0 : index
    %c512_149 = arith.constant 512 : index
    %82 = vector.load %arg9[%c0_147, %c0_148, %c512_149] : memref<8x8x1152xbf16, #tpu.memory_space<vmem>>, vector<8x8x128xbf16>
    tpu.vector_store %arg9[%c0_147, %c0_148, %c512_149], %81 {strides = array<i32>} : memref<8x8x1152xbf16, #tpu.memory_space<vmem>>, vector<8x8x128xbf16>,
    %c3_150 = arith.constant 3 : index
    %c11_151 = arith.constant 11 : index
    %c0_152 = arith.constant 0 : index
    %83 = vector.load %arg8[%c3_150, %c11_151, %c0_152] : memref<14x24x128xbf16, #tpu.memory_space<vmem>>, vector<8x8x128xbf16>
    %c0_153 = arith.constant 0 : index
    %c0_154 = arith.constant 0 : index
    %c640_155 = arith.constant 640 : index
    %84 = vector.load %arg9[%c0_153, %c0_154, %c640_155] : memref<8x8x1152xbf16, #tpu.memory_space<vmem>>, vector<8x8x128xbf16>
    tpu.vector_store %arg9[%c0_153, %c0_154, %c640_155], %83 {strides = array<i32>} : memref<8x8x1152xbf16, #tpu.memory_space<vmem>>, vector<8x8x128xbf16>,
    %c6_156 = arith.constant 6 : index
    %c5_157 = arith.constant 5 : index
    %c0_158 = arith.constant 0 : index
    %85 = vector.load %arg8[%c6_156, %c5_157, %c0_158] : memref<14x24x128xbf16, #tpu.memory_space<vmem>>, vector<8x8x128xbf16>
    %c0_159 = arith.constant 0 : index
    %c0_160 = arith.constant 0 : index
    %c768_161 = arith.constant 768 : index
    %86 = vector.load %arg9[%c0_159, %c0_160, %c768_161] : memref<8x8x1152xbf16, #tpu.memory_space<vmem>>, vector<8x8x128xbf16>
    tpu.vector_store %arg9[%c0_159, %c0_160, %c768_161], %85 {strides = array<i32>} : memref<8x8x1152xbf16, #tpu.memory_space<vmem>>, vector<8x8x128xbf16>,
    %c6_162 = arith.constant 6 : index
    %c8_163 = arith.constant 8 : index
    %c0_164 = arith.constant 0 : index
    %87 = vector.load %arg8[%c6_162, %c8_163, %c0_164] : memref<14x24x128xbf16, #tpu.memory_space<vmem>>, vector<8x8x128xbf16>
    %c0_165 = arith.constant 0 : index
    %c0_166 = arith.constant 0 : index
    %c896_167 = arith.constant 896 : index
    %88 = vector.load %arg9[%c0_165, %c0_166, %c896_167] : memref<8x8x1152xbf16, #tpu.memory_space<vmem>>, vector<8x8x128xbf16>
    tpu.vector_store %arg9[%c0_165, %c0_166, %c896_167], %87 {strides = array<i32>} : memref<8x8x1152xbf16, #tpu.memory_space<vmem>>, vector<8x8x128xbf16>,
    %c6_168 = arith.constant 6 : index
    %c11_169 = arith.constant 11 : index
    %c0_170 = arith.constant 0 : index
    %89 = vector.load %arg8[%c6_168, %c11_169, %c0_170] : memref<14x24x128xbf16, #tpu.memory_space<vmem>>, vector<8x8x128xbf16>
    %c0_171 = arith.constant 0 : index
    %c0_172 = arith.constant 0 : index
    %c1024_173 = arith.constant 1024 : index
    %90 = vector.load %arg9[%c0_171, %c0_172, %c1024_173] : memref<8x8x1152xbf16, #tpu.memory_space<vmem>>, vector<8x8x128xbf16>
    tpu.vector_store %arg9[%c0_171, %c0_172, %c1024_173], %89 {strides = array<i32>} : memref<8x8x1152xbf16, #tpu.memory_space<vmem>>, vector<8x8x128xbf16>,
    %c0_174 = arith.constant 0 : index
    %c0_175 = arith.constant 0 : index
    %c0_176 = arith.constant 0 : index
    %91 = vector.load %arg9[%c0_174, %c0_175, %c0_176] : memref<8x8x1152xbf16, #tpu.memory_space<vmem>>, vector<8x8x1152xbf16>
    %92 = vector.shape_cast %91 : vector<8x8x1152xbf16> to vector<64x1152xbf16>
    %c2304 = arith.constant 2304 : index
    %c0_177 = arith.constant 0 : index
    %93 = vector.load %arg3[%c2304, %c0_177] : memref<3456x128xbf16, #tpu.memory_space<vmem>>, vector<1152x128xbf16>
    %cst_178 = arith.constant dense<0.000000e+00> : vector<64x128xf32>
    %94 = tpu.matmul %92, %93, %cst_178 {dimension_numbers = #tpu.dot_dimension_numbers<[1], [0], [0], [1], [0, 0, 1, 1], [], []>} : vector<64x1152xbf16>, vector<1152x128xbf16>, vector<64x128xf32> -> vector<64x128xf32>
    %95 = arith.addf %72, %94 : vector<64x128xf32>
    %c0_179 = arith.constant 0 : index
    %c0_180 = arith.constant 0 : index
    %96 = vector.load %arg5[%c0_179, %c0_180] : memref<1x128xf32, #tpu.memory_space<vmem>>, vector<1x128xf32>
    %97 = vector.broadcast %96 : vector<1x128xf32> to vector<64x128xf32>
    %98 = arith.mulf %95, %97 : vector<64x128xf32>
    %c0_181 = arith.constant 0 : index
    %c0_182 = arith.constant 0 : index
    %99 = vector.load %arg6[%c0_181, %c0_182] : memref<1x128xf32, #tpu.memory_space<vmem>>, vector<1x128xf32>
    %100 = vector.broadcast %99 : vector<1x128xf32> to vector<64x128xf32>
    %101 = arith.addf %98, %100 : vector<64x128xf32>
    %cst_183 = arith.constant 0.000000e+00 : f32
    %102 = vector.broadcast %cst_183 : f32 to vector<64x128xf32>
    %103 = arith.maximumf %101, %102 : vector<64x128xf32>
    %104 = vector.shape_cast %103 : vector<64x128xf32> to vector<8x8x128xf32>
    %105 = arith.truncf %104 : vector<8x8x128xf32> to vector<8x8x128xbf16>
    %c0_184 = arith.constant 0 : index
    %c0_185 = arith.constant 0 : index
    %c0_186 = arith.constant 0 : index
    %c0_187 = arith.constant 0 : index
    %106 = vector.load %arg7[%c0_184, %c0_185, %c0_186, %c0_187] : memref<1x8x8x128xbf16, #tpu.memory_space<vmem>>, vector<1x8x8x128xbf16>
    %107 = vector.shape_cast %106 : vector<1x8x8x128xbf16> to vector<8x8x128xbf16>
    %108 = vector.shape_cast %105 : vector<8x8x128xbf16> to vector<1x8x8x128xbf16>
    tpu.vector_store %arg7[%c0_184, %c0_185, %c0_186, %c0_187], %108 {strides = array<i32>} : memref<1x8x8x128xbf16, #tpu.memory_space<vmem>>, vector<1x8x8x128xbf16>,
    return
  }
  func.func @transform_0(%arg0: i32, %arg1: i32) -> (i32, i32, i32, i32) {
    %c0_i32 = arith.constant 0 : i32
    %c0_i32_0 = arith.constant 0 : i32
    %c0_i32_1 = arith.constant 0 : i32
    %c0_i32_2 = arith.constant 0 : i32
    return %arg0, %c0_i32, %c0_i32_0, %c0_i32_1 : i32, i32, i32, i32
  }
  func.func @transform_1(%arg0: i32, %arg1: i32) -> (i32, i32) {
    %c0_i32 = arith.constant 0 : i32
    %c0_i32_0 = arith.constant 0 : i32
    %c0_i32_1 = arith.constant 0 : i32
    return %c0_i32, %c0_i32_0 : i32, i32
  }
  func.func @transform_2(%arg0: i32, %arg1: i32) -> (i32, i32) {
    %c0_i32 = arith.constant 0 : i32
    %c0_i32_0 = arith.constant 0 : i32
    %c0_i32_1 = arith.constant 0 : i32
    return %c0_i32, %c0_i32_0 : i32, i32
  }
  func.func @transform_3(%arg0: i32, %arg1: i32) -> (i32, i32) {
    %c0_i32 = arith.constant 0 : i32
    %c0_i32_0 = arith.constant 0 : i32
    %c0_i32_1 = arith.constant 0 : i32
    return %c0_i32, %c0_i32_0 : i32, i32
  }
  func.func @transform_4(%arg0: i32, %arg1: i32) -> (i32, i32) {
    %c0_i32 = arith.constant 0 : i32
    %c0_i32_0 = arith.constant 0 : i32
    %c0_i32_1 = arith.constant 0 : i32
    return %c0_i32, %c0_i32_0 : i32, i32
  }
  func.func @transform_5(%arg0: i32, %arg1: i32) -> (i32, i32, i32, i32) {
    %c0_i32 = arith.constant 0 : i32
    %c0_i32_0 = arith.constant 0 : i32
    %c0_i32_1 = arith.constant 0 : i32
    return %arg0, %arg1, %c0_i32, %c0_i32_0 : i32, i32, i32, i32
  }
}

module attributes {stable_mosaic.version = 11 : i64} {
  func.func @_head_kernel(%arg0: i32, %arg1: memref<2x64x128xbf16, #tpu.memory_space<vmem>>, %arg2: memref<128x128xbf16, #tpu.memory_space<vmem>>, %arg3: memref<1x128xf32, #tpu.memory_space<vmem>>, %arg4: memref<2x64x128xf32, #tpu.memory_space<vmem>>) attributes {dimension_semantics = [#tpu.dimension_semantics<parallel>], iteration_bounds = array<i64: 1>, scalar_prefetch = 0 : i64, scratch_operands = 0 : i64, tpu.core_type = #tpu.core_type<tc>, window_params = [{transform_indices = @transform_0, window_bounds = array<i64: 2, 64, 128>}, {pipeline_mode = #tpu.pipeline_mode<synchronous>, transform_indices = @transform_1, window_bounds = array<i64: 128, 128>}, {pipeline_mode = #tpu.pipeline_mode<synchronous>, transform_indices = @transform_2, window_bounds = array<i64: 1, 128>}, {transform_indices = @transform_3, window_bounds = array<i64: 2, 64, 128>}]} {
    %c0 = arith.constant 0 : index
    %c0_0 = arith.constant 0 : index
    %c0_1 = arith.constant 0 : index
    %0 = vector.load %arg1[%c0, %c0_0, %c0_1] : memref<2x64x128xbf16, #tpu.memory_space<vmem>>, vector<2x64x128xbf16>
    %1 = vector.shape_cast %0 : vector<2x64x128xbf16> to vector<128x128xbf16>
    %c0_2 = arith.constant 0 : index
    %c0_3 = arith.constant 0 : index
    %2 = vector.load %arg2[%c0_2, %c0_3] : memref<128x128xbf16, #tpu.memory_space<vmem>>, vector<128x128xbf16>
    %cst = arith.constant dense<0.000000e+00> : vector<128x128xf32>
    %3 = tpu.matmul %1, %2, %cst {dimension_numbers = #tpu.dot_dimension_numbers<[1], [0], [0], [1], [0, 0, 1, 1], [], []>} : vector<128x128xbf16>, vector<128x128xbf16>, vector<128x128xf32> -> vector<128x128xf32>
    %c0_4 = arith.constant 0 : index
    %c0_5 = arith.constant 0 : index
    %4 = vector.load %arg3[%c0_4, %c0_5] : memref<1x128xf32, #tpu.memory_space<vmem>>, vector<1x128xf32>
    %5 = vector.broadcast %4 : vector<1x128xf32> to vector<128x128xf32>
    %6 = arith.addf %3, %5 : vector<128x128xf32>
    %7 = vector.shape_cast %6 : vector<128x128xf32> to vector<2x64x128xf32>
    %cst_6 = arith.constant dense<0xFF800000> : vector<64x128xf32>
    %8 = vector.multi_reduction <maximumf>, %7, %cst_6 [0] : vector<2x64x128xf32> to vector<64x128xf32>
    %9 = vector.shape_cast %8 : vector<64x128xf32> to vector<1x64x128xf32>
    %10 = vector.broadcast %9 : vector<1x64x128xf32> to vector<2x64x128xf32>
    %11 = arith.subf %7, %10 : vector<2x64x128xf32>
    %12 = math.exp %11 : vector<2x64x128xf32>
    %cst_7 = arith.constant dense<0.000000e+00> : vector<64x128xf32>
    %13 = vector.multi_reduction <add>, %12, %cst_7 [0] : vector<2x64x128xf32> to vector<64x128xf32>
    %14 = vector.shape_cast %13 : vector<64x128xf32> to vector<1x64x128xf32>
    %15 = math.log %14 : vector<1x64x128xf32>
    %16 = arith.addf %9, %15 : vector<1x64x128xf32>
    %17 = vector.broadcast %16 : vector<1x64x128xf32> to vector<2x64x128xf32>
    %18 = arith.subf %7, %17 : vector<2x64x128xf32>
    %c0_8 = arith.constant 0 : index
    %c0_9 = arith.constant 0 : index
    %c0_10 = arith.constant 0 : index
    %19 = vector.load %arg4[%c0_8, %c0_9, %c0_10] : memref<2x64x128xf32, #tpu.memory_space<vmem>>, vector<2x64x128xf32>
    tpu.vector_store %arg4[%c0_8, %c0_9, %c0_10], %18 {strides = array<i32>} : memref<2x64x128xf32, #tpu.memory_space<vmem>>, vector<2x64x128xf32>,
    return
  }
  func.func @transform_0(%arg0: i32) -> (i32, i32, i32) {
    %c0_i32 = arith.constant 0 : i32
    %c0_i32_0 = arith.constant 0 : i32
    %c0_i32_1 = arith.constant 0 : i32
    return %c0_i32, %arg0, %c0_i32_0 : i32, i32, i32
  }
  func.func @transform_1(%arg0: i32) -> (i32, i32) {
    %c0_i32 = arith.constant 0 : i32
    %c0_i32_0 = arith.constant 0 : i32
    %c0_i32_1 = arith.constant 0 : i32
    return %c0_i32, %c0_i32_0 : i32, i32
  }
  func.func @transform_2(%arg0: i32) -> (i32, i32) {
    %c0_i32 = arith.constant 0 : i32
    %c0_i32_0 = arith.constant 0 : i32
    %c0_i32_1 = arith.constant 0 : i32
    return %c0_i32, %c0_i32_0 : i32, i32
  }
  func.func @transform_3(%arg0: i32) -> (i32, i32, i32) {
    %c0_i32 = arith.constant 0 : i32
    %c0_i32_0 = arith.constant 0 : i32
    %c0_i32_1 = arith.constant 0 : i32
    return %c0_i32, %arg0, %c0_i32_0 : i32, i32, i32
  }
}

</mosaic_0001>

<llo_original>
// kernel: inception_forward.7
$region0: #{inception_forward.7}
  #allocation0 [shape = 'u32[]', space=smem, size = 0x4, offset = 0x4, fixed_abs, tag = 'smem constant byte address 0x4 - core index']
  #allocation1 [shape = 'u32[144,128]{1,0:T(1,128)}', space=vmem, size = 0x12000, scoped, tag = 'internal scratch']
  %s0 = inlined_call_operand.vmem [shape: bf16[2,64,128], index: 0, kind: input, shape index: {}]
  %s1 = inlined_call_operand.vmem [shape: bf16[128,128], index: 1, kind: input, shape index: {}]
  %s2 = inlined_call_operand.vmem [shape: f32[1,128], index: 2, kind: input, shape index: {}]
  %s3 = inlined_call_operand.vmem [shape: f32[2,64,128], index: 3, kind: output, shape index: {}]
  %s4 = sld [smem:[#allocation0]]
  $region22: #{inception_forward.7} parent=0
    _
  %s6 = ssub.s32 1, %s4
  %s7 = scalar_select 0, %s6, %s4
  // Predicated region
  $region2: #{inception_forward.7} parent=0 // pred_check
    _
  $region3: #{inception_forward.7} parent=0 // pred_check_branch
    %9 = sbr.rel (0) target = $region5
  $region4: #{inception_forward.7} parent=0 // pred_region
    _
  $region5: #{inception_forward.7} parent=0 // pred_fallthru
    _
  // Predicated region
  $region6: #{inception_forward.7} parent=0 // pred_check
    _
  $region7: #{inception_forward.7} parent=0 // pred_check_branch
    %11 = sbr.rel (0) target = $region9
  $region8: #{inception_forward.7} parent=0 // pred_region
    _
  $region9: #{inception_forward.7} parent=0 // pred_fallthru
    _
  // Predicated region
  $region10: #{inception_forward.7} parent=0 // pred_check
    _
  $region11: #{inception_forward.7} parent=0 // pred_check_branch
    %13 = sbr.rel (0) target = $region13
  $region12: #{inception_forward.7} parent=0 // pred_region
    _
  $region13: #{inception_forward.7} parent=0 // pred_fallthru
    _
  %v15 = vld [vmem:[%s0] sm:$0xf]
  %v16 = vld [vmem:[%s0 + $0x4] sm:$0xf]
  %v17 = vld [vmem:[%s0 + $0x8] sm:$0xf]
  %v18 = vld [vmem:[%s0 + $0xc] sm:$0xf]
  %v19 = vld [vmem:[%s0 + $0x10] sm:$0xf]
  %v20 = vld [vmem:[%s0 + $0x14] sm:$0xf]
  %v21 = vld [vmem:[%s0 + $0x18] sm:$0xf]
  %v22 = vld [vmem:[%s0 + $0x1c] sm:$0xf]
  %v23 = vld [vmem:[%s0 + $0x20] sm:$0xf]
  %v24 = vld [vmem:[%s0 + $0x24] sm:$0xf]
  %v25 = vld [vmem:[%s0 + $0x28] sm:$0xf]
  %v26 = vld [vmem:[%s0 + $0x2c] sm:$0xf]
  %v27 = vld [vmem:[%s0 + $0x30] sm:$0xf]
  %v28 = vld [vmem:[%s0 + $0x34] sm:$0xf]
  %v29 = vld [vmem:[%s0 + $0x38] sm:$0xf]
  %v30 = vld [vmem:[%s0 + $0x3c] sm:$0xf]
  %v31 = vld [vmem:[%s1] sm:$0xf]
  %v32 = vld [vmem:[%s1 + $0x4] sm:$0xf]
  %v33 = vld [vmem:[%s1 + $0x8] sm:$0xf]
  %v34 = vld [vmem:[%s1 + $0xc] sm:$0xf]
  %v35 = vld [vmem:[%s1 + $0x10] sm:$0xf]
  %v36 = vld [vmem:[%s1 + $0x14] sm:$0xf]
  %v37 = vld [vmem:[%s1 + $0x18] sm:$0xf]
  %v38 = vld [vmem:[%s1 + $0x1c] sm:$0xf]
  %v39 = vld [vmem:[%s1 + $0x20] sm:$0xf]
  %v40 = vld [vmem:[%s1 + $0x24] sm:$0xf]
  %v41 = vld [vmem:[%s1 + $0x28] sm:$0xf]
  %v42 = vld [vmem:[%s1 + $0x2c] sm:$0xf]
  %v43 = vld [vmem:[%s1 + $0x30] sm:$0xf]
  %v44 = vld [vmem:[%s1 + $0x34] sm:$0xf]
  %v45 = vld [vmem:[%s1 + $0x38] sm:$0xf]
  %v46 = vld [vmem:[%s1 + $0x3c] sm:$0xf]
  %v47 = vld [vmem:[%s2] sm:$0x1]
  %v49 = vlaneseq
  %v50 = vshrl.u32 %v49, 7
  %v51 = vsub.s32 0, %v50
  %v52 = vrot.slane %v47, %v51
  %v70 = vunpack.c.l.b16 %v15
  %v71 = vunpack.c.l.b16 %v16
  %v72 = vunpack.c.l.b16 %v17
  %v73 = vunpack.c.l.b16 %v18
  %v74 = vunpack.c.l.b16 %v19
  %v75 = vunpack.c.l.b16 %v20
  %v76 = vunpack.c.l.b16 %v21
  %v77 = vunpack.c.l.b16 %v22
  %v78 = vunpack.c.l.b16 %v23
  %v79 = vunpack.c.l.b16 %v24
  %v80 = vunpack.c.l.b16 %v25
  %v81 = vunpack.c.l.b16 %v26
  %v82 = vunpack.c.l.b16 %v27
  %v83 = vunpack.c.l.b16 %v28
  %v84 = vunpack.c.l.b16 %v29
  %v85 = vunpack.c.l.b16 %v30
  %v86 = vpack.c.b16 %v71, %v70
  %v87 = vpack.c.b16 %v73, %v72
  %v88 = vpack.c.b16 %v75, %v74
  %v89 = vpack.c.b16 %v77, %v76
  %v90 = vpack.c.b16 %v79, %v78
  %v91 = vpack.c.b16 %v81, %v80
  %v92 = vpack.c.b16 %v83, %v82
  %v93 = vpack.c.b16 %v85, %v84
  %v118 = vunpack.c.l.b16 %v31
  %v119 = vunpack.c.l.b16 %v32
  %v120 = vunpack.c.l.b16 %v33
  %v121 = vunpack.c.l.b16 %v34
  %v122 = vunpack.c.l.b16 %v35
  %v123 = vunpack.c.l.b16 %v36
  %v124 = vunpack.c.l.b16 %v37
  %v125 = vunpack.c.l.b16 %v38
  %v126 = vunpack.c.l.b16 %v39
  %v127 = vunpack.c.l.b16 %v40
  %v128 = vunpack.c.l.b16 %v41
  %v129 = vunpack.c.l.b16 %v42
  %v130 = vunpack.c.l.b16 %v43
  %v131 = vunpack.c.l.b16 %v44
  %v132 = vunpack.c.l.b16 %v45
  %v133 = vunpack.c.l.b16 %v46
  %v134 = vpack.c.b16 %v119, %v118
  %v135 = vpack.c.b16 %v121, %v120
  %v136 = vpack.c.b16 %v123, %v122
  %v137 = vpack.c.b16 %v125, %v124
  %v138 = vpack.c.b16 %v127, %v126
  %v139 = vpack.c.b16 %v129, %v128
  %v140 = vpack.c.b16 %v131, %v130
  %v141 = vpack.c.b16 %v133, %v132
  %150 = vmatprep.subr.bf16.mxu0 0
  %151 = vmatpush1.bf16.msra.mxu0 %v141
  %152 = vmatprep.subr.bf16.mxu0 0
  %153 = vmatpush1.bf16.msra.mxu0 %v140
  %154 = vmatprep.subr.bf16.mxu0 0
  %155 = vmatpush1.bf16.msra.mxu0 %v139
  %156 = vmatprep.subr.bf16.mxu0 0
  %157 = vmatpush1.bf16.msra.mxu0 %v138
  %158 = vmatprep.subr.bf16.mxu0 0
  %159 = vmatpush1.bf16.msra.mxu0 %v137
  %160 = vmatprep.subr.bf16.mxu0 0
  %161 = vmatpush1.bf16.msra.mxu0 %v136
  %162 = vmatprep.subr.bf16.mxu0 0
  %163 = vmatpush1.bf16.msra.mxu0 %v135
  %164 = vmatprep.subr.bf16.mxu0 0
  %165 = vmatpush1.bf16.msra.mxu0 %v134
  %166 = vmatprep.subr.bf16.mxu0 0
  %167 = vmatpush2.bf16.msra.mxu0 0
  %168 = vmatprep.subr.bf16.mxu0 0
  %169 = vmatpush2.bf16.msra.mxu0 0
  %170 = vmatprep.subr.bf16.mxu0 0
  %171 = vmatpush2.bf16.msra.mxu0 0
  %172 = vmatprep.subr.bf16.mxu0 0
  %173 = vmatpush2.bf16.msra.mxu0 0
  %174 = vmatprep.subr.bf16.mxu0 0
  %175 = vmatpush2.bf16.msra.mxu0 0
  %176 = vmatprep.subr.bf16.mxu0 0
  %177 = vmatpush2.bf16.msra.mxu0 0
  %178 = vmatprep.subr.bf16.mxu0 0
  %179 = vmatpush2.bf16.msra.mxu0 0
  %180 = vmatprep.subr.bf16.mxu0 0
  %181 = vmatpush2.bf16.msra.mxu0 0
  %182 = vmatprep.mubr.bf16.mxu0 0
  %183 = vmatmul.mubr.bf16.gmra.mxu0 %v86
  %v184 = vpop.f32.mrf.mxu0
  %v185 = vadd.f32 %v52, %v184
  %v186 = vpop.f32.mrf.mxu0
  %v187 = vpop.f32.mrf.mxu0
  %v188 = vadd.f32 %v52, %v187
  %v189 = vpop.f32.mrf.mxu0
  %190 = vmatprep.mubr.bf16.mxu0 0
  %191 = vmatmul.mubr.bf16.gmra.mxu0 %v87
  %v192 = vpop.f32.mrf.mxu0
  %v193 = vadd.f32 %v52, %v192
  %v194 = vpop.f32.mrf.mxu0
  %v195 = vpop.f32.mrf.mxu0
  %v196 = vadd.f32 %v52, %v195
  %v197 = vpop.f32.mrf.mxu0
  %198 = vmatprep.mubr.bf16.mxu0 0
  %199 = vmatmul.mubr.bf16.gmra.mxu0 %v88
  %v200 = vpop.f32.mrf.mxu0
  %v201 = vadd.f32 %v52, %v200
  %v202 = vpop.f32.mrf.mxu0
  %v203 = vpop.f32.mrf.mxu0
  %v204 = vadd.f32 %v52, %v203
  %v205 = vpop.f32.mrf.mxu0
  %206 = vmatprep.mubr.bf16.mxu0 0
  %207 = vmatmul.mubr.bf16.gmra.mxu0 %v89
  %v208 = vpop.f32.mrf.mxu0
  %v209 = vadd.f32 %v52, %v208
  %v210 = vpop.f32.mrf.mxu0
  %v211 = vpop.f32.mrf.mxu0
  %v212 = vadd.f32 %v52, %v211
  %v213 = vpop.f32.mrf.mxu0
  %214 = vmatprep.mubr.bf16.mxu0 0
  %215 = vmatmul.mubr.bf16.gmra.mxu0 %v90
  %v216 = vpop.f32.mrf.mxu0
  %v217 = vadd.f32 %v52, %v216
  %v218 = vpop.f32.mrf.mxu0
  %v219 = vpop.f32.mrf.mxu0
  %v220 = vadd.f32 %v52, %v219
  %v221 = vpop.f32.mrf.mxu0
  %222 = vmatprep.mubr.bf16.mxu0 0
  %223 = vmatmul.mubr.bf16.gmra.mxu0 %v91
  %v224 = vpop.f32.mrf.mxu0
  %v225 = vadd.f32 %v52, %v224
  %v226 = vpop.f32.mrf.mxu0
  %v227 = vpop.f32.mrf.mxu0
  %v228 = vadd.f32 %v52, %v227
  %v229 = vpop.f32.mrf.mxu0
  %230 = vmatprep.mubr.bf16.mxu0 0
  %231 = vmatmul.mubr.bf16.gmra.mxu0 %v92
  %v232 = vpop.f32.mrf.mxu0
  %v233 = vadd.f32 %v52, %v232
  %v234 = vpop.f32.mrf.mxu0
  %v235 = vpop.f32.mrf.mxu0
  %v236 = vadd.f32 %v52, %v235
  %v237 = vpop.f32.mrf.mxu0
  %238 = vmatprep.mubr.bf16.mxu0 0
  %239 = vmatmul.mubr.bf16.gmra.mxu0 %v93
  %v240 = vpop.f32.mrf.mxu0
  %v241 = vadd.f32 %v52, %v240
  %v242 = vpop.f32.mrf.mxu0
  %v243 = vpop.f32.mrf.mxu0
  %v244 = vadd.f32 %v52, %v243
  %v245 = vpop.f32.mrf.mxu0
  %246 = vdwg.mxu0
  %v247 = vmax.f32 %v185, %v217
  %v248 = vmax.f32 %v188, %v220
  %v249 = vmax.f32 %v193, %v225
  %v250 = vmax.f32 %v196, %v228
  %v251 = vmax.f32 %v201, %v233
  %v252 = vmax.f32 %v204, %v236
  %v253 = vmax.f32 %v209, %v241
  %v254 = vmax.f32 %v212, %v244
  %v255 = vsub.f32 %v185, %v247
  %v256 = vsub.f32 %v188, %v248
  %v257 = vsub.f32 %v193, %v249
  %v258 = vsub.f32 %v196, %v250
  %v259 = vsub.f32 %v201, %v251
  %v260 = vsub.f32 %v204, %v252
  %v261 = vsub.f32 %v209, %v253
  %v262 = vsub.f32 %v212, %v254
  %v263 = vsub.f32 %v217, %v247
  %v264 = vsub.f32 %v220, %v248
  %v265 = vsub.f32 %v225, %v249
  %v266 = vsub.f32 %v228, %v250
  %v267 = vsub.f32 %v233, %v251
  %v268 = vsub.f32 %v236, %v252
  %v269 = vsub.f32 %v241, %v253
  %v270 = vsub.f32 %v244, %v254
  %v271 = vmul.f32 %v255, 1.442695
  %v272 = vpow.pop %v271
  %v273 = vmul.f32 %v256, 1.442695
  %v274 = vpow.pop %v273
  %v275 = vmul.f32 %v257, 1.442695
  %v276 = vpow.pop %v275
  %v277 = vmul.f32 %v258, 1.442695
  %v278 = vpow.pop %v277
  %v279 = vmul.f32 %v259, 1.442695
  %v280 = vpow.pop %v279
  %v281 = vmul.f32 %v260, 1.442695
  %v282 = vpow.pop %v281
  %v283 = vmul.f32 %v261, 1.442695
  %v284 = vpow.pop %v283
  %v285 = vmul.f32 %v262, 1.442695
  %v286 = vpow.pop %v285
  %v287 = vmul.f32 %v263, 1.442695
  %v288 = vpow.pop %v287
  %v289 = vmul.f32 %v264, 1.442695
  %v290 = vpow.pop %v289
  %v291 = vmul.f32 %v265, 1.442695
  %v292 = vpow.pop %v291
  %v293 = vmul.f32 %v266, 1.442695
  %v294 = vpow.pop %v293
  %v295 = vmul.f32 %v267, 1.442695
  %v296 = vpow.pop %v295
  %v297 = vmul.f32 %v268, 1.442695
  %v298 = vpow.pop %v297
  %v299 = vmul.f32 %v269, 1.442695
  %v300 = vpow.pop %v299
  %v301 = vmul.f32 %v270, 1.442695
  %v302 = vpow.pop %v301
  %v303 = vadd.f32 %v272, %v288
  %v304 = vadd.f32 %v274, %v290
  %v305 = vadd.f32 %v276, %v292
  %v306 = vadd.f32 %v278, %v294
  %v307 = vadd.f32 %v280, %v296
  %v308 = vadd.f32 %v282, %v298
  %v309 = vadd.f32 %v284, %v300
  %v310 = vadd.f32 %v286, %v302
  %v311 = vlog2.pop %v303
  %v312 = vmul.f32 %v311, 0.6931472
  %v313 = vlog2.pop %v304
  %v314 = vmul.f32 %v313, 0.6931472
  %v315 = vlog2.pop %v305
  %v316 = vmul.f32 %v315, 0.6931472
  %v317 = vlog2.pop %v306
  %v318 = vmul.f32 %v317, 0.6931472
  %v319 = vlog2.pop %v307
  %v320 = vmul.f32 %v319, 0.6931472
  %v321 = vlog2.pop %v308
  %v322 = vmul.f32 %v321, 0.6931472
  %v323 = vlog2.pop %v309
  %v324 = vmul.f32 %v323, 0.6931472
  %v325 = vlog2.pop %v310
  %v326 = vmul.f32 %v325, 0.6931472
  %v327 = vadd.f32 %v247, %v312
  %v328 = vadd.f32 %v248, %v314
  %v329 = vadd.f32 %v249, %v316
  %v330 = vadd.f32 %v250, %v318
  %v331 = vadd.f32 %v251, %v320
  %v332 = vadd.f32 %v252, %v322
  %v333 = vadd.f32 %v253, %v324
  %v334 = vadd.f32 %v254, %v326
  %v335 = vsub.f32 %v185, %v327
  %v336 = vsub.f32 %v188, %v328
  %v337 = vsub.f32 %v193, %v329
  %v338 = vsub.f32 %v196, %v330
  %v339 = vsub.f32 %v201, %v331
  %v340 = vsub.f32 %v204, %v332
  %v341 = vsub.f32 %v209, %v333
  %v342 = vsub.f32 %v212, %v334
  %v343 = vsub.f32 %v217, %v327
  %v344 = vsub.f32 %v220, %v328
  %v345 = vsub.f32 %v225, %v329
  %v346 = vsub.f32 %v228, %v330
  %v347 = vsub.f32 %v233, %v331
  %v348 = vsub.f32 %v236, %v332
  %v349 = vsub.f32 %v241, %v333
  %v350 = vsub.f32 %v244, %v334
  %351 = vst [vmem:[%s3] sm:$0xff] %v335
  %352 = vst [vmem:[%s3 + $0x8] sm:$0xff] %v336
  %353 = vst [vmem:[%s3 + $0x10] sm:$0xff] %v337
  %354 = vst [vmem:[%s3 + $0x18] sm:$0xff] %v338
  %355 = vst [vmem:[%s3 + $0x20] sm:$0xff] %v339
  %356 = vst [vmem:[%s3 + $0x28] sm:$0xff] %v340
  %357 = vst [vmem:[%s3 + $0x30] sm:$0xff] %v341
  %358 = vst [vmem:[%s3 + $0x38] sm:$0xff] %v342
  %359 = vst [vmem:[%s3 + $0x40] sm:$0xff] %v343
  %360 = vst [vmem:[%s3 + $0x48] sm:$0xff] %v344
  %361 = vst [vmem:[%s3 + $0x50] sm:$0xff] %v345
  %362 = vst [vmem:[%s3 + $0x58] sm:$0xff] %v346
  %363 = vst [vmem:[%s3 + $0x60] sm:$0xff] %v347
  %364 = vst [vmem:[%s3 + $0x68] sm:$0xff] %v348
  %365 = vst [vmem:[%s3 + $0x70] sm:$0xff] %v349
  %366 = vst [vmem:[%s3 + $0x78] sm:$0xff] %v350
  // Predicated region
  $region14: #{inception_forward.7} parent=0 // pred_check
    _
  $region15: #{inception_forward.7} parent=0 // pred_check_branch
    %368 = sbr.rel (0) target = $region17
  $region16: #{inception_forward.7} parent=0 // pred_region
    _
  $region17: #{inception_forward.7} parent=0 // pred_fallthru
    _
  // Predicated region
  $region18: #{inception_forward.7} parent=0 // pred_check
    _
  $region19: #{inception_forward.7} parent=0 // pred_check_branch
    %370 = sbr.rel (0) target = $region21
  $region20: #{inception_forward.7} parent=0 // pred_region
    _
  $region21: #{inception_forward.7} parent=0 // pred_fallthru
    _

// kernel: inception_forward.4
$region0: #{inception_forward.4}
  #allocation0 [shape = 'u32[]', space=smem, size = 0x4, offset = 0x4, fixed_abs, tag = 'smem constant byte address 0x4 - core index']
  #allocation1 [shape = 'u32[144,128]{1,0:T(1,128)}', space=vmem, size = 0x12000, scoped, tag = 'internal scratch']
  %s0 = inlined_call_operand.vmem [shape: bf16[128,16], index: 0, kind: input, shape index: {}]
  %s1 = inlined_call_operand.vmem [shape: bf16[16,128], index: 1, kind: input, shape index: {}]
  %s2 = inlined_call_operand.vmem [shape: f32[1,128], index: 2, kind: input, shape index: {}]
  %s3 = inlined_call_operand.vmem [shape: bf16[128,128], index: 3, kind: output, shape index: {}]
  %s4 = sld [smem:[#allocation0]]
  $region22: #{inception_forward.4} parent=0
    _
  %s6 = ssub.s32 1, %s4
  %s7 = scalar_select 0, %s6, %s4
  // Predicated region
  $region2: #{inception_forward.4} parent=0 // pred_check
    _
  $region3: #{inception_forward.4} parent=0 // pred_check_branch
    %9 = sbr.rel (0) target = $region5
  $region4: #{inception_forward.4} parent=0 // pred_region
    _
  $region5: #{inception_forward.4} parent=0 // pred_fallthru
    _
  // Predicated region
  $region6: #{inception_forward.4} parent=0 // pred_check
    _
  $region7: #{inception_forward.4} parent=0 // pred_check_branch
    %11 = sbr.rel (0) target = $region9
  $region8: #{inception_forward.4} parent=0 // pred_region
    _
  $region9: #{inception_forward.4} parent=0 // pred_fallthru
    _
  // Predicated region
  $region10: #{inception_forward.4} parent=0 // pred_check
    _
  $region11: #{inception_forward.4} parent=0 // pred_check_branch
    %13 = sbr.rel (0) target = $region13
  $region12: #{inception_forward.4} parent=0 // pred_region
    _
  $region13: #{inception_forward.4} parent=0 // pred_fallthru
    _
  %v15 = vld [vmem:[%s0] sm:$0xf]
  %v16 = vld [vmem:[%s0 + $0x4] sm:$0xf]
  %v17 = vld [vmem:[%s0 + $0x8] sm:$0xf]
  %v18 = vld [vmem:[%s0 + $0xc] sm:$0xf]
  %v19 = vld [vmem:[%s0 + $0x10] sm:$0xf]
  %v20 = vld [vmem:[%s0 + $0x14] sm:$0xf]
  %v21 = vld [vmem:[%s0 + $0x18] sm:$0xf]
  %v22 = vld [vmem:[%s0 + $0x1c] sm:$0xf]
  %v23 = vld [vmem:[%s0 + $0x20] sm:$0xf]
  %v24 = vld [vmem:[%s0 + $0x24] sm:$0xf]
  %v25 = vld [vmem:[%s0 + $0x28] sm:$0xf]
  %v26 = vld [vmem:[%s0 + $0x2c] sm:$0xf]
  %v27 = vld [vmem:[%s0 + $0x30] sm:$0xf]
  %v28 = vld [vmem:[%s0 + $0x34] sm:$0xf]
  %v29 = vld [vmem:[%s0 + $0x38] sm:$0xf]
  %v30 = vld [vmem:[%s0 + $0x3c] sm:$0xf]
  %v31 = vld [vmem:[%s1] sm:$0xf]
  %v32 = vld [vmem:[%s1 + $0x4] sm:$0xf]
  %v33 = vld [vmem:[%s2] sm:$0x1]
  %v35 = vlaneseq
  %v36 = vshrl.u32 %v35, 7
  %v37 = vsub.s32 0, %v36
  %v38 = vrot.slane %v33, %v37
  %v56 = vunpack.c.l.b16 %v15
  %v57 = vunpack.c.l.b16 %v16
  %v58 = vunpack.c.l.b16 %v17
  %v59 = vunpack.c.l.b16 %v18
  %v60 = vunpack.c.l.b16 %v19
  %v61 = vunpack.c.l.b16 %v20
  %v62 = vunpack.c.l.b16 %v21
  %v63 = vunpack.c.l.b16 %v22
  %v64 = vunpack.c.l.b16 %v23
  %v65 = vunpack.c.l.b16 %v24
  %v66 = vunpack.c.l.b16 %v25
  %v67 = vunpack.c.l.b16 %v26
  %v68 = vunpack.c.l.b16 %v27
  %v69 = vunpack.c.l.b16 %v28
  %v70 = vunpack.c.l.b16 %v29
  %v71 = vunpack.c.l.b16 %v30
  %v72 = vpack.c.b16 %v57, %v56
  %v73 = vpack.c.b16 %v59, %v58
  %v74 = vpack.c.b16 %v61, %v60
  %v75 = vpack.c.b16 %v63, %v62
  %v76 = vpack.c.b16 %v65, %v64
  %v77 = vpack.c.b16 %v67, %v66
  %v78 = vpack.c.b16 %v69, %v68
  %v79 = vpack.c.b16 %v71, %v70
  %v82 = vunpack.c.l.b16 %v31
  %v83 = vunpack.c.l.b16 %v32
  %v84 = vpack.c.b16 %v83, %v82
  %vm86 = vcmask 130048
  %v88 = vsel %vm86, %v72, 0
  %v91 = vsel %vm86, %v73, 0
  %v94 = vsel %vm86, %v74, 0
  %v97 = vsel %vm86, %v75, 0
  %v100 = vsel %vm86, %v76, 0
  %v103 = vsel %vm86, %v77, 0
  %v106 = vsel %vm86, %v78, 0
  %v109 = vsel %vm86, %v79, 0
  %111 = vmatprep.subr.bf16.mxu0 0
  %112 = vmatpush1.bf16.msra.mxu0 0
  %113 = vmatprep.subr.bf16.mxu0 0
  %114 = vmatpush1.bf16.msra.mxu0 0
  %115 = vmatprep.subr.bf16.mxu0 0
  %116 = vmatpush1.bf16.msra.mxu0 0
  %117 = vmatprep.subr.bf16.mxu0 0
  %118 = vmatpush1.bf16.msra.mxu0 0
  %119 = vmatprep.subr.bf16.mxu0 0
  %120 = vmatpush1.bf16.msra.mxu0 0
  %121 = vmatprep.subr.bf16.mxu0 0
  %122 = vmatpush1.bf16.msra.mxu0 0
  %123 = vmatprep.subr.bf16.mxu0 0
  %124 = vmatpush1.bf16.msra.mxu0 0
  %125 = vmatprep.subr.bf16.mxu0 0
  %126 = vmatpush1.bf16.msra.mxu0 %v84
  %127 = vmatprep.subr.bf16.mxu0 0
  %128 = vmatpush2.bf16.msra.mxu0 0
  %129 = vmatprep.subr.bf16.mxu0 0
  %130 = vmatpush2.bf16.msra.mxu0 0
  %131 = vmatprep.subr.bf16.mxu0 0
  %132 = vmatpush2.bf16.msra.mxu0 0
  %133 = vmatprep.subr.bf16.mxu0 0
  %134 = vmatpush2.bf16.msra.mxu0 0
  %135 = vmatprep.subr.bf16.mxu0 0
  %136 = vmatpush2.bf16.msra.mxu0 0
  %137 = vmatprep.subr.bf16.mxu0 0
  %138 = vmatpush2.bf16.msra.mxu0 0
  %139 = vmatprep.subr.bf16.mxu0 0
  %140 = vmatpush2.bf16.msra.mxu0 0
  %141 = vmatprep.subr.bf16.mxu0 0
  %142 = vmatpush2.bf16.msra.mxu0 0
  %143 = vmatprep.mubr.bf16.mxu0 0
  %144 = vmatmul.mubr.bf16.gmra.mxu0 %v88
  %v145 = vpop.f32.mrf.mxu0
  %v146 = vadd.f32 %v38, %v145
  %v147 = vpop.f32.mrf.mxu0
  %v148 = vpop.f32.mrf.mxu0
  %v149 = vadd.f32 %v38, %v148
  %v150 = vpop.f32.mrf.mxu0
  %151 = vmatprep.mubr.bf16.mxu0 0
  %152 = vmatmul.mubr.bf16.gmra.mxu0 %v91
  %v153 = vpop.f32.mrf.mxu0
  %v154 = vadd.f32 %v38, %v153
  %v155 = vpop.f32.mrf.mxu0
  %v156 = vpop.f32.mrf.mxu0
  %v157 = vadd.f32 %v38, %v156
  %v158 = vpop.f32.mrf.mxu0
  %159 = vmatprep.mubr.bf16.mxu0 0
  %160 = vmatmul.mubr.bf16.gmra.mxu0 %v94
  %v161 = vpop.f32.mrf.mxu0
  %v162 = vadd.f32 %v38, %v161
  %v163 = vpop.f32.mrf.mxu0
  %v164 = vpop.f32.mrf.mxu0
  %v165 = vadd.f32 %v38, %v164
  %v166 = vpop.f32.mrf.mxu0
  %167 = vmatprep.mubr.bf16.mxu0 0
  %168 = vmatmul.mubr.bf16.gmra.mxu0 %v97
  %v169 = vpop.f32.mrf.mxu0
  %v170 = vadd.f32 %v38, %v169
  %v171 = vpop.f32.mrf.mxu0
  %v172 = vpop.f32.mrf.mxu0
  %v173 = vadd.f32 %v38, %v172
  %v174 = vpop.f32.mrf.mxu0
  %175 = vmatprep.mubr.bf16.mxu0 0
  %176 = vmatmul.mubr.bf16.gmra.mxu0 %v100
  %v177 = vpop.f32.mrf.mxu0
  %v178 = vadd.f32 %v38, %v177
  %v179 = vpop.f32.mrf.mxu0
  %v180 = vpop.f32.mrf.mxu0
  %v181 = vadd.f32 %v38, %v180
  %v182 = vpop.f32.mrf.mxu0
  %183 = vmatprep.mubr.bf16.mxu0 0
  %184 = vmatmul.mubr.bf16.gmra.mxu0 %v103
  %v185 = vpop.f32.mrf.mxu0
  %v186 = vadd.f32 %v38, %v185
  %v187 = vpop.f32.mrf.mxu0
  %v188 = vpop.f32.mrf.mxu0
  %v189 = vadd.f32 %v38, %v188
  %v190 = vpop.f32.mrf.mxu0
  %191 = vmatprep.mubr.bf16.mxu0 0
  %192 = vmatmul.mubr.bf16.gmra.mxu0 %v106
  %v193 = vpop.f32.mrf.mxu0
  %v194 = vadd.f32 %v38, %v193
  %v195 = vpop.f32.mrf.mxu0
  %v196 = vpop.f32.mrf.mxu0
  %v197 = vadd.f32 %v38, %v196
  %v198 = vpop.f32.mrf.mxu0
  %199 = vmatprep.mubr.bf16.mxu0 0
  %200 = vmatmul.mubr.bf16.gmra.mxu0 %v109
  %v201 = vpop.f32.mrf.mxu0
  %v202 = vadd.f32 %v38, %v201
  %v203 = vpop.f32.mrf.mxu0
  %v204 = vpop.f32.mrf.mxu0
  %v205 = vadd.f32 %v38, %v204
  %v206 = vpop.f32.mrf.mxu0
  %207 = vdwg.mxu0
  %v208 = vmax.f32 %v146, 0.0
  %v209 = vmax.f32 %v149, 0.0
  %v210 = vmax.f32 %v154, 0.0
  %v211 = vmax.f32 %v157, 0.0
  %v212 = vmax.f32 %v162, 0.0
  %v213 = vmax.f32 %v165, 0.0
  %v214 = vmax.f32 %v170, 0.0
  %v215 = vmax.f32 %v173, 0.0
  %v216 = vmax.f32 %v178, 0.0
  %v217 = vmax.f32 %v181, 0.0
  %v218 = vmax.f32 %v186, 0.0
  %v219 = vmax.f32 %v189, 0.0
  %v220 = vmax.f32 %v194, 0.0
  %v221 = vmax.f32 %v197, 0.0
  %v222 = vmax.f32 %v202, 0.0
  %v223 = vmax.f32 %v205, 0.0
  %v224 = vpack.c.bf16 %v209, %v208
  %v225 = vpack.c.bf16 %v211, %v210
  %v226 = vpack.c.bf16 %v213, %v212
  %v227 = vpack.c.bf16 %v215, %v214
  %v228 = vpack.c.bf16 %v217, %v216
  %v229 = vpack.c.bf16 %v219, %v218
  %v230 = vpack.c.bf16 %v221, %v220
  %v231 = vpack.c.bf16 %v223, %v222
  %v240 = vunpack.c.l.b16 %v224
  %v241 = vunpack.c.h.b16 %v224
  %v242 = vunpack.c.l.b16 %v225
  %v243 = vunpack.c.h.b16 %v225
  %v244 = vunpack.c.l.b16 %v226
  %v245 = vunpack.c.h.b16 %v226
  %v246 = vunpack.c.l.b16 %v227
  %v247 = vunpack.c.h.b16 %v227
  %v248 = vunpack.c.l.b16 %v228
  %v249 = vunpack.c.h.b16 %v228
  %v250 = vunpack.c.l.b16 %v229
  %v251 = vunpack.c.h.b16 %v229
  %v252 = vunpack.c.l.b16 %v230
  %v253 = vunpack.c.h.b16 %v230
  %v254 = vunpack.c.l.b16 %v231
  %v255 = vunpack.c.h.b16 %v231
  %v256 = vpack.c.b16 %v240, %v240
  %v257 = vpack.c.b16 %v241, %v241
  %v258 = vpack.c.b16 %v242, %v242
  %v259 = vpack.c.b16 %v243, %v243
  %v260 = vpack.c.b16 %v244, %v244
  %v261 = vpack.c.b16 %v245, %v245
  %v262 = vpack.c.b16 %v246, %v246
  %v263 = vpack.c.b16 %v247, %v247
  %v264 = vpack.c.b16 %v248, %v248
  %v265 = vpack.c.b16 %v249, %v249
  %v266 = vpack.c.b16 %v250, %v250
  %v267 = vpack.c.b16 %v251, %v251
  %v268 = vpack.c.b16 %v252, %v252
  %v269 = vpack.c.b16 %v253, %v253
  %v270 = vpack.c.b16 %v254, %v254
  %v271 = vpack.c.b16 %v255, %v255
  %288 = vst [vmem:[%s3] sm:$0xf] %v256
  %289 = vst [vmem:[%s3 + $0x4] sm:$0xf] %v257
  %290 = vst [vmem:[%s3 + $0x8] sm:$0xf] %v258
  %291 = vst [vmem:[%s3 + $0xc] sm:$0xf] %v259
  %292 = vst [vmem:[%s3 + $0x10] sm:$0xf] %v260
  %293 = vst [vmem:[%s3 + $0x14] sm:$0xf] %v261
  %294 = vst [vmem:[%s3 + $0x18] sm:$0xf] %v262
  %295 = vst [vmem:[%s3 + $0x1c] sm:$0xf] %v263
  %296 = vst [vmem:[%s3 + $0x20] sm:$0xf] %v264
  %297 = vst [vmem:[%s3 + $0x24] sm:$0xf] %v265
  %298 = vst [vmem:[%s3 + $0x28] sm:$0xf] %v266
  %299 = vst [vmem:[%s3 + $0x2c] sm:$0xf] %v267
  %300 = vst [vmem:[%s3 + $0x30] sm:$0xf] %v268
  %301 = vst [vmem:[%s3 + $0x34] sm:$0xf] %v269
  %302 = vst [vmem:[%s3 + $0x38] sm:$0xf] %v270
  %303 = vst [vmem:[%s3 + $0x3c] sm:$0xf] %v271
  // Predicated region
  $region14: #{inception_forward.4} parent=0 // pred_check
    _
  $region15: #{inception_forward.4} parent=0 // pred_check_branch
    %305 = sbr.rel (0) target = $region17
  $region16: #{inception_forward.4} parent=0 // pred_region
    _
  $region17: #{inception_forward.4} parent=0 // pred_fallthru
    _
  // Predicated region
  $region18: #{inception_forward.4} parent=0 // pred_check
    _
  $region19: #{inception_forward.4} parent=0 // pred_check_branch
    %307 = sbr.rel (0) target = $region21
  $region20: #{inception_forward.4} parent=0 // pred_region
    _
  $region21: #{inception_forward.4} parent=0 // pred_fallthru
    _

// kernel: inception_forward.5
$region0: #{inception_forward.5}
  #allocation0 [shape = 'u32[]', space=smem, size = 0x4, offset = 0x4, fixed_abs, tag = 'smem constant byte address 0x4 - core index']
  #allocation1 [shape = 'u32[144,128]{1,0:T(1,128)}', space=vmem, size = 0x12000, scoped, tag = 'internal scratch']
  #allocation2 [shape = 'bf16[14,24,128]{2,1,0:T(8,128)(2,1)}', space=vmem, size = 0x15000, scoped, tag = 'scratch operand']
  #allocation3 [shape = 'bf16[8,8,1152]{2,1,0:T(8,128)(2,1)}', space=vmem, size = 0x24000, scoped, tag = 'scratch operand']
  %s0 = inlined_call_operand.vmem [shape: bf16[2,8,8,128], index: 0, kind: input, shape index: {}]
  %s1 = inlined_call_operand.vmem [shape: bf16[3456,128], index: 1, kind: input, shape index: {}]
  %s2 = inlined_call_operand.vmem [shape: f32[1,128], index: 2, kind: input, shape index: {}]
  %s3 = inlined_call_operand.vmem [shape: f32[1,128], index: 3, kind: input, shape index: {}]
  %s4 = inlined_call_operand.vmem [shape: f32[1,128], index: 4, kind: input, shape index: {}]
  %s5 = inlined_call_operand.vmem [shape: bf16[2,8,8,128], index: 5, kind: output, shape index: {}]
  %s6 = sld [smem:[#allocation0]]
  $region69: #{inception_forward.5} parent=0
    _
  %s8 = ssub.s32 1, %s6
  %s9 = scalar_select 0, %s8, %s6
  loop: start=0, step=1, limit=4
  $region2: #{inception_forward.5} parent=0 // loop_pre_header
    _
  $region3: #{inception_forward.5} parent=0 // loop_header
    %s11 = sphi 0, %s15
    %p12 = scmp.ge.s32.totalorder %s11, 4
    %s18 = sphi 0, %s30
    %s19 = sphi 0, %s26
    %s20 = sphi 0, %s18
    %s21 = sphi 0, %s19
    %s22 = sphi 0, %s20
    %s23 = sphi 0, %s21
    %s33 = sphi 0, %s35
    %s36 = sphi 0, %s33
    %s37 = sphi 0, %s36
    %s53 = sphi 0, %s37
    %s57 = sphi 0, %s57
    %s59 = sphi 0, %s57
    %s60 = sphi 0, %s59
    %s74 = sphi 0, %s60
    %s78 = sphi 0, %s78
    %s80 = sphi 0, %s78
    %s81 = sphi 0, %s80
    %s95 = sphi 0, %s81
    %s99 = sphi 0, %s99
    %s101 = sphi 0, %s99
    %s102 = sphi 0, %s101
    %s116 = sphi 0, %s102
    %s120 = sphi 0, %s120
    %s122 = sphi 0, %s120
    %s123 = sphi 0, %s122
    %s137 = sphi 0, %s123
    %s145 = sphi 0, %s147
    %s148 = sphi 0, %s145
    %s149 = sphi 0, %s148
    %s165 = sphi 0, %s149
  $region4: #{inception_forward.5} parent=0 // loop_header_branch
    %14 = sbr.rel (%p12) target = $region8
  $region5: #{inception_forward.5} parent=0 // loop_body
    %s16 = ssub.s32 %s11, 1
    %s17 = ssub.s32 %s11, 2
    %s24 = sadd.s32 1, %s19
    %p25 = scmp.ge.s32.totalorder %s24, 1
    %s26 = scalar_select %p25, 0, %s24
    %s27 = sadd.s32 1, %s18
    %s28 = scalar_select %p25, %s27, %s18
    %p29 = scmp.ge.s32.totalorder %s28, 2
    %s30 = scalar_select %p29, 0, %s28
    %s31 = ssub.s32 %s18, %s30
    %p32 = scmp.eq.s32.totalorder %s31, 0
    %s34 = sadd.s32 %s33, 1
    %s35 = scalar_select %p32, %s33, %s34
    %p38 = pneg %p32
    %p39 = scmp.eq.s32.totalorder %s11, 1
    %p40 = por %p38, %p39
    %p41 = scmp.ne.s32.totalorder %s33, %s36
    %p42 = scmp.eq.s32.totalorder %s11, 0
    %p43 = por %p41, %p42
    %p44 = scmp.ne.s32.totalorder %s33, %s36
    %p45 = scmp.eq.s32.totalorder %s16, 1
    %p46 = por %p44, %p45
    %p47 = scmp.ne.s32.totalorder %s36, %s37
    %p48 = scmp.eq.s32.totalorder %s16, 0
    %p49 = por %p47, %p48
    %p50 = scmp.ne.s32.totalorder %s36, %s37
    %p51 = scmp.eq.s32.totalorder %s17, 1
    %p52 = por %p50, %p51
    %p54 = scmp.ne.s32.totalorder %s37, %s53
    %p55 = scmp.eq.s32.totalorder %s17, 0
    %p56 = por %p54, %p55
    %s58 = sadd.s32 %s57, 1
    %p61 = scmp.eq.s32.totalorder %s11, 1
    %p62 = scmp.ne.s32.totalorder %s57, %s59
    %p63 = scmp.eq.s32.totalorder %s11, 0
    %p64 = por %p62, %p63
    %p65 = scmp.ne.s32.totalorder %s57, %s59
    %p66 = scmp.eq.s32.totalorder %s16, 1
    %p67 = por %p65, %p66
    %p68 = scmp.ne.s32.totalorder %s59, %s60
    %p69 = scmp.eq.s32.totalorder %s16, 0
    %p70 = por %p68, %p69
    %p71 = scmp.ne.s32.totalorder %s59, %s60
    %p72 = scmp.eq.s32.totalorder %s17, 1
    %p73 = por %p71, %p72
    %p75 = scmp.ne.s32.totalorder %s60, %s74
    %p76 = scmp.eq.s32.totalorder %s17, 0
    %p77 = por %p75, %p76
    %s79 = sadd.s32 %s78, 1
    %p82 = scmp.eq.s32.totalorder %s11, 1
    %p83 = scmp.ne.s32.totalorder %s78, %s80
    %p84 = scmp.eq.s32.totalorder %s11, 0
    %p85 = por %p83, %p84
    %p86 = scmp.ne.s32.totalorder %s78, %s80
    %p87 = scmp.eq.s32.totalorder %s16, 1
    %p88 = por %p86, %p87
    %p89 = scmp.ne.s32.totalorder %s80, %s81
    %p90 = scmp.eq.s32.totalorder %s16, 0
    %p91 = por %p89, %p90
    %p92 = scmp.ne.s32.totalorder %s80, %s81
    %p93 = scmp.eq.s32.totalorder %s17, 1
    %p94 = por %p92, %p93
    %p96 = scmp.ne.s32.totalorder %s81, %s95
    %p97 = scmp.eq.s32.totalorder %s17, 0
    %p98 = por %p96, %p97
    %s100 = sadd.s32 %s99, 1
    %p103 = scmp.eq.s32.totalorder %s11, 1
    %p104 = scmp.ne.s32.totalorder %s99, %s101
    %p105 = scmp.eq.s32.totalorder %s11, 0
    %p106 = por %p104, %p105
    %p107 = scmp.ne.s32.totalorder %s99, %s101
    %p108 = scmp.eq.s32.totalorder %s16, 1
    %p109 = por %p107, %p108
    %p110 = scmp.ne.s32.totalorder %s101, %s102
    %p111 = scmp.eq.s32.totalorder %s16, 0
    %p112 = por %p110, %p111
    %p113 = scmp.ne.s32.totalorder %s101, %s102
    %p114 = scmp.eq.s32.totalorder %s17, 1
    %p115 = por %p113, %p114
    %p117 = scmp.ne.s32.totalorder %s102, %s116
    %p118 = scmp.eq.s32.totalorder %s17, 0
    %p119 = por %p117, %p118
    %s121 = sadd.s32 %s120, 1
    %p124 = scmp.eq.s32.totalorder %s11, 1
    %p125 = scmp.ne.s32.totalorder %s120, %s122
    %p126 = scmp.eq.s32.totalorder %s11, 0
    %p127 = por %p125, %p126
    %p128 = scmp.ne.s32.totalorder %s120, %s122
    %p129 = scmp.eq.s32.totalorder %s16, 1
    %p130 = por %p128, %p129
    %p131 = scmp.ne.s32.totalorder %s122, %s123
    %p132 = scmp.eq.s32.totalorder %s16, 0
    %p133 = por %p131, %p132
    %p134 = scmp.ne.s32.totalorder %s122, %s123
    %p135 = scmp.eq.s32.totalorder %s17, 1
    %p136 = por %p134, %p135
    %p138 = scmp.ne.s32.totalorder %s123, %s137
    %p139 = scmp.eq.s32.totalorder %s17, 0
    %p140 = por %p138, %p139
    %s141 = ssub.s32 %s18, %s30
    %s142 = ssub.s32 %s19, %s26
    %s143 = sor.u32 %s141, %s142
    %p144 = scmp.eq.s32.totalorder %s143, 0
    %s146 = sadd.s32 %s145, 1
    %s147 = scalar_select %p144, %s145, %s146
    %p150 = pneg %p144
    %p151 = scmp.eq.s32.totalorder %s11, 1
    %p152 = por %p150, %p151
    %p153 = scmp.ne.s32.totalorder %s145, %s148
    %p154 = scmp.eq.s32.totalorder %s11, 0
    %p155 = por %p153, %p154
    %p156 = scmp.ne.s32.totalorder %s145, %s148
    %p157 = scmp.eq.s32.totalorder %s16, 1
    %p158 = por %p156, %p157
    %p159 = scmp.ne.s32.totalorder %s148, %s149
    %p160 = scmp.eq.s32.totalorder %s16, 0
    %p161 = por %p159, %p160
    %p162 = scmp.ne.s32.totalorder %s148, %s149
    %p163 = scmp.eq.s32.totalorder %s17, 1
    %p164 = por %p162, %p163
    %p166 = scmp.ne.s32.totalorder %s149, %s165
    %p167 = scmp.eq.s32.totalorder %s17, 0
    %p168 = por %p166, %p167
    %p169 = scmp.le.s32.totalorder 1, %s11
    %p170 = scmp.lt.s32.totalorder %s11, 3
    %p171 = pnand %p169, %p170
    %p172 = pneg %p171
    // Predicated region
    $region9: #{inception_forward.5} parent=5 // pred_check
      _
    $region10: #{inception_forward.5} parent=5 // pred_check_branch
      %174 = sbr.rel (%p171) target = $region12
    $region11: #{inception_forward.5} parent=5 // pred_region
      %s175 = ssub.s32 %s11, 1
      // Predicated region
      $region13: #{inception_forward.5} parent=11 // pred_check
        %p176 = pneg %p70
      $region14: #{inception_forward.5} parent=11 // pred_check_branch
        %178 = sbr.rel (%p176) target = $region16
      $region15: #{inception_forward.5} parent=11 // pred_region
        _
      $region16: #{inception_forward.5} parent=11 // pred_fallthru
        _
      // Predicated region
      $region17: #{inception_forward.5} parent=11 // pred_check
        %p179 = pneg %p91
      $region18: #{inception_forward.5} parent=11 // pred_check_branch
        %181 = sbr.rel (%p179) target = $region20
      $region19: #{inception_forward.5} parent=11 // pred_region
        _
      $region20: #{inception_forward.5} parent=11 // pred_fallthru
        _
      // Predicated region
      $region21: #{inception_forward.5} parent=11 // pred_check
        %p182 = pneg %p112
      $region22: #{inception_forward.5} parent=11 // pred_check_branch
        %184 = sbr.rel (%p182) target = $region24
      $region23: #{inception_forward.5} parent=11 // pred_region
        _
      $region24: #{inception_forward.5} parent=11 // pred_fallthru
        _
      // Predicated region
      $region25: #{inception_forward.5} parent=11 // pred_check
        %p185 = pneg %p133
      $region26: #{inception_forward.5} parent=11 // pred_check_branch
        %187 = sbr.rel (%p185) target = $region28
      $region27: #{inception_forward.5} parent=11 // pred_region
        _
      $region28: #{inception_forward.5} parent=11 // pred_fallthru
        _
    $region12: #{inception_forward.5} parent=5 // pred_fallthru
      _
    %p188 = scmp.lt.s32.totalorder %s11, 2
    // Predicated region
    $region29: #{inception_forward.5} parent=5 // pred_check
      %p189 = pneg %p188
    $region30: #{inception_forward.5} parent=5 // pred_check_branch
      %191 = sbr.rel (%p189) target = $region32
    $region31: #{inception_forward.5} parent=5 // pred_region
      // Predicated region
      $region33: #{inception_forward.5} parent=31 // pred_check
        %p192 = pneg %p43
      $region34: #{inception_forward.5} parent=31 // pred_check_branch
        %194 = sbr.rel (%p192) target = $region36
      $region35: #{inception_forward.5} parent=31 // pred_region
        %p195 = scmp.lt.s32.totalorder %s18, 1
        %s196 = scalar_select %p195, %s18, 1
        %s197 = smul.addr %s196, 8
        %s198 = smul.addr %s197, 4
        %s199 = scalar_lea.vmem %s0, %s198
      $region36: #{inception_forward.5} parent=31 // pred_fallthru
        _
    $region32: #{inception_forward.5} parent=5 // pred_fallthru
      _
    %p200 = scmp.le.s32.totalorder 1, %s11
    %p201 = scmp.lt.s32.totalorder %s11, 3
    %p202 = pnand %p200, %p201
    %p203 = pneg %p202
    // Predicated region
    $region37: #{inception_forward.5} parent=5 // pred_check
      _
    $region38: #{inception_forward.5} parent=5 // pred_check_branch
      %205 = sbr.rel (%p202) target = $region40
    $region39: #{inception_forward.5} parent=5 // pred_region
      %s206 = ssub.s32 %s11, 1
      %p207 = scmp.lt.s32.totalorder %s20, 1
      %s208 = scalar_select %p207, %s20, 1
      %s209 = smul.addr %s208, 8
      %s210 = smul.addr %s209, 4
      %s211 = scalar_lea.vmem %s0, %s210
      %p212 = pneg %p49
      %p213 = pneg %p46
      %p214 = pneg %p70
      %p215 = pneg %p67
      %p216 = pneg %p91
      %p217 = pneg %p88
      %p218 = pneg %p112
      %p219 = pneg %p109
      %p220 = pneg %p133
      %p221 = pneg %p130
      %p222 = pneg %p161
      %p223 = pneg %p158
      %s224 = smul.u32 8, %s21
      %p225 = scmp.lt.s32.totalorder %s20, 1
      %s226 = scalar_select %p225, %s20, 1
      %p227 = scmp.lt.s32.totalorder %s224, 7
      %s228 = scalar_select %p227, %s224, 7
      %s229 = smul.addr %s226, 8
      %s230 = sadd.s32 %s228, %s229
      %s231 = smul.addr %s230, 4
      %s232 = scalar_lea.vmem %s5, %s231
      %p233 = scmp.lt.s32.totalorder %s20, 1
      %s234 = scalar_select %p233, %s20, 1
      %s235 = smul.addr %s234, 8
      %s236 = smul.addr %s235, 4
      %s237 = scalar_lea.vmem %s0, %s236
      %s238 = smul.u32 8, %s21
      %p239 = scmp.lt.s32.totalorder %s20, 1
      %s240 = scalar_select %p239, %s20, 1
      %p241 = scmp.lt.s32.totalorder %s238, 7
      %s242 = scalar_select %p241, %s238, 7
      %s243 = smul.addr %s240, 8
      %s244 = sadd.s32 %s242, %s243
      %s245 = smul.addr %s244, 4
      %s246 = scalar_lea.vmem %s5, %s245
      %s247 = smul.u32 8, %s21
      %s249 = smul.u32 %s21, 8
      %250 = vst [vmem:[#allocation2] sm:$0xf] 0
      %251 = vst [vmem:[#allocation2 + $0xc] sm:$0xf] 0
      %252 = vst [vmem:[#allocation2 + $0x18] sm:$0xf] 0
      %253 = vst [vmem:[#allocation2 + $0x24] sm:$0xf] 0
      %254 = vst [vmem:[#allocation2 + $0x30] sm:$0xf] 0
      %255 = vst [vmem:[#allocation2 + $0x3c] sm:$0xf] 0
      %256 = vst [vmem:[#allocation2 + $0x48] sm:$0xf] 0
      %257 = vst [vmem:[#allocation2 + $0x54] sm:$0xf] 0
      %258 = vst [vmem:[#allocation2 + $0x60] sm:$0xf] 0
      %259 = vst [vmem:[#allocation2 + $0x6c] sm:$0xf] 0
      %260 = vst [vmem:[#allocation2 + $0x78] sm:$0xf] 0
      %261 = vst [vmem:[#allocation2 + $0x84] sm:$0xf] 0
      %262 = vst [vmem:[#allocation2 + $0x90] sm:$0xf] 0
      %263 = vst [vmem:[#allocation2 + $0x9c] sm:$0xf] 0
      %264 = vst [vmem:[#allocation2 + $0x8] sm:$0xf] 0
      %265 = vst [vmem:[#allocation2 + $0x14] sm:$0xf] 0
      %266 = vst [vmem:[#allocation2 + $0x20] sm:$0xf] 0
      %267 = vst [vmem:[#allocation2 + $0x2c] sm:$0xf] 0
      %268 = vst [vmem:[#allocation2 + $0x38] sm:$0xf] 0
      %269 = vst [vmem:[#allocation2 + $0x44] sm:$0xf] 0
      %270 = vst [vmem:[#allocation2 + $0x50] sm:$0xf] 0
      %271 = vst [vmem:[#allocation2 + $0x5c] sm:$0xf] 0
      %272 = vst [vmem:[#allocation2 + $0x68] sm:$0xf] 0
      %273 = vst [vmem:[#allocation2 + $0x74] sm:$0xf] 0
      %274 = vst [vmem:[#allocation2 + $0x80] sm:$0xf] 0
      %275 = vst [vmem:[#allocation2 + $0x8c] sm:$0xf] 0
      %276 = vst [vmem:[#allocation2 + $0x98] sm:$0xf] 0
      %277 = vst [vmem:[#allocation2 + $0xa4] sm:$0xf] 0
      %s278 = smul.addr %s249, 4
      %s279 = scalar_lea.vmem %s237, %s278
      %v280 = vld [vmem:[%s279] sm:$0xf]
      %v281 = vld [vmem:[%s279 + $0x4] sm:$0xf]
      %v282 = vld [vmem:[%s279 + $0x8] sm:$0xf]
      %v283 = vld [vmem:[%s279 + $0xc] sm:$0xf]
      %v284 = vld [vmem:[%s279 + $0x10] sm:$0xf]
      %v285 = vld [vmem:[%s279 + $0x14] sm:$0xf]
      %v286 = vld [vmem:[%s279 + $0x18] sm:$0xf]
      %v287 = vld [vmem:[%s279 + $0x1c] sm:$0xf]
      %s288 = scalar_lea.vmem [#allocation2], 36
      %289 = vst [vmem:[%s288 + $0x4] sm:$0xf] %v280
      %290 = vst [vmem:[%s288 + $0x10] sm:$0xf] %v281
      %291 = vst [vmem:[%s288 + $0x1c] sm:$0xf] %v282
      %292 = vst [vmem:[%s288 + $0x28] sm:$0xf] %v283
      %293 = vst [vmem:[%s288 + $0x34] sm:$0xf] %v284
      %294 = vst [vmem:[%s288 + $0x40] sm:$0xf] %v285
      %295 = vst [vmem:[%s288 + $0x4c] sm:$0xf] %v286
      %296 = vst [vmem:[%s288 + $0x58] sm:$0xf] %v287
      %p297 = scmp.eq.s32.totalorder %s21, 0
      // Predicated region
      $region41: #{inception_forward.5} parent=39 // pred_check
        %p298 = pneg %p297
      $region42: #{inception_forward.5} parent=39 // pred_check_branch
        %300 = sbr.rel (%p298) target = $region44
      $region43: #{inception_forward.5} parent=39 // pred_region
        %301 = vst [vmem:[#allocation2 + $0x4] sm:$0xf] 0
        %302 = vst [vmem:[#allocation2 + $0x10] sm:$0xf] 0
        %303 = vst [vmem:[#allocation2 + $0x1c] sm:$0xf] 0
      $region44: #{inception_forward.5} parent=39 // pred_fallthru
        _
      %p304 = scmp.gt.s32.totalorder %s21, 0
      // Predicated region
      $region45: #{inception_forward.5} parent=39 // pred_check
        %p305 = pneg %p304
      $region46: #{inception_forward.5} parent=39 // pred_check_branch
        %307 = sbr.rel (%p305) target = $region48
      $region47: #{inception_forward.5} parent=39 // pred_region
        %s308 = ssub.s32 %s249, 3
        %s309 = smul.addr %s308, 4
        %s310 = scalar_lea.vmem %s237, %s309
        %v311 = vld [vmem:[%s310] sm:$0xf]
        %v312 = vld [vmem:[%s310 + $0x4] sm:$0xf]
        %v313 = vld [vmem:[%s310 + $0x8] sm:$0xf]
        %314 = vst [vmem:[#allocation2 + $0x4] sm:$0xf] %v311
        %315 = vst [vmem:[#allocation2 + $0x10] sm:$0xf] %v312
        %316 = vst [vmem:[#allocation2 + $0x1c] sm:$0xf] %v313
      $region48: #{inception_forward.5} parent=39 // pred_fallthru
        _
      // Predicated region
      $region49: #{inception_forward.5} parent=39 // pred_check
        %p317 = pneg %p297
      $region50: #{inception_forward.5} parent=39 // pred_check_branch
        %319 = sbr.rel (%p317) target = $region52
      $region51: #{inception_forward.5} parent=39 // pred_region
        %s320 = scalar_lea.vmem [#allocation2], 132
        %321 = vst [vmem:[%s320 + $0x4] sm:$0xf] 0
        %322 = vst [vmem:[%s320 + $0x10] sm:$0xf] 0
        %323 = vst [vmem:[%s320 + $0x1c] sm:$0xf] 0
      $region52: #{inception_forward.5} parent=39 // pred_fallthru
        _
      %p324 = scmp.lt.s32.totalorder %s21, 0
      // Predicated region
      $region53: #{inception_forward.5} parent=39 // pred_check
        %p325 = pneg %p324
      $region54: #{inception_forward.5} parent=39 // pred_check_branch
        %327 = sbr.rel (%p325) target = $region56
      $region55: #{inception_forward.5} parent=39 // pred_region
        %s328 = sadd.s32 %s249, 8
        %s329 = smul.addr %s328, 4
        %s330 = scalar_lea.vmem %s237, %s329
        %v331 = vld [vmem:[%s330] sm:$0xf]
        %v332 = vld [vmem:[%s330 + $0x4] sm:$0xf]
        %v333 = vld [vmem:[%s330 + $0x8] sm:$0xf]
        %s334 = scalar_lea.vmem [#allocation2], 132
        %335 = vst [vmem:[%s334 + $0x4] sm:$0xf] %v331
        %336 = vst [vmem:[%s334 + $0x10] sm:$0xf] %v332
        %337 = vst [vmem:[%s334 + $0x1c] sm:$0xf] %v333
      $region56: #{inception_forward.5} parent=39 // pred_fallthru
        _
      %v338 = vunpack.c.l.bf16 %v280
      %v339 = vunpack.c.l.bf16 %v281
      %v340 = vunpack.c.l.bf16 %v282
      %v341 = vunpack.c.l.bf16 %v283
      %v342 = vunpack.c.l.bf16 %v284
      %v343 = vunpack.c.l.bf16 %v285
      %v344 = vunpack.c.l.bf16 %v286
      %v345 = vunpack.c.l.bf16 %v287
      %v346 = vld [vmem:[%s2] sm:$0x1]
      %v348 = vlaneseq
      %v349 = vshrl.u32 %v348, 7
      %v350 = vsub.s32 0, %v349
      %v351 = vrot.slane %v346, %v350
      %v353 = vadd.f32 %v338, %v351
      %v354 = vadd.f32 %v339, %v351
      %v355 = vadd.f32 %v340, %v351
      %v356 = vadd.f32 %v341, %v351
      %v357 = vadd.f32 %v342, %v351
      %v358 = vadd.f32 %v343, %v351
      %v359 = vadd.f32 %v344, %v351
      %v360 = vadd.f32 %v345, %v351
      %s361 = scalar_lea.vmem [#allocation2], 24
      %v362 = vld [vmem:[%s361] sm:$0x8]
      %v363 = vld [vmem:[%s361 + $0x4] sm:$0xf]
      %v364 = vld [vmem:[%s361 + $0xc] sm:$0x8]
      %v365 = vld [vmem:[%s361 + $0x10] sm:$0xf]
      %v366 = vld [vmem:[%s361 + $0x18] sm:$0x8]
      %v367 = vld [vmem:[%s361 + $0x1c] sm:$0xf]
      %v368 = vld [vmem:[%s361 + $0x24] sm:$0x8]
      %v369 = vld [vmem:[%s361 + $0x28] sm:$0xf]
      %v370 = vld [vmem:[%s361 + $0x30] sm:$0x8]
      %v371 = vld [vmem:[%s361 + $0x34] sm:$0xf]
      %v372 = vld [vmem:[%s361 + $0x3c] sm:$0x8]
      %v373 = vld [vmem:[%s361 + $0x40] sm:$0xf]
      %v374 = vld [vmem:[%s361 + $0x48] sm:$0x8]
      %v375 = vld [vmem:[%s361 + $0x4c] sm:$0xf]
      %v376 = vld [vmem:[%s361 + $0x54] sm:$0x8]
      %v377 = vld [vmem:[%s361 + $0x58] sm:$0xf]
      %vm378 = vsmask.f32 256
      %vm379 = vsmask.f32 4368
      %vm380 = vmor %vm378, %vm379
      %v382 = vshrl.u32 %v362, 16
      %v384 = vrot.slane %v382, 7
      %v385 = vrot.slane %v384, 4
      %v387 = vshrl.u32 %v363, 16
      %v389 = vrot.slane %v387, 7
      %v390 = vshll.u32 %v363, 16
      %v392 = vor.u32 %v389, %v390
      %v393 = vsel %vm380, %v385, %v392
      %v395 = vshrl.u32 %v364, 16
      %v397 = vrot.slane %v395, 7
      %v398 = vrot.slane %v397, 4
      %v400 = vshrl.u32 %v365, 16
      %v402 = vrot.slane %v400, 7
      %v403 = vshll.u32 %v365, 16
      %v405 = vor.u32 %v402, %v403
      %v406 = vsel %vm380, %v398, %v405
      %v408 = vshrl.u32 %v366, 16
      %v410 = vrot.slane %v408, 7
      %v411 = vrot.slane %v410, 4
      %v413 = vshrl.u32 %v367, 16
      %v415 = vrot.slane %v413, 7
      %v416 = vshll.u32 %v367, 16
      %v418 = vor.u32 %v415, %v416
      %v419 = vsel %vm380, %v411, %v418
      %v421 = vshrl.u32 %v368, 16
      %v423 = vrot.slane %v421, 7
      %v424 = vrot.slane %v423, 4
      %v426 = vshrl.u32 %v369, 16
      %v428 = vrot.slane %v426, 7
      %v429 = vshll.u32 %v369, 16
      %v431 = vor.u32 %v428, %v429
      %v432 = vsel %vm380, %v424, %v431
      %v434 = vshrl.u32 %v370, 16
      %v436 = vrot.slane %v434, 7
      %v437 = vrot.slane %v436, 4
      %v439 = vshrl.u32 %v371, 16
      %v441 = vrot.slane %v439, 7
      %v442 = vshll.u32 %v371, 16
      %v444 = vor.u32 %v441, %v442
      %v445 = vsel %vm380, %v437, %v444
      %v447 = vshrl.u32 %v372, 16
      %v449 = vrot.slane %v447, 7
      %v450 = vrot.slane %v449, 4
      %v452 = vshrl.u32 %v373, 16
      %v454 = vrot.slane %v452, 7
      %v455 = vshll.u32 %v373, 16
      %v457 = vor.u32 %v454, %v455
      %v458 = vsel %vm380, %v450, %v457
      %v460 = vshrl.u32 %v374, 16
      %v462 = vrot.slane %v460, 7
      %v463 = vrot.slane %v462, 4
      %v465 = vshrl.u32 %v375, 16
      %v467 = vrot.slane %v465, 7
      %v468 = vshll.u32 %v375, 16
      %v470 = vor.u32 %v467, %v468
      %v471 = vsel %vm380, %v463, %v470
      %v473 = vshrl.u32 %v376, 16
      %v475 = vrot.slane %v473, 7
      %v476 = vrot.slane %v475, 4
      %v478 = vshrl.u32 %v377, 16
      %v480 = vrot.slane %v478, 7
      %v481 = vshll.u32 %v377, 16
      %v483 = vor.u32 %v480, %v481
      %v484 = vsel %vm380, %v476, %v483
      %493 = vst [vmem:[#allocation3] sm:$0xf] %v393
      %494 = vst [vmem:[#allocation3 + $0x24] sm:$0xf] %v406
      %495 = vst [vmem:[#allocation3 + $0x48] sm:$0xf] %v419
      %496 = vst [vmem:[#allocation3 + $0x6c] sm:$0xf] %v432
      %497 = vst [vmem:[#allocation3 + $0x90] sm:$0xf] %v445
      %498 = vst [vmem:[#allocation3 + $0xb4] sm:$0xf] %v458
      %499 = vst [vmem:[#allocation3 + $0xd8] sm:$0xf] %v471
      %500 = vst [vmem:[#allocation3 + $0xfc] sm:$0xf] %v484
      %v501 = vld [vmem:[%s361 + $0x4] sm:$0xf]
      %v502 = vld [vmem:[%s361 + $0x10] sm:$0xf]
      %v503 = vld [vmem:[%s361 + $0x1c] sm:$0xf]
      %v504 = vld [vmem:[%s361 + $0x28] sm:$0xf]
      %v505 = vld [vmem:[%s361 + $0x34] sm:$0xf]
      %v506 = vld [vmem:[%s361 + $0x40] sm:$0xf]
      %v507 = vld [vmem:[%s361 + $0x4c] sm:$0xf]
      %v508 = vld [vmem:[%s361 + $0x58] sm:$0xf]
      %509 = vst [vmem:[#allocation3 + $0x4] sm:$0xf] %v501
      %510 = vst [vmem:[#allocation3 + $0x28] sm:$0xf] %v502
      %511 = vst [vmem:[#allocation3 + $0x4c] sm:$0xf] %v503
      %512 = vst [vmem:[#allocation3 + $0x70] sm:$0xf] %v504
      %513 = vst [vmem:[#allocation3 + $0x94] sm:$0xf] %v505
      %514 = vst [vmem:[#allocation3 + $0xb8] sm:$0xf] %v506
      %515 = vst [vmem:[#allocation3 + $0xdc] sm:$0xf] %v507
      %516 = vst [vmem:[#allocation3 + $0x100] sm:$0xf] %v508
      %v517 = vld [vmem:[%s361 + $0x4] sm:$0xf]
      %v518 = vld [vmem:[%s361 + $0x8] sm:$0x1]
      %v519 = vld [vmem:[%s361 + $0x10] sm:$0xf]
      %v520 = vld [vmem:[%s361 + $0x14] sm:$0x1]
      %v521 = vld [vmem:[%s361 + $0x1c] sm:$0xf]
      %v522 = vld [vmem:[%s361 + $0x20] sm:$0x1]
      %v523 = vld [vmem:[%s361 + $0x28] sm:$0xf]
      %v524 = vld [vmem:[%s361 + $0x2c] sm:$0x1]
      %v525 = vld [vmem:[%s361 + $0x34] sm:$0xf]
      %v526 = vld [vmem:[%s361 + $0x38] sm:$0x1]
      %v527 = vld [vmem:[%s361 + $0x40] sm:$0xf]
      %v528 = vld [vmem:[%s361 + $0x44] sm:$0x1]
      %v529 = vld [vmem:[%s361 + $0x4c] sm:$0xf]
      %v530 = vld [vmem:[%s361 + $0x50] sm:$0x1]
      %v531 = vld [vmem:[%s361 + $0x58] sm:$0xf]
      %v532 = vld [vmem:[%s361 + $0x5c] sm:$0x1]
      %vm533 = vsmask.f32 3328
      %vm534 = vsmask.f32 7440
      %vm535 = vmor %vm533, %vm534
      %v537 = vshrl.u32 %v517, 16
      %v539 = vrot.slane %v537, 4
      %v540 = vshll.u32 %v517, 16
      %v542 = vrot.slane %v540, 5
      %v543 = vor.u32 %v539, %v542
      %v544 = vrot.slane %v543, 4
      %v546 = vshll.u32 %v518, 16
      %v548 = vrot.slane %v546, 5
      %v549 = vsel %vm535, %v544, %v548
      %v551 = vshrl.u32 %v519, 16
      %v553 = vrot.slane %v551, 4
      %v554 = vshll.u32 %v519, 16
      %v556 = vrot.slane %v554, 5
      %v557 = vor.u32 %v553, %v556
      %v558 = vrot.slane %v557, 4
      %v560 = vshll.u32 %v520, 16
      %v562 = vrot.slane %v560, 5
      %v563 = vsel %vm535, %v558, %v562
      %v565 = vshrl.u32 %v521, 16
      %v567 = vrot.slane %v565, 4
      %v568 = vshll.u32 %v521, 16
      %v570 = vrot.slane %v568, 5
      %v571 = vor.u32 %v567, %v570
      %v572 = vrot.slane %v571, 4
      %v574 = vshll.u32 %v522, 16
      %v576 = vrot.slane %v574, 5
      %v577 = vsel %vm535, %v572, %v576
      %v579 = vshrl.u32 %v523, 16
      %v581 = vrot.slane %v579, 4
      %v582 = vshll.u32 %v523, 16
      %v584 = vrot.slane %v582, 5
      %v585 = vor.u32 %v581, %v584
      %v586 = vrot.slane %v585, 4
      %v588 = vshll.u32 %v524, 16
      %v590 = vrot.slane %v588, 5
      %v591 = vsel %vm535, %v586, %v590
      %v593 = vshrl.u32 %v525, 16
      %v595 = vrot.slane %v593, 4
      %v596 = vshll.u32 %v525, 16
      %v598 = vrot.slane %v596, 5
      %v599 = vor.u32 %v595, %v598
      %v600 = vrot.slane %v599, 4
      %v602 = vshll.u32 %v526, 16
      %v604 = vrot.slane %v602, 5
      %v605 = vsel %vm535, %v600, %v604
      %v607 = vshrl.u32 %v527, 16
      %v609 = vrot.slane %v607, 4
      %v610 = vshll.u32 %v527, 16
      %v612 = vrot.slane %v610, 5
      %v613 = vor.u32 %v609, %v612
      %v614 = vrot.slane %v613, 4
      %v616 = vshll.u32 %v528, 16
      %v618 = vrot.slane %v616, 5
      %v619 = vsel %vm535, %v614, %v618
      %v621 = vshrl.u32 %v529, 16
      %v623 = vrot.slane %v621, 4
      %v624 = vshll.u32 %v529, 16
      %v626 = vrot.slane %v624, 5
      %v627 = vor.u32 %v623, %v626
      %v628 = vrot.slane %v627, 4
      %v630 = vshll.u32 %v530, 16
      %v632 = vrot.slane %v630, 5
      %v633 = vsel %vm535, %v628, %v632
      %v635 = vshrl.u32 %v531, 16
      %v637 = vrot.slane %v635, 4
      %v638 = vshll.u32 %v531, 16
      %v640 = vrot.slane %v638, 5
      %v641 = vor.u32 %v637, %v640
      %v642 = vrot.slane %v641, 4
      %v644 = vshll.u32 %v532, 16
      %v646 = vrot.slane %v644, 5
      %v647 = vsel %vm535, %v642, %v646
      %656 = vst [vmem:[#allocation3 + $0x8] sm:$0xf] %v549
      %657 = vst [vmem:[#allocation3 + $0x2c] sm:$0xf] %v563
      %658 = vst [vmem:[#allocation3 + $0x50] sm:$0xf] %v577
      %659 = vst [vmem:[#allocation3 + $0x74] sm:$0xf] %v591
      %660 = vst [vmem:[#allocation3 + $0x98] sm:$0xf] %v605
      %661 = vst [vmem:[#allocation3 + $0xbc] sm:$0xf] %v619
      %662 = vst [vmem:[#allocation3 + $0xe0] sm:$0xf] %v633
      %663 = vst [vmem:[#allocation3 + $0x104] sm:$0xf] %v647
      %v664 = vld [vmem:[%s288] sm:$0x8]
      %v665 = vld [vmem:[%s288 + $0x4] sm:$0xf]
      %v666 = vld [vmem:[%s288 + $0xc] sm:$0x8]
      %v667 = vld [vmem:[%s288 + $0x10] sm:$0xf]
      %v668 = vld [vmem:[%s288 + $0x18] sm:$0x8]
      %v669 = vld [vmem:[%s288 + $0x1c] sm:$0xf]
      %v670 = vld [vmem:[%s288 + $0x24] sm:$0x8]
      %v671 = vld [vmem:[%s288 + $0x28] sm:$0xf]
      %v672 = vld [vmem:[%s288 + $0x30] sm:$0x8]
      %v673 = vld [vmem:[%s288 + $0x34] sm:$0xf]
      %v674 = vld [vmem:[%s288 + $0x3c] sm:$0x8]
      %v675 = vld [vmem:[%s288 + $0x40] sm:$0xf]
      %v676 = vld [vmem:[%s288 + $0x48] sm:$0x8]
      %v677 = vld [vmem:[%s288 + $0x4c] sm:$0xf]
      %v678 = vld [vmem:[%s288 + $0x54] sm:$0x8]
      %v679 = vld [vmem:[%s288 + $0x58] sm:$0xf]
      %v681 = vshrl.u32 %v664, 16
      %v683 = vrot.slane %v681, 7
      %v684 = vrot.slane %v683, 4
      %v686 = vshrl.u32 %v665, 16
      %v688 = vrot.slane %v686, 7
      %v689 = vshll.u32 %v665, 16
      %v691 = vor.u32 %v688, %v689
      %v692 = vsel %vm380, %v684, %v691
      %v694 = vshrl.u32 %v666, 16
      %v696 = vrot.slane %v694, 7
      %v697 = vrot.slane %v696, 4
      %v699 = vshrl.u32 %v667, 16
      %v701 = vrot.slane %v699, 7
      %v702 = vshll.u32 %v667, 16
      %v704 = vor.u32 %v701, %v702
      %v705 = vsel %vm380, %v697, %v704
      %v707 = vshrl.u32 %v668, 16
      %v709 = vrot.slane %v707, 7
      %v710 = vrot.slane %v709, 4
      %v712 = vshrl.u32 %v669, 16
      %v714 = vrot.slane %v712, 7
      %v715 = vshll.u32 %v669, 16
      %v717 = vor.u32 %v714, %v715
      %v718 = vsel %vm380, %v710, %v717
      %v720 = vshrl.u32 %v670, 16
      %v722 = vrot.slane %v720, 7
      %v723 = vrot.slane %v722, 4
      %v725 = vshrl.u32 %v671, 16
      %v727 = vrot.slane %v725, 7
      %v728 = vshll.u32 %v671, 16
      %v730 = vor.u32 %v727, %v728
      %v731 = vsel %vm380, %v723, %v730
      %v733 = vshrl.u32 %v672, 16
      %v735 = vrot.slane %v733, 7
      %v736 = vrot.slane %v735, 4
      %v738 = vshrl.u32 %v673, 16
      %v740 = vrot.slane %v738, 7
      %v741 = vshll.u32 %v673, 16
      %v743 = vor.u32 %v740, %v741
      %v744 = vsel %vm380, %v736, %v743
      %v746 = vshrl.u32 %v674, 16
      %v748 = vrot.slane %v746, 7
      %v749 = vrot.slane %v748, 4
      %v751 = vshrl.u32 %v675, 16
      %v753 = vrot.slane %v751, 7
      %v754 = vshll.u32 %v675, 16
      %v756 = vor.u32 %v753, %v754
      %v757 = vsel %vm380, %v749, %v756
      %v759 = vshrl.u32 %v676, 16
      %v761 = vrot.slane %v759, 7
      %v762 = vrot.slane %v761, 4
      %v764 = vshrl.u32 %v677, 16
      %v766 = vrot.slane %v764, 7
      %v767 = vshll.u32 %v677, 16
      %v769 = vor.u32 %v766, %v767
      %v770 = vsel %vm380, %v762, %v769
      %v772 = vshrl.u32 %v678, 16
      %v774 = vrot.slane %v772, 7
      %v775 = vrot.slane %v774, 4
      %v777 = vshrl.u32 %v679, 16
      %v779 = vrot.slane %v777, 7
      %v780 = vshll.u32 %v679, 16
      %v782 = vor.u32 %v779, %v780
      %v783 = vsel %vm380, %v775, %v782
      %792 = vst [vmem:[#allocation3 + $0xc] sm:$0xf] %v692
      %793 = vst [vmem:[#allocation3 + $0x30] sm:$0xf] %v705
      %794 = vst [vmem:[#allocation3 + $0x54] sm:$0xf] %v718
      %795 = vst [vmem:[#allocation3 + $0x78] sm:$0xf] %v731
      %796 = vst [vmem:[#allocation3 + $0x9c] sm:$0xf] %v744
      %797 = vst [vmem:[#allocation3 + $0xc0] sm:$0xf] %v757
      %798 = vst [vmem:[#allocation3 + $0xe4] sm:$0xf] %v770
      %799 = vst [vmem:[#allocation3 + $0x108] sm:$0xf] %v783
      %v800 = vld [vmem:[%s288 + $0x4] sm:$0xf]
      %v801 = vld [vmem:[%s288 + $0x10] sm:$0xf]
      %v802 = vld [vmem:[%s288 + $0x1c] sm:$0xf]
      %v803 = vld [vmem:[%s288 + $0x28] sm:$0xf]
      %v804 = vld [vmem:[%s288 + $0x34] sm:$0xf]
      %v805 = vld [vmem:[%s288 + $0x40] sm:$0xf]
      %v806 = vld [vmem:[%s288 + $0x4c] sm:$0xf]
      %v807 = vld [vmem:[%s288 + $0x58] sm:$0xf]
      %808 = vst [vmem:[#allocation3 + $0x10] sm:$0xf] %v800
      %809 = vst [vmem:[#allocation3 + $0x34] sm:$0xf] %v801
      %810 = vst [vmem:[#allocation3 + $0x58] sm:$0xf] %v802
      %811 = vst [vmem:[#allocation3 + $0x7c] sm:$0xf] %v803
      %812 = vst [vmem:[#allocation3 + $0xa0] sm:$0xf] %v804
      %813 = vst [vmem:[#allocation3 + $0xc4] sm:$0xf] %v805
      %814 = vst [vmem:[#allocation3 + $0xe8] sm:$0xf] %v806
      %815 = vst [vmem:[#allocation3 + $0x10c] sm:$0xf] %v807
      %v816 = vld [vmem:[%s288 + $0x4] sm:$0xf]
      %v817 = vld [vmem:[%s288 + $0x8] sm:$0x1]
      %v818 = vld [vmem:[%s288 + $0x10] sm:$0xf]
      %v819 = vld [vmem:[%s288 + $0x14] sm:$0x1]
      %v820 = vld [vmem:[%s288 + $0x1c] sm:$0xf]
      %v821 = vld [vmem:[%s288 + $0x20] sm:$0x1]
      %v822 = vld [vmem:[%s288 + $0x28] sm:$0xf]
      %v823 = vld [vmem:[%s288 + $0x2c] sm:$0x1]
      %v824 = vld [vmem:[%s288 + $0x34] sm:$0xf]
      %v825 = vld [vmem:[%s288 + $0x38] sm:$0x1]
      %v826 = vld [vmem:[%s288 + $0x40] sm:$0xf]
      %v827 = vld [vmem:[%s288 + $0x44] sm:$0x1]
      %v828 = vld [vmem:[%s288 + $0x4c] sm:$0xf]
      %v829 = vld [vmem:[%s288 + $0x50] sm:$0x1]
      %v830 = vld [vmem:[%s288 + $0x58] sm:$0xf]
      %v831 = vld [vmem:[%s288 + $0x5c] sm:$0x1]
      %v833 = vshrl.u32 %v816, 16
      %v835 = vrot.slane %v833, 4
      %v836 = vshll.u32 %v816, 16
      %v838 = vrot.slane %v836, 5
      %v839 = vor.u32 %v835, %v838
      %v840 = vrot.slane %v839, 4
      %v842 = vshll.u32 %v817, 16
      %v844 = vrot.slane %v842, 5
      %v845 = vsel %vm535, %v840, %v844
      %v847 = vshrl.u32 %v818, 16
      %v849 = vrot.slane %v847, 4
      %v850 = vshll.u32 %v818, 16
      %v852 = vrot.slane %v850, 5
      %v853 = vor.u32 %v849, %v852
      %v854 = vrot.slane %v853, 4
      %v856 = vshll.u32 %v819, 16
      %v858 = vrot.slane %v856, 5
      %v859 = vsel %vm535, %v854, %v858
      %v861 = vshrl.u32 %v820, 16
      %v863 = vrot.slane %v861, 4
      %v864 = vshll.u32 %v820, 16
      %v866 = vrot.slane %v864, 5
      %v867 = vor.u32 %v863, %v866
      %v868 = vrot.slane %v867, 4
      %v870 = vshll.u32 %v821, 16
      %v872 = vrot.slane %v870, 5
      %v873 = vsel %vm535, %v868, %v872
      %v875 = vshrl.u32 %v822, 16
      %v877 = vrot.slane %v875, 4
      %v878 = vshll.u32 %v822, 16
      %v880 = vrot.slane %v878, 5
      %v881 = vor.u32 %v877, %v880
      %v882 = vrot.slane %v881, 4
      %v884 = vshll.u32 %v823, 16
      %v886 = vrot.slane %v884, 5
      %v887 = vsel %vm535, %v882, %v886
      %v889 = vshrl.u32 %v824, 16
      %v891 = vrot.slane %v889, 4
      %v892 = vshll.u32 %v824, 16
      %v894 = vrot.slane %v892, 5
      %v895 = vor.u32 %v891, %v894
      %v896 = vrot.slane %v895, 4
      %v898 = vshll.u32 %v825, 16
      %v900 = vrot.slane %v898, 5
      %v901 = vsel %vm535, %v896, %v900
      %v903 = vshrl.u32 %v826, 16
      %v905 = vrot.slane %v903, 4
      %v906 = vshll.u32 %v826, 16
      %v908 = vrot.slane %v906, 5
      %v909 = vor.u32 %v905, %v908
      %v910 = vrot.slane %v909, 4
      %v912 = vshll.u32 %v827, 16
      %v914 = vrot.slane %v912, 5
      %v915 = vsel %vm535, %v910, %v914
      %v917 = vshrl.u32 %v828, 16
      %v919 = vrot.slane %v917, 4
      %v920 = vshll.u32 %v828, 16
      %v922 = vrot.slane %v920, 5
      %v923 = vor.u32 %v919, %v922
      %v924 = vrot.slane %v923, 4
      %v926 = vshll.u32 %v829, 16
      %v928 = vrot.slane %v926, 5
      %v929 = vsel %vm535, %v924, %v928
      %v931 = vshrl.u32 %v830, 16
      %v933 = vrot.slane %v931, 4
      %v934 = vshll.u32 %v830, 16
      %v936 = vrot.slane %v934, 5
      %v937 = vor.u32 %v933, %v936
      %v938 = vrot.slane %v937, 4
      %v940 = vshll.u32 %v831, 16
      %v942 = vrot.slane %v940, 5
      %v943 = vsel %vm535, %v938, %v942
      %952 = vst [vmem:[#allocation3 + $0x14] sm:$0xf] %v845
      %953 = vst [vmem:[#allocation3 + $0x38] sm:$0xf] %v859
      %954 = vst [vmem:[#allocation3 + $0x5c] sm:$0xf] %v873
      %955 = vst [vmem:[#allocation3 + $0x80] sm:$0xf] %v887
      %956 = vst [vmem:[#allocation3 + $0xa4] sm:$0xf] %v901
      %957 = vst [vmem:[#allocation3 + $0xc8] sm:$0xf] %v915
      %958 = vst [vmem:[#allocation3 + $0xec] sm:$0xf] %v929
      %959 = vst [vmem:[#allocation3 + $0x110] sm:$0xf] %v943
      %s960 = scalar_lea.vmem [#allocation2], 48
      %v961 = vld [vmem:[%s960] sm:$0x8]
      %v962 = vld [vmem:[%s960 + $0x4] sm:$0xf]
      %v963 = vld [vmem:[%s960 + $0xc] sm:$0x8]
      %v964 = vld [vmem:[%s960 + $0x10] sm:$0xf]
      %v965 = vld [vmem:[%s960 + $0x18] sm:$0x8]
      %v966 = vld [vmem:[%s960 + $0x1c] sm:$0xf]
      %v967 = vld [vmem:[%s960 + $0x24] sm:$0x8]
      %v968 = vld [vmem:[%s960 + $0x28] sm:$0xf]
      %v969 = vld [vmem:[%s960 + $0x30] sm:$0x8]
      %v970 = vld [vmem:[%s960 + $0x34] sm:$0xf]
      %v971 = vld [vmem:[%s960 + $0x3c] sm:$0x8]
      %v972 = vld [vmem:[%s960 + $0x40] sm:$0xf]
      %v973 = vld [vmem:[%s960 + $0x48] sm:$0x8]
      %v974 = vld [vmem:[%s960 + $0x4c] sm:$0xf]
      %v975 = vld [vmem:[%s960 + $0x54] sm:$0x8]
      %v976 = vld [vmem:[%s960 + $0x58] sm:$0xf]
      %v978 = vshrl.u32 %v961, 16
      %v980 = vrot.slane %v978, 7
      %v981 = vrot.slane %v980, 4
      %v983 = vshrl.u32 %v962, 16
      %v985 = vrot.slane %v983, 7
      %v986 = vshll.u32 %v962, 16
      %v988 = vor.u32 %v985, %v986
      %v989 = vsel %vm380, %v981, %v988
      %v991 = vshrl.u32 %v963, 16
      %v993 = vrot.slane %v991, 7
      %v994 = vrot.slane %v993, 4
      %v996 = vshrl.u32 %v964, 16
      %v998 = vrot.slane %v996, 7
      %v999 = vshll.u32 %v964, 16
      %v1001 = vor.u32 %v998, %v999
      %v1002 = vsel %vm380, %v994, %v1001
      %v1004 = vshrl.u32 %v965, 16
      %v1006 = vrot.slane %v1004, 7
      %v1007 = vrot.slane %v1006, 4
      %v1009 = vshrl.u32 %v966, 16
      %v1011 = vrot.slane %v1009, 7
      %v1012 = vshll.u32 %v966, 16
      %v1014 = vor.u32 %v1011, %v1012
      %v1015 = vsel %vm380, %v1007, %v1014
      %v1017 = vshrl.u32 %v967, 16
      %v1019 = vrot.slane %v1017, 7
      %v1020 = vrot.slane %v1019, 4
      %v1022 = vshrl.u32 %v968, 16
      %v1024 = vrot.slane %v1022, 7
      %v1025 = vshll.u32 %v968, 16
      %v1027 = vor.u32 %v1024, %v1025
      %v1028 = vsel %vm380, %v1020, %v1027
      %v1030 = vshrl.u32 %v969, 16
      %v1032 = vrot.slane %v1030, 7
      %v1033 = vrot.slane %v1032, 4
      %v1035 = vshrl.u32 %v970, 16
      %v1037 = vrot.slane %v1035, 7
      %v1038 = vshll.u32 %v970, 16
      %v1040 = vor.u32 %v1037, %v1038
      %v1041 = vsel %vm380, %v1033, %v1040
      %v1043 = vshrl.u32 %v971, 16
      %v1045 = vrot.slane %v1043, 7
      %v1046 = vrot.slane %v1045, 4
      %v1048 = vshrl.u32 %v972, 16
      %v1050 = vrot.slane %v1048, 7
      %v1051 = vshll.u32 %v972, 16
      %v1053 = vor.u32 %v1050, %v1051
      %v1054 = vsel %vm380, %v1046, %v1053
      %v1056 = vshrl.u32 %v973, 16
      %v1058 = vrot.slane %v1056, 7
      %v1059 = vrot.slane %v1058, 4
      %v1061 = vshrl.u32 %v974, 16
      %v1063 = vrot.slane %v1061, 7
      %v1064 = vshll.u32 %v974, 16
      %v1066 = vor.u32 %v1063, %v1064
      %v1067 = vsel %vm380, %v1059, %v1066
      %v1069 = vshrl.u32 %v975, 16
      %v1071 = vrot.slane %v1069, 7
      %v1072 = vrot.slane %v1071, 4
      %v1074 = vshrl.u32 %v976, 16
      %v1076 = vrot.slane %v1074, 7
      %v1077 = vshll.u32 %v976, 16
      %v1079 = vor.u32 %v1076, %v1077
      %v1080 = vsel %vm380, %v1072, %v1079
      %1089 = vst [vmem:[#allocation3 + $0x18] sm:$0xf] %v989
      %1090 = vst [vmem:[#allocation3 + $0x3c] sm:$0xf] %v1002
      %1091 = vst [vmem:[#allocation3 + $0x60] sm:$0xf] %v1015
      %1092 = vst [vmem:[#allocation3 + $0x84] sm:$0xf] %v1028
      %1093 = vst [vmem:[#allocation3 + $0xa8] sm:$0xf] %v1041
      %1094 = vst [vmem:[#allocation3 + $0xcc] sm:$0xf] %v1054
      %1095 = vst [vmem:[#allocation3 + $0xf0] sm:$0xf] %v1067
      %1096 = vst [vmem:[#allocation3 + $0x114] sm:$0xf] %v1080
      %v1097 = vld [vmem:[%s960 + $0x4] sm:$0xf]
      %v1098 = vld [vmem:[%s960 + $0x10] sm:$0xf]
      %v1099 = vld [vmem:[%s960 + $0x1c] sm:$0xf]
      %v1100 = vld [vmem:[%s960 + $0x28] sm:$0xf]
      %v1101 = vld [vmem:[%s960 + $0x34] sm:$0xf]
      %v1102 = vld [vmem:[%s960 + $0x40] sm:$0xf]
      %v1103 = vld [vmem:[%s960 + $0x4c] sm:$0xf]
      %v1104 = vld [vmem:[%s960 + $0x58] sm:$0xf]
      %1105 = vst [vmem:[#allocation3 + $0x1c] sm:$0xf] %v1097
      %1106 = vst [vmem:[#allocation3 + $0x40] sm:$0xf] %v1098
      %1107 = vst [vmem:[#allocation3 + $0x64] sm:$0xf] %v1099
      %1108 = vst [vmem:[#allocation3 + $0x88] sm:$0xf] %v1100
      %1109 = vst [vmem:[#allocation3 + $0xac] sm:$0xf] %v1101
      %1110 = vst [vmem:[#allocation3 + $0xd0] sm:$0xf] %v1102
      %1111 = vst [vmem:[#allocation3 + $0xf4] sm:$0xf] %v1103
      %1112 = vst [vmem:[#allocation3 + $0x118] sm:$0xf] %v1104
      %v1113 = vld [vmem:[%s960 + $0x4] sm:$0xf]
      %v1114 = vld [vmem:[%s960 + $0x8] sm:$0x1]
      %v1115 = vld [vmem:[%s960 + $0x10] sm:$0xf]
      %v1116 = vld [vmem:[%s960 + $0x14] sm:$0x1]
      %v1117 = vld [vmem:[%s960 + $0x1c] sm:$0xf]
      %v1118 = vld [vmem:[%s960 + $0x20] sm:$0x1]
      %v1119 = vld [vmem:[%s960 + $0x28] sm:$0xf]
      %v1120 = vld [vmem:[%s960 + $0x2c] sm:$0x1]
      %v1121 = vld [vmem:[%s960 + $0x34] sm:$0xf]
      %v1122 = vld [vmem:[%s960 + $0x38] sm:$0x1]
      %v1123 = vld [vmem:[%s960 + $0x40] sm:$0xf]
      %v1124 = vld [vmem:[%s960 + $0x44] sm:$0x1]
      %v1125 = vld [vmem:[%s960 + $0x4c] sm:$0xf]
      %v1126 = vld [vmem:[%s960 + $0x50] sm:$0x1]
      %v1127 = vld [vmem:[%s960 + $0x58] sm:$0xf]
      %v1128 = vld [vmem:[%s960 + $0x5c] sm:$0x1]
      %v1130 = vshrl.u32 %v1113, 16
      %v1132 = vrot.slane %v1130, 4
      %v1133 = vshll.u32 %v1113, 16
      %v1135 = vrot.slane %v1133, 5
      %v1136 = vor.u32 %v1132, %v1135
      %v1137 = vrot.slane %v1136, 4
      %v1139 = vshll.u32 %v1114, 16
      %v1141 = vrot.slane %v1139, 5
      %v1142 = vsel %vm535, %v1137, %v1141
      %v1144 = vshrl.u32 %v1115, 16
      %v1146 = vrot.slane %v1144, 4
      %v1147 = vshll.u32 %v1115, 16
      %v1149 = vrot.slane %v1147, 5
      %v1150 = vor.u32 %v1146, %v1149
      %v1151 = vrot.slane %v1150, 4
      %v1153 = vshll.u32 %v1116, 16
      %v1155 = vrot.slane %v1153, 5
      %v1156 = vsel %vm535, %v1151, %v1155
      %v1158 = vshrl.u32 %v1117, 16
      %v1160 = vrot.slane %v1158, 4
      %v1161 = vshll.u32 %v1117, 16
      %v1163 = vrot.slane %v1161, 5
      %v1164 = vor.u32 %v1160, %v1163
      %v1165 = vrot.slane %v1164, 4
      %v1167 = vshll.u32 %v1118, 16
      %v1169 = vrot.slane %v1167, 5
      %v1170 = vsel %vm535, %v1165, %v1169
      %v1172 = vshrl.u32 %v1119, 16
      %v1174 = vrot.slane %v1172, 4
      %v1175 = vshll.u32 %v1119, 16
      %v1177 = vrot.slane %v1175, 5
      %v1178 = vor.u32 %v1174, %v1177
      %v1179 = vrot.slane %v1178, 4
      %v1181 = vshll.u32 %v1120, 16
      %v1183 = vrot.slane %v1181, 5
      %v1184 = vsel %vm535, %v1179, %v1183
      %v1186 = vshrl.u32 %v1121, 16
      %v1188 = vrot.slane %v1186, 4
      %v1189 = vshll.u32 %v1121, 16
      %v1191 = vrot.slane %v1189, 5
      %v1192 = vor.u32 %v1188, %v1191
      %v1193 = vrot.slane %v1192, 4
      %v1195 = vshll.u32 %v1122, 16
      %v1197 = vrot.slane %v1195, 5
      %v1198 = vsel %vm535, %v1193, %v1197
      %v1200 = vshrl.u32 %v1123, 16
      %v1202 = vrot.slane %v1200, 4
      %v1203 = vshll.u32 %v1123, 16
      %v1205 = vrot.slane %v1203, 5
      %v1206 = vor.u32 %v1202, %v1205
      %v1207 = vrot.slane %v1206, 4
      %v1209 = vshll.u32 %v1124, 16
      %v1211 = vrot.slane %v1209, 5
      %v1212 = vsel %vm535, %v1207, %v1211
      %v1214 = vshrl.u32 %v1125, 16
      %v1216 = vrot.slane %v1214, 4
      %v1217 = vshll.u32 %v1125, 16
      %v1219 = vrot.slane %v1217, 5
      %v1220 = vor.u32 %v1216, %v1219
      %v1221 = vrot.slane %v1220, 4
      %v1223 = vshll.u32 %v1126, 16
      %v1225 = vrot.slane %v1223, 5
      %v1226 = vsel %vm535, %v1221, %v1225
      %v1228 = vshrl.u32 %v1127, 16
      %v1230 = vrot.slane %v1228, 4
      %v1231 = vshll.u32 %v1127, 16
      %v1233 = vrot.slane %v1231, 5
      %v1234 = vor.u32 %v1230, %v1233
      %v1235 = vrot.slane %v1234, 4
      %v1237 = vshll.u32 %v1128, 16
      %v1239 = vrot.slane %v1237, 5
      %v1240 = vsel %vm535, %v1235, %v1239
      %1249 = vst [vmem:[#allocation3 + $0x20] sm:$0xf] %v1142
      %1250 = vst [vmem:[#allocation3 + $0x44] sm:$0xf] %v1156
      %1251 = vst [vmem:[#allocation3 + $0x68] sm:$0xf] %v1170
      %1252 = vst [vmem:[#allocation3 + $0x8c] sm:$0xf] %v1184
      %1253 = vst [vmem:[#allocation3 + $0xb0] sm:$0xf] %v1198
      %1254 = vst [vmem:[#allocation3 + $0xd4] sm:$0xf] %v1212
      %1255 = vst [vmem:[#allocation3 + $0xf8] sm:$0xf] %v1226
      %1256 = vst [vmem:[#allocation3 + $0x11c] sm:$0xf] %v1240
      %v1257 = vld [vmem:[#allocation3] sm:$0xff]
      %v1258 = vld [vmem:[#allocation3 + $0x8] sm:$0xff]
      %v1259 = vld [vmem:[#allocation3 + $0x10] sm:$0xff]
      %v1260 = vld [vmem:[#allocation3 + $0x18] sm:$0xff]
      %v1261 = vld [vmem:[#allocation3 + $0x20] sm:$0xf]
      %v1262 = vld [vmem:[#allocation3 + $0x24] sm:$0xff]
      %v1263 = vld [vmem:[#allocation3 + $0x2c] sm:$0xff]
      %v1264 = vld [vmem:[#allocation3 + $0x34] sm:$0xff]
      %v1265 = vld [vmem:[#allocation3 + $0x3c] sm:$0xff]
      %v1266 = vld [vmem:[#allocation3 + $0x44] sm:$0xf]
      %v1267 = vld [vmem:[#allocation3 + $0x48] sm:$0xff]
      %v1268 = vld [vmem:[#allocation3 + $0x50] sm:$0xff]
      %v1269 = vld [vmem:[#allocation3 + $0x58] sm:$0xff]
      %v1270 = vld [vmem:[#allocation3 + $0x60] sm:$0xff]
      %v1271 = vld [vmem:[#allocation3 + $0x68] sm:$0xf]
      %v1272 = vld [vmem:[#allocation3 + $0x6c] sm:$0xff]
      %v1273 = vld [vmem:[#allocation3 + $0x74] sm:$0xff]
      %v1274 = vld [vmem:[#allocation3 + $0x7c] sm:$0xff]
      %v1275 = vld [vmem:[#allocation3 + $0x84] sm:$0xff]
      %v1276 = vld [vmem:[#allocation3 + $0x8c] sm:$0xf]
      %v1277 = vld [vmem:[#allocation3 + $0x90] sm:$0xff]
      %v1278 = vld [vmem:[#allocation3 + $0x98] sm:$0xff]
      %v1279 = vld [vmem:[#allocation3 + $0xa0] sm:$0xff]
      %v1280 = vld [vmem:[#allocation3 + $0xa8] sm:$0xff]
      %v1281 = vld [vmem:[#allocation3 + $0xb0] sm:$0xf]
      %v1282 = vld [vmem:[#allocation3 + $0xb4] sm:$0xff]
      %v1283 = vld [vmem:[#allocation3 + $0xbc] sm:$0xff]
      %v1284 = vld [vmem:[#allocation3 + $0xc4] sm:$0xff]
      %v1285 = vld [vmem:[#allocation3 + $0xcc] sm:$0xff]
      %v1286 = vld [vmem:[#allocation3 + $0xd4] sm:$0xf]
      %v1287 = vld [vmem:[#allocation3 + $0xd8] sm:$0xff]
      %v1288 = vld [vmem:[#allocation3 + $0xe0] sm:$0xff]
      %v1289 = vld [vmem:[#allocation3 + $0xe8] sm:$0xff]
      %v1290 = vld [vmem:[#allocation3 + $0xf0] sm:$0xff]
      %v1291 = vld [vmem:[#allocation3 + $0xf8] sm:$0xf]
      %v1292 = vld [vmem:[#allocation3 + $0xfc] sm:$0xff]
      %v1293 = vld [vmem:[#allocation3 + $0x104] sm:$0xff]
      %v1294 = vld [vmem:[#allocation3 + $0x10c] sm:$0xff]
      %v1295 = vld [vmem:[#allocation3 + $0x114] sm:$0xff]
      %v1296 = vld [vmem:[#allocation3 + $0x11c] sm:$0xf]
      %v1297 = vld [vmem:[%s1] sm:$0xf]
      %v1298 = vld [vmem:[%s1 + $0x4] sm:$0xf]
      %v1299 = vld [vmem:[%s1 + $0x8] sm:$0xf]
      %v1300 = vld [vmem:[%s1 + $0xc] sm:$0xf]
      %v1301 = vld [vmem:[%s1 + $0x10] sm:$0xf]
      %v1302 = vld [vmem:[%s1 + $0x14] sm:$0xf]
      %v1303 = vld [vmem:[%s1 + $0x18] sm:$0xf]
      %v1304 = vld [vmem:[%s1 + $0x1c] sm:$0xf]
      %v1305 = vld [vmem:[%s1 + $0x20] sm:$0xf]
      %v1306 = vld [vmem:[%s1 + $0x24] sm:$0xf]
      %v1307 = vld [vmem:[%s1 + $0x28] sm:$0xf]
      %v1308 = vld [vmem:[%s1 + $0x2c] sm:$0xf]
      %v1309 = vld [vmem:[%s1 + $0x30] sm:$0xf]
      %v1310 = vld [vmem:[%s1 + $0x34] sm:$0xf]
      %v1311 = vld [vmem:[%s1 + $0x38] sm:$0xf]
      %v1312 = vld [vmem:[%s1 + $0x3c] sm:$0xf]
      %v1313 = vld [vmem:[%s1 + $0x40] sm:$0xf]
      %v1314 = vld [vmem:[%s1 + $0x44] sm:$0xf]
      %v1315 = vld [vmem:[%s1 + $0x48] sm:$0xf]
      %v1316 = vld [vmem:[%s1 + $0x4c] sm:$0xf]
      %v1317 = vld [vmem:[%s1 + $0x50] sm:$0xf]
      %v1318 = vld [vmem:[%s1 + $0x54] sm:$0xf]
      %v1319 = vld [vmem:[%s1 + $0x58] sm:$0xf]
      %v1320 = vld [vmem:[%s1 + $0x5c] sm:$0xf]
      %v1321 = vld [vmem:[%s1 + $0x60] sm:$0xf]
      %v1322 = vld [vmem:[%s1 + $0x64] sm:$0xf]
      %v1323 = vld [vmem:[%s1 + $0x68] sm:$0xf]
      %v1324 = vld [vmem:[%s1 + $0x6c] sm:$0xf]
      %v1325 = vld [vmem:[%s1 + $0x70] sm:$0xf]
      %v1326 = vld [vmem:[%s1 + $0x74] sm:$0xf]
      %v1327 = vld [vmem:[%s1 + $0x78] sm:$0xf]
      %v1328 = vld [vmem:[%s1 + $0x7c] sm:$0xf]
      %v1329 = vld [vmem:[%s1 + $0x80] sm:$0xf]
      %v1330 = vld [vmem:[%s1 + $0x84] sm:$0xf]
      %v1331 = vld [vmem:[%s1 + $0x88] sm:$0xf]
      %v1332 = vld [vmem:[%s1 + $0x8c] sm:$0xf]
      %v1333 = vld [vmem:[%s1 + $0x90] sm:$0xf]
      %v1334 = vld [vmem:[%s1 + $0x94] sm:$0xf]
      %v1335 = vld [vmem:[%s1 + $0x98] sm:$0xf]
      %v1336 = vld [vmem:[%s1 + $0x9c] sm:$0xf]
      %v1337 = vld [vmem:[%s1 + $0xa0] sm:$0xf]
      %v1338 = vld [vmem:[%s1 + $0xa4] sm:$0xf]
      %v1339 = vld [vmem:[%s1 + $0xa8] sm:$0xf]
      %v1340 = vld [vmem:[%s1 + $0xac] sm:$0xf]
      %v1341 = vld [vmem:[%s1 + $0xb0] sm:$0xf]
      %v1342 = vld [vmem:[%s1 + $0xb4] sm:$0xf]
      %v1343 = vld [vmem:[%s1 + $0xb8] sm:$0xf]
      %v1344 = vld [vmem:[%s1 + $0xbc] sm:$0xf]
      %v1345 = vld [vmem:[%s1 + $0xc0] sm:$0xf]
      %v1346 = vld [vmem:[%s1 + $0xc4] sm:$0xf]
      %v1347 = vld [vmem:[%s1 + $0xc8] sm:$0xf]
      %v1348 = vld [vmem:[%s1 + $0xcc] sm:$0xf]
      %v1349 = vld [vmem:[%s1 + $0xd0] sm:$0xf]
      %v1350 = vld [vmem:[%s1 + $0xd4] sm:$0xf]
      %v1351 = vld [vmem:[%s1 + $0xd8] sm:$0xf]
      %v1352 = vld [vmem:[%s1 + $0xdc] sm:$0xf]
      %v1353 = vld [vmem:[%s1 + $0xe0] sm:$0xf]
      %v1354 = vld [vmem:[%s1 + $0xe4] sm:$0xf]
      %v1355 = vld [vmem:[%s1 + $0xe8] sm:$0xf]
      %v1356 = vld [vmem:[%s1 + $0xec] sm:$0xf]
      %v1357 = vld [vmem:[%s1 + $0xf0] sm:$0xf]
      %v1358 = vld [vmem:[%s1 + $0xf4] sm:$0xf]
      %v1359 = vld [vmem:[%s1 + $0xf8] sm:$0xf]
      %v1360 = vld [vmem:[%s1 + $0xfc] sm:$0xf]
      %v1361 = vld [vmem:[%s1 + $0x100] sm:$0xf]
      %v1362 = vld [vmem:[%s1 + $0x104] sm:$0xf]
      %v1363 = vld [vmem:[%s1 + $0x108] sm:$0xf]
      %v1364 = vld [vmem:[%s1 + $0x10c] sm:$0xf]
      %v1365 = vld [vmem:[%s1 + $0x110] sm:$0xf]
      %v1366 = vld [vmem:[%s1 + $0x114] sm:$0xf]
      %v1367 = vld [vmem:[%s1 + $0x118] sm:$0xf]
      %v1368 = vld [vmem:[%s1 + $0x11c] sm:$0xf]
      %v1369 = vld [vmem:[%s1 + $0x120] sm:$0xf]
      %v1370 = vld [vmem:[%s1 + $0x124] sm:$0xf]
      %v1371 = vld [vmem:[%s1 + $0x128] sm:$0xf]
      %v1372 = vld [vmem:[%s1 + $0x12c] sm:$0xf]
      %v1373 = vld [vmem:[%s1 + $0x130] sm:$0xf]
      %v1374 = vld [vmem:[%s1 + $0x134] sm:$0xf]
      %v1375 = vld [vmem:[%s1 + $0x138] sm:$0xf]
      %v1376 = vld [vmem:[%s1 + $0x13c] sm:$0xf]
      %v1377 = vld [vmem:[%s1 + $0x140] sm:$0xf]
      %v1378 = vld [vmem:[%s1 + $0x144] sm:$0xf]
      %v1379 = vld [vmem:[%s1 + $0x148] sm:$0xf]
      %v1380 = vld [vmem:[%s1 + $0x14c] sm:$0xf]
      %v1381 = vld [vmem:[%s1 + $0x150] sm:$0xf]
      %v1382 = vld [vmem:[%s1 + $0x154] sm:$0xf]
      %v1383 = vld [vmem:[%s1 + $0x158] sm:$0xf]
      %v1384 = vld [vmem:[%s1 + $0x15c] sm:$0xf]
      %v1385 = vld [vmem:[%s1 + $0x160] sm:$0xf]
      %v1386 = vld [vmem:[%s1 + $0x164] sm:$0xf]
      %v1387 = vld [vmem:[%s1 + $0x168] sm:$0xf]
      %v1388 = vld [vmem:[%s1 + $0x16c] sm:$0xf]
      %v1389 = vld [vmem:[%s1 + $0x170] sm:$0xf]
      %v1390 = vld [vmem:[%s1 + $0x174] sm:$0xf]
      %v1391 = vld [vmem:[%s1 + $0x178] sm:$0xf]
      %v1392 = vld [vmem:[%s1 + $0x17c] sm:$0xf]
      %v1393 = vld [vmem:[%s1 + $0x180] sm:$0xf]
      %v1394 = vld [vmem:[%s1 + $0x184] sm:$0xf]
      %v1395 = vld [vmem:[%s1 + $0x188] sm:$0xf]
      %v1396 = vld [vmem:[%s1 + $0x18c] sm:$0xf]
      %v1397 = vld [vmem:[%s1 + $0x190] sm:$0xf]
      %v1398 = vld [vmem:[%s1 + $0x194] sm:$0xf]
      %v1399 = vld [vmem:[%s1 + $0x198] sm:$0xf]
      %v1400 = vld [vmem:[%s1 + $0x19c] sm:$0xf]
      %v1401 = vld [vmem:[%s1 + $0x1a0] sm:$0xf]
      %v1402 = vld [vmem:[%s1 + $0x1a4] sm:$0xf]
      %v1403 = vld [vmem:[%s1 + $0x1a8] sm:$0xf]
      %v1404 = vld [vmem:[%s1 + $0x1ac] sm:$0xf]
      %v1405 = vld [vmem:[%s1 + $0x1b0] sm:$0xf]
      %v1406 = vld [vmem:[%s1 + $0x1b4] sm:$0xf]
      %v1407 = vld [vmem:[%s1 + $0x1b8] sm:$0xf]
      %v1408 = vld [vmem:[%s1 + $0x1bc] sm:$0xf]
      %v1409 = vld [vmem:[%s1 + $0x1c0] sm:$0xf]
      %v1410 = vld [vmem:[%s1 + $0x1c4] sm:$0xf]
      %v1411 = vld [vmem:[%s1 + $0x1c8] sm:$0xf]
      %v1412 = vld [vmem:[%s1 + $0x1cc] sm:$0xf]
      %v1413 = vld [vmem:[%s1 + $0x1d0] sm:$0xf]
      %v1414 = vld [vmem:[%s1 + $0x1d4] sm:$0xf]
      %v1415 = vld [vmem:[%s1 + $0x1d8] sm:$0xf]
      %v1416 = vld [vmem:[%s1 + $0x1dc] sm:$0xf]
      %v1417 = vld [vmem:[%s1 + $0x1e0] sm:$0xf]
      %v1418 = vld [vmem:[%s1 + $0x1e4] sm:$0xf]
      %v1419 = vld [vmem:[%s1 + $0x1e8] sm:$0xf]
      %v1420 = vld [vmem:[%s1 + $0x1ec] sm:$0xf]
      %v1421 = vld [vmem:[%s1 + $0x1f0] sm:$0xf]
      %v1422 = vld [vmem:[%s1 + $0x1f4] sm:$0xf]
      %v1423 = vld [vmem:[%s1 + $0x1f8] sm:$0xf]
      %v1424 = vld [vmem:[%s1 + $0x1fc] sm:$0xf]
      %v1425 = vld [vmem:[%s1 + $0x200] sm:$0xf]
      %v1426 = vld [vmem:[%s1 + $0x204] sm:$0xf]
      %v1427 = vld [vmem:[%s1 + $0x208] sm:$0xf]
      %v1428 = vld [vmem:[%s1 + $0x20c] sm:$0xf]
      %v1429 = vld [vmem:[%s1 + $0x210] sm:$0xf]
      %v1430 = vld [vmem:[%s1 + $0x214] sm:$0xf]
      %v1431 = vld [vmem:[%s1 + $0x218] sm:$0xf]
      %v1432 = vld [vmem:[%s1 + $0x21c] sm:$0xf]
      %v1433 = vld [vmem:[%s1 + $0x220] sm:$0xf]
      %v1434 = vld [vmem:[%s1 + $0x224] sm:$0xf]
      %v1435 = vld [vmem:[%s1 + $0x228] sm:$0xf]
      %v1436 = vld [vmem:[%s1 + $0x22c] sm:$0xf]
      %v1437 = vld [vmem:[%s1 + $0x230] sm:$0xf]
      %v1438 = vld [vmem:[%s1 + $0x234] sm:$0xf]
      %v1439 = vld [vmem:[%s1 + $0x238] sm:$0xf]
      %v1440 = vld [vmem:[%s1 + $0x23c] sm:$0xf]
      %v1481 = vunpack.c.l.b16 %v1257
      %v1482 = vunpack.c.h.b16 %v1257
      %v1483 = vunpack.c.l.b16 %v1258
      %v1484 = vunpack.c.h.b16 %v1258
      %v1485 = vunpack.c.l.b16 %v1259
      %v1486 = vunpack.c.h.b16 %v1259
      %v1487 = vunpack.c.l.b16 %v1260
      %v1488 = vunpack.c.h.b16 %v1260
      %v1489 = vunpack.c.l.b16 %v1261
      %v1490 = vunpack.c.l.b16 %v1262
      %v1491 = vunpack.c.h.b16 %v1262
      %v1492 = vunpack.c.l.b16 %v1263
      %v1493 = vunpack.c.h.b16 %v1263
      %v1494 = vunpack.c.l.b16 %v1264
      %v1495 = vunpack.c.h.b16 %v1264
      %v1496 = vunpack.c.l.b16 %v1265
      %v1497 = vunpack.c.h.b16 %v1265
      %v1498 = vunpack.c.l.b16 %v1266
      %v1499 = vunpack.c.l.b16 %v1267
      %v1500 = vunpack.c.h.b16 %v1267
      %v1501 = vunpack.c.l.b16 %v1268
      %v1502 = vunpack.c.h.b16 %v1268
      %v1503 = vunpack.c.l.b16 %v1269
      %v1504 = vunpack.c.h.b16 %v1269
      %v1505 = vunpack.c.l.b16 %v1270
      %v1506 = vunpack.c.h.b16 %v1270
      %v1507 = vunpack.c.l.b16 %v1271
      %v1508 = vunpack.c.l.b16 %v1272
      %v1509 = vunpack.c.h.b16 %v1272
      %v1510 = vunpack.c.l.b16 %v1273
      %v1511 = vunpack.c.h.b16 %v1273
      %v1512 = vunpack.c.l.b16 %v1274
      %v1513 = vunpack.c.h.b16 %v1274
      %v1514 = vunpack.c.l.b16 %v1275
      %v1515 = vunpack.c.h.b16 %v1275
      %v1516 = vunpack.c.l.b16 %v1276
      %v1517 = vunpack.c.l.b16 %v1277
      %v1518 = vunpack.c.h.b16 %v1277
      %v1519 = vunpack.c.l.b16 %v1278
      %v1520 = vunpack.c.h.b16 %v1278
      %v1521 = vunpack.c.l.b16 %v1279
      %v1522 = vunpack.c.h.b16 %v1279
      %v1523 = vunpack.c.l.b16 %v1280
      %v1524 = vunpack.c.h.b16 %v1280
      %v1525 = vunpack.c.l.b16 %v1281
      %v1526 = vunpack.c.l.b16 %v1282
      %v1527 = vunpack.c.h.b16 %v1282
      %v1528 = vunpack.c.l.b16 %v1283
      %v1529 = vunpack.c.h.b16 %v1283
      %v1530 = vunpack.c.l.b16 %v1284
      %v1531 = vunpack.c.h.b16 %v1284
      %v1532 = vunpack.c.l.b16 %v1285
      %v1533 = vunpack.c.h.b16 %v1285
      %v1534 = vunpack.c.l.b16 %v1286
      %v1535 = vunpack.c.l.b16 %v1287
      %v1536 = vunpack.c.h.b16 %v1287
      %v1537 = vunpack.c.l.b16 %v1288
      %v1538 = vunpack.c.h.b16 %v1288
      %v1539 = vunpack.c.l.b16 %v1289
      %v1540 = vunpack.c.h.b16 %v1289
      %v1541 = vunpack.c.l.b16 %v1290
      %v1542 = vunpack.c.h.b16 %v1290
      %v1543 = vunpack.c.l.b16 %v1291
      %v1544 = vunpack.c.l.b16 %v1292
      %v1545 = vunpack.c.h.b16 %v1292
      %v1546 = vunpack.c.l.b16 %v1293
      %v1547 = vunpack.c.h.b16 %v1293
      %v1548 = vunpack.c.l.b16 %v1294
      %v1549 = vunpack.c.h.b16 %v1294
      %v1550 = vunpack.c.l.b16 %v1295
      %v1551 = vunpack.c.h.b16 %v1295
      %v1552 = vunpack.c.l.b16 %v1296
      %v1553 = vpack.c.b16 %v1490, %v1481
      %v1554 = vpack.c.b16 %v1491, %v1482
      %v1555 = vpack.c.b16 %v1492, %v1483
      %v1556 = vpack.c.b16 %v1493, %v1484
      %v1557 = vpack.c.b16 %v1494, %v1485
      %v1558 = vpack.c.b16 %v1495, %v1486
      %v1559 = vpack.c.b16 %v1496, %v1487
      %v1560 = vpack.c.b16 %v1497, %v1488
      %v1561 = vpack.c.b16 %v1498, %v1489
      %v1562 = vpack.c.b16 %v1508, %v1499
      %v1563 = vpack.c.b16 %v1509, %v1500
      %v1564 = vpack.c.b16 %v1510, %v1501
      %v1565 = vpack.c.b16 %v1511, %v1502
      %v1566 = vpack.c.b16 %v1512, %v1503
      %v1567 = vpack.c.b16 %v1513, %v1504
      %v1568 = vpack.c.b16 %v1514, %v1505
      %v1569 = vpack.c.b16 %v1515, %v1506
      %v1570 = vpack.c.b16 %v1516, %v1507
      %v1571 = vpack.c.b16 %v1526, %v1517
      %v1572 = vpack.c.b16 %v1527, %v1518
      %v1573 = vpack.c.b16 %v1528, %v1519
      %v1574 = vpack.c.b16 %v1529, %v1520
      %v1575 = vpack.c.b16 %v1530, %v1521
      %v1576 = vpack.c.b16 %v1531, %v1522
      %v1577 = vpack.c.b16 %v1532, %v1523
      %v1578 = vpack.c.b16 %v1533, %v1524
      %v1579 = vpack.c.b16 %v1534, %v1525
      %v1580 = vpack.c.b16 %v1544, %v1535
      %v1581 = vpack.c.b16 %v1545, %v1536
      %v1582 = vpack.c.b16 %v1546, %v1537
      %v1583 = vpack.c.b16 %v1547, %v1538
      %v1584 = vpack.c.b16 %v1548, %v1539
      %v1585 = vpack.c.b16 %v1549, %v1540
      %v1586 = vpack.c.b16 %v1550, %v1541
      %v1587 = vpack.c.b16 %v1551, %v1542
      %v1588 = vpack.c.b16 %v1552, %v1543
      %v1769 = vunpack.c.l.b16 %v1297
      %v1770 = vunpack.c.l.b16 %v1298
      %v1771 = vunpack.c.l.b16 %v1299
      %v1772 = vunpack.c.l.b16 %v1300
      %v1773 = vunpack.c.l.b16 %v1301
      %v1774 = vunpack.c.l.b16 %v1302
      %v1775 = vunpack.c.l.b16 %v1303
      %v1776 = vunpack.c.l.b16 %v1304
      %v1777 = vunpack.c.l.b16 %v1305
      %v1778 = vunpack.c.l.b16 %v1306
      %v1779 = vunpack.c.l.b16 %v1307
      %v1780 = vunpack.c.l.b16 %v1308
      %v1781 = vunpack.c.l.b16 %v1309
      %v1782 = vunpack.c.l.b16 %v1310
      %v1783 = vunpack.c.l.b16 %v1311
      %v1784 = vunpack.c.l.b16 %v1312
      %v1785 = vunpack.c.l.b16 %v1313
      %v1786 = vunpack.c.l.b16 %v1314
      %v1787 = vunpack.c.l.b16 %v1315
      %v1788 = vunpack.c.l.b16 %v1316
      %v1789 = vunpack.c.l.b16 %v1317
      %v1790 = vunpack.c.l.b16 %v1318
      %v1791 = vunpack.c.l.b16 %v1319
      %v1792 = vunpack.c.l.b16 %v1320
      %v1793 = vunpack.c.l.b16 %v1321
      %v1794 = vunpack.c.l.b16 %v1322
      %v1795 = vunpack.c.l.b16 %v1323
      %v1796 = vunpack.c.l.b16 %v1324
      %v1797 = vunpack.c.l.b16 %v1325
      %v1798 = vunpack.c.l.b16 %v1326
      %v1799 = vunpack.c.l.b16 %v1327
      %v1800 = vunpack.c.l.b16 %v1328
      %v1801 = vunpack.c.l.b16 %v1329
      %v1802 = vunpack.c.l.b16 %v1330
      %v1803 = vunpack.c.l.b16 %v1331
      %v1804 = vunpack.c.l.b16 %v1332
      %v1805 = vunpack.c.l.b16 %v1333
      %v1806 = vunpack.c.l.b16 %v1334
      %v1807 = vunpack.c.l.b16 %v1335
      %v1808 = vunpack.c.l.b16 %v1336
      %v1809 = vunpack.c.l.b16 %v1337
      %v1810 = vunpack.c.l.b16 %v1338
      %v1811 = vunpack.c.l.b16 %v1339
      %v1812 = vunpack.c.l.b16 %v1340
      %v1813 = vunpack.c.l.b16 %v1341
      %v1814 = vunpack.c.l.b16 %v1342
      %v1815 = vunpack.c.l.b16 %v1343
      %v1816 = vunpack.c.l.b16 %v1344
      %v1817 = vunpack.c.l.b16 %v1345
      %v1818 = vunpack.c.l.b16 %v1346
      %v1819 = vunpack.c.l.b16 %v1347
      %v1820 = vunpack.c.l.b16 %v1348
      %v1821 = vunpack.c.l.b16 %v1349
      %v1822 = vunpack.c.l.b16 %v1350
      %v1823 = vunpack.c.l.b16 %v1351
      %v1824 = vunpack.c.l.b16 %v1352
      %v1825 = vunpack.c.l.b16 %v1353
      %v1826 = vunpack.c.l.b16 %v1354
      %v1827 = vunpack.c.l.b16 %v1355
      %v1828 = vunpack.c.l.b16 %v1356
      %v1829 = vunpack.c.l.b16 %v1357
      %v1830 = vunpack.c.l.b16 %v1358
      %v1831 = vunpack.c.l.b16 %v1359
      %v1832 = vunpack.c.l.b16 %v1360
      %v1833 = vunpack.c.l.b16 %v1361
      %v1834 = vunpack.c.l.b16 %v1362
      %v1835 = vunpack.c.l.b16 %v1363
      %v1836 = vunpack.c.l.b16 %v1364
      %v1837 = vunpack.c.l.b16 %v1365
      %v1838 = vunpack.c.l.b16 %v1366
      %v1839 = vunpack.c.l.b16 %v1367
      %v1840 = vunpack.c.l.b16 %v1368
      %v1841 = vunpack.c.l.b16 %v1369
      %v1842 = vunpack.c.l.b16 %v1370
      %v1843 = vunpack.c.l.b16 %v1371
      %v1844 = vunpack.c.l.b16 %v1372
      %v1845 = vunpack.c.l.b16 %v1373
      %v1846 = vunpack.c.l.b16 %v1374
      %v1847 = vunpack.c.l.b16 %v1375
      %v1848 = vunpack.c.l.b16 %v1376
      %v1849 = vunpack.c.l.b16 %v1377
      %v1850 = vunpack.c.l.b16 %v1378
      %v1851 = vunpack.c.l.b16 %v1379
      %v1852 = vunpack.c.l.b16 %v1380
      %v1853 = vunpack.c.l.b16 %v1381
      %v1854 = vunpack.c.l.b16 %v1382
      %v1855 = vunpack.c.l.b16 %v1383
      %v1856 = vunpack.c.l.b16 %v1384
      %v1857 = vunpack.c.l.b16 %v1385
      %v1858 = vunpack.c.l.b16 %v1386
      %v1859 = vunpack.c.l.b16 %v1387
      %v1860 = vunpack.c.l.b16 %v1388
      %v1861 = vunpack.c.l.b16 %v1389
      %v1862 = vunpack.c.l.b16 %v1390
      %v1863 = vunpack.c.l.b16 %v1391
      %v1864 = vunpack.c.l.b16 %v1392
      %v1865 = vunpack.c.l.b16 %v1393
      %v1866 = vunpack.c.l.b16 %v1394
      %v1867 = vunpack.c.l.b16 %v1395
      %v1868 = vunpack.c.l.b16 %v1396
      %v1869 = vunpack.c.l.b16 %v1397
      %v1870 = vunpack.c.l.b16 %v1398
      %v1871 = vunpack.c.l.b16 %v1399
      %v1872 = vunpack.c.l.b16 %v1400
      %v1873 = vunpack.c.l.b16 %v1401
      %v1874 = vunpack.c.l.b16 %v1402
      %v1875 = vunpack.c.l.b16 %v1403
      %v1876 = vunpack.c.l.b16 %v1404
      %v1877 = vunpack.c.l.b16 %v1405
      %v1878 = vunpack.c.l.b16 %v1406
      %v1879 = vunpack.c.l.b16 %v1407
      %v1880 = vunpack.c.l.b16 %v1408
      %v1881 = vunpack.c.l.b16 %v1409
      %v1882 = vunpack.c.l.b16 %v1410
      %v1883 = vunpack.c.l.b16 %v1411
      %v1884 = vunpack.c.l.b16 %v1412
      %v1885 = vunpack.c.l.b16 %v1413
      %v1886 = vunpack.c.l.b16 %v1414
      %v1887 = vunpack.c.l.b16 %v1415
      %v1888 = vunpack.c.l.b16 %v1416
      %v1889 = vunpack.c.l.b16 %v1417
      %v1890 = vunpack.c.l.b16 %v1418
      %v1891 = vunpack.c.l.b16 %v1419
      %v1892 = vunpack.c.l.b16 %v1420
      %v1893 = vunpack.c.l.b16 %v1421
      %v1894 = vunpack.c.l.b16 %v1422
      %v1895 = vunpack.c.l.b16 %v1423
      %v1896 = vunpack.c.l.b16 %v1424
      %v1897 = vunpack.c.l.b16 %v1425
      %v1898 = vunpack.c.l.b16 %v1426
      %v1899 = vunpack.c.l.b16 %v1427
      %v1900 = vunpack.c.l.b16 %v1428
      %v1901 = vunpack.c.l.b16 %v1429
      %v1902 = vunpack.c.l.b16 %v1430
      %v1903 = vunpack.c.l.b16 %v1431
      %v1904 = vunpack.c.l.b16 %v1432
      %v1905 = vunpack.c.l.b16 %v1433
      %v1906 = vunpack.c.l.b16 %v1434
      %v1907 = vunpack.c.l.b16 %v1435
      %v1908 = vunpack.c.l.b16 %v1436
      %v1909 = vunpack.c.l.b16 %v1437
      %v1910 = vunpack.c.l.b16 %v1438
      %v1911 = vunpack.c.l.b16 %v1439
      %v1912 = vunpack.c.l.b16 %v1440
      %v1913 = vpack.c.b16 %v1770, %v1769
      %v1914 = vpack.c.b16 %v1772, %v1771
      %v1915 = vpack.c.b16 %v1774, %v1773
      %v1916 = vpack.c.b16 %v1776, %v1775
      %v1917 = vpack.c.b16 %v1778, %v1777
      %v1918 = vpack.c.b16 %v1780, %v1779
      %v1919 = vpack.c.b16 %v1782, %v1781
      %v1920 = vpack.c.b16 %v1784, %v1783
      %v1921 = vpack.c.b16 %v1786, %v1785
      %v1922 = vpack.c.b16 %v1788, %v1787
      %v1923 = vpack.c.b16 %v1790, %v1789
      %v1924 = vpack.c.b16 %v1792, %v1791
      %v1925 = vpack.c.b16 %v1794, %v1793
      %v1926 = vpack.c.b16 %v1796, %v1795
      %v1927 = vpack.c.b16 %v1798, %v1797
      %v1928 = vpack.c.b16 %v1800, %v1799
      %v1929 = vpack.c.b16 %v1802, %v1801
      %v1930 = vpack.c.b16 %v1804, %v1803
      %v1931 = vpack.c.b16 %v1806, %v1805
      %v1932 = vpack.c.b16 %v1808, %v1807
      %v1933 = vpack.c.b16 %v1810, %v1809
      %v1934 = vpack.c.b16 %v1812, %v1811
      %v1935 = vpack.c.b16 %v1814, %v1813
      %v1936 = vpack.c.b16 %v1816, %v1815
      %v1937 = vpack.c.b16 %v1818, %v1817
      %v1938 = vpack.c.b16 %v1820, %v1819
      %v1939 = vpack.c.b16 %v1822, %v1821
      %v1940 = vpack.c.b16 %v1824, %v1823
      %v1941 = vpack.c.b16 %v1826, %v1825
      %v1942 = vpack.c.b16 %v1828, %v1827
      %v1943 = vpack.c.b16 %v1830, %v1829
      %v1944 = vpack.c.b16 %v1832, %v1831
      %v1945 = vpack.c.b16 %v1834, %v1833
      %v1946 = vpack.c.b16 %v1836, %v1835
      %v1947 = vpack.c.b16 %v1838, %v1837
      %v1948 = vpack.c.b16 %v1840, %v1839
      %v1949 = vpack.c.b16 %v1842, %v1841
      %v1950 = vpack.c.b16 %v1844, %v1843
      %v1951 = vpack.c.b16 %v1846, %v1845
      %v1952 = vpack.c.b16 %v1848, %v1847
      %v1953 = vpack.c.b16 %v1850, %v1849
      %v1954 = vpack.c.b16 %v1852, %v1851
      %v1955 = vpack.c.b16 %v1854, %v1853
      %v1956 = vpack.c.b16 %v1856, %v1855
      %v1957 = vpack.c.b16 %v1858, %v1857
      %v1958 = vpack.c.b16 %v1860, %v1859
      %v1959 = vpack.c.b16 %v1862, %v1861
      %v1960 = vpack.c.b16 %v1864, %v1863
      %v1961 = vpack.c.b16 %v1866, %v1865
      %v1962 = vpack.c.b16 %v1868, %v1867
      %v1963 = vpack.c.b16 %v1870, %v1869
      %v1964 = vpack.c.b16 %v1872, %v1871
      %v1965 = vpack.c.b16 %v1874, %v1873
      %v1966 = vpack.c.b16 %v1876, %v1875
      %v1967 = vpack.c.b16 %v1878, %v1877
      %v1968 = vpack.c.b16 %v1880, %v1879
      %v1969 = vpack.c.b16 %v1882, %v1881
      %v1970 = vpack.c.b16 %v1884, %v1883
      %v1971 = vpack.c.b16 %v1886, %v1885
      %v1972 = vpack.c.b16 %v1888, %v1887
      %v1973 = vpack.c.b16 %v1890, %v1889
      %v1974 = vpack.c.b16 %v1892, %v1891
      %v1975 = vpack.c.b16 %v1894, %v1893
      %v1976 = vpack.c.b16 %v1896, %v1895
      %v1977 = vpack.c.b16 %v1898, %v1897
      %v1978 = vpack.c.b16 %v1900, %v1899
      %v1979 = vpack.c.b16 %v1902, %v1901
      %v1980 = vpack.c.b16 %v1904, %v1903
      %v1981 = vpack.c.b16 %v1906, %v1905
      %v1982 = vpack.c.b16 %v1908, %v1907
      %v1983 = vpack.c.b16 %v1910, %v1909
      %v1984 = vpack.c.b16 %v1912, %v1911
      %2057 = vmatprep.subr.bf16.mxu0 0
      %2058 = vmatpush1.bf16.msra.mxu0 %v1920
      %2059 = vmatprep.subr.bf16.mxu0 0
      %2060 = vmatpush1.bf16.msra.mxu0 %v1919
      %2061 = vmatprep.subr.bf16.mxu0 0
      %2062 = vmatpush1.bf16.msra.mxu0 %v1918
      %2063 = vmatprep.subr.bf16.mxu0 0
      %2064 = vmatpush1.bf16.msra.mxu0 %v1917
      %2065 = vmatprep.subr.bf16.mxu0 0
      %2066 = vmatpush1.bf16.msra.mxu0 %v1916
      %2067 = vmatprep.subr.bf16.mxu0 0
      %2068 = vmatpush1.bf16.msra.mxu0 %v1915
      %2069 = vmatprep.subr.bf16.mxu0 0
      %2070 = vmatpush1.bf16.msra.mxu0 %v1914
      %2071 = vmatprep.subr.bf16.mxu0 0
      %2072 = vmatpush1.bf16.msra.mxu0 %v1913
      %2073 = vmatprep.subr.bf16.mxu0 0
      %2074 = vmatpush2.bf16.msra.mxu0 %v1928
      %2075 = vmatprep.subr.bf16.mxu0 0
      %2076 = vmatpush2.bf16.msra.mxu0 %v1927
      %2077 = vmatprep.subr.bf16.mxu0 0
      %2078 = vmatpush2.bf16.msra.mxu0 %v1926
      %2079 = vmatprep.subr.bf16.mxu0 0
      %2080 = vmatpush2.bf16.msra.mxu0 %v1925
      %2081 = vmatprep.subr.bf16.mxu0 0
      %2082 = vmatpush2.bf16.msra.mxu0 %v1924
      %2083 = vmatprep.subr.bf16.mxu0 0
      %2084 = vmatpush2.bf16.msra.mxu0 %v1923
      %2085 = vmatprep.subr.bf16.mxu0 0
      %2086 = vmatpush2.bf16.msra.mxu0 %v1922
      %2087 = vmatprep.subr.bf16.mxu0 0
      %2088 = vmatpush2.bf16.msra.mxu0 %v1921
      %2089 = vmatprep.mubr.bf16.mxu0 %v1554
      %2090 = vmatmul.mubr.bf16.gmra.mxu0 %v1553
      %v2091 = vpop.f32.mrf.mxu0
      %v2092 = vadd.f32 0.0, %v2091
      %v2093 = vpop.f32.mrf.mxu0
      %v2094 = vpop.f32.mrf.mxu0
      %v2095 = vadd.f32 0.0, %v2094
      %v2096 = vpop.f32.mrf.mxu0
      %2097 = vmatprep.mubr.bf16.mxu0 %v1563
      %2098 = vmatmul.mubr.bf16.gmra.mxu0 %v1562
      %v2099 = vpop.f32.mrf.mxu0
      %v2100 = vadd.f32 0.0, %v2099
      %v2101 = vpop.f32.mrf.mxu0
      %v2102 = vpop.f32.mrf.mxu0
      %v2103 = vadd.f32 0.0, %v2102
      %v2104 = vpop.f32.mrf.mxu0
      %2105 = vmatprep.mubr.bf16.mxu0 %v1572
      %2106 = vmatmul.mubr.bf16.gmra.mxu0 %v1571
      %v2107 = vpop.f32.mrf.mxu0
      %v2108 = vadd.f32 0.0, %v2107
      %v2109 = vpop.f32.mrf.mxu0
      %v2110 = vpop.f32.mrf.mxu0
      %v2111 = vadd.f32 0.0, %v2110
      %v2112 = vpop.f32.mrf.mxu0
      %2113 = vmatprep.mubr.bf16.mxu0 %v1581
      %2114 = vmatmul.mubr.bf16.gmra.mxu0 %v1580
      %v2115 = vpop.f32.mrf.mxu0
      %v2116 = vadd.f32 0.0, %v2115
      %v2117 = vpop.f32.mrf.mxu0
      %v2118 = vpop.f32.mrf.mxu0
      %v2119 = vadd.f32 0.0, %v2118
      %v2120 = vpop.f32.mrf.mxu0
      %2121 = vdwg.mxu0
      %2122 = vmatprep.subr.bf16.mxu0 0
      %2123 = vmatpush1.bf16.msra.mxu0 %v1936
      %2124 = vmatprep.subr.bf16.mxu0 0
      %2125 = vmatpush1.bf16.msra.mxu0 %v1935
      %2126 = vmatprep.subr.bf16.mxu0 0
      %2127 = vmatpush1.bf16.msra.mxu0 %v1934
      %2128 = vmatprep.subr.bf16.mxu0 0
      %2129 = vmatpush1.bf16.msra.mxu0 %v1933
      %2130 = vmatprep.subr.bf16.mxu0 0
      %2131 = vmatpush1.bf16.msra.mxu0 %v1932
      %2132 = vmatprep.subr.bf16.mxu0 0
      %2133 = vmatpush1.bf16.msra.mxu0 %v1931
      %2134 = vmatprep.subr.bf16.mxu0 0
      %2135 = vmatpush1.bf16.msra.mxu0 %v1930
      %2136 = vmatprep.subr.bf16.mxu0 0
      %2137 = vmatpush1.bf16.msra.mxu0 %v1929
      %2138 = vmatprep.subr.bf16.mxu0 0
      %2139 = vmatpush2.bf16.msra.mxu0 %v1944
      %2140 = vmatprep.subr.bf16.mxu0 0
      %2141 = vmatpush2.bf16.msra.mxu0 %v1943
      %2142 = vmatprep.subr.bf16.mxu0 0
      %2143 = vmatpush2.bf16.msra.mxu0 %v1942
      %2144 = vmatprep.subr.bf16.mxu0 0
      %2145 = vmatpush2.bf16.msra.mxu0 %v1941
      %2146 = vmatprep.subr.bf16.mxu0 0
      %2147 = vmatpush2.bf16.msra.mxu0 %v1940
      %2148 = vmatprep.subr.bf16.mxu0 0
      %2149 = vmatpush2.bf16.msra.mxu0 %v1939
      %2150 = vmatprep.subr.bf16.mxu0 0
      %2151 = vmatpush2.bf16.msra.mxu0 %v1938
      %2152 = vmatprep.subr.bf16.mxu0 0
      %2153 = vmatpush2.bf16.msra.mxu0 %v1937
      %2154 = vmatprep.mubr.bf16.mxu0 %v1556
      %2155 = vmatmul.mubr.bf16.gmra.mxu0 %v1555
      %v2156 = vpop.f32.mrf.mxu0
      %v2157 = vadd.f32 %v2092, %v2156
      %v2158 = vpop.f32.mrf.mxu0
      %v2159 = vpop.f32.mrf.mxu0
      %v2160 = vadd.f32 %v2095, %v2159
      %v2161 = vpop.f32.mrf.mxu0
      %2162 = vmatprep.mubr.bf16.mxu0 %v1565
      %2163 = vmatmul.mubr.bf16.gmra.mxu0 %v1564
      %v2164 = vpop.f32.mrf.mxu0
      %v2165 = vadd.f32 %v2100, %v2164
      %v2166 = vpop.f32.mrf.mxu0
      %v2167 = vpop.f32.mrf.mxu0
      %v2168 = vadd.f32 %v2103, %v2167
      %v2169 = vpop.f32.mrf.mxu0
      %2170 = vmatprep.mubr.bf16.mxu0 %v1574
      %2171 = vmatmul.mubr.bf16.gmra.mxu0 %v1573
      %v2172 = vpop.f32.mrf.mxu0
      %v2173 = vadd.f32 %v2108, %v2172
      %v2174 = vpop.f32.mrf.mxu0
      %v2175 = vpop.f32.mrf.mxu0
      %v2176 = vadd.f32 %v2111, %v2175
      %v2177 = vpop.f32.mrf.mxu0
      %2178 = vmatprep.mubr.bf16.mxu0 %v1583
      %2179 = vmatmul.mubr.bf16.gmra.mxu0 %v1582
      %v2180 = vpop.f32.mrf.mxu0
      %v2181 = vadd.f32 %v2116, %v2180
      %v2182 = vpop.f32.mrf.mxu0
      %v2183 = vpop.f32.mrf.mxu0
      %v2184 = vadd.f32 %v2119, %v2183
      %v2185 = vpop.f32.mrf.mxu0
      %2186 = vdwg.mxu0
      %2187 = vmatprep.subr.bf16.mxu0 0
      %2188 = vmatpush1.bf16.msra.mxu0 %v1952
      %2189 = vmatprep.subr.bf16.mxu0 0
      %2190 = vmatpush1.bf16.msra.mxu0 %v1951
      %2191 = vmatprep.subr.bf16.mxu0 0
      %2192 = vmatpush1.bf16.msra.mxu0 %v1950
      %2193 = vmatprep.subr.bf16.mxu0 0
      %2194 = vmatpush1.bf16.msra.mxu0 %v1949
      %2195 = vmatprep.subr.bf16.mxu0 0
      %2196 = vmatpush1.bf16.msra.mxu0 %v1948
      %2197 = vmatprep.subr.bf16.mxu0 0
      %2198 = vmatpush1.bf16.msra.mxu0 %v1947
      %2199 = vmatprep.subr.bf16.mxu0 0
      %2200 = vmatpush1.bf16.msra.mxu0 %v1946
      %2201 = vmatprep.subr.bf16.mxu0 0
      %2202 = vmatpush1.bf16.msra.mxu0 %v1945
      %2203 = vmatprep.subr.bf16.mxu0 0
      %2204 = vmatpush2.bf16.msra.mxu0 %v1960
      %2205 = vmatprep.subr.bf16.mxu0 0
      %2206 = vmatpush2.bf16.msra.mxu0 %v1959
      %2207 = vmatprep.subr.bf16.mxu0 0
      %2208 = vmatpush2.bf16.msra.mxu0 %v1958
      %2209 = vmatprep.subr.bf16.mxu0 0
      %2210 = vmatpush2.bf16.msra.mxu0 %v1957
      %2211 = vmatprep.subr.bf16.mxu0 0
      %2212 = vmatpush2.bf16.msra.mxu0 %v1956
      %2213 = vmatprep.subr.bf16.mxu0 0
      %2214 = vmatpush2.bf16.msra.mxu0 %v1955
      %2215 = vmatprep.subr.bf16.mxu0 0
      %2216 = vmatpush2.bf16.msra.mxu0 %v1954
      %2217 = vmatprep.subr.bf16.mxu0 0
      %2218 = vmatpush2.bf16.msra.mxu0 %v1953
      %2219 = vmatprep.mubr.bf16.mxu0 %v1558
      %2220 = vmatmul.mubr.bf16.gmra.mxu0 %v1557
      %v2221 = vpop.f32.mrf.mxu0
      %v2222 = vadd.f32 %v2157, %v2221
      %v2223 = vpop.f32.mrf.mxu0
      %v2224 = vpop.f32.mrf.mxu0
      %v2225 = vadd.f32 %v2160, %v2224
      %v2226 = vpop.f32.mrf.mxu0
      %2227 = vmatprep.mubr.bf16.mxu0 %v1567
      %2228 = vmatmul.mubr.bf16.gmra.mxu0 %v1566
      %v2229 = vpop.f32.mrf.mxu0
      %v2230 = vadd.f32 %v2165, %v2229
      %v2231 = vpop.f32.mrf.mxu0
      %v2232 = vpop.f32.mrf.mxu0
      %v2233 = vadd.f32 %v2168, %v2232
      %v2234 = vpop.f32.mrf.mxu0
      %2235 = vmatprep.mubr.bf16.mxu0 %v1576
      %2236 = vmatmul.mubr.bf16.gmra.mxu0 %v1575
      %v2237 = vpop.f32.mrf.mxu0
      %v2238 = vadd.f32 %v2173, %v2237
      %v2239 = vpop.f32.mrf.mxu0
      %v2240 = vpop.f32.mrf.mxu0
      %v2241 = vadd.f32 %v2176, %v2240
      %v2242 = vpop.f32.mrf.mxu0
      %2243 = vmatprep.mubr.bf16.mxu0 %v1585
      %2244 = vmatmul.mubr.bf16.gmra.mxu0 %v1584
      %v2245 = vpop.f32.mrf.mxu0
      %v2246 = vadd.f32 %v2181, %v2245
      %v2247 = vpop.f32.mrf.mxu0
      %v2248 = vpop.f32.mrf.mxu0
      %v2249 = vadd.f32 %v2184, %v2248
      %v2250 = vpop.f32.mrf.mxu0
      %2251 = vdwg.mxu0
      %2252 = vmatprep.subr.bf16.mxu0 0
      %2253 = vmatpush1.bf16.msra.mxu0 %v1968
      %2254 = vmatprep.subr.bf16.mxu0 0
      %2255 = vmatpush1.bf16.msra.mxu0 %v1967
      %2256 = vmatprep.subr.bf16.mxu0 0
      %2257 = vmatpush1.bf16.msra.mxu0 %v1966
      %2258 = vmatprep.subr.bf16.mxu0 0
      %2259 = vmatpush1.bf16.msra.mxu0 %v1965
      %2260 = vmatprep.subr.bf16.mxu0 0
      %2261 = vmatpush1.bf16.msra.mxu0 %v1964
      %2262 = vmatprep.subr.bf16.mxu0 0
      %2263 = vmatpush1.bf16.msra.mxu0 %v1963
      %2264 = vmatprep.subr.bf16.mxu0 0
      %2265 = vmatpush1.bf16.msra.mxu0 %v1962
      %2266 = vmatprep.subr.bf16.mxu0 0
      %2267 = vmatpush1.bf16.msra.mxu0 %v1961
      %2268 = vmatprep.subr.bf16.mxu0 0
      %2269 = vmatpush2.bf16.msra.mxu0 %v1976
      %2270 = vmatprep.subr.bf16.mxu0 0
      %2271 = vmatpush2.bf16.msra.mxu0 %v1975
      %2272 = vmatprep.subr.bf16.mxu0 0
      %2273 = vmatpush2.bf16.msra.mxu0 %v1974
      %2274 = vmatprep.subr.bf16.mxu0 0
      %2275 = vmatpush2.bf16.msra.mxu0 %v1973
      %2276 = vmatprep.subr.bf16.mxu0 0
      %2277 = vmatpush2.bf16.msra.mxu0 %v1972
      %2278 = vmatprep.subr.bf16.mxu0 0
      %2279 = vmatpush2.bf16.msra.mxu0 %v1971
      %2280 = vmatprep.subr.bf16.mxu0 0
      %2281 = vmatpush2.bf16.msra.mxu0 %v1970
      %2282 = vmatprep.subr.bf16.mxu0 0
      %2283 = vmatpush2.bf16.msra.mxu0 %v1969
      %2284 = vmatprep.mubr.bf16.mxu0 %v1560
      %2285 = vmatmul.mubr.bf16.gmra.mxu0 %v1559
      %v2286 = vpop.f32.mrf.mxu0
      %v2287 = vadd.f32 %v2222, %v2286
      %v2288 = vpop.f32.mrf.mxu0
      %v2289 = vpop.f32.mrf.mxu0
      %v2290 = vadd.f32 %v2225, %v2289
      %v2291 = vpop.f32.mrf.mxu0
      %2292 = vmatprep.mubr.bf16.mxu0 %v1569
      %2293 = vmatmul.mubr.bf16.gmra.mxu0 %v1568
      %v2294 = vpop.f32.mrf.mxu0
      %v2295 = vadd.f32 %v2230, %v2294
      %v2296 = vpop.f32.mrf.mxu0
      %v2297 = vpop.f32.mrf.mxu0
      %v2298 = vadd.f32 %v2233, %v2297
      %v2299 = vpop.f32.mrf.mxu0
      %2300 = vmatprep.mubr.bf16.mxu0 %v1578
      %2301 = vmatmul.mubr.bf16.gmra.mxu0 %v1577
      %v2302 = vpop.f32.mrf.mxu0
      %v2303 = vadd.f32 %v2238, %v2302
      %v2304 = vpop.f32.mrf.mxu0
      %v2305 = vpop.f32.mrf.mxu0
      %v2306 = vadd.f32 %v2241, %v2305
      %v2307 = vpop.f32.mrf.mxu0
      %2308 = vmatprep.mubr.bf16.mxu0 %v1587
      %2309 = vmatmul.mubr.bf16.gmra.mxu0 %v1586
      %v2310 = vpop.f32.mrf.mxu0
      %v2311 = vadd.f32 %v2246, %v2310
      %v2312 = vpop.f32.mrf.mxu0
      %v2313 = vpop.f32.mrf.mxu0
      %v2314 = vadd.f32 %v2249, %v2313
      %v2315 = vpop.f32.mrf.mxu0
      %2316 = vdwg.mxu0
      %2317 = vmatprep.subr.bf16.mxu0 0
      %2318 = vmatpush1.bf16.msra.mxu0 %v1984
      %2319 = vmatprep.subr.bf16.mxu0 0
      %2320 = vmatpush1.bf16.msra.mxu0 %v1983
      %2321 = vmatprep.subr.bf16.mxu0 0
      %2322 = vmatpush1.bf16.msra.mxu0 %v1982
      %2323 = vmatprep.subr.bf16.mxu0 0
      %2324 = vmatpush1.bf16.msra.mxu0 %v1981
      %2325 = vmatprep.subr.bf16.mxu0 0
      %2326 = vmatpush1.bf16.msra.mxu0 %v1980
      %2327 = vmatprep.subr.bf16.mxu0 0
      %2328 = vmatpush1.bf16.msra.mxu0 %v1979
      %2329 = vmatprep.subr.bf16.mxu0 0
      %2330 = vmatpush1.bf16.msra.mxu0 %v1978
      %2331 = vmatprep.subr.bf16.mxu0 0
      %2332 = vmatpush1.bf16.msra.mxu0 %v1977
      %2333 = vmatprep.subr.bf16.mxu0 0
      %2334 = vmatpush2.bf16.msra.mxu0 0
      %2335 = vmatprep.subr.bf16.mxu0 0
      %2336 = vmatpush2.bf16.msra.mxu0 0
      %2337 = vmatprep.subr.bf16.mxu0 0
      %2338 = vmatpush2.bf16.msra.mxu0 0
      %2339 = vmatprep.subr.bf16.mxu0 0
      %2340 = vmatpush2.bf16.msra.mxu0 0
      %2341 = vmatprep.subr.bf16.mxu0 0
      %2342 = vmatpush2.bf16.msra.mxu0 0
      %2343 = vmatprep.subr.bf16.mxu0 0
      %2344 = vmatpush2.bf16.msra.mxu0 0
      %2345 = vmatprep.subr.bf16.mxu0 0
      %2346 = vmatpush2.bf16.msra.mxu0 0
      %2347 = vmatprep.subr.bf16.mxu0 0
      %2348 = vmatpush2.bf16.msra.mxu0 0
      %2349 = vmatprep.mubr.bf16.mxu0 0
      %2350 = vmatmul.mubr.bf16.gmra.mxu0 %v1561
      %v2351 = vpop.f32.mrf.mxu0
      %v2352 = vadd.f32 %v2287, %v2351
      %v2353 = vpop.f32.mrf.mxu0
      %v2354 = vpop.f32.mrf.mxu0
      %v2355 = vadd.f32 %v2290, %v2354
      %v2356 = vpop.f32.mrf.mxu0
      %2357 = vmatprep.mubr.bf16.mxu0 0
      %2358 = vmatmul.mubr.bf16.gmra.mxu0 %v1570
      %v2359 = vpop.f32.mrf.mxu0
      %v2360 = vadd.f32 %v2295, %v2359
      %v2361 = vpop.f32.mrf.mxu0
      %v2362 = vpop.f32.mrf.mxu0
      %v2363 = vadd.f32 %v2298, %v2362
      %v2364 = vpop.f32.mrf.mxu0
      %2365 = vmatprep.mubr.bf16.mxu0 0
      %2366 = vmatmul.mubr.bf16.gmra.mxu0 %v1579
      %v2367 = vpop.f32.mrf.mxu0
      %v2368 = vadd.f32 %v2303, %v2367
      %v2369 = vpop.f32.mrf.mxu0
      %v2370 = vpop.f32.mrf.mxu0
      %v2371 = vadd.f32 %v2306, %v2370
      %v2372 = vpop.f32.mrf.mxu0
      %2373 = vmatprep.mubr.bf16.mxu0 0
      %2374 = vmatmul.mubr.bf16.gmra.mxu0 %v1588
      %v2375 = vpop.f32.mrf.mxu0
      %v2376 = vadd.f32 %v2311, %v2375
      %v2377 = vpop.f32.mrf.mxu0
      %v2378 = vpop.f32.mrf.mxu0
      %v2379 = vadd.f32 %v2314, %v2378
      %v2380 = vpop.f32.mrf.mxu0
      %2381 = vdwg.mxu0
      %v2382 = vadd.f32 %v353, %v2352
      %v2383 = vadd.f32 %v354, %v2355
      %v2384 = vadd.f32 %v355, %v2360
      %v2385 = vadd.f32 %v356, %v2363
      %v2386 = vadd.f32 %v357, %v2368
      %v2387 = vadd.f32 %v358, %v2371
      %v2388 = vadd.f32 %v359, %v2376
      %v2389 = vadd.f32 %v360, %v2379
      %s2390 = scalar_lea.vmem [#allocation2], 12
      %v2391 = vld [vmem:[%s2390] sm:$0x8]
      %v2392 = vld [vmem:[%s2390 + $0x4] sm:$0x7]
      %v2393 = vld [vmem:[%s2390 + $0xc] sm:$0x8]
      %v2394 = vld [vmem:[%s2390 + $0x10] sm:$0x7]
      %v2395 = vld [vmem:[%s2390 + $0x18] sm:$0x8]
      %v2396 = vld [vmem:[%s2390 + $0x1c] sm:$0x7]
      %v2397 = vld [vmem:[%s2390 + $0x24] sm:$0x8]
      %v2398 = vld [vmem:[%s2390 + $0x28] sm:$0x7]
      %v2399 = vld [vmem:[%s2390 + $0x30] sm:$0x8]
      %v2400 = vld [vmem:[%s2390 + $0x34] sm:$0x7]
      %v2401 = vld [vmem:[%s2390 + $0x3c] sm:$0x8]
      %v2402 = vld [vmem:[%s2390 + $0x40] sm:$0x7]
      %v2403 = vld [vmem:[%s2390 + $0x48] sm:$0x8]
      %v2404 = vld [vmem:[%s2390 + $0x4c] sm:$0x7]
      %v2405 = vld [vmem:[%s2390 + $0x54] sm:$0x8]
      %v2406 = vld [vmem:[%s2390 + $0x58] sm:$0x7]
      %vm2423 = vcmask 1040384
      %vm2424 = vcmask 1044484
      %vm2425 = vmor %vm2423, %vm2424
      %v2426 = vrot.slane %v2391, 7
      %v2427 = vrot.slane %v2426, 4
      %v2428 = vrot.slane %v2392, 7
      %v2429 = vsel %vm2425, %v2427, %v2428
      %v2430 = vrot.slane %v2393, 7
      %v2431 = vrot.slane %v2430, 4
      %v2432 = vrot.slane %v2394, 7
      %v2433 = vsel %vm2425, %v2431, %v2432
      %v2434 = vrot.slane %v2395, 7
      %v2435 = vrot.slane %v2434, 4
      %v2436 = vrot.slane %v2396, 7
      %v2437 = vsel %vm2425, %v2435, %v2436
      %v2438 = vrot.slane %v2397, 7
      %v2439 = vrot.slane %v2438, 4
      %v2440 = vrot.slane %v2398, 7
      %v2441 = vsel %vm2425, %v2439, %v2440
      %v2442 = vrot.slane %v2399, 7
      %v2443 = vrot.slane %v2442, 4
      %v2444 = vrot.slane %v2400, 7
      %v2445 = vsel %vm2425, %v2443, %v2444
      %v2446 = vrot.slane %v2401, 7
      %v2447 = vrot.slane %v2446, 4
      %v2448 = vrot.slane %v2402, 7
      %v2449 = vsel %vm2425, %v2447, %v2448
      %v2450 = vrot.slane %v2403, 7
      %v2451 = vrot.slane %v2450, 4
      %v2452 = vrot.slane %v2404, 7
      %v2453 = vsel %vm2425, %v2451, %v2452
      %v2454 = vrot.slane %v2405, 7
      %v2455 = vrot.slane %v2454, 4
      %v2456 = vrot.slane %v2406, 7
      %v2457 = vsel %vm2425, %v2455, %v2456
      %2466 = vst [vmem:[#allocation3] sm:$0xf] %v2429
      %2467 = vst [vmem:[#allocation3 + $0x24] sm:$0xf] %v2433
      %2468 = vst [vmem:[#allocation3 + $0x48] sm:$0xf] %v2437
      %2469 = vst [vmem:[#allocation3 + $0x6c] sm:$0xf] %v2441
      %2470 = vst [vmem:[#allocation3 + $0x90] sm:$0xf] %v2445
      %2471 = vst [vmem:[#allocation3 + $0xb4] sm:$0xf] %v2449
      %2472 = vst [vmem:[#allocation3 + $0xd8] sm:$0xf] %v2453
      %2473 = vst [vmem:[#allocation3 + $0xfc] sm:$0xf] %v2457
      %v2474 = vld [vmem:[%s2390 + $0x4] sm:$0xf]
      %v2475 = vld [vmem:[%s2390 + $0x10] sm:$0xf]
      %v2476 = vld [vmem:[%s2390 + $0x1c] sm:$0xf]
      %v2477 = vld [vmem:[%s2390 + $0x28] sm:$0xf]
      %v2478 = vld [vmem:[%s2390 + $0x34] sm:$0xf]
      %v2479 = vld [vmem:[%s2390 + $0x40] sm:$0xf]
      %v2480 = vld [vmem:[%s2390 + $0x4c] sm:$0xf]
      %v2481 = vld [vmem:[%s2390 + $0x58] sm:$0xf]
      %2482 = vst [vmem:[#allocation3 + $0x4] sm:$0xf] %v2474
      %2483 = vst [vmem:[#allocation3 + $0x28] sm:$0xf] %v2475
      %2484 = vst [vmem:[#allocation3 + $0x4c] sm:$0xf] %v2476
      %2485 = vst [vmem:[#allocation3 + $0x70] sm:$0xf] %v2477
      %2486 = vst [vmem:[#allocation3 + $0x94] sm:$0xf] %v2478
      %2487 = vst [vmem:[#allocation3 + $0xb8] sm:$0xf] %v2479
      %2488 = vst [vmem:[#allocation3 + $0xdc] sm:$0xf] %v2480
      %2489 = vst [vmem:[#allocation3 + $0x100] sm:$0xf] %v2481
      %v2490 = vld [vmem:[%s2390 + $0x4] sm:$0xe]
      %v2491 = vld [vmem:[%s2390 + $0x8] sm:$0x1]
      %v2492 = vld [vmem:[%s2390 + $0x10] sm:$0xe]
      %v2493 = vld [vmem:[%s2390 + $0x14] sm:$0x1]
      %v2494 = vld [vmem:[%s2390 + $0x1c] sm:$0xe]
      %v2495 = vld [vmem:[%s2390 + $0x20] sm:$0x1]
      %v2496 = vld [vmem:[%s2390 + $0x28] sm:$0xe]
      %v2497 = vld [vmem:[%s2390 + $0x2c] sm:$0x1]
      %v2498 = vld [vmem:[%s2390 + $0x34] sm:$0xe]
      %v2499 = vld [vmem:[%s2390 + $0x38] sm:$0x1]
      %v2500 = vld [vmem:[%s2390 + $0x40] sm:$0xe]
      %v2501 = vld [vmem:[%s2390 + $0x44] sm:$0x1]
      %v2502 = vld [vmem:[%s2390 + $0x4c] sm:$0xe]
      %v2503 = vld [vmem:[%s2390 + $0x50] sm:$0x1]
      %v2504 = vld [vmem:[%s2390 + $0x58] sm:$0xe]
      %v2505 = vld [vmem:[%s2390 + $0x5c] sm:$0x1]
      %vm2522 = vcmask 1042432
      %vm2523 = vcmask 1046532
      %vm2524 = vmor %vm2522, %vm2523
      %v2525 = vrot.slane %v2490, 5
      %v2526 = vrot.slane %v2525, 4
      %v2527 = vrot.slane %v2491, 5
      %v2528 = vsel %vm2524, %v2526, %v2527
      %v2529 = vrot.slane %v2492, 5
      %v2530 = vrot.slane %v2529, 4
      %v2531 = vrot.slane %v2493, 5
      %v2532 = vsel %vm2524, %v2530, %v2531
      %v2533 = vrot.slane %v2494, 5
      %v2534 = vrot.slane %v2533, 4
      %v2535 = vrot.slane %v2495, 5
      %v2536 = vsel %vm2524, %v2534, %v2535
      %v2537 = vrot.slane %v2496, 5
      %v2538 = vrot.slane %v2537, 4
      %v2539 = vrot.slane %v2497, 5
      %v2540 = vsel %vm2524, %v2538, %v2539
      %v2541 = vrot.slane %v2498, 5
      %v2542 = vrot.slane %v2541, 4
      %v2543 = vrot.slane %v2499, 5
      %v2544 = vsel %vm2524, %v2542, %v2543
      %v2545 = vrot.slane %v2500, 5
      %v2546 = vrot.slane %v2545, 4
      %v2547 = vrot.slane %v2501, 5
      %v2548 = vsel %vm2524, %v2546, %v2547
      %v2549 = vrot.slane %v2502, 5
      %v2550 = vrot.slane %v2549, 4
      %v2551 = vrot.slane %v2503, 5
      %v2552 = vsel %vm2524, %v2550, %v2551
      %v2553 = vrot.slane %v2504, 5
      %v2554 = vrot.slane %v2553, 4
      %v2555 = vrot.slane %v2505, 5
      %v2556 = vsel %vm2524, %v2554, %v2555
      %2565 = vst [vmem:[#allocation3 + $0x8] sm:$0xf] %v2528
      %2566 = vst [vmem:[#allocation3 + $0x2c] sm:$0xf] %v2532
      %2567 = vst [vmem:[#allocation3 + $0x50] sm:$0xf] %v2536
      %2568 = vst [vmem:[#allocation3 + $0x74] sm:$0xf] %v2540
      %2569 = vst [vmem:[#allocation3 + $0x98] sm:$0xf] %v2544
      %2570 = vst [vmem:[#allocation3 + $0xbc] sm:$0xf] %v2548
      %2571 = vst [vmem:[#allocation3 + $0xe0] sm:$0xf] %v2552
      %2572 = vst [vmem:[#allocation3 + $0x104] sm:$0xf] %v2556
      %v2573 = vld [vmem:[%s288] sm:$0x8]
      %v2574 = vld [vmem:[%s288 + $0x4] sm:$0x7]
      %v2575 = vld [vmem:[%s288 + $0xc] sm:$0x8]
      %v2576 = vld [vmem:[%s288 + $0x10] sm:$0x7]
      %v2577 = vld [vmem:[%s288 + $0x18] sm:$0x8]
      %v2578 = vld [vmem:[%s288 + $0x1c] sm:$0x7]
      %v2579 = vld [vmem:[%s288 + $0x24] sm:$0x8]
      %v2580 = vld [vmem:[%s288 + $0x28] sm:$0x7]
      %v2581 = vld [vmem:[%s288 + $0x30] sm:$0x8]
      %v2582 = vld [vmem:[%s288 + $0x34] sm:$0x7]
      %v2583 = vld [vmem:[%s288 + $0x3c] sm:$0x8]
      %v2584 = vld [vmem:[%s288 + $0x40] sm:$0x7]
      %v2585 = vld [vmem:[%s288 + $0x48] sm:$0x8]
      %v2586 = vld [vmem:[%s288 + $0x4c] sm:$0x7]
      %v2587 = vld [vmem:[%s288 + $0x54] sm:$0x8]
      %v2588 = vld [vmem:[%s288 + $0x58] sm:$0x7]
      %v2605 = vrot.slane %v2573, 7
      %v2606 = vrot.slane %v2605, 4
      %v2607 = vrot.slane %v2574, 7
      %v2608 = vsel %vm2425, %v2606, %v2607
      %v2609 = vrot.slane %v2575, 7
      %v2610 = vrot.slane %v2609, 4
      %v2611 = vrot.slane %v2576, 7
      %v2612 = vsel %vm2425, %v2610, %v2611
      %v2613 = vrot.slane %v2577, 7
      %v2614 = vrot.slane %v2613, 4
      %v2615 = vrot.slane %v2578, 7
      %v2616 = vsel %vm2425, %v2614, %v2615
      %v2617 = vrot.slane %v2579, 7
      %v2618 = vrot.slane %v2617, 4
      %v2619 = vrot.slane %v2580, 7
      %v2620 = vsel %vm2425, %v2618, %v2619
      %v2621 = vrot.slane %v2581, 7
      %v2622 = vrot.slane %v2621, 4
      %v2623 = vrot.slane %v2582, 7
      %v2624 = vsel %vm2425, %v2622, %v2623
      %v2625 = vrot.slane %v2583, 7
      %v2626 = vrot.slane %v2625, 4
      %v2627 = vrot.slane %v2584, 7
      %v2628 = vsel %vm2425, %v2626, %v2627
      %v2629 = vrot.slane %v2585, 7
      %v2630 = vrot.slane %v2629, 4
      %v2631 = vrot.slane %v2586, 7
      %v2632 = vsel %vm2425, %v2630, %v2631
      %v2633 = vrot.slane %v2587, 7
      %v2634 = vrot.slane %v2633, 4
      %v2635 = vrot.slane %v2588, 7
      %v2636 = vsel %vm2425, %v2634, %v2635
      %2645 = vst [vmem:[#allocation3 + $0xc] sm:$0xf] %v2608
      %2646 = vst [vmem:[#allocation3 + $0x30] sm:$0xf] %v2612
      %2647 = vst [vmem:[#allocation3 + $0x54] sm:$0xf] %v2616
      %2648 = vst [vmem:[#allocation3 + $0x78] sm:$0xf] %v2620
      %2649 = vst [vmem:[#allocation3 + $0x9c] sm:$0xf] %v2624
      %2650 = vst [vmem:[#allocation3 + $0xc0] sm:$0xf] %v2628
      %2651 = vst [vmem:[#allocation3 + $0xe4] sm:$0xf] %v2632
      %2652 = vst [vmem:[#allocation3 + $0x108] sm:$0xf] %v2636
      %v2653 = vld [vmem:[%s288 + $0x4] sm:$0xf]
      %v2654 = vld [vmem:[%s288 + $0x10] sm:$0xf]
      %v2655 = vld [vmem:[%s288 + $0x1c] sm:$0xf]
      %v2656 = vld [vmem:[%s288 + $0x28] sm:$0xf]
      %v2657 = vld [vmem:[%s288 + $0x34] sm:$0xf]
      %v2658 = vld [vmem:[%s288 + $0x40] sm:$0xf]
      %v2659 = vld [vmem:[%s288 + $0x4c] sm:$0xf]
      %v2660 = vld [vmem:[%s288 + $0x58] sm:$0xf]
      %2661 = vst [vmem:[#allocation3 + $0x10] sm:$0xf] %v2653
      %2662 = vst [vmem:[#allocation3 + $0x34] sm:$0xf] %v2654
      %2663 = vst [vmem:[#allocation3 + $0x58] sm:$0xf] %v2655
      %2664 = vst [vmem:[#allocation3 + $0x7c] sm:$0xf] %v2656
      %2665 = vst [vmem:[#allocation3 + $0xa0] sm:$0xf] %v2657
      %2666 = vst [vmem:[#allocation3 + $0xc4] sm:$0xf] %v2658
      %2667 = vst [vmem:[#allocation3 + $0xe8] sm:$0xf] %v2659
      %2668 = vst [vmem:[#allocation3 + $0x10c] sm:$0xf] %v2660
      %v2669 = vld [vmem:[%s288 + $0x4] sm:$0xe]
      %v2670 = vld [vmem:[%s288 + $0x8] sm:$0x1]
      %v2671 = vld [vmem:[%s288 + $0x10] sm:$0xe]
      %v2672 = vld [vmem:[%s288 + $0x14] sm:$0x1]
      %v2673 = vld [vmem:[%s288 + $0x1c] sm:$0xe]
      %v2674 = vld [vmem:[%s288 + $0x20] sm:$0x1]
      %v2675 = vld [vmem:[%s288 + $0x28] sm:$0xe]
      %v2676 = vld [vmem:[%s288 + $0x2c] sm:$0x1]
      %v2677 = vld [vmem:[%s288 + $0x34] sm:$0xe]
      %v2678 = vld [vmem:[%s288 + $0x38] sm:$0x1]
      %v2679 = vld [vmem:[%s288 + $0x40] sm:$0xe]
      %v2680 = vld [vmem:[%s288 + $0x44] sm:$0x1]
      %v2681 = vld [vmem:[%s288 + $0x4c] sm:$0xe]
      %v2682 = vld [vmem:[%s288 + $0x50] sm:$0x1]
      %v2683 = vld [vmem:[%s288 + $0x58] sm:$0xe]
      %v2684 = vld [vmem:[%s288 + $0x5c] sm:$0x1]
      %v2701 = vrot.slane %v2669, 5
      %v2702 = vrot.slane %v2701, 4
      %v2703 = vrot.slane %v2670, 5
      %v2704 = vsel %vm2524, %v2702, %v2703
      %v2705 = vrot.slane %v2671, 5
      %v2706 = vrot.slane %v2705, 4
      %v2707 = vrot.slane %v2672, 5
      %v2708 = vsel %vm2524, %v2706, %v2707
      %v2709 = vrot.slane %v2673, 5
      %v2710 = vrot.slane %v2709, 4
      %v2711 = vrot.slane %v2674, 5
      %v2712 = vsel %vm2524, %v2710, %v2711
      %v2713 = vrot.slane %v2675, 5
      %v2714 = vrot.slane %v2713, 4
      %v2715 = vrot.slane %v2676, 5
      %v2716 = vsel %vm2524, %v2714, %v2715
      %v2717 = vrot.slane %v2677, 5
      %v2718 = vrot.slane %v2717, 4
      %v2719 = vrot.slane %v2678, 5
      %v2720 = vsel %vm2524, %v2718, %v2719
      %v2721 = vrot.slane %v2679, 5
      %v2722 = vrot.slane %v2721, 4
      %v2723 = vrot.slane %v2680, 5
      %v2724 = vsel %vm2524, %v2722, %v2723
      %v2725 = vrot.slane %v2681, 5
      %v2726 = vrot.slane %v2725, 4
      %v2727 = vrot.slane %v2682, 5
      %v2728 = vsel %vm2524, %v2726, %v2727
      %v2729 = vrot.slane %v2683, 5
      %v2730 = vrot.slane %v2729, 4
      %v2731 = vrot.slane %v2684, 5
      %v2732 = vsel %vm2524, %v2730, %v2731
      %2741 = vst [vmem:[#allocation3 + $0x14] sm:$0xf] %v2704
      %2742 = vst [vmem:[#allocation3 + $0x38] sm:$0xf] %v2708
      %2743 = vst [vmem:[#allocation3 + $0x5c] sm:$0xf] %v2712
      %2744 = vst [vmem:[#allocation3 + $0x80] sm:$0xf] %v2716
      %2745 = vst [vmem:[#allocation3 + $0xa4] sm:$0xf] %v2720
      %2746 = vst [vmem:[#allocation3 + $0xc8] sm:$0xf] %v2724
      %2747 = vst [vmem:[#allocation3 + $0xec] sm:$0xf] %v2728
      %2748 = vst [vmem:[#allocation3 + $0x110] sm:$0xf] %v2732
      %s2749 = scalar_lea.vmem [#allocation2], 60
      %v2750 = vld [vmem:[%s2749] sm:$0x8]
      %v2751 = vld [vmem:[%s2749 + $0x4] sm:$0x7]
      %v2752 = vld [vmem:[%s2749 + $0xc] sm:$0x8]
      %v2753 = vld [vmem:[%s2749 + $0x10] sm:$0x7]
      %v2754 = vld [vmem:[%s2749 + $0x18] sm:$0x8]
      %v2755 = vld [vmem:[%s2749 + $0x1c] sm:$0x7]
      %v2756 = vld [vmem:[%s2749 + $0x24] sm:$0x8]
      %v2757 = vld [vmem:[%s2749 + $0x28] sm:$0x7]
      %v2758 = vld [vmem:[%s2749 + $0x30] sm:$0x8]
      %v2759 = vld [vmem:[%s2749 + $0x34] sm:$0x7]
      %v2760 = vld [vmem:[%s2749 + $0x3c] sm:$0x8]
      %v2761 = vld [vmem:[%s2749 + $0x40] sm:$0x7]
      %v2762 = vld [vmem:[%s2749 + $0x48] sm:$0x8]
      %v2763 = vld [vmem:[%s2749 + $0x4c] sm:$0x7]
      %v2764 = vld [vmem:[%s2749 + $0x54] sm:$0x8]
      %v2765 = vld [vmem:[%s2749 + $0x58] sm:$0x7]
      %v2782 = vrot.slane %v2750, 7
      %v2783 = vrot.slane %v2782, 4
      %v2784 = vrot.slane %v2751, 7
      %v2785 = vsel %vm2425, %v2783, %v2784
      %v2786 = vrot.slane %v2752, 7
      %v2787 = vrot.slane %v2786, 4
      %v2788 = vrot.slane %v2753, 7
      %v2789 = vsel %vm2425, %v2787, %v2788
      %v2790 = vrot.slane %v2754, 7
      %v2791 = vrot.slane %v2790, 4
      %v2792 = vrot.slane %v2755, 7
      %v2793 = vsel %vm2425, %v2791, %v2792
      %v2794 = vrot.slane %v2756, 7
      %v2795 = vrot.slane %v2794, 4
      %v2796 = vrot.slane %v2757, 7
      %v2797 = vsel %vm2425, %v2795, %v2796
      %v2798 = vrot.slane %v2758, 7
      %v2799 = vrot.slane %v2798, 4
      %v2800 = vrot.slane %v2759, 7
      %v2801 = vsel %vm2425, %v2799, %v2800
      %v2802 = vrot.slane %v2760, 7
      %v2803 = vrot.slane %v2802, 4
      %v2804 = vrot.slane %v2761, 7
      %v2805 = vsel %vm2425, %v2803, %v2804
      %v2806 = vrot.slane %v2762, 7
      %v2807 = vrot.slane %v2806, 4
      %v2808 = vrot.slane %v2763, 7
      %v2809 = vsel %vm2425, %v2807, %v2808
      %v2810 = vrot.slane %v2764, 7
      %v2811 = vrot.slane %v2810, 4
      %v2812 = vrot.slane %v2765, 7
      %v2813 = vsel %vm2425, %v2811, %v2812
      %2822 = vst [vmem:[#allocation3 + $0x18] sm:$0xf] %v2785
      %2823 = vst [vmem:[#allocation3 + $0x3c] sm:$0xf] %v2789
      %2824 = vst [vmem:[#allocation3 + $0x60] sm:$0xf] %v2793
      %2825 = vst [vmem:[#allocation3 + $0x84] sm:$0xf] %v2797
      %2826 = vst [vmem:[#allocation3 + $0xa8] sm:$0xf] %v2801
      %2827 = vst [vmem:[#allocation3 + $0xcc] sm:$0xf] %v2805
      %2828 = vst [vmem:[#allocation3 + $0xf0] sm:$0xf] %v2809
      %2829 = vst [vmem:[#allocation3 + $0x114] sm:$0xf] %v2813
      %v2830 = vld [vmem:[%s2749 + $0x4] sm:$0xf]
      %v2831 = vld [vmem:[%s2749 + $0x10] sm:$0xf]
      %v2832 = vld [vmem:[%s2749 + $0x1c] sm:$0xf]
      %v2833 = vld [vmem:[%s2749 + $0x28] sm:$0xf]
      %v2834 = vld [vmem:[%s2749 + $0x34] sm:$0xf]
      %v2835 = vld [vmem:[%s2749 + $0x40] sm:$0xf]
      %v2836 = vld [vmem:[%s2749 + $0x4c] sm:$0xf]
      %v2837 = vld [vmem:[%s2749 + $0x58] sm:$0xf]
      %2838 = vst [vmem:[#allocation3 + $0x1c] sm:$0xf] %v2830
      %2839 = vst [vmem:[#allocation3 + $0x40] sm:$0xf] %v2831
      %2840 = vst [vmem:[#allocation3 + $0x64] sm:$0xf] %v2832
      %2841 = vst [vmem:[#allocation3 + $0x88] sm:$0xf] %v2833
      %2842 = vst [vmem:[#allocation3 + $0xac] sm:$0xf] %v2834
      %2843 = vst [vmem:[#allocation3 + $0xd0] sm:$0xf] %v2835
      %2844 = vst [vmem:[#allocation3 + $0xf4] sm:$0xf] %v2836
      %2845 = vst [vmem:[#allocation3 + $0x118] sm:$0xf] %v2837
      %v2846 = vld [vmem:[%s2749 + $0x4] sm:$0xe]
      %v2847 = vld [vmem:[%s2749 + $0x8] sm:$0x1]
      %v2848 = vld [vmem:[%s2749 + $0x10] sm:$0xe]
      %v2849 = vld [vmem:[%s2749 + $0x14] sm:$0x1]
      %v2850 = vld [vmem:[%s2749 + $0x1c] sm:$0xe]
      %v2851 = vld [vmem:[%s2749 + $0x20] sm:$0x1]
      %v2852 = vld [vmem:[%s2749 + $0x28] sm:$0xe]
      %v2853 = vld [vmem:[%s2749 + $0x2c] sm:$0x1]
      %v2854 = vld [vmem:[%s2749 + $0x34] sm:$0xe]
      %v2855 = vld [vmem:[%s2749 + $0x38] sm:$0x1]
      %v2856 = vld [vmem:[%s2749 + $0x40] sm:$0xe]
      %v2857 = vld [vmem:[%s2749 + $0x44] sm:$0x1]
      %v2858 = vld [vmem:[%s2749 + $0x4c] sm:$0xe]
      %v2859 = vld [vmem:[%s2749 + $0x50] sm:$0x1]
      %v2860 = vld [vmem:[%s2749 + $0x58] sm:$0xe]
      %v2861 = vld [vmem:[%s2749 + $0x5c] sm:$0x1]
      %v2878 = vrot.slane %v2846, 5
      %v2879 = vrot.slane %v2878, 4
      %v2880 = vrot.slane %v2847, 5
      %v2881 = vsel %vm2524, %v2879, %v2880
      %v2882 = vrot.slane %v2848, 5
      %v2883 = vrot.slane %v2882, 4
      %v2884 = vrot.slane %v2849, 5
      %v2885 = vsel %vm2524, %v2883, %v2884
      %v2886 = vrot.slane %v2850, 5
      %v2887 = vrot.slane %v2886, 4
      %v2888 = vrot.slane %v2851, 5
      %v2889 = vsel %vm2524, %v2887, %v2888
      %v2890 = vrot.slane %v2852, 5
      %v2891 = vrot.slane %v2890, 4
      %v2892 = vrot.slane %v2853, 5
      %v2893 = vsel %vm2524, %v2891, %v2892
      %v2894 = vrot.slane %v2854, 5
      %v2895 = vrot.slane %v2894, 4
      %v2896 = vrot.slane %v2855, 5
      %v2897 = vsel %vm2524, %v2895, %v2896
      %v2898 = vrot.slane %v2856, 5
      %v2899 = vrot.slane %v2898, 4
      %v2900 = vrot.slane %v2857, 5
      %v2901 = vsel %vm2524, %v2899, %v2900
      %v2902 = vrot.slane %v2858, 5
      %v2903 = vrot.slane %v2902, 4
      %v2904 = vrot.slane %v2859, 5
      %v2905 = vsel %vm2524, %v2903, %v2904
      %v2906 = vrot.slane %v2860, 5
      %v2907 = vrot.slane %v2906, 4
      %v2908 = vrot.slane %v2861, 5
      %v2909 = vsel %vm2524, %v2907, %v2908
      %2918 = vst [vmem:[#allocation3 + $0x20] sm:$0xf] %v2881
      %2919 = vst [vmem:[#allocation3 + $0x44] sm:$0xf] %v2885
      %2920 = vst [vmem:[#allocation3 + $0x68] sm:$0xf] %v2889
      %2921 = vst [vmem:[#allocation3 + $0x8c] sm:$0xf] %v2893
      %2922 = vst [vmem:[#allocation3 + $0xb0] sm:$0xf] %v2897
      %2923 = vst [vmem:[#allocation3 + $0xd4] sm:$0xf] %v2901
      %2924 = vst [vmem:[#allocation3 + $0xf8] sm:$0xf] %v2905
      %2925 = vst [vmem:[#allocation3 + $0x11c] sm:$0xf] %v2909
      %v2926 = vld [vmem:[#allocation3] sm:$0xff]
      %v2927 = vld [vmem:[#allocation3 + $0x8] sm:$0xff]
      %v2928 = vld [vmem:[#allocation3 + $0x10] sm:$0xff]
      %v2929 = vld [vmem:[#allocation3 + $0x18] sm:$0xff]
      %v2930 = vld [vmem:[#allocation3 + $0x20] sm:$0xf]
      %v2931 = vld [vmem:[#allocation3 + $0x24] sm:$0xff]
      %v2932 = vld [vmem:[#allocation3 + $0x2c] sm:$0xff]
      %v2933 = vld [vmem:[#allocation3 + $0x34] sm:$0xff]
      %v2934 = vld [vmem:[#allocation3 + $0x3c] sm:$0xff]
      %v2935 = vld [vmem:[#allocation3 + $0x44] sm:$0xf]
      %v2936 = vld [vmem:[#allocation3 + $0x48] sm:$0xff]
      %v2937 = vld [vmem:[#allocation3 + $0x50] sm:$0xff]
      %v2938 = vld [vmem:[#allocation3 + $0x58] sm:$0xff]
      %v2939 = vld [vmem:[#allocation3 + $0x60] sm:$0xff]
      %v2940 = vld [vmem:[#allocation3 + $0x68] sm:$0xf]
      %v2941 = vld [vmem:[#allocation3 + $0x6c] sm:$0xff]
      %v2942 = vld [vmem:[#allocation3 + $0x74] sm:$0xff]
      %v2943 = vld [vmem:[#allocation3 + $0x7c] sm:$0xff]
      %v2944 = vld [vmem:[#allocation3 + $0x84] sm:$0xff]
      %v2945 = vld [vmem:[#allocation3 + $0x8c] sm:$0xf]
      %v2946 = vld [vmem:[#allocation3 + $0x90] sm:$0xff]
      %v2947 = vld [vmem:[#allocation3 + $0x98] sm:$0xff]
      %v2948 = vld [vmem:[#allocation3 + $0xa0] sm:$0xff]
      %v2949 = vld [vmem:[#allocation3 + $0xa8] sm:$0xff]
      %v2950 = vld [vmem:[#allocation3 + $0xb0] sm:$0xf]
      %v2951 = vld [vmem:[#allocation3 + $0xb4] sm:$0xff]
      %v2952 = vld [vmem:[#allocation3 + $0xbc] sm:$0xff]
      %v2953 = vld [vmem:[#allocation3 + $0xc4] sm:$0xff]
      %v2954 = vld [vmem:[#allocation3 + $0xcc] sm:$0xff]
      %v2955 = vld [vmem:[#allocation3 + $0xd4] sm:$0xf]
      %v2956 = vld [vmem:[#allocation3 + $0xd8] sm:$0xff]
      %v2957 = vld [vmem:[#allocation3 + $0xe0] sm:$0xff]
      %v2958 = vld [vmem:[#allocation3 + $0xe8] sm:$0xff]
      %v2959 = vld [vmem:[#allocation3 + $0xf0] sm:$0xff]
      %v2960 = vld [vmem:[#allocation3 + $0xf8] sm:$0xf]
      %v2961 = vld [vmem:[#allocation3 + $0xfc] sm:$0xff]
      %v2962 = vld [vmem:[#allocation3 + $0x104] sm:$0xff]
      %v2963 = vld [vmem:[#allocation3 + $0x10c] sm:$0xff]
      %v2964 = vld [vmem:[#allocation3 + $0x114] sm:$0xff]
      %v2965 = vld [vmem:[#allocation3 + $0x11c] sm:$0xf]
      %v2966 = vld [vmem:[%s1 + $0x240] sm:$0xf]
      %v2967 = vld [vmem:[%s1 + $0x244] sm:$0xf]
      %v2968 = vld [vmem:[%s1 + $0x248] sm:$0xf]
      %v2969 = vld [vmem:[%s1 + $0x24c] sm:$0xf]
      %v2970 = vld [vmem:[%s1 + $0x250] sm:$0xf]
      %v2971 = vld [vmem:[%s1 + $0x254] sm:$0xf]
      %v2972 = vld [vmem:[%s1 + $0x258] sm:$0xf]
      %v2973 = vld [vmem:[%s1 + $0x25c] sm:$0xf]
      %v2974 = vld [vmem:[%s1 + $0x260] sm:$0xf]
      %v2975 = vld [vmem:[%s1 + $0x264] sm:$0xf]
      %v2976 = vld [vmem:[%s1 + $0x268] sm:$0xf]
      %v2977 = vld [vmem:[%s1 + $0x26c] sm:$0xf]
      %v2978 = vld [vmem:[%s1 + $0x270] sm:$0xf]
      %v2979 = vld [vmem:[%s1 + $0x274] sm:$0xf]
      %v2980 = vld [vmem:[%s1 + $0x278] sm:$0xf]
      %v2981 = vld [vmem:[%s1 + $0x27c] sm:$0xf]
      %v2982 = vld [vmem:[%s1 + $0x280] sm:$0xf]
      %v2983 = vld [vmem:[%s1 + $0x284] sm:$0xf]
      %v2984 = vld [vmem:[%s1 + $0x288] sm:$0xf]
      %v2985 = vld [vmem:[%s1 + $0x28c] sm:$0xf]
      %v2986 = vld [vmem:[%s1 + $0x290] sm:$0xf]
      %v2987 = vld [vmem:[%s1 + $0x294] sm:$0xf]
      %v2988 = vld [vmem:[%s1 + $0x298] sm:$0xf]
      %v2989 = vld [vmem:[%s1 + $0x29c] sm:$0xf]
      %v2990 = vld [vmem:[%s1 + $0x2a0] sm:$0xf]
      %v2991 = vld [vmem:[%s1 + $0x2a4] sm:$0xf]
      %v2992 = vld [vmem:[%s1 + $0x2a8] sm:$0xf]
      %v2993 = vld [vmem:[%s1 + $0x2ac] sm:$0xf]
      %v2994 = vld [vmem:[%s1 + $0x2b0] sm:$0xf]
      %v2995 = vld [vmem:[%s1 + $0x2b4] sm:$0xf]
      %v2996 = vld [vmem:[%s1 + $0x2b8] sm:$0xf]
      %v2997 = vld [vmem:[%s1 + $0x2bc] sm:$0xf]
      %v2998 = vld [vmem:[%s1 + $0x2c0] sm:$0xf]
      %v2999 = vld [vmem:[%s1 + $0x2c4] sm:$0xf]
      %v3000 = vld [vmem:[%s1 + $0x2c8] sm:$0xf]
      %v3001 = vld [vmem:[%s1 + $0x2cc] sm:$0xf]
      %v3002 = vld [vmem:[%s1 + $0x2d0] sm:$0xf]
      %v3003 = vld [vmem:[%s1 + $0x2d4] sm:$0xf]
      %v3004 = vld [vmem:[%s1 + $0x2d8] sm:$0xf]
      %v3005 = vld [vmem:[%s1 + $0x2dc] sm:$0xf]
      %v3006 = vld [vmem:[%s1 + $0x2e0] sm:$0xf]
      %v3007 = vld [vmem:[%s1 + $0x2e4] sm:$0xf]
      %v3008 = vld [vmem:[%s1 + $0x2e8] sm:$0xf]
      %v3009 = vld [vmem:[%s1 + $0x2ec] sm:$0xf]
      %v3010 = vld [vmem:[%s1 + $0x2f0] sm:$0xf]
      %v3011 = vld [vmem:[%s1 + $0x2f4] sm:$0xf]
      %v3012 = vld [vmem:[%s1 + $0x2f8] sm:$0xf]
      %v3013 = vld [vmem:[%s1 + $0x2fc] sm:$0xf]
      %v3014 = vld [vmem:[%s1 + $0x300] sm:$0xf]
      %v3015 = vld [vmem:[%s1 + $0x304] sm:$0xf]
      %v3016 = vld [vmem:[%s1 + $0x308] sm:$0xf]
      %v3017 = vld [vmem:[%s1 + $0x30c] sm:$0xf]
      %v3018 = vld [vmem:[%s1 + $0x310] sm:$0xf]
      %v3019 = vld [vmem:[%s1 + $0x314] sm:$0xf]
      %v3020 = vld [vmem:[%s1 + $0x318] sm:$0xf]
      %v3021 = vld [vmem:[%s1 + $0x31c] sm:$0xf]
      %v3022 = vld [vmem:[%s1 + $0x320] sm:$0xf]
      %v3023 = vld [vmem:[%s1 + $0x324] sm:$0xf]
      %v3024 = vld [vmem:[%s1 + $0x328] sm:$0xf]
      %v3025 = vld [vmem:[%s1 + $0x32c] sm:$0xf]
      %v3026 = vld [vmem:[%s1 + $0x330] sm:$0xf]
      %v3027 = vld [vmem:[%s1 + $0x334] sm:$0xf]
      %v3028 = vld [vmem:[%s1 + $0x338] sm:$0xf]
      %v3029 = vld [vmem:[%s1 + $0x33c] sm:$0xf]
      %v3030 = vld [vmem:[%s1 + $0x340] sm:$0xf]
      %v3031 = vld [vmem:[%s1 + $0x344] sm:$0xf]
      %v3032 = vld [vmem:[%s1 + $0x348] sm:$0xf]
      %v3033 = vld [vmem:[%s1 + $0x34c] sm:$0xf]
      %v3034 = vld [vmem:[%s1 + $0x350] sm:$0xf]
      %v3035 = vld [vmem:[%s1 + $0x354] sm:$0xf]
      %v3036 = vld [vmem:[%s1 + $0x358] sm:$0xf]
      %v3037 = vld [vmem:[%s1 + $0x35c] sm:$0xf]
      %v3038 = vld [vmem:[%s1 + $0x360] sm:$0xf]
      %v3039 = vld [vmem:[%s1 + $0x364] sm:$0xf]
      %v3040 = vld [vmem:[%s1 + $0x368] sm:$0xf]
      %v3041 = vld [vmem:[%s1 + $0x36c] sm:$0xf]
      %v3042 = vld [vmem:[%s1 + $0x370] sm:$0xf]
      %v3043 = vld [vmem:[%s1 + $0x374] sm:$0xf]
      %v3044 = vld [vmem:[%s1 + $0x378] sm:$0xf]
      %v3045 = vld [vmem:[%s1 + $0x37c] sm:$0xf]
      %v3046 = vld [vmem:[%s1 + $0x380] sm:$0xf]
      %v3047 = vld [vmem:[%s1 + $0x384] sm:$0xf]
      %v3048 = vld [vmem:[%s1 + $0x388] sm:$0xf]
      %v3049 = vld [vmem:[%s1 + $0x38c] sm:$0xf]
      %v3050 = vld [vmem:[%s1 + $0x390] sm:$0xf]
      %v3051 = vld [vmem:[%s1 + $0x394] sm:$0xf]
      %v3052 = vld [vmem:[%s1 + $0x398] sm:$0xf]
      %v3053 = vld [vmem:[%s1 + $0x39c] sm:$0xf]
      %v3054 = vld [vmem:[%s1 + $0x3a0] sm:$0xf]
      %v3055 = vld [vmem:[%s1 + $0x3a4] sm:$0xf]
      %v3056 = vld [vmem:[%s1 + $0x3a8] sm:$0xf]
      %v3057 = vld [vmem:[%s1 + $0x3ac] sm:$0xf]
      %v3058 = vld [vmem:[%s1 + $0x3b0] sm:$0xf]
      %v3059 = vld [vmem:[%s1 + $0x3b4] sm:$0xf]
      %v3060 = vld [vmem:[%s1 + $0x3b8] sm:$0xf]
      %v3061 = vld [vmem:[%s1 + $0x3bc] sm:$0xf]
      %v3062 = vld [vmem:[%s1 + $0x3c0] sm:$0xf]
      %v3063 = vld [vmem:[%s1 + $0x3c4] sm:$0xf]
      %v3064 = vld [vmem:[%s1 + $0x3c8] sm:$0xf]
      %v3065 = vld [vmem:[%s1 + $0x3cc] sm:$0xf]
      %v3066 = vld [vmem:[%s1 + $0x3d0] sm:$0xf]
      %v3067 = vld [vmem:[%s1 + $0x3d4] sm:$0xf]
      %v3068 = vld [vmem:[%s1 + $0x3d8] sm:$0xf]
      %v3069 = vld [vmem:[%s1 + $0x3dc] sm:$0xf]
      %v3070 = vld [vmem:[%s1 + $0x3e0] sm:$0xf]
      %v3071 = vld [vmem:[%s1 + $0x3e4] sm:$0xf]
      %v3072 = vld [vmem:[%s1 + $0x3e8] sm:$0xf]
      %v3073 = vld [vmem:[%s1 + $0x3ec] sm:$0xf]
      %v3074 = vld [vmem:[%s1 + $0x3f0] sm:$0xf]
      %v3075 = vld [vmem:[%s1 + $0x3f4] sm:$0xf]
      %v3076 = vld [vmem:[%s1 + $0x3f8] sm:$0xf]
      %v3077 = vld [vmem:[%s1 + $0x3fc] sm:$0xf]
      %v3078 = vld [vmem:[%s1 + $0x400] sm:$0xf]
      %v3079 = vld [vmem:[%s1 + $0x404] sm:$0xf]
      %v3080 = vld [vmem:[%s1 + $0x408] sm:$0xf]
      %v3081 = vld [vmem:[%s1 + $0x40c] sm:$0xf]
      %v3082 = vld [vmem:[%s1 + $0x410] sm:$0xf]
      %v3083 = vld [vmem:[%s1 + $0x414] sm:$0xf]
      %v3084 = vld [vmem:[%s1 + $0x418] sm:$0xf]
      %v3085 = vld [vmem:[%s1 + $0x41c] sm:$0xf]
      %v3086 = vld [vmem:[%s1 + $0x420] sm:$0xf]
      %v3087 = vld [vmem:[%s1 + $0x424] sm:$0xf]
      %v3088 = vld [vmem:[%s1 + $0x428] sm:$0xf]
      %v3089 = vld [vmem:[%s1 + $0x42c] sm:$0xf]
      %v3090 = vld [vmem:[%s1 + $0x430] sm:$0xf]
      %v3091 = vld [vmem:[%s1 + $0x434] sm:$0xf]
      %v3092 = vld [vmem:[%s1 + $0x438] sm:$0xf]
      %v3093 = vld [vmem:[%s1 + $0x43c] sm:$0xf]
      %v3094 = vld [vmem:[%s1 + $0x440] sm:$0xf]
      %v3095 = vld [vmem:[%s1 + $0x444] sm:$0xf]
      %v3096 = vld [vmem:[%s1 + $0x448] sm:$0xf]
      %v3097 = vld [vmem:[%s1 + $0x44c] sm:$0xf]
      %v3098 = vld [vmem:[%s1 + $0x450] sm:$0xf]
      %v3099 = vld [vmem:[%s1 + $0x454] sm:$0xf]
      %v3100 = vld [vmem:[%s1 + $0x458] sm:$0xf]
      %v3101 = vld [vmem:[%s1 + $0x45c] sm:$0xf]
      %v3102 = vld [vmem:[%s1 + $0x460] sm:$0xf]
      %v3103 = vld [vmem:[%s1 + $0x464] sm:$0xf]
      %v3104 = vld [vmem:[%s1 + $0x468] sm:$0xf]
      %v3105 = vld [vmem:[%s1 + $0x46c] sm:$0xf]
      %v3106 = vld [vmem:[%s1 + $0x470] sm:$0xf]
      %v3107 = vld [vmem:[%s1 + $0x474] sm:$0xf]
      %v3108 = vld [vmem:[%s1 + $0x478] sm:$0xf]
      %v3109 = vld [vmem:[%s1 + $0x47c] sm:$0xf]
      %v3150 = vunpack.c.l.b16 %v2926
      %v3151 = vunpack.c.h.b16 %v2926
      %v3152 = vunpack.c.l.b16 %v2927
      %v3153 = vunpack.c.h.b16 %v2927
      %v3154 = vunpack.c.l.b16 %v2928
      %v3155 = vunpack.c.h.b16 %v2928
      %v3156 = vunpack.c.l.b16 %v2929
      %v3157 = vunpack.c.h.b16 %v2929
      %v3158 = vunpack.c.l.b16 %v2930
      %v3159 = vunpack.c.l.b16 %v2931
      %v3160 = vunpack.c.h.b16 %v2931
      %v3161 = vunpack.c.l.b16 %v2932
      %v3162 = vunpack.c.h.b16 %v2932
      %v3163 = vunpack.c.l.b16 %v2933
      %v3164 = vunpack.c.h.b16 %v2933
      %v3165 = vunpack.c.l.b16 %v2934
      %v3166 = vunpack.c.h.b16 %v2934
      %v3167 = vunpack.c.l.b16 %v2935
      %v3168 = vunpack.c.l.b16 %v2936
      %v3169 = vunpack.c.h.b16 %v2936
      %v3170 = vunpack.c.l.b16 %v2937
      %v3171 = vunpack.c.h.b16 %v2937
      %v3172 = vunpack.c.l.b16 %v2938
      %v3173 = vunpack.c.h.b16 %v2938
      %v3174 = vunpack.c.l.b16 %v2939
      %v3175 = vunpack.c.h.b16 %v2939
      %v3176 = vunpack.c.l.b16 %v2940
      %v3177 = vunpack.c.l.b16 %v2941
      %v3178 = vunpack.c.h.b16 %v2941
      %v3179 = vunpack.c.l.b16 %v2942
      %v3180 = vunpack.c.h.b16 %v2942
      %v3181 = vunpack.c.l.b16 %v2943
      %v3182 = vunpack.c.h.b16 %v2943
      %v3183 = vunpack.c.l.b16 %v2944
      %v3184 = vunpack.c.h.b16 %v2944
      %v3185 = vunpack.c.l.b16 %v2945
      %v3186 = vunpack.c.l.b16 %v2946
      %v3187 = vunpack.c.h.b16 %v2946
      %v3188 = vunpack.c.l.b16 %v2947
      %v3189 = vunpack.c.h.b16 %v2947
      %v3190 = vunpack.c.l.b16 %v2948
      %v3191 = vunpack.c.h.b16 %v2948
      %v3192 = vunpack.c.l.b16 %v2949
      %v3193 = vunpack.c.h.b16 %v2949
      %v3194 = vunpack.c.l.b16 %v2950
      %v3195 = vunpack.c.l.b16 %v2951
      %v3196 = vunpack.c.h.b16 %v2951
      %v3197 = vunpack.c.l.b16 %v2952
      %v3198 = vunpack.c.h.b16 %v2952
      %v3199 = vunpack.c.l.b16 %v2953
      %v3200 = vunpack.c.h.b16 %v2953
      %v3201 = vunpack.c.l.b16 %v2954
      %v3202 = vunpack.c.h.b16 %v2954
      %v3203 = vunpack.c.l.b16 %v2955
      %v3204 = vunpack.c.l.b16 %v2956
      %v3205 = vunpack.c.h.b16 %v2956
      %v3206 = vunpack.c.l.b16 %v2957
      %v3207 = vunpack.c.h.b16 %v2957
      %v3208 = vunpack.c.l.b16 %v2958
      %v3209 = vunpack.c.h.b16 %v2958
      %v3210 = vunpack.c.l.b16 %v2959
      %v3211 = vunpack.c.h.b16 %v2959
      %v3212 = vunpack.c.l.b16 %v2960
      %v3213 = vunpack.c.l.b16 %v2961
      %v3214 = vunpack.c.h.b16 %v2961
      %v3215 = vunpack.c.l.b16 %v2962
      %v3216 = vunpack.c.h.b16 %v2962
      %v3217 = vunpack.c.l.b16 %v2963
      %v3218 = vunpack.c.h.b16 %v2963
      %v3219 = vunpack.c.l.b16 %v2964
      %v3220 = vunpack.c.h.b16 %v2964
      %v3221 = vunpack.c.l.b16 %v2965
      %v3222 = vpack.c.b16 %v3159, %v3150
      %v3223 = vpack.c.b16 %v3160, %v3151
      %v3224 = vpack.c.b16 %v3161, %v3152
      %v3225 = vpack.c.b16 %v3162, %v3153
      %v3226 = vpack.c.b16 %v3163, %v3154
      %v3227 = vpack.c.b16 %v3164, %v3155
      %v3228 = vpack.c.b16 %v3165, %v3156
      %v3229 = vpack.c.b16 %v3166, %v3157
      %v3230 = vpack.c.b16 %v3167, %v3158
      %v3231 = vpack.c.b16 %v3177, %v3168
      %v3232 = vpack.c.b16 %v3178, %v3169
      %v3233 = vpack.c.b16 %v3179, %v3170
      %v3234 = vpack.c.b16 %v3180, %v3171
      %v3235 = vpack.c.b16 %v3181, %v3172
      %v3236 = vpack.c.b16 %v3182, %v3173
      %v3237 = vpack.c.b16 %v3183, %v3174
      %v3238 = vpack.c.b16 %v3184, %v3175
      %v3239 = vpack.c.b16 %v3185, %v3176
      %v3240 = vpack.c.b16 %v3195, %v3186
      %v3241 = vpack.c.b16 %v3196, %v3187
      %v3242 = vpack.c.b16 %v3197, %v3188
      %v3243 = vpack.c.b16 %v3198, %v3189
      %v3244 = vpack.c.b16 %v3199, %v3190
      %v3245 = vpack.c.b16 %v3200, %v3191
      %v3246 = vpack.c.b16 %v3201, %v3192
      %v3247 = vpack.c.b16 %v3202, %v3193
      %v3248 = vpack.c.b16 %v3203, %v3194
      %v3249 = vpack.c.b16 %v3213, %v3204
      %v3250 = vpack.c.b16 %v3214, %v3205
      %v3251 = vpack.c.b16 %v3215, %v3206
      %v3252 = vpack.c.b16 %v3216, %v3207
      %v3253 = vpack.c.b16 %v3217, %v3208
      %v3254 = vpack.c.b16 %v3218, %v3209
      %v3255 = vpack.c.b16 %v3219, %v3210
      %v3256 = vpack.c.b16 %v3220, %v3211
      %v3257 = vpack.c.b16 %v3221, %v3212
      %v3438 = vunpack.c.l.b16 %v2966
      %v3439 = vunpack.c.l.b16 %v2967
      %v3440 = vunpack.c.l.b16 %v2968
      %v3441 = vunpack.c.l.b16 %v2969
      %v3442 = vunpack.c.l.b16 %v2970
      %v3443 = vunpack.c.l.b16 %v2971
      %v3444 = vunpack.c.l.b16 %v2972
      %v3445 = vunpack.c.l.b16 %v2973
      %v3446 = vunpack.c.l.b16 %v2974
      %v3447 = vunpack.c.l.b16 %v2975
      %v3448 = vunpack.c.l.b16 %v2976
      %v3449 = vunpack.c.l.b16 %v2977
      %v3450 = vunpack.c.l.b16 %v2978
      %v3451 = vunpack.c.l.b16 %v2979
      %v3452 = vunpack.c.l.b16 %v2980
      %v3453 = vunpack.c.l.b16 %v2981
      %v3454 = vunpack.c.l.b16 %v2982
      %v3455 = vunpack.c.l.b16 %v2983
      %v3456 = vunpack.c.l.b16 %v2984
      %v3457 = vunpack.c.l.b16 %v2985
      %v3458 = vunpack.c.l.b16 %v2986
      %v3459 = vunpack.c.l.b16 %v2987
      %v3460 = vunpack.c.l.b16 %v2988
      %v3461 = vunpack.c.l.b16 %v2989
      %v3462 = vunpack.c.l.b16 %v2990
      %v3463 = vunpack.c.l.b16 %v2991
      %v3464 = vunpack.c.l.b16 %v2992
      %v3465 = vunpack.c.l.b16 %v2993
      %v3466 = vunpack.c.l.b16 %v2994
      %v3467 = vunpack.c.l.b16 %v2995
      %v3468 = vunpack.c.l.b16 %v2996
      %v3469 = vunpack.c.l.b16 %v2997
      %v3470 = vunpack.c.l.b16 %v2998
      %v3471 = vunpack.c.l.b16 %v2999
      %v3472 = vunpack.c.l.b16 %v3000
      %v3473 = vunpack.c.l.b16 %v3001
      %v3474 = vunpack.c.l.b16 %v3002
      %v3475 = vunpack.c.l.b16 %v3003
      %v3476 = vunpack.c.l.b16 %v3004
      %v3477 = vunpack.c.l.b16 %v3005
      %v3478 = vunpack.c.l.b16 %v3006
      %v3479 = vunpack.c.l.b16 %v3007
      %v3480 = vunpack.c.l.b16 %v3008
      %v3481 = vunpack.c.l.b16 %v3009
      %v3482 = vunpack.c.l.b16 %v3010
      %v3483 = vunpack.c.l.b16 %v3011
      %v3484 = vunpack.c.l.b16 %v3012
      %v3485 = vunpack.c.l.b16 %v3013
      %v3486 = vunpack.c.l.b16 %v3014
      %v3487 = vunpack.c.l.b16 %v3015
      %v3488 = vunpack.c.l.b16 %v3016
      %v3489 = vunpack.c.l.b16 %v3017
      %v3490 = vunpack.c.l.b16 %v3018
      %v3491 = vunpack.c.l.b16 %v3019
      %v3492 = vunpack.c.l.b16 %v3020
      %v3493 = vunpack.c.l.b16 %v3021
      %v3494 = vunpack.c.l.b16 %v3022
      %v3495 = vunpack.c.l.b16 %v3023
      %v3496 = vunpack.c.l.b16 %v3024
      %v3497 = vunpack.c.l.b16 %v3025
      %v3498 = vunpack.c.l.b16 %v3026
      %v3499 = vunpack.c.l.b16 %v3027
      %v3500 = vunpack.c.l.b16 %v3028
      %v3501 = vunpack.c.l.b16 %v3029
      %v3502 = vunpack.c.l.b16 %v3030
      %v3503 = vunpack.c.l.b16 %v3031
      %v3504 = vunpack.c.l.b16 %v3032
      %v3505 = vunpack.c.l.b16 %v3033
      %v3506 = vunpack.c.l.b16 %v3034
      %v3507 = vunpack.c.l.b16 %v3035
      %v3508 = vunpack.c.l.b16 %v3036
      %v3509 = vunpack.c.l.b16 %v3037
      %v3510 = vunpack.c.l.b16 %v3038
      %v3511 = vunpack.c.l.b16 %v3039
      %v3512 = vunpack.c.l.b16 %v3040
      %v3513 = vunpack.c.l.b16 %v3041
      %v3514 = vunpack.c.l.b16 %v3042
      %v3515 = vunpack.c.l.b16 %v3043
      %v3516 = vunpack.c.l.b16 %v3044
      %v3517 = vunpack.c.l.b16 %v3045
      %v3518 = vunpack.c.l.b16 %v3046
      %v3519 = vunpack.c.l.b16 %v3047
      %v3520 = vunpack.c.l.b16 %v3048
      %v3521 = vunpack.c.l.b16 %v3049
      %v3522 = vunpack.c.l.b16 %v3050
      %v3523 = vunpack.c.l.b16 %v3051
      %v3524 = vunpack.c.l.b16 %v3052
      %v3525 = vunpack.c.l.b16 %v3053
      %v3526 = vunpack.c.l.b16 %v3054
      %v3527 = vunpack.c.l.b16 %v3055
      %v3528 = vunpack.c.l.b16 %v3056
      %v3529 = vunpack.c.l.b16 %v3057
      %v3530 = vunpack.c.l.b16 %v3058
      %v3531 = vunpack.c.l.b16 %v3059
      %v3532 = vunpack.c.l.b16 %v3060
      %v3533 = vunpack.c.l.b16 %v3061
      %v3534 = vunpack.c.l.b16 %v3062
      %v3535 = vunpack.c.l.b16 %v3063
      %v3536 = vunpack.c.l.b16 %v3064
      %v3537 = vunpack.c.l.b16 %v3065
      %v3538 = vunpack.c.l.b16 %v3066
      %v3539 = vunpack.c.l.b16 %v3067
      %v3540 = vunpack.c.l.b16 %v3068
      %v3541 = vunpack.c.l.b16 %v3069
      %v3542 = vunpack.c.l.b16 %v3070
      %v3543 = vunpack.c.l.b16 %v3071
      %v3544 = vunpack.c.l.b16 %v3072
      %v3545 = vunpack.c.l.b16 %v3073
      %v3546 = vunpack.c.l.b16 %v3074
      %v3547 = vunpack.c.l.b16 %v3075
      %v3548 = vunpack.c.l.b16 %v3076
      %v3549 = vunpack.c.l.b16 %v3077
      %v3550 = vunpack.c.l.b16 %v3078
      %v3551 = vunpack.c.l.b16 %v3079
      %v3552 = vunpack.c.l.b16 %v3080
      %v3553 = vunpack.c.l.b16 %v3081
      %v3554 = vunpack.c.l.b16 %v3082
      %v3555 = vunpack.c.l.b16 %v3083
      %v3556 = vunpack.c.l.b16 %v3084
      %v3557 = vunpack.c.l.b16 %v3085
      %v3558 = vunpack.c.l.b16 %v3086
      %v3559 = vunpack.c.l.b16 %v3087
      %v3560 = vunpack.c.l.b16 %v3088
      %v3561 = vunpack.c.l.b16 %v3089
      %v3562 = vunpack.c.l.b16 %v3090
      %v3563 = vunpack.c.l.b16 %v3091
      %v3564 = vunpack.c.l.b16 %v3092
      %v3565 = vunpack.c.l.b16 %v3093
      %v3566 = vunpack.c.l.b16 %v3094
      %v3567 = vunpack.c.l.b16 %v3095
      %v3568 = vunpack.c.l.b16 %v3096
      %v3569 = vunpack.c.l.b16 %v3097
      %v3570 = vunpack.c.l.b16 %v3098
      %v3571 = vunpack.c.l.b16 %v3099
      %v3572 = vunpack.c.l.b16 %v3100
      %v3573 = vunpack.c.l.b16 %v3101
      %v3574 = vunpack.c.l.b16 %v3102
      %v3575 = vunpack.c.l.b16 %v3103
      %v3576 = vunpack.c.l.b16 %v3104
      %v3577 = vunpack.c.l.b16 %v3105
      %v3578 = vunpack.c.l.b16 %v3106
      %v3579 = vunpack.c.l.b16 %v3107
      %v3580 = vunpack.c.l.b16 %v3108
      %v3581 = vunpack.c.l.b16 %v3109
      %v3582 = vpack.c.b16 %v3439, %v3438
      %v3583 = vpack.c.b16 %v3441, %v3440
      %v3584 = vpack.c.b16 %v3443, %v3442
      %v3585 = vpack.c.b16 %v3445, %v3444
      %v3586 = vpack.c.b16 %v3447, %v3446
      %v3587 = vpack.c.b16 %v3449, %v3448
      %v3588 = vpack.c.b16 %v3451, %v3450
      %v3589 = vpack.c.b16 %v3453, %v3452
      %v3590 = vpack.c.b16 %v3455, %v3454
      %v3591 = vpack.c.b16 %v3457, %v3456
      %v3592 = vpack.c.b16 %v3459, %v3458
      %v3593 = vpack.c.b16 %v3461, %v3460
      %v3594 = vpack.c.b16 %v3463, %v3462
      %v3595 = vpack.c.b16 %v3465, %v3464
      %v3596 = vpack.c.b16 %v3467, %v3466
      %v3597 = vpack.c.b16 %v3469, %v3468
      %v3598 = vpack.c.b16 %v3471, %v3470
      %v3599 = vpack.c.b16 %v3473, %v3472
      %v3600 = vpack.c.b16 %v3475, %v3474
      %v3601 = vpack.c.b16 %v3477, %v3476
      %v3602 = vpack.c.b16 %v3479, %v3478
      %v3603 = vpack.c.b16 %v3481, %v3480
      %v3604 = vpack.c.b16 %v3483, %v3482
      %v3605 = vpack.c.b16 %v3485, %v3484
      %v3606 = vpack.c.b16 %v3487, %v3486
      %v3607 = vpack.c.b16 %v3489, %v3488
      %v3608 = vpack.c.b16 %v3491, %v3490
      %v3609 = vpack.c.b16 %v3493, %v3492
      %v3610 = vpack.c.b16 %v3495, %v3494
      %v3611 = vpack.c.b16 %v3497, %v3496
      %v3612 = vpack.c.b16 %v3499, %v3498
      %v3613 = vpack.c.b16 %v3501, %v3500
      %v3614 = vpack.c.b16 %v3503, %v3502
      %v3615 = vpack.c.b16 %v3505, %v3504
      %v3616 = vpack.c.b16 %v3507, %v3506
      %v3617 = vpack.c.b16 %v3509, %v3508
      %v3618 = vpack.c.b16 %v3511, %v3510
      %v3619 = vpack.c.b16 %v3513, %v3512
      %v3620 = vpack.c.b16 %v3515, %v3514
      %v3621 = vpack.c.b16 %v3517, %v3516
      %v3622 = vpack.c.b16 %v3519, %v3518
      %v3623 = vpack.c.b16 %v3521, %v3520
      %v3624 = vpack.c.b16 %v3523, %v3522
      %v3625 = vpack.c.b16 %v3525, %v3524
      %v3626 = vpack.c.b16 %v3527, %v3526
      %v3627 = vpack.c.b16 %v3529, %v3528
      %v3628 = vpack.c.b16 %v3531, %v3530
      %v3629 = vpack.c.b16 %v3533, %v3532
      %v3630 = vpack.c.b16 %v3535, %v3534
      %v3631 = vpack.c.b16 %v3537, %v3536
      %v3632 = vpack.c.b16 %v3539, %v3538
      %v3633 = vpack.c.b16 %v3541, %v3540
      %v3634 = vpack.c.b16 %v3543, %v3542
      %v3635 = vpack.c.b16 %v3545, %v3544
      %v3636 = vpack.c.b16 %v3547, %v3546
      %v3637 = vpack.c.b16 %v3549, %v3548
      %v3638 = vpack.c.b16 %v3551, %v3550
      %v3639 = vpack.c.b16 %v3553, %v3552
      %v3640 = vpack.c.b16 %v3555, %v3554
      %v3641 = vpack.c.b16 %v3557, %v3556
      %v3642 = vpack.c.b16 %v3559, %v3558
      %v3643 = vpack.c.b16 %v3561, %v3560
      %v3644 = vpack.c.b16 %v3563, %v3562
      %v3645 = vpack.c.b16 %v3565, %v3564
      %v3646 = vpack.c.b16 %v3567, %v3566
      %v3647 = vpack.c.b16 %v3569, %v3568
      %v3648 = vpack.c.b16 %v3571, %v3570
      %v3649 = vpack.c.b16 %v3573, %v3572
      %v3650 = vpack.c.b16 %v3575, %v3574
      %v3651 = vpack.c.b16 %v3577, %v3576
      %v3652 = vpack.c.b16 %v3579, %v3578
      %v3653 = vpack.c.b16 %v3581, %v3580
      %3726 = vmatprep.subr.bf16.mxu0 0
      %3727 = vmatpush1.bf16.msra.mxu0 %v3589
      %3728 = vmatprep.subr.bf16.mxu0 0
      %3729 = vmatpush1.bf16.msra.mxu0 %v3588
      %3730 = vmatprep.subr.bf16.mxu0 0
      %3731 = vmatpush1.bf16.msra.mxu0 %v3587
      %3732 = vmatprep.subr.bf16.mxu0 0
      %3733 = vmatpush1.bf16.msra.mxu0 %v3586
      %3734 = vmatprep.subr.bf16.mxu0 0
      %3735 = vmatpush1.bf16.msra.mxu0 %v3585
      %3736 = vmatprep.subr.bf16.mxu0 0
      %3737 = vmatpush1.bf16.msra.mxu0 %v3584
      %3738 = vmatprep.subr.bf16.mxu0 0
      %3739 = vmatpush1.bf16.msra.mxu0 %v3583
      %3740 = vmatprep.subr.bf16.mxu0 0
      %3741 = vmatpush1.bf16.msra.mxu0 %v3582
      %3742 = vmatprep.subr.bf16.mxu0 0
      %3743 = vmatpush2.bf16.msra.mxu0 %v3597
      %3744 = vmatprep.subr.bf16.mxu0 0
      %3745 = vmatpush2.bf16.msra.mxu0 %v3596
      %3746 = vmatprep.subr.bf16.mxu0 0
      %3747 = vmatpush2.bf16.msra.mxu0 %v3595
      %3748 = vmatprep.subr.bf16.mxu0 0
      %3749 = vmatpush2.bf16.msra.mxu0 %v3594
      %3750 = vmatprep.subr.bf16.mxu0 0
      %3751 = vmatpush2.bf16.msra.mxu0 %v3593
      %3752 = vmatprep.subr.bf16.mxu0 0
      %3753 = vmatpush2.bf16.msra.mxu0 %v3592
      %3754 = vmatprep.subr.bf16.mxu0 0
      %3755 = vmatpush2.bf16.msra.mxu0 %v3591
      %3756 = vmatprep.subr.bf16.mxu0 0
      %3757 = vmatpush2.bf16.msra.mxu0 %v3590
      %3758 = vmatprep.mubr.bf16.mxu0 %v3223
      %3759 = vmatmul.mubr.bf16.gmra.mxu0 %v3222
      %v3760 = vpop.f32.mrf.mxu0
      %v3761 = vadd.f32 0.0, %v3760
      %v3762 = vpop.f32.mrf.mxu0
      %v3763 = vpop.f32.mrf.mxu0
      %v3764 = vadd.f32 0.0, %v3763
      %v3765 = vpop.f32.mrf.mxu0
      %3766 = vmatprep.mubr.bf16.mxu0 %v3232
      %3767 = vmatmul.mubr.bf16.gmra.mxu0 %v3231
      %v3768 = vpop.f32.mrf.mxu0
      %v3769 = vadd.f32 0.0, %v3768
      %v3770 = vpop.f32.mrf.mxu0
      %v3771 = vpop.f32.mrf.mxu0
      %v3772 = vadd.f32 0.0, %v3771
      %v3773 = vpop.f32.mrf.mxu0
      %3774 = vmatprep.mubr.bf16.mxu0 %v3241
      %3775 = vmatmul.mubr.bf16.gmra.mxu0 %v3240
      %v3776 = vpop.f32.mrf.mxu0
      %v3777 = vadd.f32 0.0, %v3776
      %v3778 = vpop.f32.mrf.mxu0
      %v3779 = vpop.f32.mrf.mxu0
      %v3780 = vadd.f32 0.0, %v3779
      %v3781 = vpop.f32.mrf.mxu0
      %3782 = vmatprep.mubr.bf16.mxu0 %v3250
      %3783 = vmatmul.mubr.bf16.gmra.mxu0 %v3249
      %v3784 = vpop.f32.mrf.mxu0
      %v3785 = vadd.f32 0.0, %v3784
      %v3786 = vpop.f32.mrf.mxu0
      %v3787 = vpop.f32.mrf.mxu0
      %v3788 = vadd.f32 0.0, %v3787
      %v3789 = vpop.f32.mrf.mxu0
      %3790 = vdwg.mxu0
      %3791 = vmatprep.subr.bf16.mxu0 0
      %3792 = vmatpush1.bf16.msra.mxu0 %v3605
      %3793 = vmatprep.subr.bf16.mxu0 0
      %3794 = vmatpush1.bf16.msra.mxu0 %v3604
      %3795 = vmatprep.subr.bf16.mxu0 0
      %3796 = vmatpush1.bf16.msra.mxu0 %v3603
      %3797 = vmatprep.subr.bf16.mxu0 0
      %3798 = vmatpush1.bf16.msra.mxu0 %v3602
      %3799 = vmatprep.subr.bf16.mxu0 0
      %3800 = vmatpush1.bf16.msra.mxu0 %v3601
      %3801 = vmatprep.subr.bf16.mxu0 0
      %3802 = vmatpush1.bf16.msra.mxu0 %v3600
      %3803 = vmatprep.subr.bf16.mxu0 0
      %3804 = vmatpush1.bf16.msra.mxu0 %v3599
      %3805 = vmatprep.subr.bf16.mxu0 0
      %3806 = vmatpush1.bf16.msra.mxu0 %v3598
      %3807 = vmatprep.subr.bf16.mxu0 0
      %3808 = vmatpush2.bf16.msra.mxu0 %v3613
      %3809 = vmatprep.subr.bf16.mxu0 0
      %3810 = vmatpush2.bf16.msra.mxu0 %v3612
      %3811 = vmatprep.subr.bf16.mxu0 0
      %3812 = vmatpush2.bf16.msra.mxu0 %v3611
      %3813 = vmatprep.subr.bf16.mxu0 0
      %3814 = vmatpush2.bf16.msra.mxu0 %v3610
      %3815 = vmatprep.subr.bf16.mxu0 0
      %3816 = vmatpush2.bf16.msra.mxu0 %v3609
      %3817 = vmatprep.subr.bf16.mxu0 0
      %3818 = vmatpush2.bf16.msra.mxu0 %v3608
      %3819 = vmatprep.subr.bf16.mxu0 0
      %3820 = vmatpush2.bf16.msra.mxu0 %v3607
      %3821 = vmatprep.subr.bf16.mxu0 0
      %3822 = vmatpush2.bf16.msra.mxu0 %v3606
      %3823 = vmatprep.mubr.bf16.mxu0 %v3225
      %3824 = vmatmul.mubr.bf16.gmra.mxu0 %v3224
      %v3825 = vpop.f32.mrf.mxu0
      %v3826 = vadd.f32 %v3761, %v3825
      %v3827 = vpop.f32.mrf.mxu0
      %v3828 = vpop.f32.mrf.mxu0
      %v3829 = vadd.f32 %v3764, %v3828
      %v3830 = vpop.f32.mrf.mxu0
      %3831 = vmatprep.mubr.bf16.mxu0 %v3234
      %3832 = vmatmul.mubr.bf16.gmra.mxu0 %v3233
      %v3833 = vpop.f32.mrf.mxu0
      %v3834 = vadd.f32 %v3769, %v3833
      %v3835 = vpop.f32.mrf.mxu0
      %v3836 = vpop.f32.mrf.mxu0
      %v3837 = vadd.f32 %v3772, %v3836
      %v3838 = vpop.f32.mrf.mxu0
      %3839 = vmatprep.mubr.bf16.mxu0 %v3243
      %3840 = vmatmul.mubr.bf16.gmra.mxu0 %v3242
      %v3841 = vpop.f32.mrf.mxu0
      %v3842 = vadd.f32 %v3777, %v3841
      %v3843 = vpop.f32.mrf.mxu0
      %v3844 = vpop.f32.mrf.mxu0
      %v3845 = vadd.f32 %v3780, %v3844
      %v3846 = vpop.f32.mrf.mxu0
      %3847 = vmatprep.mubr.bf16.mxu0 %v3252
      %3848 = vmatmul.mubr.bf16.gmra.mxu0 %v3251
      %v3849 = vpop.f32.mrf.mxu0
      %v3850 = vadd.f32 %v3785, %v3849
      %v3851 = vpop.f32.mrf.mxu0
      %v3852 = vpop.f32.mrf.mxu0
      %v3853 = vadd.f32 %v3788, %v3852
      %v3854 = vpop.f32.mrf.mxu0
      %3855 = vdwg.mxu0
      %3856 = vmatprep.subr.bf16.mxu0 0
      %3857 = vmatpush1.bf16.msra.mxu0 %v3621
      %3858 = vmatprep.subr.bf16.mxu0 0
      %3859 = vmatpush1.bf16.msra.mxu0 %v3620
      %3860 = vmatprep.subr.bf16.mxu0 0
      %3861 = vmatpush1.bf16.msra.mxu0 %v3619
      %3862 = vmatprep.subr.bf16.mxu0 0
      %3863 = vmatpush1.bf16.msra.mxu0 %v3618
      %3864 = vmatprep.subr.bf16.mxu0 0
      %3865 = vmatpush1.bf16.msra.mxu0 %v3617
      %3866 = vmatprep.subr.bf16.mxu0 0
      %3867 = vmatpush1.bf16.msra.mxu0 %v3616
      %3868 = vmatprep.subr.bf16.mxu0 0
      %3869 = vmatpush1.bf16.msra.mxu0 %v3615
      %3870 = vmatprep.subr.bf16.mxu0 0
      %3871 = vmatpush1.bf16.msra.mxu0 %v3614
      %3872 = vmatprep.subr.bf16.mxu0 0
      %3873 = vmatpush2.bf16.msra.mxu0 %v3629
      %3874 = vmatprep.subr.bf16.mxu0 0
      %3875 = vmatpush2.bf16.msra.mxu0 %v3628
      %3876 = vmatprep.subr.bf16.mxu0 0
      %3877 = vmatpush2.bf16.msra.mxu0 %v3627
      %3878 = vmatprep.subr.bf16.mxu0 0
      %3879 = vmatpush2.bf16.msra.mxu0 %v3626
      %3880 = vmatprep.subr.bf16.mxu0 0
      %3881 = vmatpush2.bf16.msra.mxu0 %v3625
      %3882 = vmatprep.subr.bf16.mxu0 0
      %3883 = vmatpush2.bf16.msra.mxu0 %v3624
      %3884 = vmatprep.subr.bf16.mxu0 0
      %3885 = vmatpush2.bf16.msra.mxu0 %v3623
      %3886 = vmatprep.subr.bf16.mxu0 0
      %3887 = vmatpush2.bf16.msra.mxu0 %v3622
      %3888 = vmatprep.mubr.bf16.mxu0 %v3227
      %3889 = vmatmul.mubr.bf16.gmra.mxu0 %v3226
      %v3890 = vpop.f32.mrf.mxu0
      %v3891 = vadd.f32 %v3826, %v3890
      %v3892 = vpop.f32.mrf.mxu0
      %v3893 = vpop.f32.mrf.mxu0
      %v3894 = vadd.f32 %v3829, %v3893
      %v3895 = vpop.f32.mrf.mxu0
      %3896 = vmatprep.mubr.bf16.mxu0 %v3236
      %3897 = vmatmul.mubr.bf16.gmra.mxu0 %v3235
      %v3898 = vpop.f32.mrf.mxu0
      %v3899 = vadd.f32 %v3834, %v3898
      %v3900 = vpop.f32.mrf.mxu0
      %v3901 = vpop.f32.mrf.mxu0
      %v3902 = vadd.f32 %v3837, %v3901
      %v3903 = vpop.f32.mrf.mxu0
      %3904 = vmatprep.mubr.bf16.mxu0 %v3245
      %3905 = vmatmul.mubr.bf16.gmra.mxu0 %v3244
      %v3906 = vpop.f32.mrf.mxu0
      %v3907 = vadd.f32 %v3842, %v3906
      %v3908 = vpop.f32.mrf.mxu0
      %v3909 = vpop.f32.mrf.mxu0
      %v3910 = vadd.f32 %v3845, %v3909
      %v3911 = vpop.f32.mrf.mxu0
      %3912 = vmatprep.mubr.bf16.mxu0 %v3254
      %3913 = vmatmul.mubr.bf16.gmra.mxu0 %v3253
      %v3914 = vpop.f32.mrf.mxu0
      %v3915 = vadd.f32 %v3850, %v3914
      %v3916 = vpop.f32.mrf.mxu0
      %v3917 = vpop.f32.mrf.mxu0
      %v3918 = vadd.f32 %v3853, %v3917
      %v3919 = vpop.f32.mrf.mxu0
      %3920 = vdwg.mxu0
      %3921 = vmatprep.subr.bf16.mxu0 0
      %3922 = vmatpush1.bf16.msra.mxu0 %v3637
      %3923 = vmatprep.subr.bf16.mxu0 0
      %3924 = vmatpush1.bf16.msra.mxu0 %v3636
      %3925 = vmatprep.subr.bf16.mxu0 0
      %3926 = vmatpush1.bf16.msra.mxu0 %v3635
      %3927 = vmatprep.subr.bf16.mxu0 0
      %3928 = vmatpush1.bf16.msra.mxu0 %v3634
      %3929 = vmatprep.subr.bf16.mxu0 0
      %3930 = vmatpush1.bf16.msra.mxu0 %v3633
      %3931 = vmatprep.subr.bf16.mxu0 0
      %3932 = vmatpush1.bf16.msra.mxu0 %v3632
      %3933 = vmatprep.subr.bf16.mxu0 0
      %3934 = vmatpush1.bf16.msra.mxu0 %v3631
      %3935 = vmatprep.subr.bf16.mxu0 0
      %3936 = vmatpush1.bf16.msra.mxu0 %v3630
      %3937 = vmatprep.subr.bf16.mxu0 0
      %3938 = vmatpush2.bf16.msra.mxu0 %v3645
      %3939 = vmatprep.subr.bf16.mxu0 0
      %3940 = vmatpush2.bf16.msra.mxu0 %v3644
      %3941 = vmatprep.subr.bf16.mxu0 0
      %3942 = vmatpush2.bf16.msra.mxu0 %v3643
      %3943 = vmatprep.subr.bf16.mxu0 0
      %3944 = vmatpush2.bf16.msra.mxu0 %v3642
      %3945 = vmatprep.subr.bf16.mxu0 0
      %3946 = vmatpush2.bf16.msra.mxu0 %v3641
      %3947 = vmatprep.subr.bf16.mxu0 0
      %3948 = vmatpush2.bf16.msra.mxu0 %v3640
      %3949 = vmatprep.subr.bf16.mxu0 0
      %3950 = vmatpush2.bf16.msra.mxu0 %v3639
      %3951 = vmatprep.subr.bf16.mxu0 0
      %3952 = vmatpush2.bf16.msra.mxu0 %v3638
      %3953 = vmatprep.mubr.bf16.mxu0 %v3229
      %3954 = vmatmul.mubr.bf16.gmra.mxu0 %v3228
      %v3955 = vpop.f32.mrf.mxu0
      %v3956 = vadd.f32 %v3891, %v3955
      %v3957 = vpop.f32.mrf.mxu0
      %v3958 = vpop.f32.mrf.mxu0
      %v3959 = vadd.f32 %v3894, %v3958
      %v3960 = vpop.f32.mrf.mxu0
      %3961 = vmatprep.mubr.bf16.mxu0 %v3238
      %3962 = vmatmul.mubr.bf16.gmra.mxu0 %v3237
      %v3963 = vpop.f32.mrf.mxu0
      %v3964 = vadd.f32 %v3899, %v3963
      %v3965 = vpop.f32.mrf.mxu0
      %v3966 = vpop.f32.mrf.mxu0
      %v3967 = vadd.f32 %v3902, %v3966
      %v3968 = vpop.f32.mrf.mxu0
      %3969 = vmatprep.mubr.bf16.mxu0 %v3247
      %3970 = vmatmul.mubr.bf16.gmra.mxu0 %v3246
      %v3971 = vpop.f32.mrf.mxu0
      %v3972 = vadd.f32 %v3907, %v3971
      %v3973 = vpop.f32.mrf.mxu0
      %v3974 = vpop.f32.mrf.mxu0
      %v3975 = vadd.f32 %v3910, %v3974
      %v3976 = vpop.f32.mrf.mxu0
      %3977 = vmatprep.mubr.bf16.mxu0 %v3256
      %3978 = vmatmul.mubr.bf16.gmra.mxu0 %v3255
      %v3979 = vpop.f32.mrf.mxu0
      %v3980 = vadd.f32 %v3915, %v3979
      %v3981 = vpop.f32.mrf.mxu0
      %v3982 = vpop.f32.mrf.mxu0
      %v3983 = vadd.f32 %v3918, %v3982
      %v3984 = vpop.f32.mrf.mxu0
      %3985 = vdwg.mxu0
      %3986 = vmatprep.subr.bf16.mxu0 0
      %3987 = vmatpush1.bf16.msra.mxu0 %v3653
      %3988 = vmatprep.subr.bf16.mxu0 0
      %3989 = vmatpush1.bf16.msra.mxu0 %v3652
      %3990 = vmatprep.subr.bf16.mxu0 0
      %3991 = vmatpush1.bf16.msra.mxu0 %v3651
      %3992 = vmatprep.subr.bf16.mxu0 0
      %3993 = vmatpush1.bf16.msra.mxu0 %v3650
      %3994 = vmatprep.subr.bf16.mxu0 0
      %3995 = vmatpush1.bf16.msra.mxu0 %v3649
      %3996 = vmatprep.subr.bf16.mxu0 0
      %3997 = vmatpush1.bf16.msra.mxu0 %v3648
      %3998 = vmatprep.subr.bf16.mxu0 0
      %3999 = vmatpush1.bf16.msra.mxu0 %v3647
      %4000 = vmatprep.subr.bf16.mxu0 0
      %4001 = vmatpush1.bf16.msra.mxu0 %v3646
      %4002 = vmatprep.subr.bf16.mxu0 0
      %4003 = vmatpush2.bf16.msra.mxu0 0
      %4004 = vmatprep.subr.bf16.mxu0 0
      %4005 = vmatpush2.bf16.msra.mxu0 0
      %4006 = vmatprep.subr.bf16.mxu0 0
      %4007 = vmatpush2.bf16.msra.mxu0 0
      %4008 = vmatprep.subr.bf16.mxu0 0
      %4009 = vmatpush2.bf16.msra.mxu0 0
      %4010 = vmatprep.subr.bf16.mxu0 0
      %4011 = vmatpush2.bf16.msra.mxu0 0
      %4012 = vmatprep.subr.bf16.mxu0 0
      %4013 = vmatpush2.bf16.msra.mxu0 0
      %4014 = vmatprep.subr.bf16.mxu0 0
      %4015 = vmatpush2.bf16.msra.mxu0 0
      %4016 = vmatprep.subr.bf16.mxu0 0
      %4017 = vmatpush2.bf16.msra.mxu0 0
      %4018 = vmatprep.mubr.bf16.mxu0 0
      %4019 = vmatmul.mubr.bf16.gmra.mxu0 %v3230
      %v4020 = vpop.f32.mrf.mxu0
      %v4021 = vadd.f32 %v3956, %v4020
      %v4022 = vpop.f32.mrf.mxu0
      %v4023 = vpop.f32.mrf.mxu0
      %v4024 = vadd.f32 %v3959, %v4023
      %v4025 = vpop.f32.mrf.mxu0
      %4026 = vmatprep.mubr.bf16.mxu0 0
      %4027 = vmatmul.mubr.bf16.gmra.mxu0 %v3239
      %v4028 = vpop.f32.mrf.mxu0
      %v4029 = vadd.f32 %v3964, %v4028
      %v4030 = vpop.f32.mrf.mxu0
      %v4031 = vpop.f32.mrf.mxu0
      %v4032 = vadd.f32 %v3967, %v4031
      %v4033 = vpop.f32.mrf.mxu0
      %4034 = vmatprep.mubr.bf16.mxu0 0
      %4035 = vmatmul.mubr.bf16.gmra.mxu0 %v3248
      %v4036 = vpop.f32.mrf.mxu0
      %v4037 = vadd.f32 %v3972, %v4036
      %v4038 = vpop.f32.mrf.mxu0
      %v4039 = vpop.f32.mrf.mxu0
      %v4040 = vadd.f32 %v3975, %v4039
      %v4041 = vpop.f32.mrf.mxu0
      %4042 = vmatprep.mubr.bf16.mxu0 0
      %4043 = vmatmul.mubr.bf16.gmra.mxu0 %v3257
      %v4044 = vpop.f32.mrf.mxu0
      %v4045 = vadd.f32 %v3980, %v4044
      %v4046 = vpop.f32.mrf.mxu0
      %v4047 = vpop.f32.mrf.mxu0
      %v4048 = vadd.f32 %v3983, %v4047
      %v4049 = vpop.f32.mrf.mxu0
      %4050 = vdwg.mxu0
      %v4051 = vadd.f32 %v2382, %v4021
      %v4052 = vadd.f32 %v2383, %v4024
      %v4053 = vadd.f32 %v2384, %v4029
      %v4054 = vadd.f32 %v2385, %v4032
      %v4055 = vadd.f32 %v2386, %v4037
      %v4056 = vadd.f32 %v2387, %v4040
      %v4057 = vadd.f32 %v2388, %v4045
      %v4058 = vadd.f32 %v2389, %v4048
      %v4059 = vld [vmem:[#allocation2] sm:$0xc]
      %v4060 = vld [vmem:[#allocation2 + $0x4] sm:$0x7]
      %v4061 = vld [vmem:[#allocation2 + $0xc] sm:$0xc]
      %v4062 = vld [vmem:[#allocation2 + $0x10] sm:$0x7]
      %v4063 = vld [vmem:[#allocation2 + $0x18] sm:$0xc]
      %v4064 = vld [vmem:[#allocation2 + $0x1c] sm:$0x7]
      %v4065 = vld [vmem:[#allocation2 + $0x24] sm:$0xc]
      %v4066 = vld [vmem:[#allocation2 + $0x28] sm:$0x7]
      %v4067 = vld [vmem:[#allocation2 + $0x30] sm:$0xc]
      %v4068 = vld [vmem:[#allocation2 + $0x34] sm:$0x7]
      %v4069 = vld [vmem:[#allocation2 + $0x3c] sm:$0xc]
      %v4070 = vld [vmem:[#allocation2 + $0x40] sm:$0x7]
      %v4071 = vld [vmem:[#allocation2 + $0x48] sm:$0xc]
      %v4072 = vld [vmem:[#allocation2 + $0x4c] sm:$0x7]
      %v4073 = vld [vmem:[#allocation2 + $0x54] sm:$0xc]
      %v4074 = vld [vmem:[#allocation2 + $0x58] sm:$0x7]
      %vm4075 = vsmask.f32 1280
      %vm4076 = vsmask.f32 5392
      %vm4077 = vmor %vm4075, %vm4076
      %v4079 = vshrl.u32 %v4059, 16
      %v4081 = vrot.slane %v4079, 6
      %v4082 = vshll.u32 %v4059, 16
      %v4084 = vrot.slane %v4082, 7
      %v4085 = vor.u32 %v4081, %v4084
      %v4086 = vrot.slane %v4085, 4
      %v4088 = vshrl.u32 %v4060, 16
      %v4090 = vrot.slane %v4088, 6
      %v4091 = vshll.u32 %v4060, 16
      %v4093 = vrot.slane %v4091, 7
      %v4094 = vor.u32 %v4090, %v4093
      %v4095 = vsel %vm4077, %v4086, %v4094
      %v4097 = vshrl.u32 %v4061, 16
      %v4099 = vrot.slane %v4097, 6
      %v4100 = vshll.u32 %v4061, 16
      %v4102 = vrot.slane %v4100, 7
      %v4103 = vor.u32 %v4099, %v4102
      %v4104 = vrot.slane %v4103, 4
      %v4106 = vshrl.u32 %v4062, 16
      %v4108 = vrot.slane %v4106, 6
      %v4109 = vshll.u32 %v4062, 16
      %v4111 = vrot.slane %v4109, 7
      %v4112 = vor.u32 %v4108, %v4111
      %v4113 = vsel %vm4077, %v4104, %v4112
      %v4115 = vshrl.u32 %v4063, 16
      %v4117 = vrot.slane %v4115, 6
      %v4118 = vshll.u32 %v4063, 16
      %v4120 = vrot.slane %v4118, 7
      %v4121 = vor.u32 %v4117, %v4120
      %v4122 = vrot.slane %v4121, 4
      %v4124 = vshrl.u32 %v4064, 16
      %v4126 = vrot.slane %v4124, 6
      %v4127 = vshll.u32 %v4064, 16
      %v4129 = vrot.slane %v4127, 7
      %v4130 = vor.u32 %v4126, %v4129
      %v4131 = vsel %vm4077, %v4122, %v4130
      %v4133 = vshrl.u32 %v4065, 16
      %v4135 = vrot.slane %v4133, 6
      %v4136 = vshll.u32 %v4065, 16
      %v4138 = vrot.slane %v4136, 7
      %v4139 = vor.u32 %v4135, %v4138
      %v4140 = vrot.slane %v4139, 4
      %v4142 = vshrl.u32 %v4066, 16
      %v4144 = vrot.slane %v4142, 6
      %v4145 = vshll.u32 %v4066, 16
      %v4147 = vrot.slane %v4145, 7
      %v4148 = vor.u32 %v4144, %v4147
      %v4149 = vsel %vm4077, %v4140, %v4148
      %v4151 = vshrl.u32 %v4067, 16
      %v4153 = vrot.slane %v4151, 6
      %v4154 = vshll.u32 %v4067, 16
      %v4156 = vrot.slane %v4154, 7
      %v4157 = vor.u32 %v4153, %v4156
      %v4158 = vrot.slane %v4157, 4
      %v4160 = vshrl.u32 %v4068, 16
      %v4162 = vrot.slane %v4160, 6
      %v4163 = vshll.u32 %v4068, 16
      %v4165 = vrot.slane %v4163, 7
      %v4166 = vor.u32 %v4162, %v4165
      %v4167 = vsel %vm4077, %v4158, %v4166
      %v4169 = vshrl.u32 %v4069, 16
      %v4171 = vrot.slane %v4169, 6
      %v4172 = vshll.u32 %v4069, 16
      %v4174 = vrot.slane %v4172, 7
      %v4175 = vor.u32 %v4171, %v4174
      %v4176 = vrot.slane %v4175, 4
      %v4178 = vshrl.u32 %v4070, 16
      %v4180 = vrot.slane %v4178, 6
      %v4181 = vshll.u32 %v4070, 16
      %v4183 = vrot.slane %v4181, 7
      %v4184 = vor.u32 %v4180, %v4183
      %v4185 = vsel %vm4077, %v4176, %v4184
      %v4187 = vshrl.u32 %v4071, 16
      %v4189 = vrot.slane %v4187, 6
      %v4190 = vshll.u32 %v4071, 16
      %v4192 = vrot.slane %v4190, 7
      %v4193 = vor.u32 %v4189, %v4192
      %v4194 = vrot.slane %v4193, 4
      %v4196 = vshrl.u32 %v4072, 16
      %v4198 = vrot.slane %v4196, 6
      %v4199 = vshll.u32 %v4072, 16
      %v4201 = vrot.slane %v4199, 7
      %v4202 = vor.u32 %v4198, %v4201
      %v4203 = vsel %vm4077, %v4194, %v4202
      %v4205 = vshrl.u32 %v4073, 16
      %v4207 = vrot.slane %v4205, 6
      %v4208 = vshll.u32 %v4073, 16
      %v4210 = vrot.slane %v4208, 7
      %v4211 = vor.u32 %v4207, %v4210
      %v4212 = vrot.slane %v4211, 4
      %v4214 = vshrl.u32 %v4074, 16
      %v4216 = vrot.slane %v4214, 6
      %v4217 = vshll.u32 %v4074, 16
      %v4219 = vrot.slane %v4217, 7
      %v4220 = vor.u32 %v4216, %v4219
      %v4221 = vsel %vm4077, %v4212, %v4220
      %4230 = vst [vmem:[#allocation3] sm:$0xf] %v4095
      %4231 = vst [vmem:[#allocation3 + $0x24] sm:$0xf] %v4113
      %4232 = vst [vmem:[#allocation3 + $0x48] sm:$0xf] %v4131
      %4233 = vst [vmem:[#allocation3 + $0x6c] sm:$0xf] %v4149
      %4234 = vst [vmem:[#allocation3 + $0x90] sm:$0xf] %v4167
      %4235 = vst [vmem:[#allocation3 + $0xb4] sm:$0xf] %v4185
      %4236 = vst [vmem:[#allocation3 + $0xd8] sm:$0xf] %v4203
      %4237 = vst [vmem:[#allocation3 + $0xfc] sm:$0xf] %v4221
      %v4238 = vld [vmem:[#allocation2 + $0x4] sm:$0xf]
      %v4239 = vld [vmem:[#allocation2 + $0x10] sm:$0xf]
      %v4240 = vld [vmem:[#allocation2 + $0x1c] sm:$0xf]
      %v4241 = vld [vmem:[#allocation2 + $0x28] sm:$0xf]
      %v4242 = vld [vmem:[#allocation2 + $0x34] sm:$0xf]
      %v4243 = vld [vmem:[#allocation2 + $0x40] sm:$0xf]
      %v4244 = vld [vmem:[#allocation2 + $0x4c] sm:$0xf]
      %v4245 = vld [vmem:[#allocation2 + $0x58] sm:$0xf]
      %4246 = vst [vmem:[#allocation3 + $0x4] sm:$0xf] %v4238
      %4247 = vst [vmem:[#allocation3 + $0x28] sm:$0xf] %v4239
      %4248 = vst [vmem:[#allocation3 + $0x4c] sm:$0xf] %v4240
      %4249 = vst [vmem:[#allocation3 + $0x70] sm:$0xf] %v4241
      %4250 = vst [vmem:[#allocation3 + $0x94] sm:$0xf] %v4242
      %4251 = vst [vmem:[#allocation3 + $0xb8] sm:$0xf] %v4243
      %4252 = vst [vmem:[#allocation3 + $0xdc] sm:$0xf] %v4244
      %4253 = vst [vmem:[#allocation3 + $0x100] sm:$0xf] %v4245
      %v4254 = vld [vmem:[#allocation2 + $0x4] sm:$0xe]
      %v4255 = vld [vmem:[#allocation2 + $0x8] sm:$0x3]
      %v4256 = vld [vmem:[#allocation2 + $0x10] sm:$0xe]
      %v4257 = vld [vmem:[#allocation2 + $0x14] sm:$0x3]
      %v4258 = vld [vmem:[#allocation2 + $0x1c] sm:$0xe]
      %v4259 = vld [vmem:[#allocation2 + $0x20] sm:$0x3]
      %v4260 = vld [vmem:[#allocation2 + $0x28] sm:$0xe]
      %v4261 = vld [vmem:[#allocation2 + $0x2c] sm:$0x3]
      %v4262 = vld [vmem:[#allocation2 + $0x34] sm:$0xe]
      %v4263 = vld [vmem:[#allocation2 + $0x38] sm:$0x3]
      %v4264 = vld [vmem:[#allocation2 + $0x40] sm:$0xe]
      %v4265 = vld [vmem:[#allocation2 + $0x44] sm:$0x3]
      %v4266 = vld [vmem:[#allocation2 + $0x4c] sm:$0xe]
      %v4267 = vld [vmem:[#allocation2 + $0x50] sm:$0x3]
      %v4268 = vld [vmem:[#allocation2 + $0x58] sm:$0xe]
      %v4269 = vld [vmem:[#allocation2 + $0x5c] sm:$0x3]
      %vm4270 = vsmask.f32 2304
      %vm4271 = vsmask.f32 6416
      %vm4272 = vmor %vm4270, %vm4271
      %v4274 = vshrl.u32 %v4254, 16
      %v4276 = vrot.slane %v4274, 5
      %v4277 = vshll.u32 %v4254, 16
      %v4279 = vrot.slane %v4277, 6
      %v4280 = vor.u32 %v4276, %v4279
      %v4281 = vrot.slane %v4280, 4
      %v4283 = vshrl.u32 %v4255, 16
      %v4285 = vrot.slane %v4283, 5
      %v4286 = vshll.u32 %v4255, 16
      %v4288 = vrot.slane %v4286, 6
      %v4289 = vor.u32 %v4285, %v4288
      %v4290 = vsel %vm4272, %v4281, %v4289
      %v4292 = vshrl.u32 %v4256, 16
      %v4294 = vrot.slane %v4292, 5
      %v4295 = vshll.u32 %v4256, 16
      %v4297 = vrot.slane %v4295, 6
      %v4298 = vor.u32 %v4294, %v4297
      %v4299 = vrot.slane %v4298, 4
      %v4301 = vshrl.u32 %v4257, 16
      %v4303 = vrot.slane %v4301, 5
      %v4304 = vshll.u32 %v4257, 16
      %v4306 = vrot.slane %v4304, 6
      %v4307 = vor.u32 %v4303, %v4306
      %v4308 = vsel %vm4272, %v4299, %v4307
      %v4310 = vshrl.u32 %v4258, 16
      %v4312 = vrot.slane %v4310, 5
      %v4313 = vshll.u32 %v4258, 16
      %v4315 = vrot.slane %v4313, 6
      %v4316 = vor.u32 %v4312, %v4315
      %v4317 = vrot.slane %v4316, 4
      %v4319 = vshrl.u32 %v4259, 16
      %v4321 = vrot.slane %v4319, 5
      %v4322 = vshll.u32 %v4259, 16
      %v4324 = vrot.slane %v4322, 6
      %v4325 = vor.u32 %v4321, %v4324
      %v4326 = vsel %vm4272, %v4317, %v4325
      %v4328 = vshrl.u32 %v4260, 16
      %v4330 = vrot.slane %v4328, 5
      %v4331 = vshll.u32 %v4260, 16
      %v4333 = vrot.slane %v4331, 6
      %v4334 = vor.u32 %v4330, %v4333
      %v4335 = vrot.slane %v4334, 4
      %v4337 = vshrl.u32 %v4261, 16
      %v4339 = vrot.slane %v4337, 5
      %v4340 = vshll.u32 %v4261, 16
      %v4342 = vrot.slane %v4340, 6
      %v4343 = vor.u32 %v4339, %v4342
      %v4344 = vsel %vm4272, %v4335, %v4343
      %v4346 = vshrl.u32 %v4262, 16
      %v4348 = vrot.slane %v4346, 5
      %v4349 = vshll.u32 %v4262, 16
      %v4351 = vrot.slane %v4349, 6
      %v4352 = vor.u32 %v4348, %v4351
      %v4353 = vrot.slane %v4352, 4
      %v4355 = vshrl.u32 %v4263, 16
      %v4357 = vrot.slane %v4355, 5
      %v4358 = vshll.u32 %v4263, 16
      %v4360 = vrot.slane %v4358, 6
      %v4361 = vor.u32 %v4357, %v4360
      %v4362 = vsel %vm4272, %v4353, %v4361
      %v4364 = vshrl.u32 %v4264, 16
      %v4366 = vrot.slane %v4364, 5
      %v4367 = vshll.u32 %v4264, 16
      %v4369 = vrot.slane %v4367, 6
      %v4370 = vor.u32 %v4366, %v4369
      %v4371 = vrot.slane %v4370, 4
      %v4373 = vshrl.u32 %v4265, 16
      %v4375 = vrot.slane %v4373, 5
      %v4376 = vshll.u32 %v4265, 16
      %v4378 = vrot.slane %v4376, 6
      %v4379 = vor.u32 %v4375, %v4378
      %v4380 = vsel %vm4272, %v4371, %v4379
      %v4382 = vshrl.u32 %v4266, 16
      %v4384 = vrot.slane %v4382, 5
      %v4385 = vshll.u32 %v4266, 16
      %v4387 = vrot.slane %v4385, 6
      %v4388 = vor.u32 %v4384, %v4387
      %v4389 = vrot.slane %v4388, 4
      %v4391 = vshrl.u32 %v4267, 16
      %v4393 = vrot.slane %v4391, 5
      %v4394 = vshll.u32 %v4267, 16
      %v4396 = vrot.slane %v4394, 6
      %v4397 = vor.u32 %v4393, %v4396
      %v4398 = vsel %vm4272, %v4389, %v4397
      %v4400 = vshrl.u32 %v4268, 16
      %v4402 = vrot.slane %v4400, 5
      %v4403 = vshll.u32 %v4268, 16
      %v4405 = vrot.slane %v4403, 6
      %v4406 = vor.u32 %v4402, %v4405
      %v4407 = vrot.slane %v4406, 4
      %v4409 = vshrl.u32 %v4269, 16
      %v4411 = vrot.slane %v4409, 5
      %v4412 = vshll.u32 %v4269, 16
      %v4414 = vrot.slane %v4412, 6
      %v4415 = vor.u32 %v4411, %v4414
      %v4416 = vsel %vm4272, %v4407, %v4415
      %4425 = vst [vmem:[#allocation3 + $0x8] sm:$0xf] %v4290
      %4426 = vst [vmem:[#allocation3 + $0x2c] sm:$0xf] %v4308
      %4427 = vst [vmem:[#allocation3 + $0x50] sm:$0xf] %v4326
      %4428 = vst [vmem:[#allocation3 + $0x74] sm:$0xf] %v4344
      %4429 = vst [vmem:[#allocation3 + $0x98] sm:$0xf] %v4362
      %4430 = vst [vmem:[#allocation3 + $0xbc] sm:$0xf] %v4380
      %4431 = vst [vmem:[#allocation3 + $0xe0] sm:$0xf] %v4398
      %4432 = vst [vmem:[#allocation3 + $0x104] sm:$0xf] %v4416
      %v4433 = vld [vmem:[%s288] sm:$0xc]
      %v4434 = vld [vmem:[%s288 + $0x4] sm:$0x7]
      %v4435 = vld [vmem:[%s288 + $0xc] sm:$0xc]
      %v4436 = vld [vmem:[%s288 + $0x10] sm:$0x7]
      %v4437 = vld [vmem:[%s288 + $0x18] sm:$0xc]
      %v4438 = vld [vmem:[%s288 + $0x1c] sm:$0x7]
      %v4439 = vld [vmem:[%s288 + $0x24] sm:$0xc]
      %v4440 = vld [vmem:[%s288 + $0x28] sm:$0x7]
      %v4441 = vld [vmem:[%s288 + $0x30] sm:$0xc]
      %v4442 = vld [vmem:[%s288 + $0x34] sm:$0x7]
      %v4443 = vld [vmem:[%s288 + $0x3c] sm:$0xc]
      %v4444 = vld [vmem:[%s288 + $0x40] sm:$0x7]
      %v4445 = vld [vmem:[%s288 + $0x48] sm:$0xc]
      %v4446 = vld [vmem:[%s288 + $0x4c] sm:$0x7]
      %v4447 = vld [vmem:[%s288 + $0x54] sm:$0xc]
      %v4448 = vld [vmem:[%s288 + $0x58] sm:$0x7]
      %v4450 = vshrl.u32 %v4433, 16
      %v4452 = vrot.slane %v4450, 6
      %v4453 = vshll.u32 %v4433, 16
      %v4455 = vrot.slane %v4453, 7
      %v4456 = vor.u32 %v4452, %v4455
      %v4457 = vrot.slane %v4456, 4
      %v4459 = vshrl.u32 %v4434, 16
      %v4461 = vrot.slane %v4459, 6
      %v4462 = vshll.u32 %v4434, 16
      %v4464 = vrot.slane %v4462, 7
      %v4465 = vor.u32 %v4461, %v4464
      %v4466 = vsel %vm4077, %v4457, %v4465
      %v4468 = vshrl.u32 %v4435, 16
      %v4470 = vrot.slane %v4468, 6
      %v4471 = vshll.u32 %v4435, 16
      %v4473 = vrot.slane %v4471, 7
      %v4474 = vor.u32 %v4470, %v4473
      %v4475 = vrot.slane %v4474, 4
      %v4477 = vshrl.u32 %v4436, 16
      %v4479 = vrot.slane %v4477, 6
      %v4480 = vshll.u32 %v4436, 16
      %v4482 = vrot.slane %v4480, 7
      %v4483 = vor.u32 %v4479, %v4482
      %v4484 = vsel %vm4077, %v4475, %v4483
      %v4486 = vshrl.u32 %v4437, 16
      %v4488 = vrot.slane %v4486, 6
      %v4489 = vshll.u32 %v4437, 16
      %v4491 = vrot.slane %v4489, 7
      %v4492 = vor.u32 %v4488, %v4491
      %v4493 = vrot.slane %v4492, 4
      %v4495 = vshrl.u32 %v4438, 16
      %v4497 = vrot.slane %v4495, 6
      %v4498 = vshll.u32 %v4438, 16
      %v4500 = vrot.slane %v4498, 7
      %v4501 = vor.u32 %v4497, %v4500
      %v4502 = vsel %vm4077, %v4493, %v4501
      %v4504 = vshrl.u32 %v4439, 16
      %v4506 = vrot.slane %v4504, 6
      %v4507 = vshll.u32 %v4439, 16
      %v4509 = vrot.slane %v4507, 7
      %v4510 = vor.u32 %v4506, %v4509
      %v4511 = vrot.slane %v4510, 4
      %v4513 = vshrl.u32 %v4440, 16
      %v4515 = vrot.slane %v4513, 6
      %v4516 = vshll.u32 %v4440, 16
      %v4518 = vrot.slane %v4516, 7
      %v4519 = vor.u32 %v4515, %v4518
      %v4520 = vsel %vm4077, %v4511, %v4519
      %v4522 = vshrl.u32 %v4441, 16
      %v4524 = vrot.slane %v4522, 6
      %v4525 = vshll.u32 %v4441, 16
      %v4527 = vrot.slane %v4525, 7
      %v4528 = vor.u32 %v4524, %v4527
      %v4529 = vrot.slane %v4528, 4
      %v4531 = vshrl.u32 %v4442, 16
      %v4533 = vrot.slane %v4531, 6
      %v4534 = vshll.u32 %v4442, 16
      %v4536 = vrot.slane %v4534, 7
      %v4537 = vor.u32 %v4533, %v4536
      %v4538 = vsel %vm4077, %v4529, %v4537
      %v4540 = vshrl.u32 %v4443, 16
      %v4542 = vrot.slane %v4540, 6
      %v4543 = vshll.u32 %v4443, 16
      %v4545 = vrot.slane %v4543, 7
      %v4546 = vor.u32 %v4542, %v4545
      %v4547 = vrot.slane %v4546, 4
      %v4549 = vshrl.u32 %v4444, 16
      %v4551 = vrot.slane %v4549, 6
      %v4552 = vshll.u32 %v4444, 16
      %v4554 = vrot.slane %v4552, 7
      %v4555 = vor.u32 %v4551, %v4554
      %v4556 = vsel %vm4077, %v4547, %v4555
      %v4558 = vshrl.u32 %v4445, 16
      %v4560 = vrot.slane %v4558, 6
      %v4561 = vshll.u32 %v4445, 16
      %v4563 = vrot.slane %v4561, 7
      %v4564 = vor.u32 %v4560, %v4563
      %v4565 = vrot.slane %v4564, 4
      %v4567 = vshrl.u32 %v4446, 16
      %v4569 = vrot.slane %v4567, 6
      %v4570 = vshll.u32 %v4446, 16
      %v4572 = vrot.slane %v4570, 7
      %v4573 = vor.u32 %v4569, %v4572
      %v4574 = vsel %vm4077, %v4565, %v4573
      %v4576 = vshrl.u32 %v4447, 16
      %v4578 = vrot.slane %v4576, 6
      %v4579 = vshll.u32 %v4447, 16
      %v4581 = vrot.slane %v4579, 7
      %v4582 = vor.u32 %v4578, %v4581
      %v4583 = vrot.slane %v4582, 4
      %v4585 = vshrl.u32 %v4448, 16
      %v4587 = vrot.slane %v4585, 6
      %v4588 = vshll.u32 %v4448, 16
      %v4590 = vrot.slane %v4588, 7
      %v4591 = vor.u32 %v4587, %v4590
      %v4592 = vsel %vm4077, %v4583, %v4591
      %4601 = vst [vmem:[#allocation3 + $0xc] sm:$0xf] %v4466
      %4602 = vst [vmem:[#allocation3 + $0x30] sm:$0xf] %v4484
      %4603 = vst [vmem:[#allocation3 + $0x54] sm:$0xf] %v4502
      %4604 = vst [vmem:[#allocation3 + $0x78] sm:$0xf] %v4520
      %4605 = vst [vmem:[#allocation3 + $0x9c] sm:$0xf] %v4538
      %4606 = vst [vmem:[#allocation3 + $0xc0] sm:$0xf] %v4556
      %4607 = vst [vmem:[#allocation3 + $0xe4] sm:$0xf] %v4574
      %4608 = vst [vmem:[#allocation3 + $0x108] sm:$0xf] %v4592
      %v4609 = vld [vmem:[%s288 + $0x4] sm:$0xf]
      %v4610 = vld [vmem:[%s288 + $0x10] sm:$0xf]
      %v4611 = vld [vmem:[%s288 + $0x1c] sm:$0xf]
      %v4612 = vld [vmem:[%s288 + $0x28] sm:$0xf]
      %v4613 = vld [vmem:[%s288 + $0x34] sm:$0xf]
      %v4614 = vld [vmem:[%s288 + $0x40] sm:$0xf]
      %v4615 = vld [vmem:[%s288 + $0x4c] sm:$0xf]
      %v4616 = vld [vmem:[%s288 + $0x58] sm:$0xf]
      %4617 = vst [vmem:[#allocation3 + $0x10] sm:$0xf] %v4609
      %4618 = vst [vmem:[#allocation3 + $0x34] sm:$0xf] %v4610
      %4619 = vst [vmem:[#allocation3 + $0x58] sm:$0xf] %v4611
      %4620 = vst [vmem:[#allocation3 + $0x7c] sm:$0xf] %v4612
      %4621 = vst [vmem:[#allocation3 + $0xa0] sm:$0xf] %v4613
      %4622 = vst [vmem:[#allocation3 + $0xc4] sm:$0xf] %v4614
      %4623 = vst [vmem:[#allocation3 + $0xe8] sm:$0xf] %v4615
      %4624 = vst [vmem:[#allocation3 + $0x10c] sm:$0xf] %v4616
      %v4625 = vld [vmem:[%s288 + $0x4] sm:$0xe]
      %v4626 = vld [vmem:[%s288 + $0x8] sm:$0x3]
      %v4627 = vld [vmem:[%s288 + $0x10] sm:$0xe]
      %v4628 = vld [vmem:[%s288 + $0x14] sm:$0x3]
      %v4629 = vld [vmem:[%s288 + $0x1c] sm:$0xe]
      %v4630 = vld [vmem:[%s288 + $0x20] sm:$0x3]
      %v4631 = vld [vmem:[%s288 + $0x28] sm:$0xe]
      %v4632 = vld [vmem:[%s288 + $0x2c] sm:$0x3]
      %v4633 = vld [vmem:[%s288 + $0x34] sm:$0xe]
      %v4634 = vld [vmem:[%s288 + $0x38] sm:$0x3]
      %v4635 = vld [vmem:[%s288 + $0x40] sm:$0xe]
      %v4636 = vld [vmem:[%s288 + $0x44] sm:$0x3]
      %v4637 = vld [vmem:[%s288 + $0x4c] sm:$0xe]
      %v4638 = vld [vmem:[%s288 + $0x50] sm:$0x3]
      %v4639 = vld [vmem:[%s288 + $0x58] sm:$0xe]
      %v4640 = vld [vmem:[%s288 + $0x5c] sm:$0x3]
      %v4642 = vshrl.u32 %v4625, 16
      %v4644 = vrot.slane %v4642, 5
      %v4645 = vshll.u32 %v4625, 16
      %v4647 = vrot.slane %v4645, 6
      %v4648 = vor.u32 %v4644, %v4647
      %v4649 = vrot.slane %v4648, 4
      %v4651 = vshrl.u32 %v4626, 16
      %v4653 = vrot.slane %v4651, 5
      %v4654 = vshll.u32 %v4626, 16
      %v4656 = vrot.slane %v4654, 6
      %v4657 = vor.u32 %v4653, %v4656
      %v4658 = vsel %vm4272, %v4649, %v4657
      %v4660 = vshrl.u32 %v4627, 16
      %v4662 = vrot.slane %v4660, 5
      %v4663 = vshll.u32 %v4627, 16
      %v4665 = vrot.slane %v4663, 6
      %v4666 = vor.u32 %v4662, %v4665
      %v4667 = vrot.slane %v4666, 4
      %v4669 = vshrl.u32 %v4628, 16
      %v4671 = vrot.slane %v4669, 5
      %v4672 = vshll.u32 %v4628, 16
      %v4674 = vrot.slane %v4672, 6
      %v4675 = vor.u32 %v4671, %v4674
      %v4676 = vsel %vm4272, %v4667, %v4675
      %v4678 = vshrl.u32 %v4629, 16
      %v4680 = vrot.slane %v4678, 5
      %v4681 = vshll.u32 %v4629, 16
      %v4683 = vrot.slane %v4681, 6
      %v4684 = vor.u32 %v4680, %v4683
      %v4685 = vrot.slane %v4684, 4
      %v4687 = vshrl.u32 %v4630, 16
      %v4689 = vrot.slane %v4687, 5
      %v4690 = vshll.u32 %v4630, 16
      %v4692 = vrot.slane %v4690, 6
      %v4693 = vor.u32 %v4689, %v4692
      %v4694 = vsel %vm4272, %v4685, %v4693
      %v4696 = vshrl.u32 %v4631, 16
      %v4698 = vrot.slane %v4696, 5
      %v4699 = vshll.u32 %v4631, 16
      %v4701 = vrot.slane %v4699, 6
      %v4702 = vor.u32 %v4698, %v4701
      %v4703 = vrot.slane %v4702, 4
      %v4705 = vshrl.u32 %v4632, 16
      %v4707 = vrot.slane %v4705, 5
      %v4708 = vshll.u32 %v4632, 16
      %v4710 = vrot.slane %v4708, 6
      %v4711 = vor.u32 %v4707, %v4710
      %v4712 = vsel %vm4272, %v4703, %v4711
      %v4714 = vshrl.u32 %v4633, 16
      %v4716 = vrot.slane %v4714, 5
      %v4717 = vshll.u32 %v4633, 16
      %v4719 = vrot.slane %v4717, 6
      %v4720 = vor.u32 %v4716, %v4719
      %v4721 = vrot.slane %v4720, 4
      %v4723 = vshrl.u32 %v4634, 16
      %v4725 = vrot.slane %v4723, 5
      %v4726 = vshll.u32 %v4634, 16
      %v4728 = vrot.slane %v4726, 6
      %v4729 = vor.u32 %v4725, %v4728
      %v4730 = vsel %vm4272, %v4721, %v4729
      %v4732 = vshrl.u32 %v4635, 16
      %v4734 = vrot.slane %v4732, 5
      %v4735 = vshll.u32 %v4635, 16
      %v4737 = vrot.slane %v4735, 6
      %v4738 = vor.u32 %v4734, %v4737
      %v4739 = vrot.slane %v4738, 4
      %v4741 = vshrl.u32 %v4636, 16
      %v4743 = vrot.slane %v4741, 5
      %v4744 = vshll.u32 %v4636, 16
      %v4746 = vrot.slane %v4744, 6
      %v4747 = vor.u32 %v4743, %v4746
      %v4748 = vsel %vm4272, %v4739, %v4747
      %v4750 = vshrl.u32 %v4637, 16
      %v4752 = vrot.slane %v4750, 5
      %v4753 = vshll.u32 %v4637, 16
      %v4755 = vrot.slane %v4753, 6
      %v4756 = vor.u32 %v4752, %v4755
      %v4757 = vrot.slane %v4756, 4
      %v4759 = vshrl.u32 %v4638, 16
      %v4761 = vrot.slane %v4759, 5
      %v4762 = vshll.u32 %v4638, 16
      %v4764 = vrot.slane %v4762, 6
      %v4765 = vor.u32 %v4761, %v4764
      %v4766 = vsel %vm4272, %v4757, %v4765
      %v4768 = vshrl.u32 %v4639, 16
      %v4770 = vrot.slane %v4768, 5
      %v4771 = vshll.u32 %v4639, 16
      %v4773 = vrot.slane %v4771, 6
      %v4774 = vor.u32 %v4770, %v4773
      %v4775 = vrot.slane %v4774, 4
      %v4777 = vshrl.u32 %v4640, 16
      %v4779 = vrot.slane %v4777, 5
      %v4780 = vshll.u32 %v4640, 16
      %v4782 = vrot.slane %v4780, 6
      %v4783 = vor.u32 %v4779, %v4782
      %v4784 = vsel %vm4272, %v4775, %v4783
      %4793 = vst [vmem:[#allocation3 + $0x14] sm:$0xf] %v4658
      %4794 = vst [vmem:[#allocation3 + $0x38] sm:$0xf] %v4676
      %4795 = vst [vmem:[#allocation3 + $0x5c] sm:$0xf] %v4694
      %4796 = vst [vmem:[#allocation3 + $0x80] sm:$0xf] %v4712
      %4797 = vst [vmem:[#allocation3 + $0xa4] sm:$0xf] %v4730
      %4798 = vst [vmem:[#allocation3 + $0xc8] sm:$0xf] %v4748
      %4799 = vst [vmem:[#allocation3 + $0xec] sm:$0xf] %v4766
      %4800 = vst [vmem:[#allocation3 + $0x110] sm:$0xf] %v4784
      %s4801 = scalar_lea.vmem [#allocation2], 72
      %v4802 = vld [vmem:[%s4801] sm:$0xc]
      %v4803 = vld [vmem:[%s4801 + $0x4] sm:$0x7]
      %v4804 = vld [vmem:[%s4801 + $0xc] sm:$0xc]
      %v4805 = vld [vmem:[%s4801 + $0x10] sm:$0x7]
      %v4806 = vld [vmem:[%s4801 + $0x18] sm:$0xc]
      %v4807 = vld [vmem:[%s4801 + $0x1c] sm:$0x7]
      %v4808 = vld [vmem:[%s4801 + $0x24] sm:$0xc]
      %v4809 = vld [vmem:[%s4801 + $0x28] sm:$0x7]
      %v4810 = vld [vmem:[%s4801 + $0x30] sm:$0xc]
      %v4811 = vld [vmem:[%s4801 + $0x34] sm:$0x7]
      %v4812 = vld [vmem:[%s4801 + $0x3c] sm:$0xc]
      %v4813 = vld [vmem:[%s4801 + $0x40] sm:$0x7]
      %v4814 = vld [vmem:[%s4801 + $0x48] sm:$0xc]
      %v4815 = vld [vmem:[%s4801 + $0x4c] sm:$0x7]
      %v4816 = vld [vmem:[%s4801 + $0x54] sm:$0xc]
      %v4817 = vld [vmem:[%s4801 + $0x58] sm:$0x7]
      %v4819 = vshrl.u32 %v4802, 16
      %v4821 = vrot.slane %v4819, 6
      %v4822 = vshll.u32 %v4802, 16
      %v4824 = vrot.slane %v4822, 7
      %v4825 = vor.u32 %v4821, %v4824
      %v4826 = vrot.slane %v4825, 4
      %v4828 = vshrl.u32 %v4803, 16
      %v4830 = vrot.slane %v4828, 6
      %v4831 = vshll.u32 %v4803, 16
      %v4833 = vrot.slane %v4831, 7
      %v4834 = vor.u32 %v4830, %v4833
      %v4835 = vsel %vm4077, %v4826, %v4834
      %v4837 = vshrl.u32 %v4804, 16
      %v4839 = vrot.slane %v4837, 6
      %v4840 = vshll.u32 %v4804, 16
      %v4842 = vrot.slane %v4840, 7
      %v4843 = vor.u32 %v4839, %v4842
      %v4844 = vrot.slane %v4843, 4
      %v4846 = vshrl.u32 %v4805, 16
      %v4848 = vrot.slane %v4846, 6
      %v4849 = vshll.u32 %v4805, 16
      %v4851 = vrot.slane %v4849, 7
      %v4852 = vor.u32 %v4848, %v4851
      %v4853 = vsel %vm4077, %v4844, %v4852
      %v4855 = vshrl.u32 %v4806, 16
      %v4857 = vrot.slane %v4855, 6
      %v4858 = vshll.u32 %v4806, 16
      %v4860 = vrot.slane %v4858, 7
      %v4861 = vor.u32 %v4857, %v4860
      %v4862 = vrot.slane %v4861, 4
      %v4864 = vshrl.u32 %v4807, 16
      %v4866 = vrot.slane %v4864, 6
      %v4867 = vshll.u32 %v4807, 16
      %v4869 = vrot.slane %v4867, 7
      %v4870 = vor.u32 %v4866, %v4869
      %v4871 = vsel %vm4077, %v4862, %v4870
      %v4873 = vshrl.u32 %v4808, 16
      %v4875 = vrot.slane %v4873, 6
      %v4876 = vshll.u32 %v4808, 16
      %v4878 = vrot.slane %v4876, 7
      %v4879 = vor.u32 %v4875, %v4878
      %v4880 = vrot.slane %v4879, 4
      %v4882 = vshrl.u32 %v4809, 16
      %v4884 = vrot.slane %v4882, 6
      %v4885 = vshll.u32 %v4809, 16
      %v4887 = vrot.slane %v4885, 7
      %v4888 = vor.u32 %v4884, %v4887
      %v4889 = vsel %vm4077, %v4880, %v4888
      %v4891 = vshrl.u32 %v4810, 16
      %v4893 = vrot.slane %v4891, 6
      %v4894 = vshll.u32 %v4810, 16
      %v4896 = vrot.slane %v4894, 7
      %v4897 = vor.u32 %v4893, %v4896
      %v4898 = vrot.slane %v4897, 4
      %v4900 = vshrl.u32 %v4811, 16
      %v4902 = vrot.slane %v4900, 6
      %v4903 = vshll.u32 %v4811, 16
      %v4905 = vrot.slane %v4903, 7
      %v4906 = vor.u32 %v4902, %v4905
      %v4907 = vsel %vm4077, %v4898, %v4906
      %v4909 = vshrl.u32 %v4812, 16
      %v4911 = vrot.slane %v4909, 6
      %v4912 = vshll.u32 %v4812, 16
      %v4914 = vrot.slane %v4912, 7
      %v4915 = vor.u32 %v4911, %v4914
      %v4916 = vrot.slane %v4915, 4
      %v4918 = vshrl.u32 %v4813, 16
      %v4920 = vrot.slane %v4918, 6
      %v4921 = vshll.u32 %v4813, 16
      %v4923 = vrot.slane %v4921, 7
      %v4924 = vor.u32 %v4920, %v4923
      %v4925 = vsel %vm4077, %v4916, %v4924
      %v4927 = vshrl.u32 %v4814, 16
      %v4929 = vrot.slane %v4927, 6
      %v4930 = vshll.u32 %v4814, 16
      %v4932 = vrot.slane %v4930, 7
      %v4933 = vor.u32 %v4929, %v4932
      %v4934 = vrot.slane %v4933, 4
      %v4936 = vshrl.u32 %v4815, 16
      %v4938 = vrot.slane %v4936, 6
      %v4939 = vshll.u32 %v4815, 16
      %v4941 = vrot.slane %v4939, 7
      %v4942 = vor.u32 %v4938, %v4941
      %v4943 = vsel %vm4077, %v4934, %v4942
      %v4945 = vshrl.u32 %v4816, 16
      %v4947 = vrot.slane %v4945, 6
      %v4948 = vshll.u32 %v4816, 16
      %v4950 = vrot.slane %v4948, 7
      %v4951 = vor.u32 %v4947, %v4950
      %v4952 = vrot.slane %v4951, 4
      %v4954 = vshrl.u32 %v4817, 16
      %v4956 = vrot.slane %v4954, 6
      %v4957 = vshll.u32 %v4817, 16
      %v4959 = vrot.slane %v4957, 7
      %v4960 = vor.u32 %v4956, %v4959
      %v4961 = vsel %vm4077, %v4952, %v4960
      %4970 = vst [vmem:[#allocation3 + $0x18] sm:$0xf] %v4835
      %4971 = vst [vmem:[#allocation3 + $0x3c] sm:$0xf] %v4853
      %4972 = vst [vmem:[#allocation3 + $0x60] sm:$0xf] %v4871
      %4973 = vst [vmem:[#allocation3 + $0x84] sm:$0xf] %v4889
      %4974 = vst [vmem:[#allocation3 + $0xa8] sm:$0xf] %v4907
      %4975 = vst [vmem:[#allocation3 + $0xcc] sm:$0xf] %v4925
      %4976 = vst [vmem:[#allocation3 + $0xf0] sm:$0xf] %v4943
      %4977 = vst [vmem:[#allocation3 + $0x114] sm:$0xf] %v4961
      %v4978 = vld [vmem:[%s4801 + $0x4] sm:$0xf]
      %v4979 = vld [vmem:[%s4801 + $0x10] sm:$0xf]
      %v4980 = vld [vmem:[%s4801 + $0x1c] sm:$0xf]
      %v4981 = vld [vmem:[%s4801 + $0x28] sm:$0xf]
      %v4982 = vld [vmem:[%s4801 + $0x34] sm:$0xf]
      %v4983 = vld [vmem:[%s4801 + $0x40] sm:$0xf]
      %v4984 = vld [vmem:[%s4801 + $0x4c] sm:$0xf]
      %v4985 = vld [vmem:[%s4801 + $0x58] sm:$0xf]
      %4986 = vst [vmem:[#allocation3 + $0x1c] sm:$0xf] %v4978
      %4987 = vst [vmem:[#allocation3 + $0x40] sm:$0xf] %v4979
      %4988 = vst [vmem:[#allocation3 + $0x64] sm:$0xf] %v4980
      %4989 = vst [vmem:[#allocation3 + $0x88] sm:$0xf] %v4981
      %4990 = vst [vmem:[#allocation3 + $0xac] sm:$0xf] %v4982
      %4991 = vst [vmem:[#allocation3 + $0xd0] sm:$0xf] %v4983
      %4992 = vst [vmem:[#allocation3 + $0xf4] sm:$0xf] %v4984
      %4993 = vst [vmem:[#allocation3 + $0x118] sm:$0xf] %v4985
      %v4994 = vld [vmem:[%s4801 + $0x4] sm:$0xe]
      %v4995 = vld [vmem:[%s4801 + $0x8] sm:$0x3]
      %v4996 = vld [vmem:[%s4801 + $0x10] sm:$0xe]
      %v4997 = vld [vmem:[%s4801 + $0x14] sm:$0x3]
      %v4998 = vld [vmem:[%s4801 + $0x1c] sm:$0xe]
      %v4999 = vld [vmem:[%s4801 + $0x20] sm:$0x3]
      %v5000 = vld [vmem:[%s4801 + $0x28] sm:$0xe]
      %v5001 = vld [vmem:[%s4801 + $0x2c] sm:$0x3]
      %v5002 = vld [vmem:[%s4801 + $0x34] sm:$0xe]
      %v5003 = vld [vmem:[%s4801 + $0x38] sm:$0x3]
      %v5004 = vld [vmem:[%s4801 + $0x40] sm:$0xe]
      %v5005 = vld [vmem:[%s4801 + $0x44] sm:$0x3]
      %v5006 = vld [vmem:[%s4801 + $0x4c] sm:$0xe]
      %v5007 = vld [vmem:[%s4801 + $0x50] sm:$0x3]
      %v5008 = vld [vmem:[%s4801 + $0x58] sm:$0xe]
      %v5009 = vld [vmem:[%s4801 + $0x5c] sm:$0x3]
      %v5011 = vshrl.u32 %v4994, 16
      %v5013 = vrot.slane %v5011, 5
      %v5014 = vshll.u32 %v4994, 16
      %v5016 = vrot.slane %v5014, 6
      %v5017 = vor.u32 %v5013, %v5016
      %v5018 = vrot.slane %v5017, 4
      %v5020 = vshrl.u32 %v4995, 16
      %v5022 = vrot.slane %v5020, 5
      %v5023 = vshll.u32 %v4995, 16
      %v5025 = vrot.slane %v5023, 6
      %v5026 = vor.u32 %v5022, %v5025
      %v5027 = vsel %vm4272, %v5018, %v5026
      %v5029 = vshrl.u32 %v4996, 16
      %v5031 = vrot.slane %v5029, 5
      %v5032 = vshll.u32 %v4996, 16
      %v5034 = vrot.slane %v5032, 6
      %v5035 = vor.u32 %v5031, %v5034
      %v5036 = vrot.slane %v5035, 4
      %v5038 = vshrl.u32 %v4997, 16
      %v5040 = vrot.slane %v5038, 5
      %v5041 = vshll.u32 %v4997, 16
      %v5043 = vrot.slane %v5041, 6
      %v5044 = vor.u32 %v5040, %v5043
      %v5045 = vsel %vm4272, %v5036, %v5044
      %v5047 = vshrl.u32 %v4998, 16
      %v5049 = vrot.slane %v5047, 5
      %v5050 = vshll.u32 %v4998, 16
      %v5052 = vrot.slane %v5050, 6
      %v5053 = vor.u32 %v5049, %v5052
      %v5054 = vrot.slane %v5053, 4
      %v5056 = vshrl.u32 %v4999, 16
      %v5058 = vrot.slane %v5056, 5
      %v5059 = vshll.u32 %v4999, 16
      %v5061 = vrot.slane %v5059, 6
      %v5062 = vor.u32 %v5058, %v5061
      %v5063 = vsel %vm4272, %v5054, %v5062
      %v5065 = vshrl.u32 %v5000, 16
      %v5067 = vrot.slane %v5065, 5
      %v5068 = vshll.u32 %v5000, 16
      %v5070 = vrot.slane %v5068, 6
      %v5071 = vor.u32 %v5067, %v5070
      %v5072 = vrot.slane %v5071, 4
      %v5074 = vshrl.u32 %v5001, 16
      %v5076 = vrot.slane %v5074, 5
      %v5077 = vshll.u32 %v5001, 16
      %v5079 = vrot.slane %v5077, 6
      %v5080 = vor.u32 %v5076, %v5079
      %v5081 = vsel %vm4272, %v5072, %v5080
      %v5083 = vshrl.u32 %v5002, 16
      %v5085 = vrot.slane %v5083, 5
      %v5086 = vshll.u32 %v5002, 16
      %v5088 = vrot.slane %v5086, 6
      %v5089 = vor.u32 %v5085, %v5088
      %v5090 = vrot.slane %v5089, 4
      %v5092 = vshrl.u32 %v5003, 16
      %v5094 = vrot.slane %v5092, 5
      %v5095 = vshll.u32 %v5003, 16
      %v5097 = vrot.slane %v5095, 6
      %v5098 = vor.u32 %v5094, %v5097
      %v5099 = vsel %vm4272, %v5090, %v5098
      %v5101 = vshrl.u32 %v5004, 16
      %v5103 = vrot.slane %v5101, 5
      %v5104 = vshll.u32 %v5004, 16
      %v5106 = vrot.slane %v5104, 6
      %v5107 = vor.u32 %v5103, %v5106
      %v5108 = vrot.slane %v5107, 4
      %v5110 = vshrl.u32 %v5005, 16
      %v5112 = vrot.slane %v5110, 5
      %v5113 = vshll.u32 %v5005, 16
      %v5115 = vrot.slane %v5113, 6
      %v5116 = vor.u32 %v5112, %v5115
      %v5117 = vsel %vm4272, %v5108, %v5116
      %v5119 = vshrl.u32 %v5006, 16
      %v5121 = vrot.slane %v5119, 5
      %v5122 = vshll.u32 %v5006, 16
      %v5124 = vrot.slane %v5122, 6
      %v5125 = vor.u32 %v5121, %v5124
      %v5126 = vrot.slane %v5125, 4
      %v5128 = vshrl.u32 %v5007, 16
      %v5130 = vrot.slane %v5128, 5
      %v5131 = vshll.u32 %v5007, 16
      %v5133 = vrot.slane %v5131, 6
      %v5134 = vor.u32 %v5130, %v5133
      %v5135 = vsel %vm4272, %v5126, %v5134
      %v5137 = vshrl.u32 %v5008, 16
      %v5139 = vrot.slane %v5137, 5
      %v5140 = vshll.u32 %v5008, 16
      %v5142 = vrot.slane %v5140, 6
      %v5143 = vor.u32 %v5139, %v5142
      %v5144 = vrot.slane %v5143, 4
      %v5146 = vshrl.u32 %v5009, 16
      %v5148 = vrot.slane %v5146, 5
      %v5149 = vshll.u32 %v5009, 16
      %v5151 = vrot.slane %v5149, 6
      %v5152 = vor.u32 %v5148, %v5151
      %v5153 = vsel %vm4272, %v5144, %v5152
      %5162 = vst [vmem:[#allocation3 + $0x20] sm:$0xf] %v5027
      %5163 = vst [vmem:[#allocation3 + $0x44] sm:$0xf] %v5045
      %5164 = vst [vmem:[#allocation3 + $0x68] sm:$0xf] %v5063
      %5165 = vst [vmem:[#allocation3 + $0x8c] sm:$0xf] %v5081
      %5166 = vst [vmem:[#allocation3 + $0xb0] sm:$0xf] %v5099
      %5167 = vst [vmem:[#allocation3 + $0xd4] sm:$0xf] %v5117
      %5168 = vst [vmem:[#allocation3 + $0xf8] sm:$0xf] %v5135
      %5169 = vst [vmem:[#allocation3 + $0x11c] sm:$0xf] %v5153
      %v5170 = vld [vmem:[#allocation3] sm:$0xff]
      %v5171 = vld [vmem:[#allocation3 + $0x8] sm:$0xff]
      %v5172 = vld [vmem:[#allocation3 + $0x10] sm:$0xff]
      %v5173 = vld [vmem:[#allocation3 + $0x18] sm:$0xff]
      %v5174 = vld [vmem:[#allocation3 + $0x20] sm:$0xf]
      %v5175 = vld [vmem:[#allocation3 + $0x24] sm:$0xff]
      %v5176 = vld [vmem:[#allocation3 + $0x2c] sm:$0xff]
      %v5177 = vld [vmem:[#allocation3 + $0x34] sm:$0xff]
      %v5178 = vld [vmem:[#allocation3 + $0x3c] sm:$0xff]
      %v5179 = vld [vmem:[#allocation3 + $0x44] sm:$0xf]
      %v5180 = vld [vmem:[#allocation3 + $0x48] sm:$0xff]
      %v5181 = vld [vmem:[#allocation3 + $0x50] sm:$0xff]
      %v5182 = vld [vmem:[#allocation3 + $0x58] sm:$0xff]
      %v5183 = vld [vmem:[#allocation3 + $0x60] sm:$0xff]
      %v5184 = vld [vmem:[#allocation3 + $0x68] sm:$0xf]
      %v5185 = vld [vmem:[#allocation3 + $0x6c] sm:$0xff]
      %v5186 = vld [vmem:[#allocation3 + $0x74] sm:$0xff]
      %v5187 = vld [vmem:[#allocation3 + $0x7c] sm:$0xff]
      %v5188 = vld [vmem:[#allocation3 + $0x84] sm:$0xff]
      %v5189 = vld [vmem:[#allocation3 + $0x8c] sm:$0xf]
      %v5190 = vld [vmem:[#allocation3 + $0x90] sm:$0xff]
      %v5191 = vld [vmem:[#allocation3 + $0x98] sm:$0xff]
      %v5192 = vld [vmem:[#allocation3 + $0xa0] sm:$0xff]
      %v5193 = vld [vmem:[#allocation3 + $0xa8] sm:$0xff]
      %v5194 = vld [vmem:[#allocation3 + $0xb0] sm:$0xf]
      %v5195 = vld [vmem:[#allocation3 + $0xb4] sm:$0xff]
      %v5196 = vld [vmem:[#allocation3 + $0xbc] sm:$0xff]
      %v5197 = vld [vmem:[#allocation3 + $0xc4] sm:$0xff]
      %v5198 = vld [vmem:[#allocation3 + $0xcc] sm:$0xff]
      %v5199 = vld [vmem:[#allocation3 + $0xd4] sm:$0xf]
      %v5200 = vld [vmem:[#allocation3 + $0xd8] sm:$0xff]
      %v5201 = vld [vmem:[#allocation3 + $0xe0] sm:$0xff]
      %v5202 = vld [vmem:[#allocation3 + $0xe8] sm:$0xff]
      %v5203 = vld [vmem:[#allocation3 + $0xf0] sm:$0xff]
      %v5204 = vld [vmem:[#allocation3 + $0xf8] sm:$0xf]
      %v5205 = vld [vmem:[#allocation3 + $0xfc] sm:$0xff]
      %v5206 = vld [vmem:[#allocation3 + $0x104] sm:$0xff]
      %v5207 = vld [vmem:[#allocation3 + $0x10c] sm:$0xff]
      %v5208 = vld [vmem:[#allocation3 + $0x114] sm:$0xff]
      %v5209 = vld [vmem:[#allocation3 + $0x11c] sm:$0xf]
      %v5210 = vld [vmem:[%s1 + $0x480] sm:$0xf]
      %v5211 = vld [vmem:[%s1 + $0x484] sm:$0xf]
      %v5212 = vld [vmem:[%s1 + $0x488] sm:$0xf]
      %v5213 = vld [vmem:[%s1 + $0x48c] sm:$0xf]
      %v5214 = vld [vmem:[%s1 + $0x490] sm:$0xf]
      %v5215 = vld [vmem:[%s1 + $0x494] sm:$0xf]
      %v5216 = vld [vmem:[%s1 + $0x498] sm:$0xf]
      %v5217 = vld [vmem:[%s1 + $0x49c] sm:$0xf]
      %v5218 = vld [vmem:[%s1 + $0x4a0] sm:$0xf]
      %v5219 = vld [vmem:[%s1 + $0x4a4] sm:$0xf]
      %v5220 = vld [vmem:[%s1 + $0x4a8] sm:$0xf]
      %v5221 = vld [vmem:[%s1 + $0x4ac] sm:$0xf]
      %v5222 = vld [vmem:[%s1 + $0x4b0] sm:$0xf]
      %v5223 = vld [vmem:[%s1 + $0x4b4] sm:$0xf]
      %v5224 = vld [vmem:[%s1 + $0x4b8] sm:$0xf]
      %v5225 = vld [vmem:[%s1 + $0x4bc] sm:$0xf]
      %v5226 = vld [vmem:[%s1 + $0x4c0] sm:$0xf]
      %v5227 = vld [vmem:[%s1 + $0x4c4] sm:$0xf]
      %v5228 = vld [vmem:[%s1 + $0x4c8] sm:$0xf]
      %v5229 = vld [vmem:[%s1 + $0x4cc] sm:$0xf]
      %v5230 = vld [vmem:[%s1 + $0x4d0] sm:$0xf]
      %v5231 = vld [vmem:[%s1 + $0x4d4] sm:$0xf]
      %v5232 = vld [vmem:[%s1 + $0x4d8] sm:$0xf]
      %v5233 = vld [vmem:[%s1 + $0x4dc] sm:$0xf]
      %v5234 = vld [vmem:[%s1 + $0x4e0] sm:$0xf]
      %v5235 = vld [vmem:[%s1 + $0x4e4] sm:$0xf]
      %v5236 = vld [vmem:[%s1 + $0x4e8] sm:$0xf]
      %v5237 = vld [vmem:[%s1 + $0x4ec] sm:$0xf]
      %v5238 = vld [vmem:[%s1 + $0x4f0] sm:$0xf]
      %v5239 = vld [vmem:[%s1 + $0x4f4] sm:$0xf]
      %v5240 = vld [vmem:[%s1 + $0x4f8] sm:$0xf]
      %v5241 = vld [vmem:[%s1 + $0x4fc] sm:$0xf]
      %v5242 = vld [vmem:[%s1 + $0x500] sm:$0xf]
      %v5243 = vld [vmem:[%s1 + $0x504] sm:$0xf]
      %v5244 = vld [vmem:[%s1 + $0x508] sm:$0xf]
      %v5245 = vld [vmem:[%s1 + $0x50c] sm:$0xf]
      %v5246 = vld [vmem:[%s1 + $0x510] sm:$0xf]
      %v5247 = vld [vmem:[%s1 + $0x514] sm:$0xf]
      %v5248 = vld [vmem:[%s1 + $0x518] sm:$0xf]
      %v5249 = vld [vmem:[%s1 + $0x51c] sm:$0xf]
      %v5250 = vld [vmem:[%s1 + $0x520] sm:$0xf]
      %v5251 = vld [vmem:[%s1 + $0x524] sm:$0xf]
      %v5252 = vld [vmem:[%s1 + $0x528] sm:$0xf]
      %v5253 = vld [vmem:[%s1 + $0x52c] sm:$0xf]
      %v5254 = vld [vmem:[%s1 + $0x530] sm:$0xf]
      %v5255 = vld [vmem:[%s1 + $0x534] sm:$0xf]
      %v5256 = vld [vmem:[%s1 + $0x538] sm:$0xf]
      %v5257 = vld [vmem:[%s1 + $0x53c] sm:$0xf]
      %v5258 = vld [vmem:[%s1 + $0x540] sm:$0xf]
      %v5259 = vld [vmem:[%s1 + $0x544] sm:$0xf]
      %v5260 = vld [vmem:[%s1 + $0x548] sm:$0xf]
      %v5261 = vld [vmem:[%s1 + $0x54c] sm:$0xf]
      %v5262 = vld [vmem:[%s1 + $0x550] sm:$0xf]
      %v5263 = vld [vmem:[%s1 + $0x554] sm:$0xf]
      %v5264 = vld [vmem:[%s1 + $0x558] sm:$0xf]
      %v5265 = vld [vmem:[%s1 + $0x55c] sm:$0xf]
      %v5266 = vld [vmem:[%s1 + $0x560] sm:$0xf]
      %v5267 = vld [vmem:[%s1 + $0x564] sm:$0xf]
      %v5268 = vld [vmem:[%s1 + $0x568] sm:$0xf]
      %v5269 = vld [vmem:[%s1 + $0x56c] sm:$0xf]
      %v5270 = vld [vmem:[%s1 + $0x570] sm:$0xf]
      %v5271 = vld [vmem:[%s1 + $0x574] sm:$0xf]
      %v5272 = vld [vmem:[%s1 + $0x578] sm:$0xf]
      %v5273 = vld [vmem:[%s1 + $0x57c] sm:$0xf]
      %v5274 = vld [vmem:[%s1 + $0x580] sm:$0xf]
      %v5275 = vld [vmem:[%s1 + $0x584] sm:$0xf]
      %v5276 = vld [vmem:[%s1 + $0x588] sm:$0xf]
      %v5277 = vld [vmem:[%s1 + $0x58c] sm:$0xf]
      %v5278 = vld [vmem:[%s1 + $0x590] sm:$0xf]
      %v5279 = vld [vmem:[%s1 + $0x594] sm:$0xf]
      %v5280 = vld [vmem:[%s1 + $0x598] sm:$0xf]
      %v5281 = vld [vmem:[%s1 + $0x59c] sm:$0xf]
      %v5282 = vld [vmem:[%s1 + $0x5a0] sm:$0xf]
      %v5283 = vld [vmem:[%s1 + $0x5a4] sm:$0xf]
      %v5284 = vld [vmem:[%s1 + $0x5a8] sm:$0xf]
      %v5285 = vld [vmem:[%s1 + $0x5ac] sm:$0xf]
      %v5286 = vld [vmem:[%s1 + $0x5b0] sm:$0xf]
      %v5287 = vld [vmem:[%s1 + $0x5b4] sm:$0xf]
      %v5288 = vld [vmem:[%s1 + $0x5b8] sm:$0xf]
      %v5289 = vld [vmem:[%s1 + $0x5bc] sm:$0xf]
      %v5290 = vld [vmem:[%s1 + $0x5c0] sm:$0xf]
      %v5291 = vld [vmem:[%s1 + $0x5c4] sm:$0xf]
      %v5292 = vld [vmem:[%s1 + $0x5c8] sm:$0xf]
      %v5293 = vld [vmem:[%s1 + $0x5cc] sm:$0xf]
      %v5294 = vld [vmem:[%s1 + $0x5d0] sm:$0xf]
      %v5295 = vld [vmem:[%s1 + $0x5d4] sm:$0xf]
      %v5296 = vld [vmem:[%s1 + $0x5d8] sm:$0xf]
      %v5297 = vld [vmem:[%s1 + $0x5dc] sm:$0xf]
      %v5298 = vld [vmem:[%s1 + $0x5e0] sm:$0xf]
      %v5299 = vld [vmem:[%s1 + $0x5e4] sm:$0xf]
      %v5300 = vld [vmem:[%s1 + $0x5e8] sm:$0xf]
      %v5301 = vld [vmem:[%s1 + $0x5ec] sm:$0xf]
      %v5302 = vld [vmem:[%s1 + $0x5f0] sm:$0xf]
      %v5303 = vld [vmem:[%s1 + $0x5f4] sm:$0xf]
      %v5304 = vld [vmem:[%s1 + $0x5f8] sm:$0xf]
      %v5305 = vld [vmem:[%s1 + $0x5fc] sm:$0xf]
      %v5306 = vld [vmem:[%s1 + $0x600] sm:$0xf]
      %v5307 = vld [vmem:[%s1 + $0x604] sm:$0xf]
      %v5308 = vld [vmem:[%s1 + $0x608] sm:$0xf]
      %v5309 = vld [vmem:[%s1 + $0x60c] sm:$0xf]
      %v5310 = vld [vmem:[%s1 + $0x610] sm:$0xf]
      %v5311 = vld [vmem:[%s1 + $0x614] sm:$0xf]
      %v5312 = vld [vmem:[%s1 + $0x618] sm:$0xf]
      %v5313 = vld [vmem:[%s1 + $0x61c] sm:$0xf]
      %v5314 = vld [vmem:[%s1 + $0x620] sm:$0xf]
      %v5315 = vld [vmem:[%s1 + $0x624] sm:$0xf]
      %v5316 = vld [vmem:[%s1 + $0x628] sm:$0xf]
      %v5317 = vld [vmem:[%s1 + $0x62c] sm:$0xf]
      %v5318 = vld [vmem:[%s1 + $0x630] sm:$0xf]
      %v5319 = vld [vmem:[%s1 + $0x634] sm:$0xf]
      %v5320 = vld [vmem:[%s1 + $0x638] sm:$0xf]
      %v5321 = vld [vmem:[%s1 + $0x63c] sm:$0xf]
      %v5322 = vld [vmem:[%s1 + $0x640] sm:$0xf]
      %v5323 = vld [vmem:[%s1 + $0x644] sm:$0xf]
      %v5324 = vld [vmem:[%s1 + $0x648] sm:$0xf]
      %v5325 = vld [vmem:[%s1 + $0x64c] sm:$0xf]
      %v5326 = vld [vmem:[%s1 + $0x650] sm:$0xf]
      %v5327 = vld [vmem:[%s1 + $0x654] sm:$0xf]
      %v5328 = vld [vmem:[%s1 + $0x658] sm:$0xf]
      %v5329 = vld [vmem:[%s1 + $0x65c] sm:$0xf]
      %v5330 = vld [vmem:[%s1 + $0x660] sm:$0xf]
      %v5331 = vld [vmem:[%s1 + $0x664] sm:$0xf]
      %v5332 = vld [vmem:[%s1 + $0x668] sm:$0xf]
      %v5333 = vld [vmem:[%s1 + $0x66c] sm:$0xf]
      %v5334 = vld [vmem:[%s1 + $0x670] sm:$0xf]
      %v5335 = vld [vmem:[%s1 + $0x674] sm:$0xf]
      %v5336 = vld [vmem:[%s1 + $0x678] sm:$0xf]
      %v5337 = vld [vmem:[%s1 + $0x67c] sm:$0xf]
      %v5338 = vld [vmem:[%s1 + $0x680] sm:$0xf]
      %v5339 = vld [vmem:[%s1 + $0x684] sm:$0xf]
      %v5340 = vld [vmem:[%s1 + $0x688] sm:$0xf]
      %v5341 = vld [vmem:[%s1 + $0x68c] sm:$0xf]
      %v5342 = vld [vmem:[%s1 + $0x690] sm:$0xf]
      %v5343 = vld [vmem:[%s1 + $0x694] sm:$0xf]
      %v5344 = vld [vmem:[%s1 + $0x698] sm:$0xf]
      %v5345 = vld [vmem:[%s1 + $0x69c] sm:$0xf]
      %v5346 = vld [vmem:[%s1 + $0x6a0] sm:$0xf]
      %v5347 = vld [vmem:[%s1 + $0x6a4] sm:$0xf]
      %v5348 = vld [vmem:[%s1 + $0x6a8] sm:$0xf]
      %v5349 = vld [vmem:[%s1 + $0x6ac] sm:$0xf]
      %v5350 = vld [vmem:[%s1 + $0x6b0] sm:$0xf]
      %v5351 = vld [vmem:[%s1 + $0x6b4] sm:$0xf]
      %v5352 = vld [vmem:[%s1 + $0x6b8] sm:$0xf]
      %v5353 = vld [vmem:[%s1 + $0x6bc] sm:$0xf]
      %v5394 = vunpack.c.l.b16 %v5170
      %v5395 = vunpack.c.h.b16 %v5170
      %v5396 = vunpack.c.l.b16 %v5171
      %v5397 = vunpack.c.h.b16 %v5171
      %v5398 = vunpack.c.l.b16 %v5172
      %v5399 = vunpack.c.h.b16 %v5172
      %v5400 = vunpack.c.l.b16 %v5173
      %v5401 = vunpack.c.h.b16 %v5173
      %v5402 = vunpack.c.l.b16 %v5174
      %v5403 = vunpack.c.l.b16 %v5175
      %v5404 = vunpack.c.h.b16 %v5175
      %v5405 = vunpack.c.l.b16 %v5176
      %v5406 = vunpack.c.h.b16 %v5176
      %v5407 = vunpack.c.l.b16 %v5177
      %v5408 = vunpack.c.h.b16 %v5177
      %v5409 = vunpack.c.l.b16 %v5178
      %v5410 = vunpack.c.h.b16 %v5178
      %v5411 = vunpack.c.l.b16 %v5179
      %v5412 = vunpack.c.l.b16 %v5180
      %v5413 = vunpack.c.h.b16 %v5180
      %v5414 = vunpack.c.l.b16 %v5181
      %v5415 = vunpack.c.h.b16 %v5181
      %v5416 = vunpack.c.l.b16 %v5182
      %v5417 = vunpack.c.h.b16 %v5182
      %v5418 = vunpack.c.l.b16 %v5183
      %v5419 = vunpack.c.h.b16 %v5183
      %v5420 = vunpack.c.l.b16 %v5184
      %v5421 = vunpack.c.l.b16 %v5185
      %v5422 = vunpack.c.h.b16 %v5185
      %v5423 = vunpack.c.l.b16 %v5186
      %v5424 = vunpack.c.h.b16 %v5186
      %v5425 = vunpack.c.l.b16 %v5187
      %v5426 = vunpack.c.h.b16 %v5187
      %v5427 = vunpack.c.l.b16 %v5188
      %v5428 = vunpack.c.h.b16 %v5188
      %v5429 = vunpack.c.l.b16 %v5189
      %v5430 = vunpack.c.l.b16 %v5190
      %v5431 = vunpack.c.h.b16 %v5190
      %v5432 = vunpack.c.l.b16 %v5191
      %v5433 = vunpack.c.h.b16 %v5191
      %v5434 = vunpack.c.l.b16 %v5192
      %v5435 = vunpack.c.h.b16 %v5192
      %v5436 = vunpack.c.l.b16 %v5193
      %v5437 = vunpack.c.h.b16 %v5193
      %v5438 = vunpack.c.l.b16 %v5194
      %v5439 = vunpack.c.l.b16 %v5195
      %v5440 = vunpack.c.h.b16 %v5195
      %v5441 = vunpack.c.l.b16 %v5196
      %v5442 = vunpack.c.h.b16 %v5196
      %v5443 = vunpack.c.l.b16 %v5197
      %v5444 = vunpack.c.h.b16 %v5197
      %v5445 = vunpack.c.l.b16 %v5198
      %v5446 = vunpack.c.h.b16 %v5198
      %v5447 = vunpack.c.l.b16 %v5199
      %v5448 = vunpack.c.l.b16 %v5200
      %v5449 = vunpack.c.h.b16 %v5200
      %v5450 = vunpack.c.l.b16 %v5201
      %v5451 = vunpack.c.h.b16 %v5201
      %v5452 = vunpack.c.l.b16 %v5202
      %v5453 = vunpack.c.h.b16 %v5202
      %v5454 = vunpack.c.l.b16 %v5203
      %v5455 = vunpack.c.h.b16 %v5203
      %v5456 = vunpack.c.l.b16 %v5204
      %v5457 = vunpack.c.l.b16 %v5205
      %v5458 = vunpack.c.h.b16 %v5205
      %v5459 = vunpack.c.l.b16 %v5206
      %v5460 = vunpack.c.h.b16 %v5206
      %v5461 = vunpack.c.l.b16 %v5207
      %v5462 = vunpack.c.h.b16 %v5207
      %v5463 = vunpack.c.l.b16 %v5208
      %v5464 = vunpack.c.h.b16 %v5208
      %v5465 = vunpack.c.l.b16 %v5209
      %v5466 = vpack.c.b16 %v5403, %v5394
      %v5467 = vpack.c.b16 %v5404, %v5395
      %v5468 = vpack.c.b16 %v5405, %v5396
      %v5469 = vpack.c.b16 %v5406, %v5397
      %v5470 = vpack.c.b16 %v5407, %v5398
      %v5471 = vpack.c.b16 %v5408, %v5399
      %v5472 = vpack.c.b16 %v5409, %v5400
      %v5473 = vpack.c.b16 %v5410, %v5401
      %v5474 = vpack.c.b16 %v5411, %v5402
      %v5475 = vpack.c.b16 %v5421, %v5412
      %v5476 = vpack.c.b16 %v5422, %v5413
      %v5477 = vpack.c.b16 %v5423, %v5414
      %v5478 = vpack.c.b16 %v5424, %v5415
      %v5479 = vpack.c.b16 %v5425, %v5416
      %v5480 = vpack.c.b16 %v5426, %v5417
      %v5481 = vpack.c.b16 %v5427, %v5418
      %v5482 = vpack.c.b16 %v5428, %v5419
      %v5483 = vpack.c.b16 %v5429, %v5420
      %v5484 = vpack.c.b16 %v5439, %v5430
      %v5485 = vpack.c.b16 %v5440, %v5431
      %v5486 = vpack.c.b16 %v5441, %v5432
      %v5487 = vpack.c.b16 %v5442, %v5433
      %v5488 = vpack.c.b16 %v5443, %v5434
      %v5489 = vpack.c.b16 %v5444, %v5435
      %v5490 = vpack.c.b16 %v5445, %v5436
      %v5491 = vpack.c.b16 %v5446, %v5437
      %v5492 = vpack.c.b16 %v5447, %v5438
      %v5493 = vpack.c.b16 %v5457, %v5448
      %v5494 = vpack.c.b16 %v5458, %v5449
      %v5495 = vpack.c.b16 %v5459, %v5450
      %v5496 = vpack.c.b16 %v5460, %v5451
      %v5497 = vpack.c.b16 %v5461, %v5452
      %v5498 = vpack.c.b16 %v5462, %v5453
      %v5499 = vpack.c.b16 %v5463, %v5454
      %v5500 = vpack.c.b16 %v5464, %v5455
      %v5501 = vpack.c.b16 %v5465, %v5456
      %v5682 = vunpack.c.l.b16 %v5210
      %v5683 = vunpack.c.l.b16 %v5211
      %v5684 = vunpack.c.l.b16 %v5212
      %v5685 = vunpack.c.l.b16 %v5213
      %v5686 = vunpack.c.l.b16 %v5214
      %v5687 = vunpack.c.l.b16 %v5215
      %v5688 = vunpack.c.l.b16 %v5216
      %v5689 = vunpack.c.l.b16 %v5217
      %v5690 = vunpack.c.l.b16 %v5218
      %v5691 = vunpack.c.l.b16 %v5219
      %v5692 = vunpack.c.l.b16 %v5220
      %v5693 = vunpack.c.l.b16 %v5221
      %v5694 = vunpack.c.l.b16 %v5222
      %v5695 = vunpack.c.l.b16 %v5223
      %v5696 = vunpack.c.l.b16 %v5224
      %v5697 = vunpack.c.l.b16 %v5225
      %v5698 = vunpack.c.l.b16 %v5226
      %v5699 = vunpack.c.l.b16 %v5227
      %v5700 = vunpack.c.l.b16 %v5228
      %v5701 = vunpack.c.l.b16 %v5229
      %v5702 = vunpack.c.l.b16 %v5230
      %v5703 = vunpack.c.l.b16 %v5231
      %v5704 = vunpack.c.l.b16 %v5232
      %v5705 = vunpack.c.l.b16 %v5233
      %v5706 = vunpack.c.l.b16 %v5234
      %v5707 = vunpack.c.l.b16 %v5235
      %v5708 = vunpack.c.l.b16 %v5236
      %v5709 = vunpack.c.l.b16 %v5237
      %v5710 = vunpack.c.l.b16 %v5238
      %v5711 = vunpack.c.l.b16 %v5239
      %v5712 = vunpack.c.l.b16 %v5240
      %v5713 = vunpack.c.l.b16 %v5241
      %v5714 = vunpack.c.l.b16 %v5242
      %v5715 = vunpack.c.l.b16 %v5243
      %v5716 = vunpack.c.l.b16 %v5244
      %v5717 = vunpack.c.l.b16 %v5245
      %v5718 = vunpack.c.l.b16 %v5246
      %v5719 = vunpack.c.l.b16 %v5247
      %v5720 = vunpack.c.l.b16 %v5248
      %v5721 = vunpack.c.l.b16 %v5249
      %v5722 = vunpack.c.l.b16 %v5250
      %v5723 = vunpack.c.l.b16 %v5251
      %v5724 = vunpack.c.l.b16 %v5252
      %v5725 = vunpack.c.l.b16 %v5253
      %v5726 = vunpack.c.l.b16 %v5254
      %v5727 = vunpack.c.l.b16 %v5255
      %v5728 = vunpack.c.l.b16 %v5256
      %v5729 = vunpack.c.l.b16 %v5257
      %v5730 = vunpack.c.l.b16 %v5258
      %v5731 = vunpack.c.l.b16 %v5259
      %v5732 = vunpack.c.l.b16 %v5260
      %v5733 = vunpack.c.l.b16 %v5261
      %v5734 = vunpack.c.l.b16 %v5262
      %v5735 = vunpack.c.l.b16 %v5263
      %v5736 = vunpack.c.l.b16 %v5264
      %v5737 = vunpack.c.l.b16 %v5265
      %v5738 = vunpack.c.l.b16 %v5266
      %v5739 = vunpack.c.l.b16 %v5267
      %v5740 = vunpack.c.l.b16 %v5268
      %v5741 = vunpack.c.l.b16 %v5269
      %v5742 = vunpack.c.l.b16 %v5270
      %v5743 = vunpack.c.l.b16 %v5271
      %v5744 = vunpack.c.l.b16 %v5272
      %v5745 = vunpack.c.l.b16 %v5273
      %v5746 = vunpack.c.l.b16 %v5274
      %v5747 = vunpack.c.l.b16 %v5275
      %v5748 = vunpack.c.l.b16 %v5276
      %v5749 = vunpack.c.l.b16 %v5277
      %v5750 = vunpack.c.l.b16 %v5278
      %v5751 = vunpack.c.l.b16 %v5279
      %v5752 = vunpack.c.l.b16 %v5280
      %v5753 = vunpack.c.l.b16 %v5281
      %v5754 = vunpack.c.l.b16 %v5282
      %v5755 = vunpack.c.l.b16 %v5283
      %v5756 = vunpack.c.l.b16 %v5284
      %v5757 = vunpack.c.l.b16 %v5285
      %v5758 = vunpack.c.l.b16 %v5286
      %v5759 = vunpack.c.l.b16 %v5287
      %v5760 = vunpack.c.l.b16 %v5288
      %v5761 = vunpack.c.l.b16 %v5289
      %v5762 = vunpack.c.l.b16 %v5290
      %v5763 = vunpack.c.l.b16 %v5291
      %v5764 = vunpack.c.l.b16 %v5292
      %v5765 = vunpack.c.l.b16 %v5293
      %v5766 = vunpack.c.l.b16 %v5294
      %v5767 = vunpack.c.l.b16 %v5295
      %v5768 = vunpack.c.l.b16 %v5296
      %v5769 = vunpack.c.l.b16 %v5297
      %v5770 = vunpack.c.l.b16 %v5298
      %v5771 = vunpack.c.l.b16 %v5299
      %v5772 = vunpack.c.l.b16 %v5300
      %v5773 = vunpack.c.l.b16 %v5301
      %v5774 = vunpack.c.l.b16 %v5302
      %v5775 = vunpack.c.l.b16 %v5303
      %v5776 = vunpack.c.l.b16 %v5304
      %v5777 = vunpack.c.l.b16 %v5305
      %v5778 = vunpack.c.l.b16 %v5306
      %v5779 = vunpack.c.l.b16 %v5307
      %v5780 = vunpack.c.l.b16 %v5308
      %v5781 = vunpack.c.l.b16 %v5309
      %v5782 = vunpack.c.l.b16 %v5310
      %v5783 = vunpack.c.l.b16 %v5311
      %v5784 = vunpack.c.l.b16 %v5312
      %v5785 = vunpack.c.l.b16 %v5313
      %v5786 = vunpack.c.l.b16 %v5314
      %v5787 = vunpack.c.l.b16 %v5315
      %v5788 = vunpack.c.l.b16 %v5316
      %v5789 = vunpack.c.l.b16 %v5317
      %v5790 = vunpack.c.l.b16 %v5318
      %v5791 = vunpack.c.l.b16 %v5319
      %v5792 = vunpack.c.l.b16 %v5320
      %v5793 = vunpack.c.l.b16 %v5321
      %v5794 = vunpack.c.l.b16 %v5322
      %v5795 = vunpack.c.l.b16 %v5323
      %v5796 = vunpack.c.l.b16 %v5324
      %v5797 = vunpack.c.l.b16 %v5325
      %v5798 = vunpack.c.l.b16 %v5326
      %v5799 = vunpack.c.l.b16 %v5327
      %v5800 = vunpack.c.l.b16 %v5328
      %v5801 = vunpack.c.l.b16 %v5329
      %v5802 = vunpack.c.l.b16 %v5330
      %v5803 = vunpack.c.l.b16 %v5331
      %v5804 = vunpack.c.l.b16 %v5332
      %v5805 = vunpack.c.l.b16 %v5333
      %v5806 = vunpack.c.l.b16 %v5334
      %v5807 = vunpack.c.l.b16 %v5335
      %v5808 = vunpack.c.l.b16 %v5336
      %v5809 = vunpack.c.l.b16 %v5337
      %v5810 = vunpack.c.l.b16 %v5338
      %v5811 = vunpack.c.l.b16 %v5339
      %v5812 = vunpack.c.l.b16 %v5340
      %v5813 = vunpack.c.l.b16 %v5341
      %v5814 = vunpack.c.l.b16 %v5342
      %v5815 = vunpack.c.l.b16 %v5343
      %v5816 = vunpack.c.l.b16 %v5344
      %v5817 = vunpack.c.l.b16 %v5345
      %v5818 = vunpack.c.l.b16 %v5346
      %v5819 = vunpack.c.l.b16 %v5347
      %v5820 = vunpack.c.l.b16 %v5348
      %v5821 = vunpack.c.l.b16 %v5349
      %v5822 = vunpack.c.l.b16 %v5350
      %v5823 = vunpack.c.l.b16 %v5351
      %v5824 = vunpack.c.l.b16 %v5352
      %v5825 = vunpack.c.l.b16 %v5353
      %v5826 = vpack.c.b16 %v5683, %v5682
      %v5827 = vpack.c.b16 %v5685, %v5684
      %v5828 = vpack.c.b16 %v5687, %v5686
      %v5829 = vpack.c.b16 %v5689, %v5688
      %v5830 = vpack.c.b16 %v5691, %v5690
      %v5831 = vpack.c.b16 %v5693, %v5692
      %v5832 = vpack.c.b16 %v5695, %v5694
      %v5833 = vpack.c.b16 %v5697, %v5696
      %v5834 = vpack.c.b16 %v5699, %v5698
      %v5835 = vpack.c.b16 %v5701, %v5700
      %v5836 = vpack.c.b16 %v5703, %v5702
      %v5837 = vpack.c.b16 %v5705, %v5704
      %v5838 = vpack.c.b16 %v5707, %v5706
      %v5839 = vpack.c.b16 %v5709, %v5708
      %v5840 = vpack.c.b16 %v5711, %v5710
      %v5841 = vpack.c.b16 %v5713, %v5712
      %v5842 = vpack.c.b16 %v5715, %v5714
      %v5843 = vpack.c.b16 %v5717, %v5716
      %v5844 = vpack.c.b16 %v5719, %v5718
      %v5845 = vpack.c.b16 %v5721, %v5720
      %v5846 = vpack.c.b16 %v5723, %v5722
      %v5847 = vpack.c.b16 %v5725, %v5724
      %v5848 = vpack.c.b16 %v5727, %v5726
      %v5849 = vpack.c.b16 %v5729, %v5728
      %v5850 = vpack.c.b16 %v5731, %v5730
      %v5851 = vpack.c.b16 %v5733, %v5732
      %v5852 = vpack.c.b16 %v5735, %v5734
      %v5853 = vpack.c.b16 %v5737, %v5736
      %v5854 = vpack.c.b16 %v5739, %v5738
      %v5855 = vpack.c.b16 %v5741, %v5740
      %v5856 = vpack.c.b16 %v5743, %v5742
      %v5857 = vpack.c.b16 %v5745, %v5744
      %v5858 = vpack.c.b16 %v5747, %v5746
      %v5859 = vpack.c.b16 %v5749, %v5748
      %v5860 = vpack.c.b16 %v5751, %v5750
      %v5861 = vpack.c.b16 %v5753, %v5752
      %v5862 = vpack.c.b16 %v5755, %v5754
      %v5863 = vpack.c.b16 %v5757, %v5756
      %v5864 = vpack.c.b16 %v5759, %v5758
      %v5865 = vpack.c.b16 %v5761, %v5760
      %v5866 = vpack.c.b16 %v5763, %v5762
      %v5867 = vpack.c.b16 %v5765, %v5764
      %v5868 = vpack.c.b16 %v5767, %v5766
      %v5869 = vpack.c.b16 %v5769, %v5768
      %v5870 = vpack.c.b16 %v5771, %v5770
      %v5871 = vpack.c.b16 %v5773, %v5772
      %v5872 = vpack.c.b16 %v5775, %v5774
      %v5873 = vpack.c.b16 %v5777, %v5776
      %v5874 = vpack.c.b16 %v5779, %v5778
      %v5875 = vpack.c.b16 %v5781, %v5780
      %v5876 = vpack.c.b16 %v5783, %v5782
      %v5877 = vpack.c.b16 %v5785, %v5784
      %v5878 = vpack.c.b16 %v5787, %v5786
      %v5879 = vpack.c.b16 %v5789, %v5788
      %v5880 = vpack.c.b16 %v5791, %v5790
      %v5881 = vpack.c.b16 %v5793, %v5792
      %v5882 = vpack.c.b16 %v5795, %v5794
      %v5883 = vpack.c.b16 %v5797, %v5796
      %v5884 = vpack.c.b16 %v5799, %v5798
      %v5885 = vpack.c.b16 %v5801, %v5800
      %v5886 = vpack.c.b16 %v5803, %v5802
      %v5887 = vpack.c.b16 %v5805, %v5804
      %v5888 = vpack.c.b16 %v5807, %v5806
      %v5889 = vpack.c.b16 %v5809, %v5808
      %v5890 = vpack.c.b16 %v5811, %v5810
      %v5891 = vpack.c.b16 %v5813, %v5812
      %v5892 = vpack.c.b16 %v5815, %v5814
      %v5893 = vpack.c.b16 %v5817, %v5816
      %v5894 = vpack.c.b16 %v5819, %v5818
      %v5895 = vpack.c.b16 %v5821, %v5820
      %v5896 = vpack.c.b16 %v5823, %v5822
      %v5897 = vpack.c.b16 %v5825, %v5824
      %5970 = vmatprep.subr.bf16.mxu0 0
      %5971 = vmatpush1.bf16.msra.mxu0 %v5833
      %5972 = vmatprep.subr.bf16.mxu0 0
      %5973 = vmatpush1.bf16.msra.mxu0 %v5832
      %5974 = vmatprep.subr.bf16.mxu0 0
      %5975 = vmatpush1.bf16.msra.mxu0 %v5831
      %5976 = vmatprep.subr.bf16.mxu0 0
      %5977 = vmatpush1.bf16.msra.mxu0 %v5830
      %5978 = vmatprep.subr.bf16.mxu0 0
      %5979 = vmatpush1.bf16.msra.mxu0 %v5829
      %5980 = vmatprep.subr.bf16.mxu0 0
      %5981 = vmatpush1.bf16.msra.mxu0 %v5828
      %5982 = vmatprep.subr.bf16.mxu0 0
      %5983 = vmatpush1.bf16.msra.mxu0 %v5827
      %5984 = vmatprep.subr.bf16.mxu0 0
      %5985 = vmatpush1.bf16.msra.mxu0 %v5826
      %5986 = vmatprep.subr.bf16.mxu0 0
      %5987 = vmatpush2.bf16.msra.mxu0 %v5841
      %5988 = vmatprep.subr.bf16.mxu0 0
      %5989 = vmatpush2.bf16.msra.mxu0 %v5840
      %5990 = vmatprep.subr.bf16.mxu0 0
      %5991 = vmatpush2.bf16.msra.mxu0 %v5839
      %5992 = vmatprep.subr.bf16.mxu0 0
      %5993 = vmatpush2.bf16.msra.mxu0 %v5838
      %5994 = vmatprep.subr.bf16.mxu0 0
      %5995 = vmatpush2.bf16.msra.mxu0 %v5837
      %5996 = vmatprep.subr.bf16.mxu0 0
      %5997 = vmatpush2.bf16.msra.mxu0 %v5836
      %5998 = vmatprep.subr.bf16.mxu0 0
      %5999 = vmatpush2.bf16.msra.mxu0 %v5835
      %6000 = vmatprep.subr.bf16.mxu0 0
      %6001 = vmatpush2.bf16.msra.mxu0 %v5834
      %6002 = vmatprep.mubr.bf16.mxu0 %v5467
      %6003 = vmatmul.mubr.bf16.gmra.mxu0 %v5466
      %v6004 = vpop.f32.mrf.mxu0
      %v6005 = vadd.f32 0.0, %v6004
      %v6006 = vpop.f32.mrf.mxu0
      %v6007 = vpop.f32.mrf.mxu0
      %v6008 = vadd.f32 0.0, %v6007
      %v6009 = vpop.f32.mrf.mxu0
      %6010 = vmatprep.mubr.bf16.mxu0 %v5476
      %6011 = vmatmul.mubr.bf16.gmra.mxu0 %v5475
      %v6012 = vpop.f32.mrf.mxu0
      %v6013 = vadd.f32 0.0, %v6012
      %v6014 = vpop.f32.mrf.mxu0
      %v6015 = vpop.f32.mrf.mxu0
      %v6016 = vadd.f32 0.0, %v6015
      %v6017 = vpop.f32.mrf.mxu0
      %6018 = vmatprep.mubr.bf16.mxu0 %v5485
      %6019 = vmatmul.mubr.bf16.gmra.mxu0 %v5484
      %v6020 = vpop.f32.mrf.mxu0
      %v6021 = vadd.f32 0.0, %v6020
      %v6022 = vpop.f32.mrf.mxu0
      %v6023 = vpop.f32.mrf.mxu0
      %v6024 = vadd.f32 0.0, %v6023
      %v6025 = vpop.f32.mrf.mxu0
      %6026 = vmatprep.mubr.bf16.mxu0 %v5494
      %6027 = vmatmul.mubr.bf16.gmra.mxu0 %v5493
      %v6028 = vpop.f32.mrf.mxu0
      %v6029 = vadd.f32 0.0, %v6028
      %v6030 = vpop.f32.mrf.mxu0
      %v6031 = vpop.f32.mrf.mxu0
      %v6032 = vadd.f32 0.0, %v6031
      %v6033 = vpop.f32.mrf.mxu0
      %6034 = vdwg.mxu0
      %6035 = vmatprep.subr.bf16.mxu0 0
      %6036 = vmatpush1.bf16.msra.mxu0 %v5849
      %6037 = vmatprep.subr.bf16.mxu0 0
      %6038 = vmatpush1.bf16.msra.mxu0 %v5848
      %6039 = vmatprep.subr.bf16.mxu0 0
      %6040 = vmatpush1.bf16.msra.mxu0 %v5847
      %6041 = vmatprep.subr.bf16.mxu0 0
      %6042 = vmatpush1.bf16.msra.mxu0 %v5846
      %6043 = vmatprep.subr.bf16.mxu0 0
      %6044 = vmatpush1.bf16.msra.mxu0 %v5845
      %6045 = vmatprep.subr.bf16.mxu0 0
      %6046 = vmatpush1.bf16.msra.mxu0 %v5844
      %6047 = vmatprep.subr.bf16.mxu0 0
      %6048 = vmatpush1.bf16.msra.mxu0 %v5843
      %6049 = vmatprep.subr.bf16.mxu0 0
      %6050 = vmatpush1.bf16.msra.mxu0 %v5842
      %6051 = vmatprep.subr.bf16.mxu0 0
      %6052 = vmatpush2.bf16.msra.mxu0 %v5857
      %6053 = vmatprep.subr.bf16.mxu0 0
      %6054 = vmatpush2.bf16.msra.mxu0 %v5856
      %6055 = vmatprep.subr.bf16.mxu0 0
      %6056 = vmatpush2.bf16.msra.mxu0 %v5855
      %6057 = vmatprep.subr.bf16.mxu0 0
      %6058 = vmatpush2.bf16.msra.mxu0 %v5854
      %6059 = vmatprep.subr.bf16.mxu0 0
      %6060 = vmatpush2.bf16.msra.mxu0 %v5853
      %6061 = vmatprep.subr.bf16.mxu0 0
      %6062 = vmatpush2.bf16.msra.mxu0 %v5852
      %6063 = vmatprep.subr.bf16.mxu0 0
      %6064 = vmatpush2.bf16.msra.mxu0 %v5851
      %6065 = vmatprep.subr.bf16.mxu0 0
      %6066 = vmatpush2.bf16.msra.mxu0 %v5850
      %6067 = vmatprep.mubr.bf16.mxu0 %v5469
      %6068 = vmatmul.mubr.bf16.gmra.mxu0 %v5468
      %v6069 = vpop.f32.mrf.mxu0
      %v6070 = vadd.f32 %v6005, %v6069
      %v6071 = vpop.f32.mrf.mxu0
      %v6072 = vpop.f32.mrf.mxu0
      %v6073 = vadd.f32 %v6008, %v6072
      %v6074 = vpop.f32.mrf.mxu0
      %6075 = vmatprep.mubr.bf16.mxu0 %v5478
      %6076 = vmatmul.mubr.bf16.gmra.mxu0 %v5477
      %v6077 = vpop.f32.mrf.mxu0
      %v6078 = vadd.f32 %v6013, %v6077
      %v6079 = vpop.f32.mrf.mxu0
      %v6080 = vpop.f32.mrf.mxu0
      %v6081 = vadd.f32 %v6016, %v6080
      %v6082 = vpop.f32.mrf.mxu0
      %6083 = vmatprep.mubr.bf16.mxu0 %v5487
      %6084 = vmatmul.mubr.bf16.gmra.mxu0 %v5486
      %v6085 = vpop.f32.mrf.mxu0
      %v6086 = vadd.f32 %v6021, %v6085
      %v6087 = vpop.f32.mrf.mxu0
      %v6088 = vpop.f32.mrf.mxu0
      %v6089 = vadd.f32 %v6024, %v6088
      %v6090 = vpop.f32.mrf.mxu0
      %6091 = vmatprep.mubr.bf16.mxu0 %v5496
      %6092 = vmatmul.mubr.bf16.gmra.mxu0 %v5495
      %v6093 = vpop.f32.mrf.mxu0
      %v6094 = vadd.f32 %v6029, %v6093
      %v6095 = vpop.f32.mrf.mxu0
      %v6096 = vpop.f32.mrf.mxu0
      %v6097 = vadd.f32 %v6032, %v6096
      %v6098 = vpop.f32.mrf.mxu0
      %6099 = vdwg.mxu0
      %6100 = vmatprep.subr.bf16.mxu0 0
      %6101 = vmatpush1.bf16.msra.mxu0 %v5865
      %6102 = vmatprep.subr.bf16.mxu0 0
      %6103 = vmatpush1.bf16.msra.mxu0 %v5864
      %6104 = vmatprep.subr.bf16.mxu0 0
      %6105 = vmatpush1.bf16.msra.mxu0 %v5863
      %6106 = vmatprep.subr.bf16.mxu0 0
      %6107 = vmatpush1.bf16.msra.mxu0 %v5862
      %6108 = vmatprep.subr.bf16.mxu0 0
      %6109 = vmatpush1.bf16.msra.mxu0 %v5861
      %6110 = vmatprep.subr.bf16.mxu0 0
      %6111 = vmatpush1.bf16.msra.mxu0 %v5860
      %6112 = vmatprep.subr.bf16.mxu0 0
      %6113 = vmatpush1.bf16.msra.mxu0 %v5859
      %6114 = vmatprep.subr.bf16.mxu0 0
      %6115 = vmatpush1.bf16.msra.mxu0 %v5858
      %6116 = vmatprep.subr.bf16.mxu0 0
      %6117 = vmatpush2.bf16.msra.mxu0 %v5873
      %6118 = vmatprep.subr.bf16.mxu0 0
      %6119 = vmatpush2.bf16.msra.mxu0 %v5872
      %6120 = vmatprep.subr.bf16.mxu0 0
      %6121 = vmatpush2.bf16.msra.mxu0 %v5871
      %6122 = vmatprep.subr.bf16.mxu0 0
      %6123 = vmatpush2.bf16.msra.mxu0 %v5870
      %6124 = vmatprep.subr.bf16.mxu0 0
      %6125 = vmatpush2.bf16.msra.mxu0 %v5869
      %6126 = vmatprep.subr.bf16.mxu0 0
      %6127 = vmatpush2.bf16.msra.mxu0 %v5868
      %6128 = vmatprep.subr.bf16.mxu0 0
      %6129 = vmatpush2.bf16.msra.mxu0 %v5867
      %6130 = vmatprep.subr.bf16.mxu0 0
      %6131 = vmatpush2.bf16.msra.mxu0 %v5866
      %6132 = vmatprep.mubr.bf16.mxu0 %v5471
      %6133 = vmatmul.mubr.bf16.gmra.mxu0 %v5470
      %v6134 = vpop.f32.mrf.mxu0
      %v6135 = vadd.f32 %v6070, %v6134
      %v6136 = vpop.f32.mrf.mxu0
      %v6137 = vpop.f32.mrf.mxu0
      %v6138 = vadd.f32 %v6073, %v6137
      %v6139 = vpop.f32.mrf.mxu0
      %6140 = vmatprep.mubr.bf16.mxu0 %v5480
      %6141 = vmatmul.mubr.bf16.gmra.mxu0 %v5479
      %v6142 = vpop.f32.mrf.mxu0
      %v6143 = vadd.f32 %v6078, %v6142
      %v6144 = vpop.f32.mrf.mxu0
      %v6145 = vpop.f32.mrf.mxu0
      %v6146 = vadd.f32 %v6081, %v6145
      %v6147 = vpop.f32.mrf.mxu0
      %6148 = vmatprep.mubr.bf16.mxu0 %v5489
      %6149 = vmatmul.mubr.bf16.gmra.mxu0 %v5488
      %v6150 = vpop.f32.mrf.mxu0
      %v6151 = vadd.f32 %v6086, %v6150
      %v6152 = vpop.f32.mrf.mxu0
      %v6153 = vpop.f32.mrf.mxu0
      %v6154 = vadd.f32 %v6089, %v6153
      %v6155 = vpop.f32.mrf.mxu0
      %6156 = vmatprep.mubr.bf16.mxu0 %v5498
      %6157 = vmatmul.mubr.bf16.gmra.mxu0 %v5497
      %v6158 = vpop.f32.mrf.mxu0
      %v6159 = vadd.f32 %v6094, %v6158
      %v6160 = vpop.f32.mrf.mxu0
      %v6161 = vpop.f32.mrf.mxu0
      %v6162 = vadd.f32 %v6097, %v6161
      %v6163 = vpop.f32.mrf.mxu0
      %6164 = vdwg.mxu0
      %6165 = vmatprep.subr.bf16.mxu0 0
      %6166 = vmatpush1.bf16.msra.mxu0 %v5881
      %6167 = vmatprep.subr.bf16.mxu0 0
      %6168 = vmatpush1.bf16.msra.mxu0 %v5880
      %6169 = vmatprep.subr.bf16.mxu0 0
      %6170 = vmatpush1.bf16.msra.mxu0 %v5879
      %6171 = vmatprep.subr.bf16.mxu0 0
      %6172 = vmatpush1.bf16.msra.mxu0 %v5878
      %6173 = vmatprep.subr.bf16.mxu0 0
      %6174 = vmatpush1.bf16.msra.mxu0 %v5877
      %6175 = vmatprep.subr.bf16.mxu0 0
      %6176 = vmatpush1.bf16.msra.mxu0 %v5876
      %6177 = vmatprep.subr.bf16.mxu0 0
      %6178 = vmatpush1.bf16.msra.mxu0 %v5875
      %6179 = vmatprep.subr.bf16.mxu0 0
      %6180 = vmatpush1.bf16.msra.mxu0 %v5874
      %6181 = vmatprep.subr.bf16.mxu0 0
      %6182 = vmatpush2.bf16.msra.mxu0 %v5889
      %6183 = vmatprep.subr.bf16.mxu0 0
      %6184 = vmatpush2.bf16.msra.mxu0 %v5888
      %6185 = vmatprep.subr.bf16.mxu0 0
      %6186 = vmatpush2.bf16.msra.mxu0 %v5887
      %6187 = vmatprep.subr.bf16.mxu0 0
      %6188 = vmatpush2.bf16.msra.mxu0 %v5886
      %6189 = vmatprep.subr.bf16.mxu0 0
      %6190 = vmatpush2.bf16.msra.mxu0 %v5885
      %6191 = vmatprep.subr.bf16.mxu0 0
      %6192 = vmatpush2.bf16.msra.mxu0 %v5884
      %6193 = vmatprep.subr.bf16.mxu0 0
      %6194 = vmatpush2.bf16.msra.mxu0 %v5883
      %6195 = vmatprep.subr.bf16.mxu0 0
      %6196 = vmatpush2.bf16.msra.mxu0 %v5882
      %6197 = vmatprep.mubr.bf16.mxu0 %v5473
      %6198 = vmatmul.mubr.bf16.gmra.mxu0 %v5472
      %v6199 = vpop.f32.mrf.mxu0
      %v6200 = vadd.f32 %v6135, %v6199
      %v6201 = vpop.f32.mrf.mxu0
      %v6202 = vpop.f32.mrf.mxu0
      %v6203 = vadd.f32 %v6138, %v6202
      %v6204 = vpop.f32.mrf.mxu0
      %6205 = vmatprep.mubr.bf16.mxu0 %v5482
      %6206 = vmatmul.mubr.bf16.gmra.mxu0 %v5481
      %v6207 = vpop.f32.mrf.mxu0
      %v6208 = vadd.f32 %v6143, %v6207
      %v6209 = vpop.f32.mrf.mxu0
      %v6210 = vpop.f32.mrf.mxu0
      %v6211 = vadd.f32 %v6146, %v6210
      %v6212 = vpop.f32.mrf.mxu0
      %6213 = vmatprep.mubr.bf16.mxu0 %v5491
      %6214 = vmatmul.mubr.bf16.gmra.mxu0 %v5490
      %v6215 = vpop.f32.mrf.mxu0
      %v6216 = vadd.f32 %v6151, %v6215
      %v6217 = vpop.f32.mrf.mxu0
      %v6218 = vpop.f32.mrf.mxu0
      %v6219 = vadd.f32 %v6154, %v6218
      %v6220 = vpop.f32.mrf.mxu0
      %6221 = vmatprep.mubr.bf16.mxu0 %v5500
      %6222 = vmatmul.mubr.bf16.gmra.mxu0 %v5499
      %v6223 = vpop.f32.mrf.mxu0
      %v6224 = vadd.f32 %v6159, %v6223
      %v6225 = vpop.f32.mrf.mxu0
      %v6226 = vpop.f32.mrf.mxu0
      %v6227 = vadd.f32 %v6162, %v6226
      %v6228 = vpop.f32.mrf.mxu0
      %6229 = vdwg.mxu0
      %6230 = vmatprep.subr.bf16.mxu0 0
      %6231 = vmatpush1.bf16.msra.mxu0 %v5897
      %6232 = vmatprep.subr.bf16.mxu0 0
      %6233 = vmatpush1.bf16.msra.mxu0 %v5896
      %6234 = vmatprep.subr.bf16.mxu0 0
      %6235 = vmatpush1.bf16.msra.mxu0 %v5895
      %6236 = vmatprep.subr.bf16.mxu0 0
      %6237 = vmatpush1.bf16.msra.mxu0 %v5894
      %6238 = vmatprep.subr.bf16.mxu0 0
      %6239 = vmatpush1.bf16.msra.mxu0 %v5893
      %6240 = vmatprep.subr.bf16.mxu0 0
      %6241 = vmatpush1.bf16.msra.mxu0 %v5892
      %6242 = vmatprep.subr.bf16.mxu0 0
      %6243 = vmatpush1.bf16.msra.mxu0 %v5891
      %6244 = vmatprep.subr.bf16.mxu0 0
      %6245 = vmatpush1.bf16.msra.mxu0 %v5890
      %6246 = vmatprep.subr.bf16.mxu0 0
      %6247 = vmatpush2.bf16.msra.mxu0 0
      %6248 = vmatprep.subr.bf16.mxu0 0
      %6249 = vmatpush2.bf16.msra.mxu0 0
      %6250 = vmatprep.subr.bf16.mxu0 0
      %6251 = vmatpush2.bf16.msra.mxu0 0
      %6252 = vmatprep.subr.bf16.mxu0 0
      %6253 = vmatpush2.bf16.msra.mxu0 0
      %6254 = vmatprep.subr.bf16.mxu0 0
      %6255 = vmatpush2.bf16.msra.mxu0 0
      %6256 = vmatprep.subr.bf16.mxu0 0
      %6257 = vmatpush2.bf16.msra.mxu0 0
      %6258 = vmatprep.subr.bf16.mxu0 0
      %6259 = vmatpush2.bf16.msra.mxu0 0
      %6260 = vmatprep.subr.bf16.mxu0 0
      %6261 = vmatpush2.bf16.msra.mxu0 0
      %6262 = vmatprep.mubr.bf16.mxu0 0
      %6263 = vmatmul.mubr.bf16.gmra.mxu0 %v5474
      %v6264 = vpop.f32.mrf.mxu0
      %v6265 = vadd.f32 %v6200, %v6264
      %v6266 = vpop.f32.mrf.mxu0
      %v6267 = vpop.f32.mrf.mxu0
      %v6268 = vadd.f32 %v6203, %v6267
      %v6269 = vpop.f32.mrf.mxu0
      %6270 = vmatprep.mubr.bf16.mxu0 0
      %6271 = vmatmul.mubr.bf16.gmra.mxu0 %v5483
      %v6272 = vpop.f32.mrf.mxu0
      %v6273 = vadd.f32 %v6208, %v6272
      %v6274 = vpop.f32.mrf.mxu0
      %v6275 = vpop.f32.mrf.mxu0
      %v6276 = vadd.f32 %v6211, %v6275
      %v6277 = vpop.f32.mrf.mxu0
      %6278 = vmatprep.mubr.bf16.mxu0 0
      %6279 = vmatmul.mubr.bf16.gmra.mxu0 %v5492
      %v6280 = vpop.f32.mrf.mxu0
      %v6281 = vadd.f32 %v6216, %v6280
      %v6282 = vpop.f32.mrf.mxu0
      %v6283 = vpop.f32.mrf.mxu0
      %v6284 = vadd.f32 %v6219, %v6283
      %v6285 = vpop.f32.mrf.mxu0
      %6286 = vmatprep.mubr.bf16.mxu0 0
      %6287 = vmatmul.mubr.bf16.gmra.mxu0 %v5501
      %v6288 = vpop.f32.mrf.mxu0
      %v6289 = vadd.f32 %v6224, %v6288
      %v6290 = vpop.f32.mrf.mxu0
      %v6291 = vpop.f32.mrf.mxu0
      %v6292 = vadd.f32 %v6227, %v6291
      %v6293 = vpop.f32.mrf.mxu0
      %6294 = vdwg.mxu0
      %v6295 = vadd.f32 %v4051, %v6265
      %v6296 = vadd.f32 %v4052, %v6268
      %v6297 = vadd.f32 %v4053, %v6273
      %v6298 = vadd.f32 %v4054, %v6276
      %v6299 = vadd.f32 %v4055, %v6281
      %v6300 = vadd.f32 %v4056, %v6284
      %v6301 = vadd.f32 %v4057, %v6289
      %v6302 = vadd.f32 %v4058, %v6292
      %v6303 = vld [vmem:[%s3] sm:$0x1]
      %v6305 = vlaneseq
      %v6306 = vshrl.u32 %v6305, 7
      %v6307 = vsub.s32 0, %v6306
      %v6308 = vrot.slane %v6303, %v6307
      %v6310 = vmul.f32 %v6295, %v6308
      %v6311 = vmul.f32 %v6296, %v6308
      %v6312 = vmul.f32 %v6297, %v6308
      %v6313 = vmul.f32 %v6298, %v6308
      %v6314 = vmul.f32 %v6299, %v6308
      %v6315 = vmul.f32 %v6300, %v6308
      %v6316 = vmul.f32 %v6301, %v6308
      %v6317 = vmul.f32 %v6302, %v6308
      %v6318 = vld [vmem:[%s4] sm:$0x1]
      %v6320 = vlaneseq
      %v6321 = vshrl.u32 %v6320, 7
      %v6322 = vsub.s32 0, %v6321
      %v6323 = vrot.slane %v6318, %v6322
      %v6325 = vadd.f32 %v6310, %v6323
      %v6326 = vadd.f32 %v6311, %v6323
      %v6327 = vadd.f32 %v6312, %v6323
      %v6328 = vadd.f32 %v6313, %v6323
      %v6329 = vadd.f32 %v6314, %v6323
      %v6330 = vadd.f32 %v6315, %v6323
      %v6331 = vadd.f32 %v6316, %v6323
      %v6332 = vadd.f32 %v6317, %v6323
      %v6333 = vmax.f32 %v6325, 0.0
      %v6334 = vmax.f32 %v6326, 0.0
      %v6335 = vmax.f32 %v6327, 0.0
      %v6336 = vmax.f32 %v6328, 0.0
      %v6337 = vmax.f32 %v6329, 0.0
      %v6338 = vmax.f32 %v6330, 0.0
      %v6339 = vmax.f32 %v6331, 0.0
      %v6340 = vmax.f32 %v6332, 0.0
      %v6341 = vpack.c.bf16 %v6333, %v6333
      %v6342 = vpack.c.bf16 %v6334, %v6334
      %v6343 = vpack.c.bf16 %v6335, %v6335
      %v6344 = vpack.c.bf16 %v6336, %v6336
      %v6345 = vpack.c.bf16 %v6337, %v6337
      %v6346 = vpack.c.bf16 %v6338, %v6338
      %v6347 = vpack.c.bf16 %v6339, %v6339
      %v6348 = vpack.c.bf16 %v6340, %v6340
      %6349 = vst [vmem:[%s246] sm:$0xf] %v6341
      %6350 = vst [vmem:[%s246 + $0x4] sm:$0xf] %v6342
      %6351 = vst [vmem:[%s246 + $0x8] sm:$0xf] %v6343
      %6352 = vst [vmem:[%s246 + $0xc] sm:$0xf] %v6344
      %6353 = vst [vmem:[%s246 + $0x10] sm:$0xf] %v6345
      %6354 = vst [vmem:[%s246 + $0x14] sm:$0xf] %v6346
      %6355 = vst [vmem:[%s246 + $0x18] sm:$0xf] %v6347
      %6356 = vst [vmem:[%s246 + $0x1c] sm:$0xf] %v6348
      %s6357 = smul.u32 8, %s21
      %p6358 = scmp.lt.s32.totalorder %s20, 1
      %s6359 = scalar_select %p6358, %s20, 1
      %p6360 = scmp.lt.s32.totalorder %s6357, 7
      %s6361 = scalar_select %p6360, %s6357, 7
      %s6362 = smul.addr %s6359, 8
      %s6363 = sadd.s32 %s6361, %s6362
      %s6364 = smul.addr %s6363, 4
      %s6365 = scalar_lea.vmem %s5, %s6364
      // Predicated region
      $region57: #{inception_forward.5} parent=39 // pred_check
        %p6366 = pneg %p158
      $region58: #{inception_forward.5} parent=39 // pred_check_branch
        %6368 = sbr.rel (%p6366) target = $region60
      $region59: #{inception_forward.5} parent=39 // pred_region
        %s6369 = smul.u32 8, %s21
      $region60: #{inception_forward.5} parent=39 // pred_fallthru
        _
    $region40: #{inception_forward.5} parent=5 // pred_fallthru
      _
    %p6370 = scmp.le.s32.totalorder 2, %s11
    // Predicated region
    $region61: #{inception_forward.5} parent=5 // pred_check
      %p6371 = pneg %p6370
    $region62: #{inception_forward.5} parent=5 // pred_check_branch
      %6373 = sbr.rel (%p6371) target = $region64
    $region63: #{inception_forward.5} parent=5 // pred_region
      %s6374 = ssub.s32 %s11, 2
      // Predicated region
      $region65: #{inception_forward.5} parent=63 // pred_check
        %p6375 = pneg %p164
      $region66: #{inception_forward.5} parent=63 // pred_check_branch
        %6377 = sbr.rel (%p6375) target = $region68
      $region67: #{inception_forward.5} parent=63 // pred_region
        %s6378 = smul.u32 8, %s23
        %p6379 = scmp.lt.s32.totalorder %s22, 1
        %s6380 = scalar_select %p6379, %s22, 1
        %p6381 = scmp.lt.s32.totalorder %s6378, 7
        %s6382 = scalar_select %p6381, %s6378, 7
        %s6383 = smul.addr %s6380, 8
        %s6384 = sadd.s32 %s6382, %s6383
        %s6385 = smul.addr %s6384, 4
        %s6386 = scalar_lea.vmem %s5, %s6385
      $region68: #{inception_forward.5} parent=63 // pred_fallthru
        _
    $region64: #{inception_forward.5} parent=5 // pred_fallthru
      _
  $region6: #{inception_forward.5} parent=0 // loop_footer
    %s15 = sadd.s32 1, %s11
  $region7: #{inception_forward.5} parent=0 // loop_footer_branch
    %10 = sbr.rel target = $region3
  $region8: #{inception_forward.5} parent=0 // loop_exit
    _

</llo_original>
